<compile_context>
chip_gen: v7x
topology: tpu7x:2x2x1
jax: 0.10.0
libtpu: 0.0.40
codegen_flags: <defaults>
</compile_context>

<pallas_src>
import math

import jax
import jax.numpy as jnp
from jax.experimental import pallas as pl
from jax.experimental.pallas import tpu as pltpu

# ---------------- model configuration (small test sizes) ----------------
PATCH = (2, 2)
IN_CHANNELS = 4
HIDDEN = 128                 # lane-dense hidden size (multiple of 128)
DEPTH = 2
NUM_HEADS = 4
HEAD_DIM = HIDDEN // NUM_HEADS
FREQ_DIM = 256               # TimestepEmbedder frequency_embedding_size
PATCH_DIM = PATCH[0] * PATCH[1] * IN_CHANNELS
OUT_PATCH = PATCH[0] * PATCH[1] * IN_CHANNELS
MLP_RATIO = 4
EPS = 1e-6
LANE = 128
TILE_TARGET = 512            # L-tile target for mem-bound fused kernels (v5e/v6e)
ATTN_TILE = 256              # q/kv tile target for flash attention
COMPUTE = jnp.bfloat16       # MXU operand dtype; accumulation is always f32
ACT_DTYPE = jnp.bfloat16     # inter-kernel activation dtype (halves HBM traffic)


def _vmem_limit_bytes():
    """Generation-aware scoped-VMEM budget (v5e/v6e: 128 MiB, v7x: 64 MiB)."""
    try:
        cap = int(pltpu.get_tpu_info().vmem_capacity_bytes)
        if cap > 0:
            return int(min(cap * 3 // 4, 96 * 1024 * 1024))
    except Exception:
        pass
    return 48 * 1024 * 1024


VMEM_LIMIT = _vmem_limit_bytes()


def _cparams(sem):
    return pltpu.CompilerParams(dimension_semantics=sem,
                                vmem_limit_bytes=VMEM_LIMIT)


def _pick_tile(n, target=TILE_TARGET, align=8):
    """Largest tile <= target that divides n and is a multiple of align (else n)."""
    if n <= target:
        return n
    t = (target // align) * align
    while t >= align:
        if n % t == 0:
            return t
        t -= align
    return n


def _layernorm(x):
    mean = jnp.mean(x, axis=-1, keepdims=True)
    var = jnp.mean(jnp.square(x - mean), axis=-1, keepdims=True)
    return (x - mean) * jax.lax.rsqrt(var + EPS)


# ---------------- fused Pallas kernels ----------------

def _embed_kernel(x_ref, w_ref, b_ref, g_ref, bt_ref, o_ref):
    # fused Linear + affine LayerNorm
    x = x_ref[0]
    h = jnp.dot(x.astype(COMPUTE), w_ref[...],
                preferred_element_type=jnp.float32) + b_ref[...]
    h = _layernorm(h) * g_ref[...] + bt_ref[...]
    o_ref[0] = h.astype(o_ref.dtype)


def embed_pallas(x, w, b, gamma, beta):
    """Sequential(Linear, LayerNorm) embedder.  x: (B, L, P) f32 -> (B, L, D) bf16."""
    B, L, P = x.shape
    D = w.shape[1]
    tl = _pick_tile(L)
    return pl.pallas_call(
        _embed_kernel,
        out_shape=jax.ShapeDtypeStruct((B, L, D), ACT_DTYPE),
        grid=(B, L // tl),
        in_specs=[pl.BlockSpec((1, tl, P), lambda b, l: (b, l, 0)),
                  pl.BlockSpec((P, D), lambda b, l: (0, 0)),
                  pl.BlockSpec((1, D), lambda b, l: (0, 0)),
                  pl.BlockSpec((1, D), lambda b, l: (0, 0)),
                  pl.BlockSpec((1, D), lambda b, l: (0, 0))],
        out_specs=pl.BlockSpec((1, tl, D), lambda b, l: (b, l, 0)),
        compiler_params=_cparams(("parallel", "parallel")),
    )(x, w, b, gamma, beta)


def _ln_mod_matmul_kernel(x_ref, sh_ref, sc_ref, w_ref, b_ref, o_ref):
    x = x_ref[0].astype(jnp.float32)
    xm = _layernorm(x) * (1.0 + sc_ref[0]) + sh_ref[0]
    o = jnp.dot(xm.astype(COMPUTE), w_ref[...],
                preferred_element_type=jnp.float32) + b_ref[...]
    o_ref[0] = o.astype(o_ref.dtype)


def ln_mod_matmul_pallas(x, shift, scale, w, b, out_dtype=ACT_DTYPE):
    """out = modulate(LN_no_affine(x), shift, scale) @ w + b, fully fused.

    x: (B, L, D); shift/scale: (B, 1, D); w bf16 (D, N); b (1, N).
    """
    B, L, D = x.shape
    N = w.shape[1]
    tl = _pick_tile(L)
    return pl.pallas_call(
        _ln_mod_matmul_kernel,
        out_shape=jax.ShapeDtypeStruct((B, L, N), out_dtype),
        grid=(B, L // tl),
        in_specs=[pl.BlockSpec((1, tl, D), lambda b, l: (b, l, 0)),
                  pl.BlockSpec((1, 1, D), lambda b, l: (b, 0, 0)),
                  pl.BlockSpec((1, 1, D), lambda b, l: (b, 0, 0)),
                  pl.BlockSpec((D, N), lambda b, l: (0, 0)),
                  pl.BlockSpec((1, N), lambda b, l: (0, 0))],
        out_specs=pl.BlockSpec((1, tl, N), lambda b, l: (b, l, 0)),
        compiler_params=_cparams(("parallel", "parallel")),
    )(x, shift, scale, w, b)


def flash_attention_pallas(q, k, v):
    """Flash-style joint self-attention.

    q/k/v: (B, H, L, Dh) bf16, head-major, q pre-scaled (Dh^-0.5 folded into Wq).
    Grid (B, H, q_tile, kv_tile) with online softmax; only (tq, tk) scores live in
    VMEM at any time.  Returns (B, H, L, Dh) bf16.
    """
    B, H, L, Dh = q.shape
    tq = _pick_tile(L, target=ATTN_TILE)
    tk = _pick_tile(L, target=ATTN_TILE)

    def kernel(q_ref, k_ref, v_ref, o_ref, m_ref, l_ref, acc_ref):
        ki = pl.program_id(3)

        @pl.when(ki == 0)
        def _():
            m_ref[...] = jnp.full(m_ref.shape, -jnp.inf, jnp.float32)
            l_ref[...] = jnp.zeros(l_ref.shape, jnp.float32)
            acc_ref[...] = jnp.zeros(acc_ref.shape, jnp.float32)

        qt = q_ref[0, 0]                      # (tq, Dh) bf16 (pre-scaled)
        kt = k_ref[0, 0]                      # (tk, Dh) bf16
        vt = v_ref[0, 0]                      # (tk, Dh) bf16
        s = jax.lax.dot_general(qt, kt, (((1,), (1,)), ((), ())),
                                preferred_element_type=jnp.float32)   # (tq, tk)
        m_prev = m_ref[...]
        m_new = jnp.maximum(m_prev, jnp.max(s, axis=-1, keepdims=True))
        alpha = jnp.exp(m_prev - m_new)
        p = jnp.exp(s - m_new)
        l_ref[...] = alpha * l_ref[...] + jnp.sum(p, axis=-1, keepdims=True)
        acc_ref[...] = alpha * acc_ref[...] + jnp.dot(
            p.astype(vt.dtype), vt, preferred_element_type=jnp.float32)
        m_ref[...] = m_new

        @pl.when(ki == pl.num_programs(3) - 1)
        def _():
            o_ref[0, 0] = (acc_ref[...] *
                           pl.reciprocal(l_ref[...], approx=True)).astype(o_ref.dtype)

    return pl.pallas_call(
        kernel,
        out_shape=jax.ShapeDtypeStruct((B, H, L, Dh), ACT_DTYPE),
        grid=(B, H, L // tq, L // tk),
        in_specs=[pl.BlockSpec((1, 1, tq, Dh), lambda b, h, qi, ki: (b, h, qi, 0)),
                  pl.BlockSpec((1, 1, tk, Dh), lambda b, h, qi, ki: (b, h, ki, 0)),
                  pl.BlockSpec((1, 1, tk, Dh), lambda b, h, qi, ki: (b, h, ki, 0))],
        out_specs=pl.BlockSpec((1, 1, tq, Dh), lambda b, h, qi, ki: (b, h, qi, 0)),
        scratch_shapes=[pltpu.VMEM((tq, 1), jnp.float32),
                        pltpu.VMEM((tq, 1), jnp.float32),
                        pltpu.VMEM((tq, Dh), jnp.float32)],
        compiler_params=_cparams(("parallel", "parallel", "parallel", "arbitrary")),
    )(q, k, v)


def _proj_mlp_kernel(attn_ref, wo_ref, bo_ref, res_ref,
                     gmsa_ref, shm_ref, scm_ref, gmlp_ref,
                     w1_ref, b1_ref, w2_ref, b2_ref, o_ref):
    # head merge + output projection without any transpose: sum_h attn[h] @ Wo[h]
    H = attn_ref.shape[1]
    acc = jnp.dot(attn_ref[0, 0], wo_ref[0], preferred_element_type=jnp.float32)
    for h in range(1, H):
        acc = acc + jnp.dot(attn_ref[0, h], wo_ref[h],
                            preferred_element_type=jnp.float32)
    y = acc + bo_ref[...]
    # gated residual after attention (stays in registers)
    h1 = res_ref[0].astype(jnp.float32) + gmsa_ref[0] * y
    # LN + modulate + MLP + gated residual
    xm = _layernorm(h1) * (1.0 + scm_ref[0]) + shm_ref[0]
    hid = jnp.dot(xm.astype(COMPUTE), w1_ref[...],
                  preferred_element_type=jnp.float32) + b1_ref[...]
    hid = jax.nn.gelu(hid, approximate=True)
    mlp = jnp.dot(hid.astype(COMPUTE), w2_ref[...],
                  preferred_element_type=jnp.float32) + b2_ref[...]
    o_ref[0] = (h1 + gmlp_ref[0] * mlp).astype(o_ref.dtype)


def proj_mlp_residual_pallas(attn, l_offset, res, wo, bo,
                             gate_msa, shift_mlp, scale_mlp, gate_mlp,
                             w1, b1, w2, b2):
    """res + gate_msa*(attn @ Wo + bo) -> LN/mod -> MLP -> + gate_mlp*... fused.

    attn: (B, H, L_joint, Dh) bf16;  res: (B, Ls, D) bf16;  l_offset: element offset
    of this stream inside the joint sequence (multiple of the L tile).
    """
    B, H, Lj, Dh = attn.shape
    _, Ls, D = res.shape
    Dm = w1.shape[1]
    tl = _pick_tile(Ls)
    assert Ls % tl == 0 and l_offset % tl == 0, (Ls, tl, l_offset)
    off = l_offset // tl
    return pl.pallas_call(
        _proj_mlp_kernel,
        out_shape=jax.ShapeDtypeStruct((B, Ls, D), ACT_DTYPE),
        grid=(B, Ls // tl),
        in_specs=[pl.BlockSpec((1, H, tl, Dh), lambda b, l: (b, 0, l + off, 0)),
                  pl.BlockSpec((H, Dh, D), lambda b, l: (0, 0, 0)),
                  pl.BlockSpec((1, D), lambda b, l: (0, 0)),
                  pl.BlockSpec((1, tl, D), lambda b, l: (b, l, 0)),
                  pl.BlockSpec((1, 1, D), lambda b, l: (b, 0, 0)),
                  pl.BlockSpec((1, 1, D), lambda b, l: (b, 0, 0)),
                  pl.BlockSpec((1, 1, D), lambda b, l: (b, 0, 0)),
                  pl.BlockSpec((1, 1, D), lambda b, l: (b, 0, 0)),
                  pl.BlockSpec((D, Dm), lambda b, l: (0, 0)),
                  pl.BlockSpec((1, Dm), lambda b, l: (0, 0)),
                  pl.BlockSpec((Dm, D), lambda b, l: (0, 0)),
                  pl.BlockSpec((1, D), lambda b, l: (0, 0))],
        out_specs=pl.BlockSpec((1, tl, D), lambda b, l: (b, l, 0)),
        compiler_params=_cparams(("parallel", "parallel")),
    )(attn, wo, bo, res, gate_msa, shift_mlp, scale_mlp, gate_mlp, w1, b1, w2, b2)


# ---------------- parameter init (deterministic, synthetic, pre-cast) ----------------

def _nrm(key, shape, std=0.02):
    return std * jax.random.normal(key, shape, jnp.float32)


def init_params(key):
    D, H, Dh = HIDDEN, NUM_HEADS, HEAD_DIM
    Dm = MLP_RATIO * D
    P = PATCH_DIM
    keys = iter(jax.random.split(key, 32 + 8 * DEPTH))

    def nk():
        return next(keys)

    def embedder():
        return dict(w=_nrm(nk(), (P, D)).astype(COMPUTE),
                    b=jnp.zeros((1, D), jnp.float32),
                    gamma=jnp.ones((1, D), jnp.float32),
                    beta=jnp.zeros((1, D), jnp.float32))

    # final-layer linear padded to a lane-dense (D, 128) slab; real cols are [:OUT_PATCH]
    wl = jnp.zeros((D, LANE), jnp.float32).at[:, :OUT_PATCH].set(_nrm(nk(), (D, OUT_PATCH)))

    params = {
        "cond_embedder": embedder(),
        "x_embedder": embedder(),
        "prompt_embed": _nrm(nk(), (1, D)),
        "answer_embed": _nrm(nk(), (1, D)),
        "t_embedder": dict(w1=_nrm(nk(), (FREQ_DIM, D)), b1=jnp.zeros((D,)),
                           w2=_nrm(nk(), (D, D)), b2=jnp.zeros((D,))),
        "final": dict(wa=_nrm(nk(), (D, 2 * D)), ba=jnp.zeros((2 * D,)),
                      wl=wl.astype(COMPUTE), bl=jnp.zeros((1, LANE), jnp.float32)),
        "blocks": [],
    }

    scale = Dh ** -0.5
    for _ in range(DEPTH):
        wqkv = _nrm(nk(), (D, 3 * D))
        wqkv = wqkv.at[:, :D].multiply(scale)          # fold softmax scale into Wq
        wo = _nrm(nk(), (D, D)).reshape(H, Dh, D)      # head-major Wo: no merge transpose
        params["blocks"].append(dict(
            wm_c=_nrm(nk(), (D, 6 * D)), bm_c=jnp.zeros((6 * D,)),
            wm_x=_nrm(nk(), (D, 6 * D)), bm_x=jnp.zeros((6 * D,)),
            wqkv=wqkv.astype(COMPUTE), bqkv=jnp.zeros((1, 3 * D), jnp.float32),
            wo=wo.astype(COMPUTE), bo=jnp.zeros((1, D), jnp.float32),
            wf1=_nrm(nk(), (D, Dm)).astype(COMPUTE), bf1=jnp.zeros((1, Dm), jnp.float32),
            wf2=_nrm(nk(), (Dm, D)).astype(COMPUTE), bf2=jnp.zeros((1, D), jnp.float32),
        ))
    return params


# ---------------- forward ----------------

def timestep_frequency_embedding(t, dim=FREQ_DIM, max_period=10000.0):
    half = dim // 2
    freqs = jnp.exp(-math.log(max_period) * jnp.arange(half, dtype=jnp.float32) / half)
    args = t.astype(jnp.float32)[:, None] * freqs[None, :]
    return jnp.concatenate([jnp.cos(args), jnp.sin(args)], axis=-1)


def _adaln(t_vec, w, b):
    """adaLN modulation head (tiny): silu(t) @ w + b, done in plain jnp."""
    B = t_vec.shape[0]
    mod = jax.nn.silu(t_vec) @ w + b                 # (B, 6D)
    return mod.reshape(B, -1, 1, HIDDEN)             # (B, n, 1, D)


def block_forward(p, cond, x, t_cond, t_x):
    B, Lc, _ = cond.shape
    Lx = x.shape[1]
    L = Lc + Lx

    # [shift_msa, scale_msa, gate_msa, shift_mlp, scale_mlp, gate_mlp]
    mod_c = _adaln(t_cond, p["wm_c"], p["bm_c"])
    mod_x = _adaln(t_x, p["wm_x"], p["bm_x"])

    # fused LN + modulate + QKV projection (weights shared across streams, bf16 out)
    qkv_c = ln_mod_matmul_pallas(cond, mod_c[:, 0], mod_c[:, 1], p["wqkv"], p["bqkv"])
    qkv_x = ln_mod_matmul_pallas(x, mod_x[:, 0], mod_x[:, 1], p["wqkv"], p["bqkv"])

    # JAX-level layout plumbing (one fused concat+transpose per block, bf16):
    # joint sequence, head-major q/k/v — no in-kernel head split/merge or concat.
    qkv = jnp.concatenate([qkv_c, qkv_x], axis=1)                       # (B, L, 3D)
    qkv = jnp.transpose(qkv.reshape(B, L, 3, NUM_HEADS, HEAD_DIM),
                        (2, 0, 3, 1, 4))                                # (3, B, H, L, Dh)
    attn = flash_attention_pallas(qkv[0], qkv[1], qkv[2])               # (B, H, L, Dh)

    # fused Wo projection + gated residual + LN + modulate + MLP + gated residual
    cond = proj_mlp_residual_pallas(attn, 0, cond, p["wo"], p["bo"],
                                    mod_c[:, 2], mod_c[:, 3], mod_c[:, 4], mod_c[:, 5],
                                    p["wf1"], p["bf1"], p["wf2"], p["bf2"])
    x = proj_mlp_residual_pallas(attn, Lc, x, p["wo"], p["bo"],
                                 mod_x[:, 2], mod_x[:, 3], mod_x[:, 4], mod_x[:, 5],
                                 p["wf1"], p["bf1"], p["wf2"], p["bf2"])
    return cond, x


def final_layer_forward(p, x, t_x):
    B = x.shape[0]
    mod = (jax.nn.silu(t_x) @ p["wa"] + p["ba"]).reshape(B, 2, 1, HIDDEN)
    # lane-dense (.., 128) output slab; real channels sliced off outside the kernel
    y = ln_mod_matmul_pallas(x, mod[:, 0], mod[:, 1], p["wl"], p["bl"],
                             out_dtype=jnp.float32)
    return y[:, :, :OUT_PATCH]


def lavindit_forward(params, x, t, cond):
    B, T_c, Hh, Ww, C = cond.shape
    T_x = x.shape[1]
    ph, pw = PATCH
    out_c = IN_CHANNELS

    cond = cond.reshape(B, T_c * Hh * Ww, C)
    x = x.reshape(B, T_x * Hh * Ww, C)

    cond = embed_pallas(cond, **params["cond_embedder"])     # (B, Lc, D) bf16
    x = embed_pallas(x, **params["x_embedder"])               # (B, Lx, D) bf16

    te = params["t_embedder"]
    temb = timestep_frequency_embedding(t)                    # tiny: plain jnp
    temb = jax.nn.silu(temb @ te["w1"] + te["b1"]) @ te["w2"] + te["b2"]   # (B, D)

    t_cond = temb + params["prompt_embed"]
    t_x = temb + params["answer_embed"]

    for blk in params["blocks"]:
        cond, x = block_forward(blk, cond, x, t_cond, t_x)

    x = final_layer_forward(params["final"], x, t_x)          # (B, Lx, ph*pw*c) f32

    # rearrange 'B (T_x H W) (ph pw c) -> B c T_x (H ph) (W pw)'
    x = x.reshape(B, T_x, Hh, Ww, ph, pw, out_c)
    x = jnp.transpose(x, (0, 6, 1, 2, 4, 3, 5))
    x = x.reshape(B, out_c, T_x, Hh * ph, Ww * pw)
    return x.astype(jnp.float32)


# ---------------- demo ----------------

if __name__ == "__main__":
    key = jax.random.PRNGKey(0)
    kp, kx, kc, kt = jax.random.split(key, 4)
    params = init_params(kp)

    B, T_c, T_x, Hh, Ww = 2, 2, 2, 4, 4
    x = jax.random.normal(kx, (B, T_x, Hh, Ww, PATCH_DIM), jnp.float32)
    cond = jax.random.normal(kc, (B, T_c, Hh, Ww, PATCH_DIM), jnp.float32)
    t = jax.random.uniform(kt, (B,), jnp.float32) * 1000.0

    out = jax.jit(lavindit_forward)(params, x, t, cond)
    out = jax.block_until_ready(out)

    expected_shape = (B, IN_CHANNELS, T_x, Hh * PATCH[0], Ww * PATCH[1])
    assert out.shape == expected_shape, (out.shape, expected_shape)
    assert out.dtype == jnp.float32
    assert bool(jnp.all(jnp.isfinite(out)))
    print("KERNEL_OK")
</pallas_src>

<mosaic_0001>
module attributes {stable_mosaic.version = 11 : i64} {
  func.func @_ln_mod_matmul_kernel(%arg0: i32, %arg1: i32, %arg2: memref<1x32x128xbf16, #tpu.memory_space<vmem>>, %arg3: memref<1x1x128xf32, #tpu.memory_space<vmem>>, %arg4: memref<1x1x128xf32, #tpu.memory_space<vmem>>, %arg5: memref<128x384xbf16, #tpu.memory_space<vmem>>, %arg6: memref<1x384xf32, #tpu.memory_space<vmem>>, %arg7: memref<1x32x384xbf16, #tpu.memory_space<vmem>>) attributes {dimension_semantics = [#tpu.dimension_semantics<parallel>, #tpu.dimension_semantics<parallel>], iteration_bounds = array<i64: 2, 1>, scalar_prefetch = 0 : i64, scratch_operands = 0 : i64, tpu.core_type = #tpu.core_type<tc>, window_params = [{transform_indices = @transform_0, window_bounds = array<i64: 1, 32, 128>}, {transform_indices = @transform_1, window_bounds = array<i64: 1, 1, 128>}, {transform_indices = @transform_2, window_bounds = array<i64: 1, 1, 128>}, {pipeline_mode = #tpu.pipeline_mode<synchronous>, transform_indices = @transform_3, window_bounds = array<i64: 128, 384>}, {pipeline_mode = #tpu.pipeline_mode<synchronous>, transform_indices = @transform_4, window_bounds = array<i64: 1, 384>}, {transform_indices = @transform_5, window_bounds = array<i64: 1, 32, 384>}]} {
    %c0 = arith.constant 0 : index
    %c0_0 = arith.constant 0 : index
    %c0_1 = arith.constant 0 : index
    %0 = vector.load %arg2[%c0, %c0_0, %c0_1] : memref<1x32x128xbf16, #tpu.memory_space<vmem>>, vector<1x32x128xbf16>
    %1 = vector.shape_cast %0 : vector<1x32x128xbf16> to vector<32x128xbf16>
    %2 = arith.extf %1 : vector<32x128xbf16> to vector<32x128xf32>
    %cst = arith.constant dense<0.000000e+00> : vector<32xf32>
    %3 = vector.multi_reduction <add>, %2, %cst [1] : vector<32x128xf32> to vector<32xf32>
    %4 = vector.shape_cast %3 : vector<32xf32> to vector<32x1xf32>
    %cst_2 = arith.constant 1.280000e+02 : f32
    %5 = vector.broadcast %cst_2 : f32 to vector<32x1xf32>
    %6 = arith.divf %4, %5 : vector<32x1xf32>
    %7 = vector.broadcast %6 : vector<32x1xf32> to vector<32x128xf32>
    %8 = arith.subf %2, %7 : vector<32x128xf32>
    %9 = arith.mulf %8, %8 : vector<32x128xf32>
    %cst_3 = arith.constant dense<0.000000e+00> : vector<32xf32>
    %10 = vector.multi_reduction <add>, %9, %cst_3 [1] : vector<32x128xf32> to vector<32xf32>
    %11 = vector.shape_cast %10 : vector<32xf32> to vector<32x1xf32>
    %cst_4 = arith.constant 1.280000e+02 : f32
    %12 = vector.broadcast %cst_4 : f32 to vector<32x1xf32>
    %13 = arith.divf %11, %12 : vector<32x1xf32>
    %14 = vector.broadcast %6 : vector<32x1xf32> to vector<32x128xf32>
    %15 = arith.subf %2, %14 : vector<32x128xf32>
    %cst_5 = arith.constant 9.99999997E-7 : f32
    %16 = vector.broadcast %cst_5 : f32 to vector<32x1xf32>
    %17 = arith.addf %13, %16 : vector<32x1xf32>
    %18 = math.rsqrt %17 : vector<32x1xf32>
    %19 = vector.broadcast %18 : vector<32x1xf32> to vector<32x128xf32>
    %20 = arith.mulf %15, %19 : vector<32x128xf32>
    %c0_6 = arith.constant 0 : index
    %c0_7 = arith.constant 0 : index
    %c0_8 = arith.constant 0 : index
    %21 = vector.load %arg4[%c0_6, %c0_7, %c0_8] : memref<1x1x128xf32, #tpu.memory_space<vmem>>, vector<1x1x128xf32>
    %22 = vector.shape_cast %21 : vector<1x1x128xf32> to vector<1x128xf32>
    %cst_9 = arith.constant 1.000000e+00 : f32
    %23 = vector.broadcast %cst_9 : f32 to vector<1x128xf32>
    %24 = arith.addf %23, %22 : vector<1x128xf32>
    %25 = vector.broadcast %24 : vector<1x128xf32> to vector<32x128xf32>
    %26 = arith.mulf %20, %25 : vector<32x128xf32>
    %c0_10 = arith.constant 0 : index
    %c0_11 = arith.constant 0 : index
    %c0_12 = arith.constant 0 : index
    %27 = vector.load %arg3[%c0_10, %c0_11, %c0_12] : memref<1x1x128xf32, #tpu.memory_space<vmem>>, vector<1x1x128xf32>
    %28 = vector.shape_cast %27 : vector<1x1x128xf32> to vector<1x128xf32>
    %29 = vector.broadcast %28 : vector<1x128xf32> to vector<32x128xf32>
    %30 = arith.addf %26, %29 : vector<32x128xf32>
    %31 = arith.truncf %30 : vector<32x128xf32> to vector<32x128xbf16>
    %c0_13 = arith.constant 0 : index
    %c0_14 = arith.constant 0 : index
    %32 = vector.load %arg5[%c0_13, %c0_14] : memref<128x384xbf16, #tpu.memory_space<vmem>>, vector<128x384xbf16>
    %cst_15 = arith.constant dense<0.000000e+00> : vector<32x384xf32>
    %33 = tpu.matmul %31, %32, %cst_15 {dimension_numbers = #tpu.dot_dimension_numbers<[1], [0], [0], [1], [0, 0, 1, 1], [], []>} : vector<32x128xbf16>, vector<128x384xbf16>, vector<32x384xf32> -> vector<32x384xf32>
    %c0_16 = arith.constant 0 : index
    %c0_17 = arith.constant 0 : index
    %34 = vector.load %arg6[%c0_16, %c0_17] : memref<1x384xf32, #tpu.memory_space<vmem>>, vector<1x384xf32>
    %35 = vector.broadcast %34 : vector<1x384xf32> to vector<32x384xf32>
    %36 = arith.addf %33, %35 : vector<32x384xf32>
    %37 = arith.truncf %36 : vector<32x384xf32> to vector<32x384xbf16>
    %c0_18 = arith.constant 0 : index
    %c0_19 = arith.constant 0 : index
    %c0_20 = arith.constant 0 : index
    %38 = vector.load %arg7[%c0_18, %c0_19, %c0_20] : memref<1x32x384xbf16, #tpu.memory_space<vmem>>, vector<1x32x384xbf16>
    %39 = vector.shape_cast %38 : vector<1x32x384xbf16> to vector<32x384xbf16>
    %40 = vector.shape_cast %37 : vector<32x384xbf16> to vector<1x32x384xbf16>
    tpu.vector_store %arg7[%c0_18, %c0_19, %c0_20], %40 {strides = array<i32>} : memref<1x32x384xbf16, #tpu.memory_space<vmem>>, vector<1x32x384xbf16>,
    return
  }
  func.func @transform_0(%arg0: i32, %arg1: i32) -> (i32, i32, i32) {
    %c0_i32 = arith.constant 0 : i32
    %c0_i32_0 = arith.constant 0 : i32
    return %arg0, %arg1, %c0_i32 : i32, i32, i32
  }
  func.func @transform_1(%arg0: i32, %arg1: i32) -> (i32, i32, i32) {
    %c0_i32 = arith.constant 0 : i32
    %c0_i32_0 = arith.constant 0 : i32
    %c0_i32_1 = arith.constant 0 : i32
    return %arg0, %c0_i32, %c0_i32_0 : i32, i32, i32
  }
  func.func @transform_2(%arg0: i32, %arg1: i32) -> (i32, i32, i32) {
    %c0_i32 = arith.constant 0 : i32
    %c0_i32_0 = arith.constant 0 : i32
    %c0_i32_1 = arith.constant 0 : i32
    return %arg0, %c0_i32, %c0_i32_0 : i32, i32, i32
  }
  func.func @transform_3(%arg0: i32, %arg1: i32) -> (i32, i32) {
    %c0_i32 = arith.constant 0 : i32
    %c0_i32_0 = arith.constant 0 : i32
    %c0_i32_1 = arith.constant 0 : i32
    return %c0_i32, %c0_i32_0 : i32, i32
  }
  func.func @transform_4(%arg0: i32, %arg1: i32) -> (i32, i32) {
    %c0_i32 = arith.constant 0 : i32
    %c0_i32_0 = arith.constant 0 : i32
    %c0_i32_1 = arith.constant 0 : i32
    return %c0_i32, %c0_i32_0 : i32, i32
  }
  func.func @transform_5(%arg0: i32, %arg1: i32) -> (i32, i32, i32) {
    %c0_i32 = arith.constant 0 : i32
    %c0_i32_0 = arith.constant 0 : i32
    return %arg0, %arg1, %c0_i32 : i32, i32, i32
  }
}

module attributes {stable_mosaic.version = 11 : i64} {
  func.func @_embed_kernel(%arg0: i32, %arg1: i32, %arg2: memref<1x32x16xf32, #tpu.memory_space<vmem>>, %arg3: memref<16x128xbf16, #tpu.memory_space<vmem>>, %arg4: memref<1x128xf32, #tpu.memory_space<vmem>>, %arg5: memref<1x128xf32, #tpu.memory_space<vmem>>, %arg6: memref<1x128xf32, #tpu.memory_space<vmem>>, %arg7: memref<1x32x128xbf16, #tpu.memory_space<vmem>>) attributes {dimension_semantics = [#tpu.dimension_semantics<parallel>, #tpu.dimension_semantics<parallel>], iteration_bounds = array<i64: 2, 1>, scalar_prefetch = 0 : i64, scratch_operands = 0 : i64, tpu.core_type = #tpu.core_type<tc>, window_params = [{transform_indices = @transform_0, window_bounds = array<i64: 1, 32, 16>}, {pipeline_mode = #tpu.pipeline_mode<synchronous>, transform_indices = @transform_1, window_bounds = array<i64: 16, 128>}, {pipeline_mode = #tpu.pipeline_mode<synchronous>, transform_indices = @transform_2, window_bounds = array<i64: 1, 128>}, {pipeline_mode = #tpu.pipeline_mode<synchronous>, transform_indices = @transform_3, window_bounds = array<i64: 1, 128>}, {pipeline_mode = #tpu.pipeline_mode<synchronous>, transform_indices = @transform_4, window_bounds = array<i64: 1, 128>}, {transform_indices = @transform_5, window_bounds = array<i64: 1, 32, 128>}]} {
    %c0 = arith.constant 0 : index
    %c0_0 = arith.constant 0 : index
    %c0_1 = arith.constant 0 : index
    %0 = vector.load %arg2[%c0, %c0_0, %c0_1] : memref<1x32x16xf32, #tpu.memory_space<vmem>>, vector<1x32x16xf32>
    %1 = vector.shape_cast %0 : vector<1x32x16xf32> to vector<32x16xf32>
    %2 = arith.truncf %1 : vector<32x16xf32> to vector<32x16xbf16>
    %c0_2 = arith.constant 0 : index
    %c0_3 = arith.constant 0 : index
    %3 = vector.load %arg3[%c0_2, %c0_3] : memref<16x128xbf16, #tpu.memory_space<vmem>>, vector<16x128xbf16>
    %cst = arith.constant dense<0.000000e+00> : vector<32x128xf32>
    %4 = tpu.matmul %2, %3, %cst {dimension_numbers = #tpu.dot_dimension_numbers<[1], [0], [0], [1], [0, 0, 1, 1], [], []>} : vector<32x16xbf16>, vector<16x128xbf16>, vector<32x128xf32> -> vector<32x128xf32>
    %c0_4 = arith.constant 0 : index
    %c0_5 = arith.constant 0 : index
    %5 = vector.load %arg4[%c0_4, %c0_5] : memref<1x128xf32, #tpu.memory_space<vmem>>, vector<1x128xf32>
    %6 = vector.broadcast %5 : vector<1x128xf32> to vector<32x128xf32>
    %7 = arith.addf %4, %6 : vector<32x128xf32>
    %cst_6 = arith.constant dense<0.000000e+00> : vector<32xf32>
    %8 = vector.multi_reduction <add>, %7, %cst_6 [1] : vector<32x128xf32> to vector<32xf32>
    %9 = vector.shape_cast %8 : vector<32xf32> to vector<32x1xf32>
    %cst_7 = arith.constant 1.280000e+02 : f32
    %10 = vector.broadcast %cst_7 : f32 to vector<32x1xf32>
    %11 = arith.divf %9, %10 : vector<32x1xf32>
    %12 = vector.broadcast %11 : vector<32x1xf32> to vector<32x128xf32>
    %13 = arith.subf %7, %12 : vector<32x128xf32>
    %14 = arith.mulf %13, %13 : vector<32x128xf32>
    %cst_8 = arith.constant dense<0.000000e+00> : vector<32xf32>
    %15 = vector.multi_reduction <add>, %14, %cst_8 [1] : vector<32x128xf32> to vector<32xf32>
    %16 = vector.shape_cast %15 : vector<32xf32> to vector<32x1xf32>
    %cst_9 = arith.constant 1.280000e+02 : f32
    %17 = vector.broadcast %cst_9 : f32 to vector<32x1xf32>
    %18 = arith.divf %16, %17 : vector<32x1xf32>
    %19 = vector.broadcast %11 : vector<32x1xf32> to vector<32x128xf32>
    %20 = arith.subf %7, %19 : vector<32x128xf32>
    %cst_10 = arith.constant 9.99999997E-7 : f32
    %21 = vector.broadcast %cst_10 : f32 to vector<32x1xf32>
    %22 = arith.addf %18, %21 : vector<32x1xf32>
    %23 = math.rsqrt %22 : vector<32x1xf32>
    %24 = vector.broadcast %23 : vector<32x1xf32> to vector<32x128xf32>
    %25 = arith.mulf %20, %24 : vector<32x128xf32>
    %c0_11 = arith.constant 0 : index
    %c0_12 = arith.constant 0 : index
    %26 = vector.load %arg5[%c0_11, %c0_12] : memref<1x128xf32, #tpu.memory_space<vmem>>, vector<1x128xf32>
    %27 = vector.broadcast %26 : vector<1x128xf32> to vector<32x128xf32>
    %28 = arith.mulf %25, %27 : vector<32x128xf32>
    %c0_13 = arith.constant 0 : index
    %c0_14 = arith.constant 0 : index
    %29 = vector.load %arg6[%c0_13, %c0_14] : memref<1x128xf32, #tpu.memory_space<vmem>>, vector<1x128xf32>
    %30 = vector.broadcast %29 : vector<1x128xf32> to vector<32x128xf32>
    %31 = arith.addf %28, %30 : vector<32x128xf32>
    %32 = arith.truncf %31 : vector<32x128xf32> to vector<32x128xbf16>
    %c0_15 = arith.constant 0 : index
    %c0_16 = arith.constant 0 : index
    %c0_17 = arith.constant 0 : index
    %33 = vector.load %arg7[%c0_15, %c0_16, %c0_17] : memref<1x32x128xbf16, #tpu.memory_space<vmem>>, vector<1x32x128xbf16>
    %34 = vector.shape_cast %33 : vector<1x32x128xbf16> to vector<32x128xbf16>
    %35 = vector.shape_cast %32 : vector<32x128xbf16> to vector<1x32x128xbf16>
    tpu.vector_store %arg7[%c0_15, %c0_16, %c0_17], %35 {strides = array<i32>} : memref<1x32x128xbf16, #tpu.memory_space<vmem>>, vector<1x32x128xbf16>,
    return
  }
  func.func @transform_0(%arg0: i32, %arg1: i32) -> (i32, i32, i32) {
    %c0_i32 = arith.constant 0 : i32
    %c0_i32_0 = arith.constant 0 : i32
    return %arg0, %arg1, %c0_i32 : i32, i32, i32
  }
  func.func @transform_1(%arg0: i32, %arg1: i32) -> (i32, i32) {
    %c0_i32 = arith.constant 0 : i32
    %c0_i32_0 = arith.constant 0 : i32
    %c0_i32_1 = arith.constant 0 : i32
    return %c0_i32, %c0_i32_0 : i32, i32
  }
  func.func @transform_2(%arg0: i32, %arg1: i32) -> (i32, i32) {
    %c0_i32 = arith.constant 0 : i32
    %c0_i32_0 = arith.constant 0 : i32
    %c0_i32_1 = arith.constant 0 : i32
    return %c0_i32, %c0_i32_0 : i32, i32
  }
  func.func @transform_3(%arg0: i32, %arg1: i32) -> (i32, i32) {
    %c0_i32 = arith.constant 0 : i32
    %c0_i32_0 = arith.constant 0 : i32
    %c0_i32_1 = arith.constant 0 : i32
    return %c0_i32, %c0_i32_0 : i32, i32
  }
  func.func @transform_4(%arg0: i32, %arg1: i32) -> (i32, i32) {
    %c0_i32 = arith.constant 0 : i32
    %c0_i32_0 = arith.constant 0 : i32
    %c0_i32_1 = arith.constant 0 : i32
    return %c0_i32, %c0_i32_0 : i32, i32
  }
  func.func @transform_5(%arg0: i32, %arg1: i32) -> (i32, i32, i32) {
    %c0_i32 = arith.constant 0 : i32
    %c0_i32_0 = arith.constant 0 : i32
    return %arg0, %arg1, %c0_i32 : i32, i32, i32
  }
}

module attributes {stable_mosaic.version = 11 : i64} {
  func.func @kernel(%arg0: i32, %arg1: i32, %arg2: i32, %arg3: i32, %arg4: memref<1x1x64x32xbf16, #tpu.memory_space<vmem>>, %arg5: memref<1x1x64x32xbf16, #tpu.memory_space<vmem>>, %arg6: memref<1x1x64x32xbf16, #tpu.memory_space<vmem>>, %arg7: memref<1x1x64x32xbf16, #tpu.memory_space<vmem>>, %arg8: memref<64x1xf32, #tpu.memory_space<vmem>>, %arg9: memref<64x1xf32, #tpu.memory_space<vmem>>, %arg10: memref<64x32xf32, #tpu.memory_space<vmem>>) attributes {dimension_semantics = [#tpu.dimension_semantics<parallel>, #tpu.dimension_semantics<parallel>, #tpu.dimension_semantics<parallel>, #tpu.dimension_semantics<arbitrary>], iteration_bounds = array<i64: 2, 4, 1, 1>, scalar_prefetch = 0 : i64, scratch_operands = 3 : i64, tpu.core_type = #tpu.core_type<tc>, window_params = [{transform_indices = @transform_0, window_bounds = array<i64: 1, 1, 64, 32>}, {transform_indices = @transform_1, window_bounds = array<i64: 1, 1, 64, 32>}, {transform_indices = @transform_2, window_bounds = array<i64: 1, 1, 64, 32>}, {transform_indices = @transform_3, window_bounds = array<i64: 1, 1, 64, 32>}]} {
    %c0_i32 = arith.constant 0 : i32
    %0 = arith.cmpi eq, %arg3, %c0_i32 : i32
    %1 = arith.extui %0 : i1 to i32
    %c0_i32_0 = arith.constant 0 : i32
    %2 = arith.cmpi ne, %1, %c0_i32_0 : i32
    scf.if %2 {
      %cst_29 = arith.constant 0xFF800000 : f32
      %36 = vector.broadcast %cst_29 : f32 to vector<64x1xf32>
      %c0_30 = arith.constant 0 : index
      %c0_31 = arith.constant 0 : index
      %37 = vector.load %arg8[%c0_30, %c0_31] : memref<64x1xf32, #tpu.memory_space<vmem>>, vector<64x1xf32>
      tpu.vector_store %arg8[%c0_30, %c0_31], %36 {strides = array<i32>} : memref<64x1xf32, #tpu.memory_space<vmem>>, vector<64x1xf32>,
      %cst_32 = arith.constant 0.000000e+00 : f32
      %38 = vector.broadcast %cst_32 : f32 to vector<64x1xf32>
      %c0_33 = arith.constant 0 : index
      %c0_34 = arith.constant 0 : index
      %39 = vector.load %arg9[%c0_33, %c0_34] : memref<64x1xf32, #tpu.memory_space<vmem>>, vector<64x1xf32>
      tpu.vector_store %arg9[%c0_33, %c0_34], %38 {strides = array<i32>} : memref<64x1xf32, #tpu.memory_space<vmem>>, vector<64x1xf32>,
      %cst_35 = arith.constant 0.000000e+00 : f32
      %40 = vector.broadcast %cst_35 : f32 to vector<64x32xf32>
      %c0_36 = arith.constant 0 : index
      %c0_37 = arith.constant 0 : index
      %41 = vector.load %arg10[%c0_36, %c0_37] : memref<64x32xf32, #tpu.memory_space<vmem>>, vector<64x32xf32>
      tpu.vector_store %arg10[%c0_36, %c0_37], %40 {strides = array<i32>} : memref<64x32xf32, #tpu.memory_space<vmem>>, vector<64x32xf32>,
    } else {
    }
    %c0 = arith.constant 0 : index
    %c0_1 = arith.constant 0 : index
    %c0_2 = arith.constant 0 : index
    %c0_3 = arith.constant 0 : index
    %3 = vector.load %arg4[%c0, %c0_1, %c0_2, %c0_3] : memref<1x1x64x32xbf16, #tpu.memory_space<vmem>>, vector<1x1x64x32xbf16>
    %4 = vector.shape_cast %3 : vector<1x1x64x32xbf16> to vector<64x32xbf16>
    %c0_4 = arith.constant 0 : index
    %c0_5 = arith.constant 0 : index
    %c0_6 = arith.constant 0 : index
    %c0_7 = arith.constant 0 : index
    %5 = vector.load %arg5[%c0_4, %c0_5, %c0_6, %c0_7] : memref<1x1x64x32xbf16, #tpu.memory_space<vmem>>, vector<1x1x64x32xbf16>
    %6 = vector.shape_cast %5 : vector<1x1x64x32xbf16> to vector<64x32xbf16>
    %c0_8 = arith.constant 0 : index
    %c0_9 = arith.constant 0 : index
    %c0_10 = arith.constant 0 : index
    %c0_11 = arith.constant 0 : index
    %7 = vector.load %arg6[%c0_8, %c0_9, %c0_10, %c0_11] : memref<1x1x64x32xbf16, #tpu.memory_space<vmem>>, vector<1x1x64x32xbf16>
    %8 = vector.shape_cast %7 : vector<1x1x64x32xbf16> to vector<64x32xbf16>
    %cst = arith.constant dense<0.000000e+00> : vector<64x64xf32>
    %9 = tpu.matmul %4, %6, %cst {dimension_numbers = #tpu.dot_dimension_numbers<[1], [1], [0], [0], [0, 0, 1, 0], [], []>} : vector<64x32xbf16>, vector<64x32xbf16>, vector<64x64xf32> -> vector<64x64xf32>
    %c0_12 = arith.constant 0 : index
    %c0_13 = arith.constant 0 : index
    %10 = vector.load %arg8[%c0_12, %c0_13] : memref<64x1xf32, #tpu.memory_space<vmem>>, vector<64x1xf32>
    %cst_14 = arith.constant dense<0xFF800000> : vector<64xf32>
    %11 = vector.multi_reduction <maximumf>, %9, %cst_14 [1] : vector<64x64xf32> to vector<64xf32>
    %12 = vector.shape_cast %11 : vector<64xf32> to vector<64x1xf32>
    %13 = arith.maximumf %10, %12 : vector<64x1xf32>
    %14 = arith.subf %10, %13 : vector<64x1xf32>
    %15 = math.exp %14 : vector<64x1xf32>
    %16 = vector.broadcast %13 : vector<64x1xf32> to vector<64x64xf32>
    %17 = arith.subf %9, %16 : vector<64x64xf32>
    %18 = math.exp %17 : vector<64x64xf32>
    %c0_15 = arith.constant 0 : index
    %c0_16 = arith.constant 0 : index
    %19 = vector.load %arg9[%c0_15, %c0_16] : memref<64x1xf32, #tpu.memory_space<vmem>>, vector<64x1xf32>
    %20 = arith.mulf %15, %19 : vector<64x1xf32>
    %cst_17 = arith.constant dense<0.000000e+00> : vector<64xf32>
    %21 = vector.multi_reduction <add>, %18, %cst_17 [1] : vector<64x64xf32> to vector<64xf32>
    %22 = vector.shape_cast %21 : vector<64xf32> to vector<64x1xf32>
    %23 = arith.addf %20, %22 : vector<64x1xf32>
    %c0_18 = arith.constant 0 : index
    %c0_19 = arith.constant 0 : index
    %24 = vector.load %arg9[%c0_18, %c0_19] : memref<64x1xf32, #tpu.memory_space<vmem>>, vector<64x1xf32>
    tpu.vector_store %arg9[%c0_18, %c0_19], %23 {strides = array<i32>} : memref<64x1xf32, #tpu.memory_space<vmem>>, vector<64x1xf32>,
    %c0_20 = arith.constant 0 : index
    %c0_21 = arith.constant 0 : index
    %25 = vector.load %arg10[%c0_20, %c0_21] : memref<64x32xf32, #tpu.memory_space<vmem>>, vector<64x32xf32>
    %26 = vector.broadcast %15 : vector<64x1xf32> to vector<64x32xf32>
    %27 = arith.mulf %26, %25 : vector<64x32xf32>
    %28 = arith.truncf %18 : vector<64x64xf32> to vector<64x64xbf16>
    %cst_22 = arith.constant dense<0.000000e+00> : vector<64x32xf32>
    %29 = tpu.matmul %28, %8, %cst_22 {dimension_numbers = #tpu.dot_dimension_numbers<[1], [0], [0], [1], [0, 0, 1, 1], [], []>} : vector<64x64xbf16>, vector<64x32xbf16>, vector<64x32xf32> -> vector<64x32xf32>
    %30 = arith.addf %27, %29 : vector<64x32xf32>
    %c0_23 = arith.constant 0 : index
    %c0_24 = arith.constant 0 : index
    %31 = vector.load %arg10[%c0_23, %c0_24] : memref<64x32xf32, #tpu.memory_space<vmem>>, vector<64x32xf32>
    tpu.vector_store %arg10[%c0_23, %c0_24], %30 {strides = array<i32>} : memref<64x32xf32, #tpu.memory_space<vmem>>, vector<64x32xf32>,
    %c0_25 = arith.constant 0 : index
    %c0_26 = arith.constant 0 : index
    %32 = vector.load %arg8[%c0_25, %c0_26] : memref<64x1xf32, #tpu.memory_space<vmem>>, vector<64x1xf32>
    tpu.vector_store %arg8[%c0_25, %c0_26], %13 {strides = array<i32>} : memref<64x1xf32, #tpu.memory_space<vmem>>, vector<64x1xf32>,
    %c0_i32_27 = arith.constant 0 : i32
    %33 = arith.cmpi eq, %arg3, %c0_i32_27 : i32
    %34 = arith.extui %33 : i1 to i32
    %c0_i32_28 = arith.constant 0 : i32
    %35 = arith.cmpi ne, %34, %c0_i32_28 : i32
    scf.if %35 {
      %c0_29 = arith.constant 0 : index
      %c0_30 = arith.constant 0 : index
      %36 = vector.load %arg10[%c0_29, %c0_30] : memref<64x32xf32, #tpu.memory_space<vmem>>, vector<64x32xf32>
      %c0_31 = arith.constant 0 : index
      %c0_32 = arith.constant 0 : index
      %37 = vector.load %arg9[%c0_31, %c0_32] : memref<64x1xf32, #tpu.memory_space<vmem>>, vector<64x1xf32>
      %38 = tpu.reciprocal %37 {approx = true} : vector<64x1xf32> -> vector<64x1xf32>
      %39 = vector.broadcast %38 : vector<64x1xf32> to vector<64x32xf32>
      %40 = arith.mulf %36, %39 : vector<64x32xf32>
      %41 = arith.truncf %40 : vector<64x32xf32> to vector<64x32xbf16>
      %c0_33 = arith.constant 0 : index
      %c0_34 = arith.constant 0 : index
      %c0_35 = arith.constant 0 : index
      %c0_36 = arith.constant 0 : index
      %42 = vector.load %arg7[%c0_33, %c0_34, %c0_35, %c0_36] : memref<1x1x64x32xbf16, #tpu.memory_space<vmem>>, vector<1x1x64x32xbf16>
      %43 = vector.shape_cast %42 : vector<1x1x64x32xbf16> to vector<64x32xbf16>
      %44 = vector.shape_cast %41 : vector<64x32xbf16> to vector<1x1x64x32xbf16>
      tpu.vector_store %arg7[%c0_33, %c0_34, %c0_35, %c0_36], %44 {strides = array<i32>} : memref<1x1x64x32xbf16, #tpu.memory_space<vmem>>, vector<1x1x64x32xbf16>,
    } else {
    }
    return
  }
  func.func @transform_0(%arg0: i32, %arg1: i32, %arg2: i32, %arg3: i32) -> (i32, i32, i32, i32) {
    %c0_i32 = arith.constant 0 : i32
    %c0_i32_0 = arith.constant 0 : i32
    return %arg0, %arg1, %arg2, %c0_i32 : i32, i32, i32, i32
  }
  func.func @transform_1(%arg0: i32, %arg1: i32, %arg2: i32, %arg3: i32) -> (i32, i32, i32, i32) {
    %c0_i32 = arith.constant 0 : i32
    %c0_i32_0 = arith.constant 0 : i32
    return %arg0, %arg1, %arg3, %c0_i32 : i32, i32, i32, i32
  }
  func.func @transform_2(%arg0: i32, %arg1: i32, %arg2: i32, %arg3: i32) -> (i32, i32, i32, i32) {
    %c0_i32 = arith.constant 0 : i32
    %c0_i32_0 = arith.constant 0 : i32
    return %arg0, %arg1, %arg3, %c0_i32 : i32, i32, i32, i32
  }
  func.func @transform_3(%arg0: i32, %arg1: i32, %arg2: i32, %arg3: i32) -> (i32, i32, i32, i32) {
    %c0_i32 = arith.constant 0 : i32
    %c0_i32_0 = arith.constant 0 : i32
    return %arg0, %arg1, %arg2, %c0_i32 : i32, i32, i32, i32
  }
}

module attributes {stable_mosaic.version = 11 : i64} {
  func.func @_proj_mlp_kernel(%arg0: i32, %arg1: i32, %arg2: memref<1x4x32x32xbf16, #tpu.memory_space<vmem>>, %arg3: memref<4x32x128xbf16, #tpu.memory_space<vmem>>, %arg4: memref<1x128xf32, #tpu.memory_space<vmem>>, %arg5: memref<1x32x128xbf16, #tpu.memory_space<vmem>>, %arg6: memref<1x1x128xf32, #tpu.memory_space<vmem>>, %arg7: memref<1x1x128xf32, #tpu.memory_space<vmem>>, %arg8: memref<1x1x128xf32, #tpu.memory_space<vmem>>, %arg9: memref<1x1x128xf32, #tpu.memory_space<vmem>>, %arg10: memref<128x512xbf16, #tpu.memory_space<vmem>>, %arg11: memref<1x512xf32, #tpu.memory_space<vmem>>, %arg12: memref<512x128xbf16, #tpu.memory_space<vmem>>, %arg13: memref<1x128xf32, #tpu.memory_space<vmem>>, %arg14: memref<1x32x128xbf16, #tpu.memory_space<vmem>>) attributes {dimension_semantics = [#tpu.dimension_semantics<parallel>, #tpu.dimension_semantics<parallel>], iteration_bounds = array<i64: 2, 1>, scalar_prefetch = 0 : i64, scratch_operands = 0 : i64, tpu.core_type = #tpu.core_type<tc>, window_params = [{transform_indices = @transform_0, window_bounds = array<i64: 1, 4, 32, 32>}, {pipeline_mode = #tpu.pipeline_mode<synchronous>, transform_indices = @transform_1, window_bounds = array<i64: 4, 32, 128>}, {pipeline_mode = #tpu.pipeline_mode<synchronous>, transform_indices = @transform_2, window_bounds = array<i64: 1, 128>}, {transform_indices = @transform_3, window_bounds = array<i64: 1, 32, 128>}, {transform_indices = @transform_4, window_bounds = array<i64: 1, 1, 128>}, {transform_indices = @transform_5, window_bounds = array<i64: 1, 1, 128>}, {transform_indices = @transform_6, window_bounds = array<i64: 1, 1, 128>}, {transform_indices = @transform_7, window_bounds = array<i64: 1, 1, 128>}, {pipeline_mode = #tpu.pipeline_mode<synchronous>, transform_indices = @transform_8, window_bounds = array<i64: 128, 512>}, {pipeline_mode = #tpu.pipeline_mode<synchronous>, transform_indices = @transform_9, window_bounds = array<i64: 1, 512>}, {pipeline_mode = #tpu.pipeline_mode<synchronous>, transform_indices = @transform_10, window_bounds = array<i64: 512, 128>}, {pipeline_mode = #tpu.pipeline_mode<synchronous>, transform_indices = @transform_11, window_bounds = array<i64: 1, 128>}, {transform_indices = @transform_12, window_bounds = array<i64: 1, 32, 128>}]} {
    %c0 = arith.constant 0 : index
    %c0_0 = arith.constant 0 : index
    %c0_1 = arith.constant 0 : index
    %c0_2 = arith.constant 0 : index
    %0 = vector.load %arg2[%c0, %c0_0, %c0_1, %c0_2] : memref<1x4x32x32xbf16, #tpu.memory_space<vmem>>, vector<1x1x32x32xbf16>
    %1 = vector.shape_cast %0 : vector<1x1x32x32xbf16> to vector<32x32xbf16>
    %c0_3 = arith.constant 0 : index
    %c0_4 = arith.constant 0 : index
    %c0_5 = arith.constant 0 : index
    %2 = vector.load %arg3[%c0_3, %c0_4, %c0_5] : memref<4x32x128xbf16, #tpu.memory_space<vmem>>, vector<1x32x128xbf16>
    %3 = vector.shape_cast %2 : vector<1x32x128xbf16> to vector<32x128xbf16>
    %cst = arith.constant dense<0.000000e+00> : vector<32x128xf32>
    %4 = tpu.matmul %1, %3, %cst {dimension_numbers = #tpu.dot_dimension_numbers<[1], [0], [0], [1], [0, 0, 1, 1], [], []>} : vector<32x32xbf16>, vector<32x128xbf16>, vector<32x128xf32> -> vector<32x128xf32>
    %c0_6 = arith.constant 0 : index
    %c1 = arith.constant 1 : index
    %c0_7 = arith.constant 0 : index
    %c0_8 = arith.constant 0 : index
    %5 = vector.load %arg2[%c0_6, %c1, %c0_7, %c0_8] : memref<1x4x32x32xbf16, #tpu.memory_space<vmem>>, vector<1x1x32x32xbf16>
    %6 = vector.shape_cast %5 : vector<1x1x32x32xbf16> to vector<32x32xbf16>
    %c1_9 = arith.constant 1 : index
    %c0_10 = arith.constant 0 : index
    %c0_11 = arith.constant 0 : index
    %7 = vector.load %arg3[%c1_9, %c0_10, %c0_11] : memref<4x32x128xbf16, #tpu.memory_space<vmem>>, vector<1x32x128xbf16>
    %8 = vector.shape_cast %7 : vector<1x32x128xbf16> to vector<32x128xbf16>
    %cst_12 = arith.constant dense<0.000000e+00> : vector<32x128xf32>
    %9 = tpu.matmul %6, %8, %cst_12 {dimension_numbers = #tpu.dot_dimension_numbers<[1], [0], [0], [1], [0, 0, 1, 1], [], []>} : vector<32x32xbf16>, vector<32x128xbf16>, vector<32x128xf32> -> vector<32x128xf32>
    %10 = arith.addf %4, %9 : vector<32x128xf32>
    %c0_13 = arith.constant 0 : index
    %c2 = arith.constant 2 : index
    %c0_14 = arith.constant 0 : index
    %c0_15 = arith.constant 0 : index
    %11 = vector.load %arg2[%c0_13, %c2, %c0_14, %c0_15] : memref<1x4x32x32xbf16, #tpu.memory_space<vmem>>, vector<1x1x32x32xbf16>
    %12 = vector.shape_cast %11 : vector<1x1x32x32xbf16> to vector<32x32xbf16>
    %c2_16 = arith.constant 2 : index
    %c0_17 = arith.constant 0 : index
    %c0_18 = arith.constant 0 : index
    %13 = vector.load %arg3[%c2_16, %c0_17, %c0_18] : memref<4x32x128xbf16, #tpu.memory_space<vmem>>, vector<1x32x128xbf16>
    %14 = vector.shape_cast %13 : vector<1x32x128xbf16> to vector<32x128xbf16>
    %cst_19 = arith.constant dense<0.000000e+00> : vector<32x128xf32>
    %15 = tpu.matmul %12, %14, %cst_19 {dimension_numbers = #tpu.dot_dimension_numbers<[1], [0], [0], [1], [0, 0, 1, 1], [], []>} : vector<32x32xbf16>, vector<32x128xbf16>, vector<32x128xf32> -> vector<32x128xf32>
    %16 = arith.addf %10, %15 : vector<32x128xf32>
    %c0_20 = arith.constant 0 : index
    %c3 = arith.constant 3 : index
    %c0_21 = arith.constant 0 : index
    %c0_22 = arith.constant 0 : index
    %17 = vector.load %arg2[%c0_20, %c3, %c0_21, %c0_22] : memref<1x4x32x32xbf16, #tpu.memory_space<vmem>>, vector<1x1x32x32xbf16>
    %18 = vector.shape_cast %17 : vector<1x1x32x32xbf16> to vector<32x32xbf16>
    %c3_23 = arith.constant 3 : index
    %c0_24 = arith.constant 0 : index
    %c0_25 = arith.constant 0 : index
    %19 = vector.load %arg3[%c3_23, %c0_24, %c0_25] : memref<4x32x128xbf16, #tpu.memory_space<vmem>>, vector<1x32x128xbf16>
    %20 = vector.shape_cast %19 : vector<1x32x128xbf16> to vector<32x128xbf16>
    %cst_26 = arith.constant dense<0.000000e+00> : vector<32x128xf32>
    %21 = tpu.matmul %18, %20, %cst_26 {dimension_numbers = #tpu.dot_dimension_numbers<[1], [0], [0], [1], [0, 0, 1, 1], [], []>} : vector<32x32xbf16>, vector<32x128xbf16>, vector<32x128xf32> -> vector<32x128xf32>
    %22 = arith.addf %16, %21 : vector<32x128xf32>
    %c0_27 = arith.constant 0 : index
    %c0_28 = arith.constant 0 : index
    %23 = vector.load %arg4[%c0_27, %c0_28] : memref<1x128xf32, #tpu.memory_space<vmem>>, vector<1x128xf32>
    %24 = vector.broadcast %23 : vector<1x128xf32> to vector<32x128xf32>
    %25 = arith.addf %22, %24 : vector<32x128xf32>
    %c0_29 = arith.constant 0 : index
    %c0_30 = arith.constant 0 : index
    %c0_31 = arith.constant 0 : index
    %26 = vector.load %arg5[%c0_29, %c0_30, %c0_31] : memref<1x32x128xbf16, #tpu.memory_space<vmem>>, vector<1x32x128xbf16>
    %27 = vector.shape_cast %26 : vector<1x32x128xbf16> to vector<32x128xbf16>
    %28 = arith.extf %27 : vector<32x128xbf16> to vector<32x128xf32>
    %c0_32 = arith.constant 0 : index
    %c0_33 = arith.constant 0 : index
    %c0_34 = arith.constant 0 : index
    %29 = vector.load %arg6[%c0_32, %c0_33, %c0_34] : memref<1x1x128xf32, #tpu.memory_space<vmem>>, vector<1x1x128xf32>
    %30 = vector.shape_cast %29 : vector<1x1x128xf32> to vector<1x128xf32>
    %31 = vector.broadcast %30 : vector<1x128xf32> to vector<32x128xf32>
    %32 = arith.mulf %31, %25 : vector<32x128xf32>
    %33 = arith.addf %28, %32 : vector<32x128xf32>
    %cst_35 = arith.constant dense<0.000000e+00> : vector<32xf32>
    %34 = vector.multi_reduction <add>, %33, %cst_35 [1] : vector<32x128xf32> to vector<32xf32>
    %35 = vector.shape_cast %34 : vector<32xf32> to vector<32x1xf32>
    %cst_36 = arith.constant 1.280000e+02 : f32
    %36 = vector.broadcast %cst_36 : f32 to vector<32x1xf32>
    %37 = arith.divf %35, %36 : vector<32x1xf32>
    %38 = vector.broadcast %37 : vector<32x1xf32> to vector<32x128xf32>
    %39 = arith.subf %33, %38 : vector<32x128xf32>
    %40 = arith.mulf %39, %39 : vector<32x128xf32>
    %cst_37 = arith.constant dense<0.000000e+00> : vector<32xf32>
    %41 = vector.multi_reduction <add>, %40, %cst_37 [1] : vector<32x128xf32> to vector<32xf32>
    %42 = vector.shape_cast %41 : vector<32xf32> to vector<32x1xf32>
    %cst_38 = arith.constant 1.280000e+02 : f32
    %43 = vector.broadcast %cst_38 : f32 to vector<32x1xf32>
    %44 = arith.divf %42, %43 : vector<32x1xf32>
    %45 = vector.broadcast %37 : vector<32x1xf32> to vector<32x128xf32>
    %46 = arith.subf %33, %45 : vector<32x128xf32>
    %cst_39 = arith.constant 9.99999997E-7 : f32
    %47 = vector.broadcast %cst_39 : f32 to vector<32x1xf32>
    %48 = arith.addf %44, %47 : vector<32x1xf32>
    %49 = math.rsqrt %48 : vector<32x1xf32>
    %50 = vector.broadcast %49 : vector<32x1xf32> to vector<32x128xf32>
    %51 = arith.mulf %46, %50 : vector<32x128xf32>
    %c0_40 = arith.constant 0 : index
    %c0_41 = arith.constant 0 : index
    %c0_42 = arith.constant 0 : index
    %52 = vector.load %arg8[%c0_40, %c0_41, %c0_42] : memref<1x1x128xf32, #tpu.memory_space<vmem>>, vector<1x1x128xf32>
    %53 = vector.shape_cast %52 : vector<1x1x128xf32> to vector<1x128xf32>
    %cst_43 = arith.constant 1.000000e+00 : f32
    %54 = vector.broadcast %cst_43 : f32 to vector<1x128xf32>
    %55 = arith.addf %54, %53 : vector<1x128xf32>
    %56 = vector.broadcast %55 : vector<1x128xf32> to vector<32x128xf32>
    %57 = arith.mulf %51, %56 : vector<32x128xf32>
    %c0_44 = arith.constant 0 : index
    %c0_45 = arith.constant 0 : index
    %c0_46 = arith.constant 0 : index
    %58 = vector.load %arg7[%c0_44, %c0_45, %c0_46] : memref<1x1x128xf32, #tpu.memory_space<vmem>>, vector<1x1x128xf32>
    %59 = vector.shape_cast %58 : vector<1x1x128xf32> to vector<1x128xf32>
    %60 = vector.broadcast %59 : vector<1x128xf32> to vector<32x128xf32>
    %61 = arith.addf %57, %60 : vector<32x128xf32>
    %62 = arith.truncf %61 : vector<32x128xf32> to vector<32x128xbf16>
    %c0_47 = arith.constant 0 : index
    %c0_48 = arith.constant 0 : index
    %63 = vector.load %arg10[%c0_47, %c0_48] : memref<128x512xbf16, #tpu.memory_space<vmem>>, vector<128x512xbf16>
    %cst_49 = arith.constant dense<0.000000e+00> : vector<32x512xf32>
    %64 = tpu.matmul %62, %63, %cst_49 {dimension_numbers = #tpu.dot_dimension_numbers<[1], [0], [0], [1], [0, 0, 1, 1], [], []>} : vector<32x128xbf16>, vector<128x512xbf16>, vector<32x512xf32> -> vector<32x512xf32>
    %c0_50 = arith.constant 0 : index
    %c0_51 = arith.constant 0 : index
    %65 = vector.load %arg11[%c0_50, %c0_51] : memref<1x512xf32, #tpu.memory_space<vmem>>, vector<1x512xf32>
    %66 = vector.broadcast %65 : vector<1x512xf32> to vector<32x512xf32>
    %67 = arith.addf %64, %66 : vector<32x512xf32>
    %68 = arith.mulf %67, %67 : vector<32x512xf32>
    %69 = arith.mulf %67, %68 : vector<32x512xf32>
    %cst_52 = arith.constant 4.471500e-02 : f32
    %70 = vector.broadcast %cst_52 : f32 to vector<32x512xf32>
    %71 = arith.mulf %70, %69 : vector<32x512xf32>
    %72 = arith.addf %67, %71 : vector<32x512xf32>
    %cst_53 = arith.constant 0.797884583 : f32
    %73 = vector.broadcast %cst_53 : f32 to vector<32x512xf32>
    %74 = arith.mulf %73, %72 : vector<32x512xf32>
    %75 = math.tanh %74 : vector<32x512xf32>
    %cst_54 = arith.constant 1.000000e+00 : f32
    %76 = vector.broadcast %cst_54 : f32 to vector<32x512xf32>
    %77 = arith.addf %76, %75 : vector<32x512xf32>
    %cst_55 = arith.constant 5.000000e-01 : f32
    %78 = vector.broadcast %cst_55 : f32 to vector<32x512xf32>
    %79 = arith.mulf %78, %77 : vector<32x512xf32>
    %80 = arith.mulf %67, %79 : vector<32x512xf32>
    %81 = arith.truncf %80 : vector<32x512xf32> to vector<32x512xbf16>
    %c0_56 = arith.constant 0 : index
    %c0_57 = arith.constant 0 : index
    %82 = vector.load %arg12[%c0_56, %c0_57] : memref<512x128xbf16, #tpu.memory_space<vmem>>, vector<512x128xbf16>
    %cst_58 = arith.constant dense<0.000000e+00> : vector<32x128xf32>
    %83 = tpu.matmul %81, %82, %cst_58 {dimension_numbers = #tpu.dot_dimension_numbers<[1], [0], [0], [1], [0, 0, 1, 1], [], []>} : vector<32x512xbf16>, vector<512x128xbf16>, vector<32x128xf32> -> vector<32x128xf32>
    %c0_59 = arith.constant 0 : index
    %c0_60 = arith.constant 0 : index
    %84 = vector.load %arg13[%c0_59, %c0_60] : memref<1x128xf32, #tpu.memory_space<vmem>>, vector<1x128xf32>
    %85 = vector.broadcast %84 : vector<1x128xf32> to vector<32x128xf32>
    %86 = arith.addf %83, %85 : vector<32x128xf32>
    %c0_61 = arith.constant 0 : index
    %c0_62 = arith.constant 0 : index
    %c0_63 = arith.constant 0 : index
    %87 = vector.load %arg9[%c0_61, %c0_62, %c0_63] : memref<1x1x128xf32, #tpu.memory_space<vmem>>, vector<1x1x128xf32>
    %88 = vector.shape_cast %87 : vector<1x1x128xf32> to vector<1x128xf32>
    %89 = vector.broadcast %88 : vector<1x128xf32> to vector<32x128xf32>
    %90 = arith.mulf %89, %86 : vector<32x128xf32>
    %91 = arith.addf %33, %90 : vector<32x128xf32>
    %92 = arith.truncf %91 : vector<32x128xf32> to vector<32x128xbf16>
    %c0_64 = arith.constant 0 : index
    %c0_65 = arith.constant 0 : index
    %c0_66 = arith.constant 0 : index
    %93 = vector.load %arg14[%c0_64, %c0_65, %c0_66] : memref<1x32x128xbf16, #tpu.memory_space<vmem>>, vector<1x32x128xbf16>
    %94 = vector.shape_cast %93 : vector<1x32x128xbf16> to vector<32x128xbf16>
    %95 = vector.shape_cast %92 : vector<32x128xbf16> to vector<1x32x128xbf16>
    tpu.vector_store %arg14[%c0_64, %c0_65, %c0_66], %95 {strides = array<i32>} : memref<1x32x128xbf16, #tpu.memory_space<vmem>>, vector<1x32x128xbf16>,
    return
  }
  func.func @transform_0(%arg0: i32, %arg1: i32) -> (i32, i32, i32, i32) {
    %c0_i32 = arith.constant 0 : i32
    %0 = arith.addi %arg1, %c0_i32 : i32
    %c0_i32_0 = arith.constant 0 : i32
    %c0_i32_1 = arith.constant 0 : i32
    %c0_i32_2 = arith.constant 0 : i32
    return %arg0, %c0_i32_0, %0, %c0_i32_1 : i32, i32, i32, i32
  }
  func.func @transform_1(%arg0: i32, %arg1: i32) -> (i32, i32, i32) {
    %c0_i32 = arith.constant 0 : i32
    %c0_i32_0 = arith.constant 0 : i32
    %c0_i32_1 = arith.constant 0 : i32
    %c0_i32_2 = arith.constant 0 : i32
    return %c0_i32, %c0_i32_0, %c0_i32_1 : i32, i32, i32
  }
  func.func @transform_2(%arg0: i32, %arg1: i32) -> (i32, i32) {
    %c0_i32 = arith.constant 0 : i32
    %c0_i32_0 = arith.constant 0 : i32
    %c0_i32_1 = arith.constant 0 : i32
    return %c0_i32, %c0_i32_0 : i32, i32
  }
  func.func @transform_3(%arg0: i32, %arg1: i32) -> (i32, i32, i32) {
    %c0_i32 = arith.constant 0 : i32
    %c0_i32_0 = arith.constant 0 : i32
    return %arg0, %arg1, %c0_i32 : i32, i32, i32
  }
  func.func @transform_4(%arg0: i32, %arg1: i32) -> (i32, i32, i32) {
    %c0_i32 = arith.constant 0 : i32
    %c0_i32_0 = arith.constant 0 : i32
    %c0_i32_1 = arith.constant 0 : i32
    return %arg0, %c0_i32, %c0_i32_0 : i32, i32, i32
  }
  func.func @transform_5(%arg0: i32, %arg1: i32) -> (i32, i32, i32) {
    %c0_i32 = arith.constant 0 : i32
    %c0_i32_0 = arith.constant 0 : i32
    %c0_i32_1 = arith.constant 0 : i32
    return %arg0, %c0_i32, %c0_i32_0 : i32, i32, i32
  }
  func.func @transform_6(%arg0: i32, %arg1: i32) -> (i32, i32, i32) {
    %c0_i32 = arith.constant 0 : i32
    %c0_i32_0 = arith.constant 0 : i32
    %c0_i32_1 = arith.constant 0 : i32
    return %arg0, %c0_i32, %c0_i32_0 : i32, i32, i32
  }
  func.func @transform_7(%arg0: i32, %arg1: i32) -> (i32, i32, i32) {
    %c0_i32 = arith.constant 0 : i32
    %c0_i32_0 = arith.constant 0 : i32
    %c0_i32_1 = arith.constant 0 : i32
    return %arg0, %c0_i32, %c0_i32_0 : i32, i32, i32
  }
  func.func @transform_8(%arg0: i32, %arg1: i32) -> (i32, i32) {
    %c0_i32 = arith.constant 0 : i32
    %c0_i32_0 = arith.constant 0 : i32
    %c0_i32_1 = arith.constant 0 : i32
    return %c0_i32, %c0_i32_0 : i32, i32
  }
  func.func @transform_9(%arg0: i32, %arg1: i32) -> (i32, i32) {
    %c0_i32 = arith.constant 0 : i32
    %c0_i32_0 = arith.constant 0 : i32
    %c0_i32_1 = arith.constant 0 : i32
    return %c0_i32, %c0_i32_0 : i32, i32
  }
  func.func @transform_10(%arg0: i32, %arg1: i32) -> (i32, i32) {
    %c0_i32 = arith.constant 0 : i32
    %c0_i32_0 = arith.constant 0 : i32
    %c0_i32_1 = arith.constant 0 : i32
    return %c0_i32, %c0_i32_0 : i32, i32
  }
  func.func @transform_11(%arg0: i32, %arg1: i32) -> (i32, i32) {
    %c0_i32 = arith.constant 0 : i32
    %c0_i32_0 = arith.constant 0 : i32
    %c0_i32_1 = arith.constant 0 : i32
    return %c0_i32, %c0_i32_0 : i32, i32
  }
  func.func @transform_12(%arg0: i32, %arg1: i32) -> (i32, i32, i32) {
    %c0_i32 = arith.constant 0 : i32
    %c0_i32_0 = arith.constant 0 : i32
    return %arg0, %arg1, %c0_i32 : i32, i32, i32
  }
}

module attributes {stable_mosaic.version = 11 : i64} {
  func.func @_proj_mlp_kernel(%arg0: i32, %arg1: i32, %arg2: memref<1x4x32x32xbf16, #tpu.memory_space<vmem>>, %arg3: memref<4x32x128xbf16, #tpu.memory_space<vmem>>, %arg4: memref<1x128xf32, #tpu.memory_space<vmem>>, %arg5: memref<1x32x128xbf16, #tpu.memory_space<vmem>>, %arg6: memref<1x1x128xf32, #tpu.memory_space<vmem>>, %arg7: memref<1x1x128xf32, #tpu.memory_space<vmem>>, %arg8: memref<1x1x128xf32, #tpu.memory_space<vmem>>, %arg9: memref<1x1x128xf32, #tpu.memory_space<vmem>>, %arg10: memref<128x512xbf16, #tpu.memory_space<vmem>>, %arg11: memref<1x512xf32, #tpu.memory_space<vmem>>, %arg12: memref<512x128xbf16, #tpu.memory_space<vmem>>, %arg13: memref<1x128xf32, #tpu.memory_space<vmem>>, %arg14: memref<1x32x128xbf16, #tpu.memory_space<vmem>>) attributes {dimension_semantics = [#tpu.dimension_semantics<parallel>, #tpu.dimension_semantics<parallel>], iteration_bounds = array<i64: 2, 1>, scalar_prefetch = 0 : i64, scratch_operands = 0 : i64, tpu.core_type = #tpu.core_type<tc>, window_params = [{transform_indices = @transform_0, window_bounds = array<i64: 1, 4, 32, 32>}, {pipeline_mode = #tpu.pipeline_mode<synchronous>, transform_indices = @transform_1, window_bounds = array<i64: 4, 32, 128>}, {pipeline_mode = #tpu.pipeline_mode<synchronous>, transform_indices = @transform_2, window_bounds = array<i64: 1, 128>}, {transform_indices = @transform_3, window_bounds = array<i64: 1, 32, 128>}, {transform_indices = @transform_4, window_bounds = array<i64: 1, 1, 128>}, {transform_indices = @transform_5, window_bounds = array<i64: 1, 1, 128>}, {transform_indices = @transform_6, window_bounds = array<i64: 1, 1, 128>}, {transform_indices = @transform_7, window_bounds = array<i64: 1, 1, 128>}, {pipeline_mode = #tpu.pipeline_mode<synchronous>, transform_indices = @transform_8, window_bounds = array<i64: 128, 512>}, {pipeline_mode = #tpu.pipeline_mode<synchronous>, transform_indices = @transform_9, window_bounds = array<i64: 1, 512>}, {pipeline_mode = #tpu.pipeline_mode<synchronous>, transform_indices = @transform_10, window_bounds = array<i64: 512, 128>}, {pipeline_mode = #tpu.pipeline_mode<synchronous>, transform_indices = @transform_11, window_bounds = array<i64: 1, 128>}, {transform_indices = @transform_12, window_bounds = array<i64: 1, 32, 128>}]} {
    %c0 = arith.constant 0 : index
    %c0_0 = arith.constant 0 : index
    %c0_1 = arith.constant 0 : index
    %c0_2 = arith.constant 0 : index
    %0 = vector.load %arg2[%c0, %c0_0, %c0_1, %c0_2] : memref<1x4x32x32xbf16, #tpu.memory_space<vmem>>, vector<1x1x32x32xbf16>
    %1 = vector.shape_cast %0 : vector<1x1x32x32xbf16> to vector<32x32xbf16>
    %c0_3 = arith.constant 0 : index
    %c0_4 = arith.constant 0 : index
    %c0_5 = arith.constant 0 : index
    %2 = vector.load %arg3[%c0_3, %c0_4, %c0_5] : memref<4x32x128xbf16, #tpu.memory_space<vmem>>, vector<1x32x128xbf16>
    %3 = vector.shape_cast %2 : vector<1x32x128xbf16> to vector<32x128xbf16>
    %cst = arith.constant dense<0.000000e+00> : vector<32x128xf32>
    %4 = tpu.matmul %1, %3, %cst {dimension_numbers = #tpu.dot_dimension_numbers<[1], [0], [0], [1], [0, 0, 1, 1], [], []>} : vector<32x32xbf16>, vector<32x128xbf16>, vector<32x128xf32> -> vector<32x128xf32>
    %c0_6 = arith.constant 0 : index
    %c1 = arith.constant 1 : index
    %c0_7 = arith.constant 0 : index
    %c0_8 = arith.constant 0 : index
    %5 = vector.load %arg2[%c0_6, %c1, %c0_7, %c0_8] : memref<1x4x32x32xbf16, #tpu.memory_space<vmem>>, vector<1x1x32x32xbf16>
    %6 = vector.shape_cast %5 : vector<1x1x32x32xbf16> to vector<32x32xbf16>
    %c1_9 = arith.constant 1 : index
    %c0_10 = arith.constant 0 : index
    %c0_11 = arith.constant 0 : index
    %7 = vector.load %arg3[%c1_9, %c0_10, %c0_11] : memref<4x32x128xbf16, #tpu.memory_space<vmem>>, vector<1x32x128xbf16>
    %8 = vector.shape_cast %7 : vector<1x32x128xbf16> to vector<32x128xbf16>
    %cst_12 = arith.constant dense<0.000000e+00> : vector<32x128xf32>
    %9 = tpu.matmul %6, %8, %cst_12 {dimension_numbers = #tpu.dot_dimension_numbers<[1], [0], [0], [1], [0, 0, 1, 1], [], []>} : vector<32x32xbf16>, vector<32x128xbf16>, vector<32x128xf32> -> vector<32x128xf32>
    %10 = arith.addf %4, %9 : vector<32x128xf32>
    %c0_13 = arith.constant 0 : index
    %c2 = arith.constant 2 : index
    %c0_14 = arith.constant 0 : index
    %c0_15 = arith.constant 0 : index
    %11 = vector.load %arg2[%c0_13, %c2, %c0_14, %c0_15] : memref<1x4x32x32xbf16, #tpu.memory_space<vmem>>, vector<1x1x32x32xbf16>
    %12 = vector.shape_cast %11 : vector<1x1x32x32xbf16> to vector<32x32xbf16>
    %c2_16 = arith.constant 2 : index
    %c0_17 = arith.constant 0 : index
    %c0_18 = arith.constant 0 : index
    %13 = vector.load %arg3[%c2_16, %c0_17, %c0_18] : memref<4x32x128xbf16, #tpu.memory_space<vmem>>, vector<1x32x128xbf16>
    %14 = vector.shape_cast %13 : vector<1x32x128xbf16> to vector<32x128xbf16>
    %cst_19 = arith.constant dense<0.000000e+00> : vector<32x128xf32>
    %15 = tpu.matmul %12, %14, %cst_19 {dimension_numbers = #tpu.dot_dimension_numbers<[1], [0], [0], [1], [0, 0, 1, 1], [], []>} : vector<32x32xbf16>, vector<32x128xbf16>, vector<32x128xf32> -> vector<32x128xf32>
    %16 = arith.addf %10, %15 : vector<32x128xf32>
    %c0_20 = arith.constant 0 : index
    %c3 = arith.constant 3 : index
    %c0_21 = arith.constant 0 : index
    %c0_22 = arith.constant 0 : index
    %17 = vector.load %arg2[%c0_20, %c3, %c0_21, %c0_22] : memref<1x4x32x32xbf16, #tpu.memory_space<vmem>>, vector<1x1x32x32xbf16>
    %18 = vector.shape_cast %17 : vector<1x1x32x32xbf16> to vector<32x32xbf16>
    %c3_23 = arith.constant 3 : index
    %c0_24 = arith.constant 0 : index
    %c0_25 = arith.constant 0 : index
    %19 = vector.load %arg3[%c3_23, %c0_24, %c0_25] : memref<4x32x128xbf16, #tpu.memory_space<vmem>>, vector<1x32x128xbf16>
    %20 = vector.shape_cast %19 : vector<1x32x128xbf16> to vector<32x128xbf16>
    %cst_26 = arith.constant dense<0.000000e+00> : vector<32x128xf32>
    %21 = tpu.matmul %18, %20, %cst_26 {dimension_numbers = #tpu.dot_dimension_numbers<[1], [0], [0], [1], [0, 0, 1, 1], [], []>} : vector<32x32xbf16>, vector<32x128xbf16>, vector<32x128xf32> -> vector<32x128xf32>
    %22 = arith.addf %16, %21 : vector<32x128xf32>
    %c0_27 = arith.constant 0 : index
    %c0_28 = arith.constant 0 : index
    %23 = vector.load %arg4[%c0_27, %c0_28] : memref<1x128xf32, #tpu.memory_space<vmem>>, vector<1x128xf32>
    %24 = vector.broadcast %23 : vector<1x128xf32> to vector<32x128xf32>
    %25 = arith.addf %22, %24 : vector<32x128xf32>
    %c0_29 = arith.constant 0 : index
    %c0_30 = arith.constant 0 : index
    %c0_31 = arith.constant 0 : index
    %26 = vector.load %arg5[%c0_29, %c0_30, %c0_31] : memref<1x32x128xbf16, #tpu.memory_space<vmem>>, vector<1x32x128xbf16>
    %27 = vector.shape_cast %26 : vector<1x32x128xbf16> to vector<32x128xbf16>
    %28 = arith.extf %27 : vector<32x128xbf16> to vector<32x128xf32>
    %c0_32 = arith.constant 0 : index
    %c0_33 = arith.constant 0 : index
    %c0_34 = arith.constant 0 : index
    %29 = vector.load %arg6[%c0_32, %c0_33, %c0_34] : memref<1x1x128xf32, #tpu.memory_space<vmem>>, vector<1x1x128xf32>
    %30 = vector.shape_cast %29 : vector<1x1x128xf32> to vector<1x128xf32>
    %31 = vector.broadcast %30 : vector<1x128xf32> to vector<32x128xf32>
    %32 = arith.mulf %31, %25 : vector<32x128xf32>
    %33 = arith.addf %28, %32 : vector<32x128xf32>
    %cst_35 = arith.constant dense<0.000000e+00> : vector<32xf32>
    %34 = vector.multi_reduction <add>, %33, %cst_35 [1] : vector<32x128xf32> to vector<32xf32>
    %35 = vector.shape_cast %34 : vector<32xf32> to vector<32x1xf32>
    %cst_36 = arith.constant 1.280000e+02 : f32
    %36 = vector.broadcast %cst_36 : f32 to vector<32x1xf32>
    %37 = arith.divf %35, %36 : vector<32x1xf32>
    %38 = vector.broadcast %37 : vector<32x1xf32> to vector<32x128xf32>
    %39 = arith.subf %33, %38 : vector<32x128xf32>
    %40 = arith.mulf %39, %39 : vector<32x128xf32>
    %cst_37 = arith.constant dense<0.000000e+00> : vector<32xf32>
    %41 = vector.multi_reduction <add>, %40, %cst_37 [1] : vector<32x128xf32> to vector<32xf32>
    %42 = vector.shape_cast %41 : vector<32xf32> to vector<32x1xf32>
    %cst_38 = arith.constant 1.280000e+02 : f32
    %43 = vector.broadcast %cst_38 : f32 to vector<32x1xf32>
    %44 = arith.divf %42, %43 : vector<32x1xf32>
    %45 = vector.broadcast %37 : vector<32x1xf32> to vector<32x128xf32>
    %46 = arith.subf %33, %45 : vector<32x128xf32>
    %cst_39 = arith.constant 9.99999997E-7 : f32
    %47 = vector.broadcast %cst_39 : f32 to vector<32x1xf32>
    %48 = arith.addf %44, %47 : vector<32x1xf32>
    %49 = math.rsqrt %48 : vector<32x1xf32>
    %50 = vector.broadcast %49 : vector<32x1xf32> to vector<32x128xf32>
    %51 = arith.mulf %46, %50 : vector<32x128xf32>
    %c0_40 = arith.constant 0 : index
    %c0_41 = arith.constant 0 : index
    %c0_42 = arith.constant 0 : index
    %52 = vector.load %arg8[%c0_40, %c0_41, %c0_42] : memref<1x1x128xf32, #tpu.memory_space<vmem>>, vector<1x1x128xf32>
    %53 = vector.shape_cast %52 : vector<1x1x128xf32> to vector<1x128xf32>
    %cst_43 = arith.constant 1.000000e+00 : f32
    %54 = vector.broadcast %cst_43 : f32 to vector<1x128xf32>
    %55 = arith.addf %54, %53 : vector<1x128xf32>
    %56 = vector.broadcast %55 : vector<1x128xf32> to vector<32x128xf32>
    %57 = arith.mulf %51, %56 : vector<32x128xf32>
    %c0_44 = arith.constant 0 : index
    %c0_45 = arith.constant 0 : index
    %c0_46 = arith.constant 0 : index
    %58 = vector.load %arg7[%c0_44, %c0_45, %c0_46] : memref<1x1x128xf32, #tpu.memory_space<vmem>>, vector<1x1x128xf32>
    %59 = vector.shape_cast %58 : vector<1x1x128xf32> to vector<1x128xf32>
    %60 = vector.broadcast %59 : vector<1x128xf32> to vector<32x128xf32>
    %61 = arith.addf %57, %60 : vector<32x128xf32>
    %62 = arith.truncf %61 : vector<32x128xf32> to vector<32x128xbf16>
    %c0_47 = arith.constant 0 : index
    %c0_48 = arith.constant 0 : index
    %63 = vector.load %arg10[%c0_47, %c0_48] : memref<128x512xbf16, #tpu.memory_space<vmem>>, vector<128x512xbf16>
    %cst_49 = arith.constant dense<0.000000e+00> : vector<32x512xf32>
    %64 = tpu.matmul %62, %63, %cst_49 {dimension_numbers = #tpu.dot_dimension_numbers<[1], [0], [0], [1], [0, 0, 1, 1], [], []>} : vector<32x128xbf16>, vector<128x512xbf16>, vector<32x512xf32> -> vector<32x512xf32>
    %c0_50 = arith.constant 0 : index
    %c0_51 = arith.constant 0 : index
    %65 = vector.load %arg11[%c0_50, %c0_51] : memref<1x512xf32, #tpu.memory_space<vmem>>, vector<1x512xf32>
    %66 = vector.broadcast %65 : vector<1x512xf32> to vector<32x512xf32>
    %67 = arith.addf %64, %66 : vector<32x512xf32>
    %68 = arith.mulf %67, %67 : vector<32x512xf32>
    %69 = arith.mulf %67, %68 : vector<32x512xf32>
    %cst_52 = arith.constant 4.471500e-02 : f32
    %70 = vector.broadcast %cst_52 : f32 to vector<32x512xf32>
    %71 = arith.mulf %70, %69 : vector<32x512xf32>
    %72 = arith.addf %67, %71 : vector<32x512xf32>
    %cst_53 = arith.constant 0.797884583 : f32
    %73 = vector.broadcast %cst_53 : f32 to vector<32x512xf32>
    %74 = arith.mulf %73, %72 : vector<32x512xf32>
    %75 = math.tanh %74 : vector<32x512xf32>
    %cst_54 = arith.constant 1.000000e+00 : f32
    %76 = vector.broadcast %cst_54 : f32 to vector<32x512xf32>
    %77 = arith.addf %76, %75 : vector<32x512xf32>
    %cst_55 = arith.constant 5.000000e-01 : f32
    %78 = vector.broadcast %cst_55 : f32 to vector<32x512xf32>
    %79 = arith.mulf %78, %77 : vector<32x512xf32>
    %80 = arith.mulf %67, %79 : vector<32x512xf32>
    %81 = arith.truncf %80 : vector<32x512xf32> to vector<32x512xbf16>
    %c0_56 = arith.constant 0 : index
    %c0_57 = arith.constant 0 : index
    %82 = vector.load %arg12[%c0_56, %c0_57] : memref<512x128xbf16, #tpu.memory_space<vmem>>, vector<512x128xbf16>
    %cst_58 = arith.constant dense<0.000000e+00> : vector<32x128xf32>
    %83 = tpu.matmul %81, %82, %cst_58 {dimension_numbers = #tpu.dot_dimension_numbers<[1], [0], [0], [1], [0, 0, 1, 1], [], []>} : vector<32x512xbf16>, vector<512x128xbf16>, vector<32x128xf32> -> vector<32x128xf32>
    %c0_59 = arith.constant 0 : index
    %c0_60 = arith.constant 0 : index
    %84 = vector.load %arg13[%c0_59, %c0_60] : memref<1x128xf32, #tpu.memory_space<vmem>>, vector<1x128xf32>
    %85 = vector.broadcast %84 : vector<1x128xf32> to vector<32x128xf32>
    %86 = arith.addf %83, %85 : vector<32x128xf32>
    %c0_61 = arith.constant 0 : index
    %c0_62 = arith.constant 0 : index
    %c0_63 = arith.constant 0 : index
    %87 = vector.load %arg9[%c0_61, %c0_62, %c0_63] : memref<1x1x128xf32, #tpu.memory_space<vmem>>, vector<1x1x128xf32>
    %88 = vector.shape_cast %87 : vector<1x1x128xf32> to vector<1x128xf32>
    %89 = vector.broadcast %88 : vector<1x128xf32> to vector<32x128xf32>
    %90 = arith.mulf %89, %86 : vector<32x128xf32>
    %91 = arith.addf %33, %90 : vector<32x128xf32>
    %92 = arith.truncf %91 : vector<32x128xf32> to vector<32x128xbf16>
    %c0_64 = arith.constant 0 : index
    %c0_65 = arith.constant 0 : index
    %c0_66 = arith.constant 0 : index
    %93 = vector.load %arg14[%c0_64, %c0_65, %c0_66] : memref<1x32x128xbf16, #tpu.memory_space<vmem>>, vector<1x32x128xbf16>
    %94 = vector.shape_cast %93 : vector<1x32x128xbf16> to vector<32x128xbf16>
    %95 = vector.shape_cast %92 : vector<32x128xbf16> to vector<1x32x128xbf16>
    tpu.vector_store %arg14[%c0_64, %c0_65, %c0_66], %95 {strides = array<i32>} : memref<1x32x128xbf16, #tpu.memory_space<vmem>>, vector<1x32x128xbf16>,
    return
  }
  func.func @transform_0(%arg0: i32, %arg1: i32) -> (i32, i32, i32, i32) {
    %c1_i32 = arith.constant 1 : i32
    %0 = arith.addi %arg1, %c1_i32 : i32
    %c0_i32 = arith.constant 0 : i32
    %c0_i32_0 = arith.constant 0 : i32
    %c0_i32_1 = arith.constant 0 : i32
    return %arg0, %c0_i32, %0, %c0_i32_0 : i32, i32, i32, i32
  }
  func.func @transform_1(%arg0: i32, %arg1: i32) -> (i32, i32, i32) {
    %c0_i32 = arith.constant 0 : i32
    %c0_i32_0 = arith.constant 0 : i32
    %c0_i32_1 = arith.constant 0 : i32
    %c0_i32_2 = arith.constant 0 : i32
    return %c0_i32, %c0_i32_0, %c0_i32_1 : i32, i32, i32
  }
  func.func @transform_2(%arg0: i32, %arg1: i32) -> (i32, i32) {
    %c0_i32 = arith.constant 0 : i32
    %c0_i32_0 = arith.constant 0 : i32
    %c0_i32_1 = arith.constant 0 : i32
    return %c0_i32, %c0_i32_0 : i32, i32
  }
  func.func @transform_3(%arg0: i32, %arg1: i32) -> (i32, i32, i32) {
    %c0_i32 = arith.constant 0 : i32
    %c0_i32_0 = arith.constant 0 : i32
    return %arg0, %arg1, %c0_i32 : i32, i32, i32
  }
  func.func @transform_4(%arg0: i32, %arg1: i32) -> (i32, i32, i32) {
    %c0_i32 = arith.constant 0 : i32
    %c0_i32_0 = arith.constant 0 : i32
    %c0_i32_1 = arith.constant 0 : i32
    return %arg0, %c0_i32, %c0_i32_0 : i32, i32, i32
  }
  func.func @transform_5(%arg0: i32, %arg1: i32) -> (i32, i32, i32) {
    %c0_i32 = arith.constant 0 : i32
    %c0_i32_0 = arith.constant 0 : i32
    %c0_i32_1 = arith.constant 0 : i32
    return %arg0, %c0_i32, %c0_i32_0 : i32, i32, i32
  }
  func.func @transform_6(%arg0: i32, %arg1: i32) -> (i32, i32, i32) {
    %c0_i32 = arith.constant 0 : i32
    %c0_i32_0 = arith.constant 0 : i32
    %c0_i32_1 = arith.constant 0 : i32
    return %arg0, %c0_i32, %c0_i32_0 : i32, i32, i32
  }
  func.func @transform_7(%arg0: i32, %arg1: i32) -> (i32, i32, i32) {
    %c0_i32 = arith.constant 0 : i32
    %c0_i32_0 = arith.constant 0 : i32
    %c0_i32_1 = arith.constant 0 : i32
    return %arg0, %c0_i32, %c0_i32_0 : i32, i32, i32
  }
  func.func @transform_8(%arg0: i32, %arg1: i32) -> (i32, i32) {
    %c0_i32 = arith.constant 0 : i32
    %c0_i32_0 = arith.constant 0 : i32
    %c0_i32_1 = arith.constant 0 : i32
    return %c0_i32, %c0_i32_0 : i32, i32
  }
  func.func @transform_9(%arg0: i32, %arg1: i32) -> (i32, i32) {
    %c0_i32 = arith.constant 0 : i32
    %c0_i32_0 = arith.constant 0 : i32
    %c0_i32_1 = arith.constant 0 : i32
    return %c0_i32, %c0_i32_0 : i32, i32
  }
  func.func @transform_10(%arg0: i32, %arg1: i32) -> (i32, i32) {
    %c0_i32 = arith.constant 0 : i32
    %c0_i32_0 = arith.constant 0 : i32
    %c0_i32_1 = arith.constant 0 : i32
    return %c0_i32, %c0_i32_0 : i32, i32
  }
  func.func @transform_11(%arg0: i32, %arg1: i32) -> (i32, i32) {
    %c0_i32 = arith.constant 0 : i32
    %c0_i32_0 = arith.constant 0 : i32
    %c0_i32_1 = arith.constant 0 : i32
    return %c0_i32, %c0_i32_0 : i32, i32
  }
  func.func @transform_12(%arg0: i32, %arg1: i32) -> (i32, i32, i32) {
    %c0_i32 = arith.constant 0 : i32
    %c0_i32_0 = arith.constant 0 : i32
    return %arg0, %arg1, %c0_i32 : i32, i32, i32
  }
}

module attributes {stable_mosaic.version = 11 : i64} {
  func.func @_ln_mod_matmul_kernel(%arg0: i32, %arg1: i32, %arg2: memref<1x32x128xbf16, #tpu.memory_space<vmem>>, %arg3: memref<1x1x128xf32, #tpu.memory_space<vmem>>, %arg4: memref<1x1x128xf32, #tpu.memory_space<vmem>>, %arg5: memref<128x128xbf16, #tpu.memory_space<vmem>>, %arg6: memref<1x128xf32, #tpu.memory_space<vmem>>, %arg7: memref<1x32x128xf32, #tpu.memory_space<vmem>>) attributes {dimension_semantics = [#tpu.dimension_semantics<parallel>, #tpu.dimension_semantics<parallel>], iteration_bounds = array<i64: 2, 1>, scalar_prefetch = 0 : i64, scratch_operands = 0 : i64, tpu.core_type = #tpu.core_type<tc>, window_params = [{transform_indices = @transform_0, window_bounds = array<i64: 1, 32, 128>}, {transform_indices = @transform_1, window_bounds = array<i64: 1, 1, 128>}, {transform_indices = @transform_2, window_bounds = array<i64: 1, 1, 128>}, {pipeline_mode = #tpu.pipeline_mode<synchronous>, transform_indices = @transform_3, window_bounds = array<i64: 128, 128>}, {pipeline_mode = #tpu.pipeline_mode<synchronous>, transform_indices = @transform_4, window_bounds = array<i64: 1, 128>}, {transform_indices = @transform_5, window_bounds = array<i64: 1, 32, 128>}]} {
    %c0 = arith.constant 0 : index
    %c0_0 = arith.constant 0 : index
    %c0_1 = arith.constant 0 : index
    %0 = vector.load %arg2[%c0, %c0_0, %c0_1] : memref<1x32x128xbf16, #tpu.memory_space<vmem>>, vector<1x32x128xbf16>
    %1 = vector.shape_cast %0 : vector<1x32x128xbf16> to vector<32x128xbf16>
    %2 = arith.extf %1 : vector<32x128xbf16> to vector<32x128xf32>
    %cst = arith.constant dense<0.000000e+00> : vector<32xf32>
    %3 = vector.multi_reduction <add>, %2, %cst [1] : vector<32x128xf32> to vector<32xf32>
    %4 = vector.shape_cast %3 : vector<32xf32> to vector<32x1xf32>
    %cst_2 = arith.constant 1.280000e+02 : f32
    %5 = vector.broadcast %cst_2 : f32 to vector<32x1xf32>
    %6 = arith.divf %4, %5 : vector<32x1xf32>
    %7 = vector.broadcast %6 : vector<32x1xf32> to vector<32x128xf32>
    %8 = arith.subf %2, %7 : vector<32x128xf32>
    %9 = arith.mulf %8, %8 : vector<32x128xf32>
    %cst_3 = arith.constant dense<0.000000e+00> : vector<32xf32>
    %10 = vector.multi_reduction <add>, %9, %cst_3 [1] : vector<32x128xf32> to vector<32xf32>
    %11 = vector.shape_cast %10 : vector<32xf32> to vector<32x1xf32>
    %cst_4 = arith.constant 1.280000e+02 : f32
    %12 = vector.broadcast %cst_4 : f32 to vector<32x1xf32>
    %13 = arith.divf %11, %12 : vector<32x1xf32>
    %14 = vector.broadcast %6 : vector<32x1xf32> to vector<32x128xf32>
    %15 = arith.subf %2, %14 : vector<32x128xf32>
    %cst_5 = arith.constant 9.99999997E-7 : f32
    %16 = vector.broadcast %cst_5 : f32 to vector<32x1xf32>
    %17 = arith.addf %13, %16 : vector<32x1xf32>
    %18 = math.rsqrt %17 : vector<32x1xf32>
    %19 = vector.broadcast %18 : vector<32x1xf32> to vector<32x128xf32>
    %20 = arith.mulf %15, %19 : vector<32x128xf32>
    %c0_6 = arith.constant 0 : index
    %c0_7 = arith.constant 0 : index
    %c0_8 = arith.constant 0 : index
    %21 = vector.load %arg4[%c0_6, %c0_7, %c0_8] : memref<1x1x128xf32, #tpu.memory_space<vmem>>, vector<1x1x128xf32>
    %22 = vector.shape_cast %21 : vector<1x1x128xf32> to vector<1x128xf32>
    %cst_9 = arith.constant 1.000000e+00 : f32
    %23 = vector.broadcast %cst_9 : f32 to vector<1x128xf32>
    %24 = arith.addf %23, %22 : vector<1x128xf32>
    %25 = vector.broadcast %24 : vector<1x128xf32> to vector<32x128xf32>
    %26 = arith.mulf %20, %25 : vector<32x128xf32>
    %c0_10 = arith.constant 0 : index
    %c0_11 = arith.constant 0 : index
    %c0_12 = arith.constant 0 : index
    %27 = vector.load %arg3[%c0_10, %c0_11, %c0_12] : memref<1x1x128xf32, #tpu.memory_space<vmem>>, vector<1x1x128xf32>
    %28 = vector.shape_cast %27 : vector<1x1x128xf32> to vector<1x128xf32>
    %29 = vector.broadcast %28 : vector<1x128xf32> to vector<32x128xf32>
    %30 = arith.addf %26, %29 : vector<32x128xf32>
    %31 = arith.truncf %30 : vector<32x128xf32> to vector<32x128xbf16>
    %c0_13 = arith.constant 0 : index
    %c0_14 = arith.constant 0 : index
    %32 = vector.load %arg5[%c0_13, %c0_14] : memref<128x128xbf16, #tpu.memory_space<vmem>>, vector<128x128xbf16>
    %cst_15 = arith.constant dense<0.000000e+00> : vector<32x128xf32>
    %33 = tpu.matmul %31, %32, %cst_15 {dimension_numbers = #tpu.dot_dimension_numbers<[1], [0], [0], [1], [0, 0, 1, 1], [], []>} : vector<32x128xbf16>, vector<128x128xbf16>, vector<32x128xf32> -> vector<32x128xf32>
    %c0_16 = arith.constant 0 : index
    %c0_17 = arith.constant 0 : index
    %34 = vector.load %arg6[%c0_16, %c0_17] : memref<1x128xf32, #tpu.memory_space<vmem>>, vector<1x128xf32>
    %35 = vector.broadcast %34 : vector<1x128xf32> to vector<32x128xf32>
    %36 = arith.addf %33, %35 : vector<32x128xf32>
    %c0_18 = arith.constant 0 : index
    %c0_19 = arith.constant 0 : index
    %c0_20 = arith.constant 0 : index
    %37 = vector.load %arg7[%c0_18, %c0_19, %c0_20] : memref<1x32x128xf32, #tpu.memory_space<vmem>>, vector<1x32x128xf32>
    %38 = vector.shape_cast %37 : vector<1x32x128xf32> to vector<32x128xf32>
    %39 = vector.shape_cast %36 : vector<32x128xf32> to vector<1x32x128xf32>
    tpu.vector_store %arg7[%c0_18, %c0_19, %c0_20], %39 {strides = array<i32>} : memref<1x32x128xf32, #tpu.memory_space<vmem>>, vector<1x32x128xf32>,
    return
  }
  func.func @transform_0(%arg0: i32, %arg1: i32) -> (i32, i32, i32) {
    %c0_i32 = arith.constant 0 : i32
    %c0_i32_0 = arith.constant 0 : i32
    return %arg0, %arg1, %c0_i32 : i32, i32, i32
  }
  func.func @transform_1(%arg0: i32, %arg1: i32) -> (i32, i32, i32) {
    %c0_i32 = arith.constant 0 : i32
    %c0_i32_0 = arith.constant 0 : i32
    %c0_i32_1 = arith.constant 0 : i32
    return %arg0, %c0_i32, %c0_i32_0 : i32, i32, i32
  }
  func.func @transform_2(%arg0: i32, %arg1: i32) -> (i32, i32, i32) {
    %c0_i32 = arith.constant 0 : i32
    %c0_i32_0 = arith.constant 0 : i32
    %c0_i32_1 = arith.constant 0 : i32
    return %arg0, %c0_i32, %c0_i32_0 : i32, i32, i32
  }
  func.func @transform_3(%arg0: i32, %arg1: i32) -> (i32, i32) {
    %c0_i32 = arith.constant 0 : i32
    %c0_i32_0 = arith.constant 0 : i32
    %c0_i32_1 = arith.constant 0 : i32
    return %c0_i32, %c0_i32_0 : i32, i32
  }
  func.func @transform_4(%arg0: i32, %arg1: i32) -> (i32, i32) {
    %c0_i32 = arith.constant 0 : i32
    %c0_i32_0 = arith.constant 0 : i32
    %c0_i32_1 = arith.constant 0 : i32
    return %c0_i32, %c0_i32_0 : i32, i32
  }
  func.func @transform_5(%arg0: i32, %arg1: i32) -> (i32, i32, i32) {
    %c0_i32 = arith.constant 0 : i32
    %c0_i32_0 = arith.constant 0 : i32
    return %arg0, %arg1, %c0_i32 : i32, i32, i32
  }
}

</mosaic_0001>

<llo_original>
// kernel: lavindit_forward.13
$region0: #{lavindit_forward.13}
  #allocation0 [shape = 'u32[]', space=smem, size = 0x4, offset = 0x4, fixed_abs, tag = 'smem constant byte address 0x4 - core index']
  #allocation1 [shape = 'u32[144,128]{1,0:T(1,128)}', space=vmem, size = 0x12000, scoped, tag = 'internal scratch']
  %s0 = inlined_call_operand.vmem [shape: f32[2,32,16], index: 0, kind: input, shape index: {}]
  %s1 = inlined_call_operand.vmem [shape: bf16[16,128], index: 1, kind: input, shape index: {}]
  %s2 = inlined_call_operand.vmem [shape: f32[1,128], index: 2, kind: input, shape index: {}]
  %s3 = inlined_call_operand.vmem [shape: f32[1,128], index: 3, kind: input, shape index: {}]
  %s4 = inlined_call_operand.vmem [shape: f32[1,128], index: 4, kind: input, shape index: {}]
  %s5 = inlined_call_operand.vmem [shape: bf16[2,32,128], index: 5, kind: output, shape index: {}]
  %s6 = sld [smem:[#allocation0]]
  $region53: #{lavindit_forward.13} parent=0
    _
  %s8 = ssub.s32 1, %s6
  %s9 = scalar_select 0, %s8, %s6
  loop: start=0, step=1, limit=4
  $region2: #{lavindit_forward.13} parent=0 // loop_pre_header
    _
  $region3: #{lavindit_forward.13} parent=0 // loop_header
    %s11 = sphi 0, %s15
    %p12 = scmp.ge.s32.totalorder %s11, 4
    %s18 = sphi 0, %s30
    %s19 = sphi 0, %s26
    %s20 = sphi 0, %s18
    %s21 = sphi 0, %s19
    %s22 = sphi 0, %s20
    %s23 = sphi 0, %s21
    %s35 = sphi 0, %s37
    %s38 = sphi 0, %s35
    %s39 = sphi 0, %s38
    %s55 = sphi 0, %s39
    %s59 = sphi 0, %s59
    %s61 = sphi 0, %s59
    %s62 = sphi 0, %s61
    %s76 = sphi 0, %s62
    %s80 = sphi 0, %s80
    %s82 = sphi 0, %s80
    %s83 = sphi 0, %s82
    %s97 = sphi 0, %s83
    %s101 = sphi 0, %s101
    %s103 = sphi 0, %s101
    %s104 = sphi 0, %s103
    %s118 = sphi 0, %s104
    %s122 = sphi 0, %s122
    %s124 = sphi 0, %s122
    %s125 = sphi 0, %s124
    %s139 = sphi 0, %s125
    %s147 = sphi 0, %s149
    %s150 = sphi 0, %s147
    %s151 = sphi 0, %s150
    %s167 = sphi 0, %s151
  $region4: #{lavindit_forward.13} parent=0 // loop_header_branch
    %14 = sbr.rel (%p12) target = $region8
  $region5: #{lavindit_forward.13} parent=0 // loop_body
    %s16 = ssub.s32 %s11, 1
    %s17 = ssub.s32 %s11, 2
    %s24 = sadd.s32 1, %s19
    %p25 = scmp.ge.s32.totalorder %s24, 1
    %s26 = scalar_select %p25, 0, %s24
    %s27 = sadd.s32 1, %s18
    %s28 = scalar_select %p25, %s27, %s18
    %p29 = scmp.ge.s32.totalorder %s28, 2
    %s30 = scalar_select %p29, 0, %s28
    %s31 = ssub.s32 %s18, %s30
    %s32 = ssub.s32 %s19, %s26
    %s33 = sor.u32 %s31, %s32
    %p34 = scmp.eq.s32.totalorder %s33, 0
    %s36 = sadd.s32 %s35, 1
    %s37 = scalar_select %p34, %s35, %s36
    %p40 = pneg %p34
    %p41 = scmp.eq.s32.totalorder %s11, 1
    %p42 = por %p40, %p41
    %p43 = scmp.ne.s32.totalorder %s35, %s38
    %p44 = scmp.eq.s32.totalorder %s11, 0
    %p45 = por %p43, %p44
    %p46 = scmp.ne.s32.totalorder %s35, %s38
    %p47 = scmp.eq.s32.totalorder %s16, 1
    %p48 = por %p46, %p47
    %p49 = scmp.ne.s32.totalorder %s38, %s39
    %p50 = scmp.eq.s32.totalorder %s16, 0
    %p51 = por %p49, %p50
    %p52 = scmp.ne.s32.totalorder %s38, %s39
    %p53 = scmp.eq.s32.totalorder %s17, 1
    %p54 = por %p52, %p53
    %p56 = scmp.ne.s32.totalorder %s39, %s55
    %p57 = scmp.eq.s32.totalorder %s17, 0
    %p58 = por %p56, %p57
    %s60 = sadd.s32 %s59, 1
    %p63 = scmp.eq.s32.totalorder %s11, 1
    %p64 = scmp.ne.s32.totalorder %s59, %s61
    %p65 = scmp.eq.s32.totalorder %s11, 0
    %p66 = por %p64, %p65
    %p67 = scmp.ne.s32.totalorder %s59, %s61
    %p68 = scmp.eq.s32.totalorder %s16, 1
    %p69 = por %p67, %p68
    %p70 = scmp.ne.s32.totalorder %s61, %s62
    %p71 = scmp.eq.s32.totalorder %s16, 0
    %p72 = por %p70, %p71
    %p73 = scmp.ne.s32.totalorder %s61, %s62
    %p74 = scmp.eq.s32.totalorder %s17, 1
    %p75 = por %p73, %p74
    %p77 = scmp.ne.s32.totalorder %s62, %s76
    %p78 = scmp.eq.s32.totalorder %s17, 0
    %p79 = por %p77, %p78
    %s81 = sadd.s32 %s80, 1
    %p84 = scmp.eq.s32.totalorder %s11, 1
    %p85 = scmp.ne.s32.totalorder %s80, %s82
    %p86 = scmp.eq.s32.totalorder %s11, 0
    %p87 = por %p85, %p86
    %p88 = scmp.ne.s32.totalorder %s80, %s82
    %p89 = scmp.eq.s32.totalorder %s16, 1
    %p90 = por %p88, %p89
    %p91 = scmp.ne.s32.totalorder %s82, %s83
    %p92 = scmp.eq.s32.totalorder %s16, 0
    %p93 = por %p91, %p92
    %p94 = scmp.ne.s32.totalorder %s82, %s83
    %p95 = scmp.eq.s32.totalorder %s17, 1
    %p96 = por %p94, %p95
    %p98 = scmp.ne.s32.totalorder %s83, %s97
    %p99 = scmp.eq.s32.totalorder %s17, 0
    %p100 = por %p98, %p99
    %s102 = sadd.s32 %s101, 1
    %p105 = scmp.eq.s32.totalorder %s11, 1
    %p106 = scmp.ne.s32.totalorder %s101, %s103
    %p107 = scmp.eq.s32.totalorder %s11, 0
    %p108 = por %p106, %p107
    %p109 = scmp.ne.s32.totalorder %s101, %s103
    %p110 = scmp.eq.s32.totalorder %s16, 1
    %p111 = por %p109, %p110
    %p112 = scmp.ne.s32.totalorder %s103, %s104
    %p113 = scmp.eq.s32.totalorder %s16, 0
    %p114 = por %p112, %p113
    %p115 = scmp.ne.s32.totalorder %s103, %s104
    %p116 = scmp.eq.s32.totalorder %s17, 1
    %p117 = por %p115, %p116
    %p119 = scmp.ne.s32.totalorder %s104, %s118
    %p120 = scmp.eq.s32.totalorder %s17, 0
    %p121 = por %p119, %p120
    %s123 = sadd.s32 %s122, 1
    %p126 = scmp.eq.s32.totalorder %s11, 1
    %p127 = scmp.ne.s32.totalorder %s122, %s124
    %p128 = scmp.eq.s32.totalorder %s11, 0
    %p129 = por %p127, %p128
    %p130 = scmp.ne.s32.totalorder %s122, %s124
    %p131 = scmp.eq.s32.totalorder %s16, 1
    %p132 = por %p130, %p131
    %p133 = scmp.ne.s32.totalorder %s124, %s125
    %p134 = scmp.eq.s32.totalorder %s16, 0
    %p135 = por %p133, %p134
    %p136 = scmp.ne.s32.totalorder %s124, %s125
    %p137 = scmp.eq.s32.totalorder %s17, 1
    %p138 = por %p136, %p137
    %p140 = scmp.ne.s32.totalorder %s125, %s139
    %p141 = scmp.eq.s32.totalorder %s17, 0
    %p142 = por %p140, %p141
    %s143 = ssub.s32 %s18, %s30
    %s144 = ssub.s32 %s19, %s26
    %s145 = sor.u32 %s143, %s144
    %p146 = scmp.eq.s32.totalorder %s145, 0
    %s148 = sadd.s32 %s147, 1
    %s149 = scalar_select %p146, %s147, %s148
    %p152 = pneg %p146
    %p153 = scmp.eq.s32.totalorder %s11, 1
    %p154 = por %p152, %p153
    %p155 = scmp.ne.s32.totalorder %s147, %s150
    %p156 = scmp.eq.s32.totalorder %s11, 0
    %p157 = por %p155, %p156
    %p158 = scmp.ne.s32.totalorder %s147, %s150
    %p159 = scmp.eq.s32.totalorder %s16, 1
    %p160 = por %p158, %p159
    %p161 = scmp.ne.s32.totalorder %s150, %s151
    %p162 = scmp.eq.s32.totalorder %s16, 0
    %p163 = por %p161, %p162
    %p164 = scmp.ne.s32.totalorder %s150, %s151
    %p165 = scmp.eq.s32.totalorder %s17, 1
    %p166 = por %p164, %p165
    %p168 = scmp.ne.s32.totalorder %s151, %s167
    %p169 = scmp.eq.s32.totalorder %s17, 0
    %p170 = por %p168, %p169
    %p171 = scmp.le.s32.totalorder 1, %s11
    %p172 = scmp.lt.s32.totalorder %s11, 3
    %p173 = pnand %p171, %p172
    %p174 = pneg %p173
    // Predicated region
    $region9: #{lavindit_forward.13} parent=5 // pred_check
      _
    $region10: #{lavindit_forward.13} parent=5 // pred_check_branch
      %176 = sbr.rel (%p173) target = $region12
    $region11: #{lavindit_forward.13} parent=5 // pred_region
      %s177 = ssub.s32 %s11, 1
      // Predicated region
      $region13: #{lavindit_forward.13} parent=11 // pred_check
        %p178 = pneg %p72
      $region14: #{lavindit_forward.13} parent=11 // pred_check_branch
        %180 = sbr.rel (%p178) target = $region16
      $region15: #{lavindit_forward.13} parent=11 // pred_region
        _
      $region16: #{lavindit_forward.13} parent=11 // pred_fallthru
        _
      // Predicated region
      $region17: #{lavindit_forward.13} parent=11 // pred_check
        %p181 = pneg %p93
      $region18: #{lavindit_forward.13} parent=11 // pred_check_branch
        %183 = sbr.rel (%p181) target = $region20
      $region19: #{lavindit_forward.13} parent=11 // pred_region
        _
      $region20: #{lavindit_forward.13} parent=11 // pred_fallthru
        _
      // Predicated region
      $region21: #{lavindit_forward.13} parent=11 // pred_check
        %p184 = pneg %p114
      $region22: #{lavindit_forward.13} parent=11 // pred_check_branch
        %186 = sbr.rel (%p184) target = $region24
      $region23: #{lavindit_forward.13} parent=11 // pred_region
        _
      $region24: #{lavindit_forward.13} parent=11 // pred_fallthru
        _
      // Predicated region
      $region25: #{lavindit_forward.13} parent=11 // pred_check
        %p187 = pneg %p135
      $region26: #{lavindit_forward.13} parent=11 // pred_check_branch
        %189 = sbr.rel (%p187) target = $region28
      $region27: #{lavindit_forward.13} parent=11 // pred_region
        _
      $region28: #{lavindit_forward.13} parent=11 // pred_fallthru
        _
    $region12: #{lavindit_forward.13} parent=5 // pred_fallthru
      _
    %p190 = scmp.lt.s32.totalorder %s11, 2
    // Predicated region
    $region29: #{lavindit_forward.13} parent=5 // pred_check
      %p191 = pneg %p190
    $region30: #{lavindit_forward.13} parent=5 // pred_check_branch
      %193 = sbr.rel (%p191) target = $region32
    $region31: #{lavindit_forward.13} parent=5 // pred_region
      // Predicated region
      $region33: #{lavindit_forward.13} parent=31 // pred_check
        %p194 = pneg %p45
      $region34: #{lavindit_forward.13} parent=31 // pred_check_branch
        %196 = sbr.rel (%p194) target = $region36
      $region35: #{lavindit_forward.13} parent=31 // pred_region
        %s197 = smul.u32 4, %s19
        %p198 = scmp.lt.s32.totalorder %s18, 1
        %s199 = scalar_select %p198, %s18, 1
        %p200 = scmp.lt.s32.totalorder %s197, 3
        %s201 = scalar_select %p200, %s197, 3
        %s202 = smul.addr %s199, 4
        %s203 = sadd.s32 %s201, %s202
        %s204 = smul.addr %s203, 8
        %s205 = scalar_lea.vmem %s0, %s204
        %s206 = smul.u32 4, %s19
      $region36: #{lavindit_forward.13} parent=31 // pred_fallthru
        _
    $region32: #{lavindit_forward.13} parent=5 // pred_fallthru
      _
    %p207 = scmp.le.s32.totalorder 1, %s11
    %p208 = scmp.lt.s32.totalorder %s11, 3
    %p209 = pnand %p207, %p208
    %p210 = pneg %p209
    // Predicated region
    $region37: #{lavindit_forward.13} parent=5 // pred_check
      _
    $region38: #{lavindit_forward.13} parent=5 // pred_check_branch
      %212 = sbr.rel (%p209) target = $region40
    $region39: #{lavindit_forward.13} parent=5 // pred_region
      %s213 = ssub.s32 %s11, 1
      %s214 = smul.u32 4, %s21
      %p215 = scmp.lt.s32.totalorder %s20, 1
      %s216 = scalar_select %p215, %s20, 1
      %p217 = scmp.lt.s32.totalorder %s214, 3
      %s218 = scalar_select %p217, %s214, 3
      %s219 = smul.addr %s216, 4
      %s220 = sadd.s32 %s218, %s219
      %s221 = smul.addr %s220, 8
      %s222 = scalar_lea.vmem %s0, %s221
      %p223 = pneg %p51
      %p224 = pneg %p48
      %p225 = pneg %p72
      %p226 = pneg %p69
      %p227 = pneg %p93
      %p228 = pneg %p90
      %p229 = pneg %p114
      %p230 = pneg %p111
      %p231 = pneg %p135
      %p232 = pneg %p132
      %p233 = pneg %p163
      %p234 = pneg %p160
      %s235 = smul.u32 4, %s21
      %p236 = scmp.lt.s32.totalorder %s20, 1
      %s237 = scalar_select %p236, %s20, 1
      %p238 = scmp.lt.s32.totalorder %s235, 3
      %s239 = scalar_select %p238, %s235, 3
      %s240 = smul.addr %s237, 4
      %s241 = sadd.s32 %s239, %s240
      %s242 = smul.addr %s241, 4
      %s243 = scalar_lea.vmem %s5, %s242
      %s244 = smul.u32 4, %s21
      %p245 = scmp.lt.s32.totalorder %s20, 1
      %s246 = scalar_select %p245, %s20, 1
      %p247 = scmp.lt.s32.totalorder %s244, 3
      %s248 = scalar_select %p247, %s244, 3
      %s249 = smul.addr %s246, 4
      %s250 = sadd.s32 %s248, %s249
      %s251 = smul.addr %s250, 8
      %s252 = scalar_lea.vmem %s0, %s251
      %s253 = smul.u32 4, %s21
      %s254 = smul.u32 4, %s21
      %p255 = scmp.lt.s32.totalorder %s20, 1
      %s256 = scalar_select %p255, %s20, 1
      %p257 = scmp.lt.s32.totalorder %s254, 3
      %s258 = scalar_select %p257, %s254, 3
      %s259 = smul.addr %s256, 4
      %s260 = sadd.s32 %s258, %s259
      %s261 = smul.addr %s260, 4
      %s262 = scalar_lea.vmem %s5, %s261
      %s263 = smul.u32 4, %s21
      %v265 = vld [vmem:[%s252] sm:$0xff]
      %v266 = vld [vmem:[%s252 + $0x8] sm:$0xff]
      %v267 = vld [vmem:[%s252 + $0x10] sm:$0xff]
      %v268 = vld [vmem:[%s252 + $0x18] sm:$0xff]
      %v269 = vpack.c.bf16 %v266, %v265
      %v270 = vpack.c.bf16 %v268, %v267
      %v271 = vld [vmem:[%s1] sm:$0xf]
      %v272 = vld [vmem:[%s1 + $0x4] sm:$0xf]
      %v273 = vld [vmem:[%s2] sm:$0x1]
      %v275 = vlaneseq
      %v276 = vshrl.u32 %v275, 7
      %v277 = vsub.s32 0, %v276
      %v278 = vrot.slane %v273, %v277
      %v282 = vunpack.c.l.b16 %v271
      %v283 = vunpack.c.l.b16 %v272
      %v284 = vpack.c.b16 %v283, %v282
      %vm286 = vcmask 130048
      %v288 = vsel %vm286, %v269, 0
      %v291 = vsel %vm286, %v270, 0
      %293 = vmatprep.subr.bf16.mxu0 0
      %294 = vmatpush1.bf16.msra.mxu0 %v284
      %295 = vmatprep.subr.bf16.mxu0 0
      %296 = vmatpush1.bf16.msra.mxu0 0
      %297 = vmatprep.subr.bf16.mxu0 0
      %298 = vmatpush1.bf16.msra.mxu0 0
      %299 = vmatprep.subr.bf16.mxu0 0
      %300 = vmatpush1.bf16.msra.mxu0 0
      %301 = vmatprep.subr.bf16.mxu0 0
      %302 = vmatpush1.bf16.msra.mxu0 0
      %303 = vmatprep.subr.bf16.mxu0 0
      %304 = vmatpush1.bf16.msra.mxu0 0
      %305 = vmatprep.subr.bf16.mxu0 0
      %306 = vmatpush1.bf16.msra.mxu0 0
      %307 = vmatprep.subr.bf16.mxu0 0
      %308 = vmatpush1.bf16.msra.mxu0 0
      %309 = vmatprep.subr.bf16.mxu0 0
      %310 = vmatpush1.bf16.msra.mxu0 0
      %311 = vmatprep.subr.bf16.mxu0 0
      %312 = vmatpush1.bf16.msra.mxu0 0
      %313 = vmatprep.subr.bf16.mxu0 0
      %314 = vmatpush1.bf16.msra.mxu0 0
      %315 = vmatprep.subr.bf16.mxu0 0
      %316 = vmatpush1.bf16.msra.mxu0 0
      %317 = vmatprep.subr.bf16.mxu0 0
      %318 = vmatpush1.bf16.msra.mxu0 0
      %319 = vmatprep.subr.bf16.mxu0 0
      %320 = vmatpush1.bf16.msra.mxu0 0
      %321 = vmatprep.subr.bf16.mxu0 0
      %322 = vmatpush1.bf16.msra.mxu0 0
      %323 = vmatprep.subr.bf16.mxu0 0
      %324 = vmatpush1.bf16.msra.mxu0 0
      %325 = vmatprep.mubr.bf16.mxu0 0
      %326 = vmatmul.mubr.bf16.gmra.mrb[0].mxu0 %v288
      %v327 = vpop.f32.mrb[0].mxu0
      %v328 = vadd.f32 %v278, %v327
      %v329 = vpop.f32.mrb[0].mxu0
      %v330 = vpop.f32.mrb[0].mxu0
      %v331 = vadd.f32 %v278, %v330
      %v332 = vpop.f32.mrb[0].mxu0
      %333 = vmatprep.mubr.bf16.mxu0 0
      %334 = vmatmul.mubr.bf16.gmra.mrb[0].mxu0 %v291
      %v335 = vpop.f32.mrb[0].mxu0
      %v336 = vadd.f32 %v278, %v335
      %v337 = vpop.f32.mrb[0].mxu0
      %v338 = vpop.f32.mrb[0].mxu0
      %v339 = vadd.f32 %v278, %v338
      %v340 = vpop.f32.mrb[0].mxu0
      %341 = vdwg.mxu0
      %342 = vadd.xlane.f32.xlu0 %v328
      %v343 = vpop.xlane.xlu0 %342
      %344 = vadd.xlane.f32.xlu0 %v331
      %v345 = vpop.xlane.xlu0 %344
      %346 = vadd.xlane.f32.xlu0 %v336
      %v347 = vpop.xlane.xlu0 %346
      %348 = vadd.xlane.f32.xlu0 %v339
      %v349 = vpop.xlane.xlu0 %348
      %v350 = vrcp.pop 128.0
      %v351 = vmul.f32 %v343, %v350
      %v352 = vmul.f32 %v345, %v350
      %v353 = vmul.f32 %v347, %v350
      %v354 = vmul.f32 %v349, %v350
      %v355 = vsub.f32 %v328, %v351
      %v356 = vsub.f32 %v331, %v352
      %v357 = vsub.f32 %v336, %v353
      %v358 = vsub.f32 %v339, %v354
      %v359 = vmul.f32 %v355, %v355
      %v360 = vmul.f32 %v356, %v356
      %v361 = vmul.f32 %v357, %v357
      %v362 = vmul.f32 %v358, %v358
      %363 = vadd.xlane.f32.xlu0 %v359
      %v364 = vpop.xlane.xlu0 %363
      %365 = vadd.xlane.f32.xlu0 %v360
      %v366 = vpop.xlane.xlu0 %365
      %367 = vadd.xlane.f32.xlu0 %v361
      %v368 = vpop.xlane.xlu0 %367
      %369 = vadd.xlane.f32.xlu0 %v362
      %v370 = vpop.xlane.xlu0 %369
      %v371 = vmul.f32 %v364, %v350
      %v372 = vmul.f32 %v366, %v350
      %v373 = vmul.f32 %v368, %v350
      %v374 = vmul.f32 %v370, %v350
      %v375 = vadd.f32 %v371, 1e-06
      %v376 = vadd.f32 %v372, 1e-06
      %v377 = vadd.f32 %v373, 1e-06
      %v378 = vadd.f32 %v374, 1e-06
      %v379 = vrsqrt.pop %v375
      %v380 = vrsqrt.pop %v376
      %v381 = vrsqrt.pop %v377
      %v382 = vrsqrt.pop %v378
      %v383 = vmul.f32 %v355, %v379
      %v384 = vmul.f32 %v356, %v380
      %v385 = vmul.f32 %v357, %v381
      %v386 = vmul.f32 %v358, %v382
      %v387 = vld [vmem:[%s3] sm:$0x1]
      %v389 = vlaneseq
      %v390 = vshrl.u32 %v389, 7
      %v391 = vsub.s32 0, %v390
      %v392 = vrot.slane %v387, %v391
      %v394 = vmul.f32 %v383, %v392
      %v395 = vmul.f32 %v384, %v392
      %v396 = vmul.f32 %v385, %v392
      %v397 = vmul.f32 %v386, %v392
      %v398 = vld [vmem:[%s4] sm:$0x1]
      %v400 = vlaneseq
      %v401 = vshrl.u32 %v400, 7
      %v402 = vsub.s32 0, %v401
      %v403 = vrot.slane %v398, %v402
      %v405 = vadd.f32 %v394, %v403
      %v406 = vadd.f32 %v395, %v403
      %v407 = vadd.f32 %v396, %v403
      %v408 = vadd.f32 %v397, %v403
      %v409 = vpack.c.bf16 %v406, %v405
      %v410 = vpack.c.bf16 %v408, %v407
      %v413 = vunpack.c.l.b16 %v409
      %v414 = vunpack.c.h.b16 %v409
      %v415 = vunpack.c.l.b16 %v410
      %v416 = vunpack.c.h.b16 %v410
      %v417 = vpack.c.b16 %v413, %v413
      %v418 = vpack.c.b16 %v414, %v414
      %v419 = vpack.c.b16 %v415, %v415
      %v420 = vpack.c.b16 %v416, %v416
      %425 = vst [vmem:[%s262] sm:$0xf] %v417
      %426 = vst [vmem:[%s262 + $0x4] sm:$0xf] %v418
      %427 = vst [vmem:[%s262 + $0x8] sm:$0xf] %v419
      %428 = vst [vmem:[%s262 + $0xc] sm:$0xf] %v420
      %s429 = smul.u32 4, %s21
      %p430 = scmp.lt.s32.totalorder %s20, 1
      %s431 = scalar_select %p430, %s20, 1
      %p432 = scmp.lt.s32.totalorder %s429, 3
      %s433 = scalar_select %p432, %s429, 3
      %s434 = smul.addr %s431, 4
      %s435 = sadd.s32 %s433, %s434
      %s436 = smul.addr %s435, 4
      %s437 = scalar_lea.vmem %s5, %s436
      // Predicated region
      $region41: #{lavindit_forward.13} parent=39 // pred_check
        %p438 = pneg %p160
      $region42: #{lavindit_forward.13} parent=39 // pred_check_branch
        %440 = sbr.rel (%p438) target = $region44
      $region43: #{lavindit_forward.13} parent=39 // pred_region
        %s441 = smul.u32 4, %s21
      $region44: #{lavindit_forward.13} parent=39 // pred_fallthru
        _
    $region40: #{lavindit_forward.13} parent=5 // pred_fallthru
      _
    %p442 = scmp.le.s32.totalorder 2, %s11
    // Predicated region
    $region45: #{lavindit_forward.13} parent=5 // pred_check
      %p443 = pneg %p442
    $region46: #{lavindit_forward.13} parent=5 // pred_check_branch
      %445 = sbr.rel (%p443) target = $region48
    $region47: #{lavindit_forward.13} parent=5 // pred_region
      %s446 = ssub.s32 %s11, 2
      // Predicated region
      $region49: #{lavindit_forward.13} parent=47 // pred_check
        %p447 = pneg %p166
      $region50: #{lavindit_forward.13} parent=47 // pred_check_branch
        %449 = sbr.rel (%p447) target = $region52
      $region51: #{lavindit_forward.13} parent=47 // pred_region
        %s450 = smul.u32 4, %s23
        %p451 = scmp.lt.s32.totalorder %s22, 1
        %s452 = scalar_select %p451, %s22, 1
        %p453 = scmp.lt.s32.totalorder %s450, 3
        %s454 = scalar_select %p453, %s450, 3
        %s455 = smul.addr %s452, 4
        %s456 = sadd.s32 %s454, %s455
        %s457 = smul.addr %s456, 4
        %s458 = scalar_lea.vmem %s5, %s457
      $region52: #{lavindit_forward.13} parent=47 // pred_fallthru
        _
    $region48: #{lavindit_forward.13} parent=5 // pred_fallthru
      _
  $region6: #{lavindit_forward.13} parent=0 // loop_footer
    %s15 = sadd.s32 1, %s11
  $region7: #{lavindit_forward.13} parent=0 // loop_footer_branch
    %10 = sbr.rel target = $region3
  $region8: #{lavindit_forward.13} parent=0 // loop_exit
    _

// kernel: lavindit_forward.15
$region0: #{lavindit_forward.15}
  #allocation0 [shape = 'u32[]', space=smem, size = 0x4, offset = 0x4, fixed_abs, tag = 'smem constant byte address 0x4 - core index']
  #allocation1 [shape = 'u32[144,128]{1,0:T(1,128)}', space=vmem, size = 0x12000, scoped, tag = 'internal scratch']
  %s0 = inlined_call_operand.vmem [shape: bf16[2,32,128], index: 0, kind: input, shape index: {}]
  %s1 = inlined_call_operand.vmem [shape: f32[2,1,128], index: 1, kind: input, shape index: {}]
  %s2 = inlined_call_operand.vmem [shape: f32[2,1,128], index: 2, kind: input, shape index: {}]
  %s3 = inlined_call_operand.vmem [shape: bf16[128,384], index: 3, kind: input, shape index: {}]
  %s4 = inlined_call_operand.vmem [shape: f32[1,384], index: 4, kind: input, shape index: {}]
  %s5 = inlined_call_operand.vmem [shape: bf16[2,32,384], index: 5, kind: output, shape index: {}]
  %s6 = sld [smem:[#allocation0]]
  $region53: #{lavindit_forward.15} parent=0
    _
  %s8 = ssub.s32 1, %s6
  %s9 = scalar_select 0, %s8, %s6
  loop: start=0, step=1, limit=4
  $region2: #{lavindit_forward.15} parent=0 // loop_pre_header
    _
  $region3: #{lavindit_forward.15} parent=0 // loop_header
    %s11 = sphi 0, %s15
    %p12 = scmp.ge.s32.totalorder %s11, 4
    %s18 = sphi 0, %s30
    %s19 = sphi 0, %s26
    %s20 = sphi 0, %s18
    %s21 = sphi 0, %s19
    %s22 = sphi 0, %s20
    %s23 = sphi 0, %s21
    %s35 = sphi 0, %s37
    %s38 = sphi 0, %s35
    %s39 = sphi 0, %s38
    %s55 = sphi 0, %s39
    %s61 = sphi 0, %s63
    %s64 = sphi 0, %s61
    %s65 = sphi 0, %s64
    %s81 = sphi 0, %s65
    %s87 = sphi 0, %s89
    %s90 = sphi 0, %s87
    %s91 = sphi 0, %s90
    %s107 = sphi 0, %s91
    %s111 = sphi 0, %s111
    %s113 = sphi 0, %s111
    %s114 = sphi 0, %s113
    %s128 = sphi 0, %s114
    %s132 = sphi 0, %s132
    %s134 = sphi 0, %s132
    %s135 = sphi 0, %s134
    %s149 = sphi 0, %s135
    %s157 = sphi 0, %s159
    %s160 = sphi 0, %s157
    %s161 = sphi 0, %s160
    %s177 = sphi 0, %s161
  $region4: #{lavindit_forward.15} parent=0 // loop_header_branch
    %14 = sbr.rel (%p12) target = $region8
  $region5: #{lavindit_forward.15} parent=0 // loop_body
    %s16 = ssub.s32 %s11, 1
    %s17 = ssub.s32 %s11, 2
    %s24 = sadd.s32 1, %s19
    %p25 = scmp.ge.s32.totalorder %s24, 1
    %s26 = scalar_select %p25, 0, %s24
    %s27 = sadd.s32 1, %s18
    %s28 = scalar_select %p25, %s27, %s18
    %p29 = scmp.ge.s32.totalorder %s28, 2
    %s30 = scalar_select %p29, 0, %s28
    %s31 = ssub.s32 %s18, %s30
    %s32 = ssub.s32 %s19, %s26
    %s33 = sor.u32 %s31, %s32
    %p34 = scmp.eq.s32.totalorder %s33, 0
    %s36 = sadd.s32 %s35, 1
    %s37 = scalar_select %p34, %s35, %s36
    %p40 = pneg %p34
    %p41 = scmp.eq.s32.totalorder %s11, 1
    %p42 = por %p40, %p41
    %p43 = scmp.ne.s32.totalorder %s35, %s38
    %p44 = scmp.eq.s32.totalorder %s11, 0
    %p45 = por %p43, %p44
    %p46 = scmp.ne.s32.totalorder %s35, %s38
    %p47 = scmp.eq.s32.totalorder %s16, 1
    %p48 = por %p46, %p47
    %p49 = scmp.ne.s32.totalorder %s38, %s39
    %p50 = scmp.eq.s32.totalorder %s16, 0
    %p51 = por %p49, %p50
    %p52 = scmp.ne.s32.totalorder %s38, %s39
    %p53 = scmp.eq.s32.totalorder %s17, 1
    %p54 = por %p52, %p53
    %p56 = scmp.ne.s32.totalorder %s39, %s55
    %p57 = scmp.eq.s32.totalorder %s17, 0
    %p58 = por %p56, %p57
    %s59 = ssub.s32 %s18, %s30
    %p60 = scmp.eq.s32.totalorder %s59, 0
    %s62 = sadd.s32 %s61, 1
    %s63 = scalar_select %p60, %s61, %s62
    %p66 = pneg %p60
    %p67 = scmp.eq.s32.totalorder %s11, 1
    %p68 = por %p66, %p67
    %p69 = scmp.ne.s32.totalorder %s61, %s64
    %p70 = scmp.eq.s32.totalorder %s11, 0
    %p71 = por %p69, %p70
    %p72 = scmp.ne.s32.totalorder %s61, %s64
    %p73 = scmp.eq.s32.totalorder %s16, 1
    %p74 = por %p72, %p73
    %p75 = scmp.ne.s32.totalorder %s64, %s65
    %p76 = scmp.eq.s32.totalorder %s16, 0
    %p77 = por %p75, %p76
    %p78 = scmp.ne.s32.totalorder %s64, %s65
    %p79 = scmp.eq.s32.totalorder %s17, 1
    %p80 = por %p78, %p79
    %p82 = scmp.ne.s32.totalorder %s65, %s81
    %p83 = scmp.eq.s32.totalorder %s17, 0
    %p84 = por %p82, %p83
    %s85 = ssub.s32 %s18, %s30
    %p86 = scmp.eq.s32.totalorder %s85, 0
    %s88 = sadd.s32 %s87, 1
    %s89 = scalar_select %p86, %s87, %s88
    %p92 = pneg %p86
    %p93 = scmp.eq.s32.totalorder %s11, 1
    %p94 = por %p92, %p93
    %p95 = scmp.ne.s32.totalorder %s87, %s90
    %p96 = scmp.eq.s32.totalorder %s11, 0
    %p97 = por %p95, %p96
    %p98 = scmp.ne.s32.totalorder %s87, %s90
    %p99 = scmp.eq.s32.totalorder %s16, 1
    %p100 = por %p98, %p99
    %p101 = scmp.ne.s32.totalorder %s90, %s91
    %p102 = scmp.eq.s32.totalorder %s16, 0
    %p103 = por %p101, %p102
    %p104 = scmp.ne.s32.totalorder %s90, %s91
    %p105 = scmp.eq.s32.totalorder %s17, 1
    %p106 = por %p104, %p105
    %p108 = scmp.ne.s32.totalorder %s91, %s107
    %p109 = scmp.eq.s32.totalorder %s17, 0
    %p110 = por %p108, %p109
    %s112 = sadd.s32 %s111, 1
    %p115 = scmp.eq.s32.totalorder %s11, 1
    %p116 = scmp.ne.s32.totalorder %s111, %s113
    %p117 = scmp.eq.s32.totalorder %s11, 0
    %p118 = por %p116, %p117
    %p119 = scmp.ne.s32.totalorder %s111, %s113
    %p120 = scmp.eq.s32.totalorder %s16, 1
    %p121 = por %p119, %p120
    %p122 = scmp.ne.s32.totalorder %s113, %s114
    %p123 = scmp.eq.s32.totalorder %s16, 0
    %p124 = por %p122, %p123
    %p125 = scmp.ne.s32.totalorder %s113, %s114
    %p126 = scmp.eq.s32.totalorder %s17, 1
    %p127 = por %p125, %p126
    %p129 = scmp.ne.s32.totalorder %s114, %s128
    %p130 = scmp.eq.s32.totalorder %s17, 0
    %p131 = por %p129, %p130
    %s133 = sadd.s32 %s132, 1
    %p136 = scmp.eq.s32.totalorder %s11, 1
    %p137 = scmp.ne.s32.totalorder %s132, %s134
    %p138 = scmp.eq.s32.totalorder %s11, 0
    %p139 = por %p137, %p138
    %p140 = scmp.ne.s32.totalorder %s132, %s134
    %p141 = scmp.eq.s32.totalorder %s16, 1
    %p142 = por %p140, %p141
    %p143 = scmp.ne.s32.totalorder %s134, %s135
    %p144 = scmp.eq.s32.totalorder %s16, 0
    %p145 = por %p143, %p144
    %p146 = scmp.ne.s32.totalorder %s134, %s135
    %p147 = scmp.eq.s32.totalorder %s17, 1
    %p148 = por %p146, %p147
    %p150 = scmp.ne.s32.totalorder %s135, %s149
    %p151 = scmp.eq.s32.totalorder %s17, 0
    %p152 = por %p150, %p151
    %s153 = ssub.s32 %s18, %s30
    %s154 = ssub.s32 %s19, %s26
    %s155 = sor.u32 %s153, %s154
    %p156 = scmp.eq.s32.totalorder %s155, 0
    %s158 = sadd.s32 %s157, 1
    %s159 = scalar_select %p156, %s157, %s158
    %p162 = pneg %p156
    %p163 = scmp.eq.s32.totalorder %s11, 1
    %p164 = por %p162, %p163
    %p165 = scmp.ne.s32.totalorder %s157, %s160
    %p166 = scmp.eq.s32.totalorder %s11, 0
    %p167 = por %p165, %p166
    %p168 = scmp.ne.s32.totalorder %s157, %s160
    %p169 = scmp.eq.s32.totalorder %s16, 1
    %p170 = por %p168, %p169
    %p171 = scmp.ne.s32.totalorder %s160, %s161
    %p172 = scmp.eq.s32.totalorder %s16, 0
    %p173 = por %p171, %p172
    %p174 = scmp.ne.s32.totalorder %s160, %s161
    %p175 = scmp.eq.s32.totalorder %s17, 1
    %p176 = por %p174, %p175
    %p178 = scmp.ne.s32.totalorder %s161, %s177
    %p179 = scmp.eq.s32.totalorder %s17, 0
    %p180 = por %p178, %p179
    %p181 = scmp.le.s32.totalorder 1, %s11
    %p182 = scmp.lt.s32.totalorder %s11, 3
    %p183 = pnand %p181, %p182
    %p184 = pneg %p183
    // Predicated region
    $region9: #{lavindit_forward.15} parent=5 // pred_check
      _
    $region10: #{lavindit_forward.15} parent=5 // pred_check_branch
      %186 = sbr.rel (%p183) target = $region12
    $region11: #{lavindit_forward.15} parent=5 // pred_region
      %s187 = ssub.s32 %s11, 1
      // Predicated region
      $region13: #{lavindit_forward.15} parent=11 // pred_check
        %p188 = pneg %p124
      $region14: #{lavindit_forward.15} parent=11 // pred_check_branch
        %190 = sbr.rel (%p188) target = $region16
      $region15: #{lavindit_forward.15} parent=11 // pred_region
        _
      $region16: #{lavindit_forward.15} parent=11 // pred_fallthru
        _
      // Predicated region
      $region17: #{lavindit_forward.15} parent=11 // pred_check
        %p191 = pneg %p145
      $region18: #{lavindit_forward.15} parent=11 // pred_check_branch
        %193 = sbr.rel (%p191) target = $region20
      $region19: #{lavindit_forward.15} parent=11 // pred_region
        _
      $region20: #{lavindit_forward.15} parent=11 // pred_fallthru
        _
    $region12: #{lavindit_forward.15} parent=5 // pred_fallthru
      _
    %p194 = scmp.lt.s32.totalorder %s11, 2
    // Predicated region
    $region21: #{lavindit_forward.15} parent=5 // pred_check
      %p195 = pneg %p194
    $region22: #{lavindit_forward.15} parent=5 // pred_check_branch
      %197 = sbr.rel (%p195) target = $region24
    $region23: #{lavindit_forward.15} parent=5 // pred_region
      // Predicated region
      $region25: #{lavindit_forward.15} parent=23 // pred_check
        %p198 = pneg %p45
      $region26: #{lavindit_forward.15} parent=23 // pred_check_branch
        %200 = sbr.rel (%p198) target = $region28
      $region27: #{lavindit_forward.15} parent=23 // pred_region
        %s201 = smul.u32 4, %s19
        %p202 = scmp.lt.s32.totalorder %s18, 1
        %s203 = scalar_select %p202, %s18, 1
        %p204 = scmp.lt.s32.totalorder %s201, 3
        %s205 = scalar_select %p204, %s201, 3
        %s206 = smul.addr %s203, 4
        %s207 = sadd.s32 %s205, %s206
        %s208 = smul.addr %s207, 4
        %s209 = scalar_lea.vmem %s0, %s208
        %s210 = smul.u32 4, %s19
      $region28: #{lavindit_forward.15} parent=23 // pred_fallthru
        _
      // Predicated region
      $region29: #{lavindit_forward.15} parent=23 // pred_check
        %p211 = pneg %p71
      $region30: #{lavindit_forward.15} parent=23 // pred_check_branch
        %213 = sbr.rel (%p211) target = $region32
      $region31: #{lavindit_forward.15} parent=23 // pred_region
        %p214 = scmp.lt.s32.totalorder %s18, 1
        %s215 = scalar_select %p214, %s18, 1
        %s216 = scalar_lea.vmem %s1, %s215
      $region32: #{lavindit_forward.15} parent=23 // pred_fallthru
        _
      // Predicated region
      $region33: #{lavindit_forward.15} parent=23 // pred_check
        %p217 = pneg %p97
      $region34: #{lavindit_forward.15} parent=23 // pred_check_branch
        %219 = sbr.rel (%p217) target = $region36
      $region35: #{lavindit_forward.15} parent=23 // pred_region
        %p220 = scmp.lt.s32.totalorder %s18, 1
        %s221 = scalar_select %p220, %s18, 1
        %s222 = scalar_lea.vmem %s2, %s221
      $region36: #{lavindit_forward.15} parent=23 // pred_fallthru
        _
    $region24: #{lavindit_forward.15} parent=5 // pred_fallthru
      _
    %p223 = scmp.le.s32.totalorder 1, %s11
    %p224 = scmp.lt.s32.totalorder %s11, 3
    %p225 = pnand %p223, %p224
    %p226 = pneg %p225
    // Predicated region
    $region37: #{lavindit_forward.15} parent=5 // pred_check
      _
    $region38: #{lavindit_forward.15} parent=5 // pred_check_branch
      %228 = sbr.rel (%p225) target = $region40
    $region39: #{lavindit_forward.15} parent=5 // pred_region
      %s229 = ssub.s32 %s11, 1
      %s230 = smul.u32 4, %s21
      %p231 = scmp.lt.s32.totalorder %s20, 1
      %s232 = scalar_select %p231, %s20, 1
      %p233 = scmp.lt.s32.totalorder %s230, 3
      %s234 = scalar_select %p233, %s230, 3
      %s235 = smul.addr %s232, 4
      %s236 = sadd.s32 %s234, %s235
      %s237 = smul.addr %s236, 4
      %s238 = scalar_lea.vmem %s0, %s237
      %p239 = pneg %p51
      %p240 = pneg %p48
      %p241 = scmp.lt.s32.totalorder %s20, 1
      %s242 = scalar_select %p241, %s20, 1
      %s243 = scalar_lea.vmem %s1, %s242
      %p244 = pneg %p77
      %p245 = pneg %p74
      %p246 = scmp.lt.s32.totalorder %s20, 1
      %s247 = scalar_select %p246, %s20, 1
      %s248 = scalar_lea.vmem %s2, %s247
      %p249 = pneg %p103
      %p250 = pneg %p100
      %p251 = pneg %p124
      %p252 = pneg %p121
      %p253 = pneg %p145
      %p254 = pneg %p142
      %p255 = pneg %p173
      %p256 = pneg %p170
      %s257 = smul.u32 4, %s21
      %p258 = scmp.lt.s32.totalorder %s20, 1
      %s259 = scalar_select %p258, %s20, 1
      %p260 = scmp.lt.s32.totalorder %s257, 3
      %s261 = scalar_select %p260, %s257, 3
      %s262 = smul.addr %s261, 3
      %s263 = smul.addr %s259, 12
      %s264 = sadd.s32 %s262, %s263
      %s265 = smul.addr %s264, 4
      %s266 = scalar_lea.vmem %s5, %s265
      %s267 = smul.u32 4, %s21
      %p268 = scmp.lt.s32.totalorder %s20, 1
      %s269 = scalar_select %p268, %s20, 1
      %p270 = scmp.lt.s32.totalorder %s267, 3
      %s271 = scalar_select %p270, %s267, 3
      %s272 = smul.addr %s269, 4
      %s273 = sadd.s32 %s271, %s272
      %s274 = smul.addr %s273, 4
      %s275 = scalar_lea.vmem %s0, %s274
      %s276 = smul.u32 4, %s21
      %p277 = scmp.lt.s32.totalorder %s20, 1
      %s278 = scalar_select %p277, %s20, 1
      %s279 = scalar_lea.vmem %s1, %s278
      %p280 = scmp.lt.s32.totalorder %s20, 1
      %s281 = scalar_select %p280, %s20, 1
      %s282 = scalar_lea.vmem %s2, %s281
      %s283 = smul.u32 4, %s21
      %p284 = scmp.lt.s32.totalorder %s20, 1
      %s285 = scalar_select %p284, %s20, 1
      %p286 = scmp.lt.s32.totalorder %s283, 3
      %s287 = scalar_select %p286, %s283, 3
      %s288 = smul.addr %s287, 3
      %s289 = smul.addr %s285, 12
      %s290 = sadd.s32 %s288, %s289
      %s291 = smul.addr %s290, 4
      %s292 = scalar_lea.vmem %s5, %s291
      %s293 = smul.u32 4, %s21
      %v295 = vld [vmem:[%s275] sm:$0xf]
      %v296 = vld [vmem:[%s275 + $0x4] sm:$0xf]
      %v297 = vld [vmem:[%s275 + $0x8] sm:$0xf]
      %v298 = vld [vmem:[%s275 + $0xc] sm:$0xf]
      %v299 = vunpack.c.l.bf16 %v295
      %v300 = vunpack.c.l.bf16 %v296
      %v301 = vunpack.c.l.bf16 %v297
      %v302 = vunpack.c.l.bf16 %v298
      %303 = vadd.xlane.f32.xlu0 %v299
      %v304 = vpop.xlane.xlu0 %303
      %305 = vadd.xlane.f32.xlu0 %v300
      %v306 = vpop.xlane.xlu0 %305
      %307 = vadd.xlane.f32.xlu0 %v301
      %v308 = vpop.xlane.xlu0 %307
      %309 = vadd.xlane.f32.xlu0 %v302
      %v310 = vpop.xlane.xlu0 %309
      %v311 = vrcp.pop 128.0
      %v312 = vmul.f32 %v304, %v311
      %v313 = vmul.f32 %v306, %v311
      %v314 = vmul.f32 %v308, %v311
      %v315 = vmul.f32 %v310, %v311
      %v316 = vsub.f32 %v299, %v312
      %v317 = vsub.f32 %v300, %v313
      %v318 = vsub.f32 %v301, %v314
      %v319 = vsub.f32 %v302, %v315
      %v320 = vmul.f32 %v316, %v316
      %v321 = vmul.f32 %v317, %v317
      %v322 = vmul.f32 %v318, %v318
      %v323 = vmul.f32 %v319, %v319
      %324 = vadd.xlane.f32.xlu0 %v320
      %v325 = vpop.xlane.xlu0 %324
      %326 = vadd.xlane.f32.xlu0 %v321
      %v327 = vpop.xlane.xlu0 %326
      %328 = vadd.xlane.f32.xlu0 %v322
      %v329 = vpop.xlane.xlu0 %328
      %330 = vadd.xlane.f32.xlu0 %v323
      %v331 = vpop.xlane.xlu0 %330
      %v332 = vmul.f32 %v325, %v311
      %v333 = vmul.f32 %v327, %v311
      %v334 = vmul.f32 %v329, %v311
      %v335 = vmul.f32 %v331, %v311
      %v336 = vadd.f32 %v332, 1e-06
      %v337 = vadd.f32 %v333, 1e-06
      %v338 = vadd.f32 %v334, 1e-06
      %v339 = vadd.f32 %v335, 1e-06
      %v340 = vrsqrt.pop %v336
      %v341 = vrsqrt.pop %v337
      %v342 = vrsqrt.pop %v338
      %v343 = vrsqrt.pop %v339
      %v344 = vmul.f32 %v316, %v340
      %v345 = vmul.f32 %v317, %v341
      %v346 = vmul.f32 %v318, %v342
      %v347 = vmul.f32 %v319, %v343
      %v348 = vld [vmem:[%s282] sm:$0x1]
      %v349 = vadd.f32 %v348, 1.0
      %v351 = vlaneseq
      %v352 = vshrl.u32 %v351, 7
      %v353 = vsub.s32 0, %v352
      %v354 = vrot.slane %v349, %v353
      %v356 = vmul.f32 %v344, %v354
      %v357 = vmul.f32 %v345, %v354
      %v358 = vmul.f32 %v346, %v354
      %v359 = vmul.f32 %v347, %v354
      %v360 = vld [vmem:[%s279] sm:$0x1]
      %v362 = vlaneseq
      %v363 = vshrl.u32 %v362, 7
      %v364 = vsub.s32 0, %v363
      %v365 = vrot.slane %v360, %v364
      %v367 = vadd.f32 %v356, %v365
      %v368 = vadd.f32 %v357, %v365
      %v369 = vadd.f32 %v358, %v365
      %v370 = vadd.f32 %v359, %v365
      %v371 = vpack.c.bf16 %v368, %v367
      %v372 = vpack.c.bf16 %v370, %v369
      %v373 = vld [vmem:[%s3] sm:$0xff]
      %v374 = vld [vmem:[%s3 + $0x8] sm:$0xf]
      %v375 = vld [vmem:[%s3 + $0xc] sm:$0xff]
      %v376 = vld [vmem:[%s3 + $0x14] sm:$0xf]
      %v377 = vld [vmem:[%s3 + $0x18] sm:$0xff]
      %v378 = vld [vmem:[%s3 + $0x20] sm:$0xf]
      %v379 = vld [vmem:[%s3 + $0x24] sm:$0xff]
      %v380 = vld [vmem:[%s3 + $0x2c] sm:$0xf]
      %v381 = vld [vmem:[%s3 + $0x30] sm:$0xff]
      %v382 = vld [vmem:[%s3 + $0x38] sm:$0xf]
      %v383 = vld [vmem:[%s3 + $0x3c] sm:$0xff]
      %v384 = vld [vmem:[%s3 + $0x44] sm:$0xf]
      %v385 = vld [vmem:[%s3 + $0x48] sm:$0xff]
      %v386 = vld [vmem:[%s3 + $0x50] sm:$0xf]
      %v387 = vld [vmem:[%s3 + $0x54] sm:$0xff]
      %v388 = vld [vmem:[%s3 + $0x5c] sm:$0xf]
      %v389 = vld [vmem:[%s3 + $0x60] sm:$0xff]
      %v390 = vld [vmem:[%s3 + $0x68] sm:$0xf]
      %v391 = vld [vmem:[%s3 + $0x6c] sm:$0xff]
      %v392 = vld [vmem:[%s3 + $0x74] sm:$0xf]
      %v393 = vld [vmem:[%s3 + $0x78] sm:$0xff]
      %v394 = vld [vmem:[%s3 + $0x80] sm:$0xf]
      %v395 = vld [vmem:[%s3 + $0x84] sm:$0xff]
      %v396 = vld [vmem:[%s3 + $0x8c] sm:$0xf]
      %v397 = vld [vmem:[%s3 + $0x90] sm:$0xff]
      %v398 = vld [vmem:[%s3 + $0x98] sm:$0xf]
      %v399 = vld [vmem:[%s3 + $0x9c] sm:$0xff]
      %v400 = vld [vmem:[%s3 + $0xa4] sm:$0xf]
      %v401 = vld [vmem:[%s3 + $0xa8] sm:$0xff]
      %v402 = vld [vmem:[%s3 + $0xb0] sm:$0xf]
      %v403 = vld [vmem:[%s3 + $0xb4] sm:$0xff]
      %v404 = vld [vmem:[%s3 + $0xbc] sm:$0xf]
      %v405 = vld [vmem:[%s4] sm:$0x7]
      %v407 = vlaneseq
      %v408 = vshrl.u32 %v407, 7
      %v409 = vsub.s32 0, %v408
      %v410 = vrot.slane %v405, %v409
      %v411 = vlaneseq
      %v412 = vshrl.u32 %v411, 7
      %v413 = vsub.s32 1, %v412
      %v414 = vrot.slane %v405, %v413
      %v415 = vlaneseq
      %v416 = vshrl.u32 %v415, 7
      %v417 = vsub.s32 2, %v416
      %v418 = vrot.slane %v405, %v417
      %v454 = vunpack.c.l.b16 %v373
      %v455 = vunpack.c.h.b16 %v373
      %v456 = vunpack.c.l.b16 %v374
      %v457 = vunpack.c.l.b16 %v375
      %v458 = vunpack.c.h.b16 %v375
      %v459 = vunpack.c.l.b16 %v376
      %v460 = vunpack.c.l.b16 %v377
      %v461 = vunpack.c.h.b16 %v377
      %v462 = vunpack.c.l.b16 %v378
      %v463 = vunpack.c.l.b16 %v379
      %v464 = vunpack.c.h.b16 %v379
      %v465 = vunpack.c.l.b16 %v380
      %v466 = vunpack.c.l.b16 %v381
      %v467 = vunpack.c.h.b16 %v381
      %v468 = vunpack.c.l.b16 %v382
      %v469 = vunpack.c.l.b16 %v383
      %v470 = vunpack.c.h.b16 %v383
      %v471 = vunpack.c.l.b16 %v384
      %v472 = vunpack.c.l.b16 %v385
      %v473 = vunpack.c.h.b16 %v385
      %v474 = vunpack.c.l.b16 %v386
      %v475 = vunpack.c.l.b16 %v387
      %v476 = vunpack.c.h.b16 %v387
      %v477 = vunpack.c.l.b16 %v388
      %v478 = vunpack.c.l.b16 %v389
      %v479 = vunpack.c.h.b16 %v389
      %v480 = vunpack.c.l.b16 %v390
      %v481 = vunpack.c.l.b16 %v391
      %v482 = vunpack.c.h.b16 %v391
      %v483 = vunpack.c.l.b16 %v392
      %v484 = vunpack.c.l.b16 %v393
      %v485 = vunpack.c.h.b16 %v393
      %v486 = vunpack.c.l.b16 %v394
      %v487 = vunpack.c.l.b16 %v395
      %v488 = vunpack.c.h.b16 %v395
      %v489 = vunpack.c.l.b16 %v396
      %v490 = vunpack.c.l.b16 %v397
      %v491 = vunpack.c.h.b16 %v397
      %v492 = vunpack.c.l.b16 %v398
      %v493 = vunpack.c.l.b16 %v399
      %v494 = vunpack.c.h.b16 %v399
      %v495 = vunpack.c.l.b16 %v400
      %v496 = vunpack.c.l.b16 %v401
      %v497 = vunpack.c.h.b16 %v401
      %v498 = vunpack.c.l.b16 %v402
      %v499 = vunpack.c.l.b16 %v403
      %v500 = vunpack.c.h.b16 %v403
      %v501 = vunpack.c.l.b16 %v404
      %v502 = vpack.c.b16 %v457, %v454
      %v503 = vpack.c.b16 %v458, %v455
      %v504 = vpack.c.b16 %v459, %v456
      %v505 = vpack.c.b16 %v463, %v460
      %v506 = vpack.c.b16 %v464, %v461
      %v507 = vpack.c.b16 %v465, %v462
      %v508 = vpack.c.b16 %v469, %v466
      %v509 = vpack.c.b16 %v470, %v467
      %v510 = vpack.c.b16 %v471, %v468
      %v511 = vpack.c.b16 %v475, %v472
      %v512 = vpack.c.b16 %v476, %v473
      %v513 = vpack.c.b16 %v477, %v474
      %v514 = vpack.c.b16 %v481, %v478
      %v515 = vpack.c.b16 %v482, %v479
      %v516 = vpack.c.b16 %v483, %v480
      %v517 = vpack.c.b16 %v487, %v484
      %v518 = vpack.c.b16 %v488, %v485
      %v519 = vpack.c.b16 %v489, %v486
      %v520 = vpack.c.b16 %v493, %v490
      %v521 = vpack.c.b16 %v494, %v491
      %v522 = vpack.c.b16 %v495, %v492
      %v523 = vpack.c.b16 %v499, %v496
      %v524 = vpack.c.b16 %v500, %v497
      %v525 = vpack.c.b16 %v501, %v498
      %550 = vmatprep.subr.bf16.mxu0 %v503
      %551 = vmatpush1.bf16.msra.mxu0 %v502
      %552 = vmatprep.subr.bf16.mxu0 %v506
      %553 = vmatpush1.bf16.msra.mxu0 %v505
      %554 = vmatprep.subr.bf16.mxu0 %v509
      %555 = vmatpush1.bf16.msra.mxu0 %v508
      %556 = vmatprep.subr.bf16.mxu0 %v512
      %557 = vmatpush1.bf16.msra.mxu0 %v511
      %558 = vmatprep.subr.bf16.mxu0 %v515
      %559 = vmatpush1.bf16.msra.mxu0 %v514
      %560 = vmatprep.subr.bf16.mxu0 %v518
      %561 = vmatpush1.bf16.msra.mxu0 %v517
      %562 = vmatprep.subr.bf16.mxu0 %v521
      %563 = vmatpush1.bf16.msra.mxu0 %v520
      %564 = vmatprep.subr.bf16.mxu0 %v524
      %565 = vmatpush1.bf16.msra.mxu0 %v523
      %566 = vmatprep.subr.bf16.mxu0 0
      %567 = vmatpush1.bf16.msra.mxu0 0
      %568 = vmatprep.subr.bf16.mxu0 0
      %569 = vmatpush1.bf16.msra.mxu0 0
      %570 = vmatprep.subr.bf16.mxu0 0
      %571 = vmatpush1.bf16.msra.mxu0 0
      %572 = vmatprep.subr.bf16.mxu0 0
      %573 = vmatpush1.bf16.msra.mxu0 0
      %574 = vmatprep.subr.bf16.mxu0 0
      %575 = vmatpush1.bf16.msra.mxu0 0
      %576 = vmatprep.subr.bf16.mxu0 0
      %577 = vmatpush1.bf16.msra.mxu0 0
      %578 = vmatprep.subr.bf16.mxu0 0
      %579 = vmatpush1.bf16.msra.mxu0 0
      %580 = vmatprep.subr.bf16.mxu0 0
      %581 = vmatpush1.bf16.msra.mxu0 0
      %582 = vmatprep.mubr.bf16.mxu0 0
      %583 = vmatmul.mubr.bf16.gmra.mrb[0].mxu0 %v371
      %v584 = vpop.f32.mrb[0].mxu0
      %v585 = vadd.f32 %v410, %v584
      %v586 = vpop.f32.mrb[0].mxu0
      %v587 = vadd.f32 %v414, %v586
      %v588 = vpop.f32.mrb[0].mxu0
      %v589 = vadd.f32 %v410, %v588
      %v590 = vpop.f32.mrb[0].mxu0
      %v591 = vadd.f32 %v414, %v590
      %592 = vmatprep.mubr.bf16.mxu0 0
      %593 = vmatmul.mubr.bf16.gmra.mrb[0].mxu0 %v372
      %v594 = vpop.f32.mrb[0].mxu0
      %v595 = vadd.f32 %v410, %v594
      %v596 = vpop.f32.mrb[0].mxu0
      %v597 = vadd.f32 %v414, %v596
      %v598 = vpop.f32.mrb[0].mxu0
      %v599 = vadd.f32 %v410, %v598
      %v600 = vpop.f32.mrb[0].mxu0
      %v601 = vadd.f32 %v414, %v600
      %602 = vdwg.mxu0
      %603 = vmatprep.subr.bf16.mxu0 0
      %604 = vmatpush1.bf16.msra.mxu0 %v504
      %605 = vmatprep.subr.bf16.mxu0 0
      %606 = vmatpush1.bf16.msra.mxu0 %v507
      %607 = vmatprep.subr.bf16.mxu0 0
      %608 = vmatpush1.bf16.msra.mxu0 %v510
      %609 = vmatprep.subr.bf16.mxu0 0
      %610 = vmatpush1.bf16.msra.mxu0 %v513
      %611 = vmatprep.subr.bf16.mxu0 0
      %612 = vmatpush1.bf16.msra.mxu0 %v516
      %613 = vmatprep.subr.bf16.mxu0 0
      %614 = vmatpush1.bf16.msra.mxu0 %v519
      %615 = vmatprep.subr.bf16.mxu0 0
      %616 = vmatpush1.bf16.msra.mxu0 %v522
      %617 = vmatprep.subr.bf16.mxu0 0
      %618 = vmatpush1.bf16.msra.mxu0 %v525
      %619 = vmatprep.subr.bf16.mxu0 0
      %620 = vmatpush1.bf16.msra.mxu0 0
      %621 = vmatprep.subr.bf16.mxu0 0
      %622 = vmatpush1.bf16.msra.mxu0 0
      %623 = vmatprep.subr.bf16.mxu0 0
      %624 = vmatpush1.bf16.msra.mxu0 0
      %625 = vmatprep.subr.bf16.mxu0 0
      %626 = vmatpush1.bf16.msra.mxu0 0
      %627 = vmatprep.subr.bf16.mxu0 0
      %628 = vmatpush1.bf16.msra.mxu0 0
      %629 = vmatprep.subr.bf16.mxu0 0
      %630 = vmatpush1.bf16.msra.mxu0 0
      %631 = vmatprep.subr.bf16.mxu0 0
      %632 = vmatpush1.bf16.msra.mxu0 0
      %633 = vmatprep.subr.bf16.mxu0 0
      %634 = vmatpush1.bf16.msra.mxu0 0
      %635 = vmatprep.mubr.bf16.mxu0 0
      %636 = vmatmul.mubr.bf16.gmra.mrb[0].mxu0 %v371
      %v637 = vpop.f32.mrb[0].mxu0
      %v638 = vadd.f32 %v418, %v637
      %v639 = vpop.f32.mrb[0].mxu0
      %v640 = vpop.f32.mrb[0].mxu0
      %v641 = vadd.f32 %v418, %v640
      %v642 = vpop.f32.mrb[0].mxu0
      %643 = vmatprep.mubr.bf16.mxu0 0
      %644 = vmatmul.mubr.bf16.gmra.mrb[0].mxu0 %v372
      %v645 = vpop.f32.mrb[0].mxu0
      %v646 = vadd.f32 %v418, %v645
      %v647 = vpop.f32.mrb[0].mxu0
      %v648 = vpop.f32.mrb[0].mxu0
      %v649 = vadd.f32 %v418, %v648
      %v650 = vpop.f32.mrb[0].mxu0
      %651 = vdwg.mxu0
      %v652 = vpack.c.bf16 %v589, %v585
      %v653 = vpack.c.bf16 %v591, %v587
      %v654 = vpack.c.bf16 %v641, %v638
      %v655 = vpack.c.bf16 %v599, %v595
      %v656 = vpack.c.bf16 %v601, %v597
      %v657 = vpack.c.bf16 %v649, %v646
      %v664 = vunpack.c.l.b16 %v652
      %v665 = vunpack.c.l.b16 %v653
      %v666 = vunpack.c.l.b16 %v654
      %v667 = vunpack.c.h.b16 %v652
      %v668 = vunpack.c.h.b16 %v653
      %v669 = vunpack.c.h.b16 %v654
      %v670 = vunpack.c.l.b16 %v655
      %v671 = vunpack.c.l.b16 %v656
      %v672 = vunpack.c.l.b16 %v657
      %v673 = vunpack.c.h.b16 %v655
      %v674 = vunpack.c.h.b16 %v656
      %v675 = vunpack.c.h.b16 %v657
      %v676 = vpack.c.b16 %v665, %v664
      %v677 = vpack.c.b16 %v666, %v666
      %v678 = vpack.c.b16 %v668, %v667
      %v679 = vpack.c.b16 %v669, %v669
      %v680 = vpack.c.b16 %v671, %v670
      %v681 = vpack.c.b16 %v672, %v672
      %v682 = vpack.c.b16 %v674, %v673
      %v683 = vpack.c.b16 %v675, %v675
      %692 = vst [vmem:[%s292] sm:$0xff] %v676
      %693 = vst [vmem:[%s292 + $0x8] sm:$0xf] %v677
      %694 = vst [vmem:[%s292 + $0xc] sm:$0xff] %v678
      %695 = vst [vmem:[%s292 + $0x14] sm:$0xf] %v679
      %696 = vst [vmem:[%s292 + $0x18] sm:$0xff] %v680
      %697 = vst [vmem:[%s292 + $0x20] sm:$0xf] %v681
      %698 = vst [vmem:[%s292 + $0x24] sm:$0xff] %v682
      %699 = vst [vmem:[%s292 + $0x2c] sm:$0xf] %v683
      %s700 = smul.u32 4, %s21
      %p701 = scmp.lt.s32.totalorder %s20, 1
      %s702 = scalar_select %p701, %s20, 1
      %p703 = scmp.lt.s32.totalorder %s700, 3
      %s704 = scalar_select %p703, %s700, 3
      %s705 = smul.addr %s704, 3
      %s706 = smul.addr %s702, 12
      %s707 = sadd.s32 %s705, %s706
      %s708 = smul.addr %s707, 4
      %s709 = scalar_lea.vmem %s5, %s708
      // Predicated region
      $region41: #{lavindit_forward.15} parent=39 // pred_check
        %p710 = pneg %p170
      $region42: #{lavindit_forward.15} parent=39 // pred_check_branch
        %712 = sbr.rel (%p710) target = $region44
      $region43: #{lavindit_forward.15} parent=39 // pred_region
        %s713 = smul.u32 4, %s21
      $region44: #{lavindit_forward.15} parent=39 // pred_fallthru
        _
    $region40: #{lavindit_forward.15} parent=5 // pred_fallthru
      _
    %p714 = scmp.le.s32.totalorder 2, %s11
    // Predicated region
    $region45: #{lavindit_forward.15} parent=5 // pred_check
      %p715 = pneg %p714
    $region46: #{lavindit_forward.15} parent=5 // pred_check_branch
      %717 = sbr.rel (%p715) target = $region48
    $region47: #{lavindit_forward.15} parent=5 // pred_region
      %s718 = ssub.s32 %s11, 2
      // Predicated region
      $region49: #{lavindit_forward.15} parent=47 // pred_check
        %p719 = pneg %p176
      $region50: #{lavindit_forward.15} parent=47 // pred_check_branch
        %721 = sbr.rel (%p719) target = $region52
      $region51: #{lavindit_forward.15} parent=47 // pred_region
        %s722 = smul.u32 4, %s23
        %p723 = scmp.lt.s32.totalorder %s22, 1
        %s724 = scalar_select %p723, %s22, 1
        %p725 = scmp.lt.s32.totalorder %s722, 3
        %s726 = scalar_select %p725, %s722, 3
        %s727 = smul.addr %s726, 3
        %s728 = smul.addr %s724, 12
        %s729 = sadd.s32 %s727, %s728
        %s730 = smul.addr %s729, 4
        %s731 = scalar_lea.vmem %s5, %s730
      $region52: #{lavindit_forward.15} parent=47 // pred_fallthru
        _
    $region48: #{lavindit_forward.15} parent=5 // pred_fallthru
      _
  $region6: #{lavindit_forward.15} parent=0 // loop_footer
    %s15 = sadd.s32 1, %s11
  $region7: #{lavindit_forward.15} parent=0 // loop_footer_branch
    %10 = sbr.rel target = $region3
  $region8: #{lavindit_forward.15} parent=0 // loop_exit
    _

// kernel: lavindit_forward.16
$region0: #{lavindit_forward.16}
  #allocation0 [shape = 'u32[]', space=smem, size = 0x4, offset = 0x4, fixed_abs, tag = 'smem constant byte address 0x4 - core index']
  #allocation1 [shape = 'u32[144,128]{1,0:T(1,128)}', space=vmem, size = 0x12000, scoped, tag = 'internal scratch']
  #allocation2 [shape = 'f32[64,1]{1,0:T(8,128)}', space=vmem, size = 0x8000, scoped, tag = 'scratch operand']
  #allocation3 [shape = 'f32[64,1]{1,0:T(8,128)}', space=vmem, size = 0x8000, scoped, tag = 'scratch operand']
  #allocation4 [shape = 'f32[64,32]{1,0:T(8,128)}', space=vmem, size = 0x8000, scoped, tag = 'scratch operand']
  %s0 = inlined_call_operand.vmem [shape: bf16[2,4,64,32], index: 0, kind: input, shape index: {}]
  %s1 = inlined_call_operand.vmem [shape: bf16[2,4,64,32], index: 1, kind: input, shape index: {}]
  %s2 = inlined_call_operand.vmem [shape: bf16[2,4,64,32], index: 2, kind: input, shape index: {}]
  %s3 = inlined_call_operand.vmem [shape: bf16[2,4,64,32], index: 3, kind: output, shape index: {}]
  %s4 = sld [smem:[#allocation0]]
  $region53: #{lavindit_forward.16} parent=0
    _
  %s6 = ssub.s32 1, %s4
  %s7 = scalar_select 0, %s6, %s4
  loop: start=0, step=1, limit=10
  $region2: #{lavindit_forward.16} parent=0 // loop_pre_header
    _
  $region3: #{lavindit_forward.16} parent=0 // loop_header
    %s9 = sphi 0, %s13
    %p10 = scmp.ge.s32.totalorder %s9, 10
    %s16 = sphi 0, %s42
    %s17 = sphi 0, %s38
    %s18 = sphi 0, %s34
    %s19 = sphi 0, %s30
    %s20 = sphi 0, %s16
    %s21 = sphi 0, %s17
    %s22 = sphi 0, %s18
    %s23 = sphi 0, %s19
    %s24 = sphi 0, %s20
    %s25 = sphi 0, %s21
    %s26 = sphi 0, %s22
    %s27 = sphi 0, %s23
    %s49 = sphi 0, %s51
    %s52 = sphi 0, %s49
    %s53 = sphi 0, %s52
    %s69 = sphi 0, %s53
    %s79 = sphi 0, %s81
    %s82 = sphi 0, %s79
    %s83 = sphi 0, %s82
    %s99 = sphi 0, %s83
    %s109 = sphi 0, %s111
    %s112 = sphi 0, %s109
    %s113 = sphi 0, %s112
    %s129 = sphi 0, %s113
    %s139 = sphi 0, %s141
    %s142 = sphi 0, %s139
    %s143 = sphi 0, %s142
    %s159 = sphi 0, %s143
  $region4: #{lavindit_forward.16} parent=0 // loop_header_branch
    %12 = sbr.rel (%p10) target = $region8
  $region5: #{lavindit_forward.16} parent=0 // loop_body
    %s14 = ssub.s32 %s9, 1
    %s15 = ssub.s32 %s9, 2
    %s28 = sadd.s32 1, %s19
    %p29 = scmp.ge.s32.totalorder %s28, 1
    %s30 = scalar_select %p29, 0, %s28
    %s31 = sadd.s32 1, %s18
    %s32 = scalar_select %p29, %s31, %s18
    %p33 = scmp.ge.s32.totalorder %s32, 1
    %s34 = scalar_select %p33, 0, %s32
    %s35 = sadd.s32 1, %s17
    %s36 = scalar_select %p33, %s35, %s17
    %p37 = scmp.ge.s32.totalorder %s36, 4
    %s38 = scalar_select %p37, 0, %s36
    %s39 = sadd.s32 1, %s16
    %s40 = scalar_select %p37, %s39, %s16
    %p41 = scmp.ge.s32.totalorder %s40, 2
    %s42 = scalar_select %p41, 0, %s40
    %s43 = ssub.s32 %s16, %s42
    %s44 = ssub.s32 %s17, %s38
    %s45 = sor.u32 %s43, %s44
    %s46 = ssub.s32 %s18, %s34
    %s47 = sor.u32 %s45, %s46
    %p48 = scmp.eq.s32.totalorder %s47, 0
    %s50 = sadd.s32 %s49, 1
    %s51 = scalar_select %p48, %s49, %s50
    %p54 = pneg %p48
    %p55 = scmp.eq.s32.totalorder %s9, 7
    %p56 = por %p54, %p55
    %p57 = scmp.ne.s32.totalorder %s49, %s52
    %p58 = scmp.eq.s32.totalorder %s9, 0
    %p59 = por %p57, %p58
    %p60 = scmp.ne.s32.totalorder %s49, %s52
    %p61 = scmp.eq.s32.totalorder %s14, 7
    %p62 = por %p60, %p61
    %p63 = scmp.ne.s32.totalorder %s52, %s53
    %p64 = scmp.eq.s32.totalorder %s14, 0
    %p65 = por %p63, %p64
    %p66 = scmp.ne.s32.totalorder %s52, %s53
    %p67 = scmp.eq.s32.totalorder %s15, 7
    %p68 = por %p66, %p67
    %p70 = scmp.ne.s32.totalorder %s53, %s69
    %p71 = scmp.eq.s32.totalorder %s15, 0
    %p72 = por %p70, %p71
    %s73 = ssub.s32 %s16, %s42
    %s74 = ssub.s32 %s17, %s38
    %s75 = sor.u32 %s73, %s74
    %s76 = ssub.s32 %s19, %s30
    %s77 = sor.u32 %s75, %s76
    %p78 = scmp.eq.s32.totalorder %s77, 0
    %s80 = sadd.s32 %s79, 1
    %s81 = scalar_select %p78, %s79, %s80
    %p84 = pneg %p78
    %p85 = scmp.eq.s32.totalorder %s9, 7
    %p86 = por %p84, %p85
    %p87 = scmp.ne.s32.totalorder %s79, %s82
    %p88 = scmp.eq.s32.totalorder %s9, 0
    %p89 = por %p87, %p88
    %p90 = scmp.ne.s32.totalorder %s79, %s82
    %p91 = scmp.eq.s32.totalorder %s14, 7
    %p92 = por %p90, %p91
    %p93 = scmp.ne.s32.totalorder %s82, %s83
    %p94 = scmp.eq.s32.totalorder %s14, 0
    %p95 = por %p93, %p94
    %p96 = scmp.ne.s32.totalorder %s82, %s83
    %p97 = scmp.eq.s32.totalorder %s15, 7
    %p98 = por %p96, %p97
    %p100 = scmp.ne.s32.totalorder %s83, %s99
    %p101 = scmp.eq.s32.totalorder %s15, 0
    %p102 = por %p100, %p101
    %s103 = ssub.s32 %s16, %s42
    %s104 = ssub.s32 %s17, %s38
    %s105 = sor.u32 %s103, %s104
    %s106 = ssub.s32 %s19, %s30
    %s107 = sor.u32 %s105, %s106
    %p108 = scmp.eq.s32.totalorder %s107, 0
    %s110 = sadd.s32 %s109, 1
    %s111 = scalar_select %p108, %s109, %s110
    %p114 = pneg %p108
    %p115 = scmp.eq.s32.totalorder %s9, 7
    %p116 = por %p114, %p115
    %p117 = scmp.ne.s32.totalorder %s109, %s112
    %p118 = scmp.eq.s32.totalorder %s9, 0
    %p119 = por %p117, %p118
    %p120 = scmp.ne.s32.totalorder %s109, %s112
    %p121 = scmp.eq.s32.totalorder %s14, 7
    %p122 = por %p120, %p121
    %p123 = scmp.ne.s32.totalorder %s112, %s113
    %p124 = scmp.eq.s32.totalorder %s14, 0
    %p125 = por %p123, %p124
    %p126 = scmp.ne.s32.totalorder %s112, %s113
    %p127 = scmp.eq.s32.totalorder %s15, 7
    %p128 = por %p126, %p127
    %p130 = scmp.ne.s32.totalorder %s113, %s129
    %p131 = scmp.eq.s32.totalorder %s15, 0
    %p132 = por %p130, %p131
    %s133 = ssub.s32 %s16, %s42
    %s134 = ssub.s32 %s17, %s38
    %s135 = sor.u32 %s133, %s134
    %s136 = ssub.s32 %s18, %s34
    %s137 = sor.u32 %s135, %s136
    %p138 = scmp.eq.s32.totalorder %s137, 0
    %s140 = sadd.s32 %s139, 1
    %s141 = scalar_select %p138, %s139, %s140
    %p144 = pneg %p138
    %p145 = scmp.eq.s32.totalorder %s9, 7
    %p146 = por %p144, %p145
    %p147 = scmp.ne.s32.totalorder %s139, %s142
    %p148 = scmp.eq.s32.totalorder %s9, 0
    %p149 = por %p147, %p148
    %p150 = scmp.ne.s32.totalorder %s139, %s142
    %p151 = scmp.eq.s32.totalorder %s14, 7
    %p152 = por %p150, %p151
    %p153 = scmp.ne.s32.totalorder %s142, %s143
    %p154 = scmp.eq.s32.totalorder %s14, 0
    %p155 = por %p153, %p154
    %p156 = scmp.ne.s32.totalorder %s142, %s143
    %p157 = scmp.eq.s32.totalorder %s15, 7
    %p158 = por %p156, %p157
    %p160 = scmp.ne.s32.totalorder %s143, %s159
    %p161 = scmp.eq.s32.totalorder %s15, 0
    %p162 = por %p160, %p161
    %p163 = scmp.le.s32.totalorder 1, %s9
    %p164 = scmp.lt.s32.totalorder %s9, 9
    %p165 = pnand %p163, %p164
    %p166 = pneg %p165
    // Predicated region
    $region9: #{lavindit_forward.16} parent=5 // pred_check
      _
    $region10: #{lavindit_forward.16} parent=5 // pred_check_branch
      %168 = sbr.rel (%p165) target = $region12
    $region11: #{lavindit_forward.16} parent=5 // pred_region
      %s169 = ssub.s32 %s9, 1
    $region12: #{lavindit_forward.16} parent=5 // pred_fallthru
      _
    %p170 = scmp.lt.s32.totalorder %s9, 8
    // Predicated region
    $region13: #{lavindit_forward.16} parent=5 // pred_check
      %p171 = pneg %p170
    $region14: #{lavindit_forward.16} parent=5 // pred_check_branch
      %173 = sbr.rel (%p171) target = $region16
    $region15: #{lavindit_forward.16} parent=5 // pred_region
      // Predicated region
      $region17: #{lavindit_forward.16} parent=15 // pred_check
        %p174 = pneg %p59
      $region18: #{lavindit_forward.16} parent=15 // pred_check_branch
        %176 = sbr.rel (%p174) target = $region20
      $region19: #{lavindit_forward.16} parent=15 // pred_region
        %s177 = smul.u32 8, %s18
        %p178 = scmp.lt.s32.totalorder %s16, 1
        %s179 = scalar_select %p178, %s16, 1
        %p180 = scmp.lt.s32.totalorder %s17, 3
        %s181 = scalar_select %p180, %s17, 3
        %p182 = scmp.lt.s32.totalorder %s177, 7
        %s183 = scalar_select %p182, %s177, 7
        %s184 = smul.addr %s181, 8
        %s185 = sadd.s32 %s183, %s184
        %s186 = smul.addr %s179, 32
        %s187 = sadd.s32 %s185, %s186
        %s188 = smul.addr %s187, 4
        %s189 = scalar_lea.vmem %s0, %s188
        %s190 = smul.u32 8, %s18
      $region20: #{lavindit_forward.16} parent=15 // pred_fallthru
        _
      // Predicated region
      $region21: #{lavindit_forward.16} parent=15 // pred_check
        %p191 = pneg %p89
      $region22: #{lavindit_forward.16} parent=15 // pred_check_branch
        %193 = sbr.rel (%p191) target = $region24
      $region23: #{lavindit_forward.16} parent=15 // pred_region
        %s194 = smul.u32 8, %s19
        %p195 = scmp.lt.s32.totalorder %s16, 1
        %s196 = scalar_select %p195, %s16, 1
        %p197 = scmp.lt.s32.totalorder %s17, 3
        %s198 = scalar_select %p197, %s17, 3
        %p199 = scmp.lt.s32.totalorder %s194, 7
        %s200 = scalar_select %p199, %s194, 7
        %s201 = smul.addr %s198, 8
        %s202 = sadd.s32 %s200, %s201
        %s203 = smul.addr %s196, 32
        %s204 = sadd.s32 %s202, %s203
        %s205 = smul.addr %s204, 4
        %s206 = scalar_lea.vmem %s1, %s205
        %s207 = smul.u32 8, %s19
      $region24: #{lavindit_forward.16} parent=15 // pred_fallthru
        _
      // Predicated region
      $region25: #{lavindit_forward.16} parent=15 // pred_check
        %p208 = pneg %p119
      $region26: #{lavindit_forward.16} parent=15 // pred_check_branch
        %210 = sbr.rel (%p208) target = $region28
      $region27: #{lavindit_forward.16} parent=15 // pred_region
        %s211 = smul.u32 8, %s19
        %p212 = scmp.lt.s32.totalorder %s16, 1
        %s213 = scalar_select %p212, %s16, 1
        %p214 = scmp.lt.s32.totalorder %s17, 3
        %s215 = scalar_select %p214, %s17, 3
        %p216 = scmp.lt.s32.totalorder %s211, 7
        %s217 = scalar_select %p216, %s211, 7
        %s218 = smul.addr %s215, 8
        %s219 = sadd.s32 %s217, %s218
        %s220 = smul.addr %s213, 32
        %s221 = sadd.s32 %s219, %s220
        %s222 = smul.addr %s221, 4
        %s223 = scalar_lea.vmem %s2, %s222
        %s224 = smul.u32 8, %s19
      $region28: #{lavindit_forward.16} parent=15 // pred_fallthru
        _
    $region16: #{lavindit_forward.16} parent=5 // pred_fallthru
      _
    %p225 = scmp.le.s32.totalorder 1, %s9
    %p226 = scmp.lt.s32.totalorder %s9, 9
    %p227 = pnand %p225, %p226
    %p228 = pneg %p227
    // Predicated region
    $region29: #{lavindit_forward.16} parent=5 // pred_check
      _
    $region30: #{lavindit_forward.16} parent=5 // pred_check_branch
      %230 = sbr.rel (%p227) target = $region32
    $region31: #{lavindit_forward.16} parent=5 // pred_region
      %s231 = ssub.s32 %s9, 1
      %s232 = smul.u32 8, %s22
      %p233 = scmp.lt.s32.totalorder %s20, 1
      %s234 = scalar_select %p233, %s20, 1
      %p235 = scmp.lt.s32.totalorder %s21, 3
      %s236 = scalar_select %p235, %s21, 3
      %p237 = scmp.lt.s32.totalorder %s232, 7
      %s238 = scalar_select %p237, %s232, 7
      %s239 = smul.addr %s236, 8
      %s240 = sadd.s32 %s238, %s239
      %s241 = smul.addr %s234, 32
      %s242 = sadd.s32 %s240, %s241
      %s243 = smul.addr %s242, 4
      %s244 = scalar_lea.vmem %s0, %s243
      %p245 = pneg %p65
      %p246 = pneg %p62
      %s247 = smul.u32 8, %s23
      %p248 = scmp.lt.s32.totalorder %s20, 1
      %s249 = scalar_select %p248, %s20, 1
      %p250 = scmp.lt.s32.totalorder %s21, 3
      %s251 = scalar_select %p250, %s21, 3
      %p252 = scmp.lt.s32.totalorder %s247, 7
      %s253 = scalar_select %p252, %s247, 7
      %s254 = smul.addr %s251, 8
      %s255 = sadd.s32 %s253, %s254
      %s256 = smul.addr %s249, 32
      %s257 = sadd.s32 %s255, %s256
      %s258 = smul.addr %s257, 4
      %s259 = scalar_lea.vmem %s1, %s258
      %p260 = pneg %p95
      %p261 = pneg %p92
      %s262 = smul.u32 8, %s23
      %p263 = scmp.lt.s32.totalorder %s20, 1
      %s264 = scalar_select %p263, %s20, 1
      %p265 = scmp.lt.s32.totalorder %s21, 3
      %s266 = scalar_select %p265, %s21, 3
      %p267 = scmp.lt.s32.totalorder %s262, 7
      %s268 = scalar_select %p267, %s262, 7
      %s269 = smul.addr %s266, 8
      %s270 = sadd.s32 %s268, %s269
      %s271 = smul.addr %s264, 32
      %s272 = sadd.s32 %s270, %s271
      %s273 = smul.addr %s272, 4
      %s274 = scalar_lea.vmem %s2, %s273
      %p275 = pneg %p125
      %p276 = pneg %p122
      %p277 = pneg %p155
      %p278 = pneg %p152
      %s279 = smul.u32 8, %s22
      %p280 = scmp.lt.s32.totalorder %s20, 1
      %s281 = scalar_select %p280, %s20, 1
      %p282 = scmp.lt.s32.totalorder %s21, 3
      %s283 = scalar_select %p282, %s21, 3
      %p284 = scmp.lt.s32.totalorder %s279, 7
      %s285 = scalar_select %p284, %s279, 7
      %s286 = smul.addr %s283, 8
      %s287 = sadd.s32 %s285, %s286
      %s288 = smul.addr %s281, 32
      %s289 = sadd.s32 %s287, %s288
      %s290 = smul.addr %s289, 4
      %s291 = scalar_lea.vmem %s3, %s290
      %s292 = smul.u32 8, %s22
      %p293 = scmp.lt.s32.totalorder %s20, 1
      %s294 = scalar_select %p293, %s20, 1
      %p295 = scmp.lt.s32.totalorder %s21, 3
      %s296 = scalar_select %p295, %s21, 3
      %p297 = scmp.lt.s32.totalorder %s292, 7
      %s298 = scalar_select %p297, %s292, 7
      %s299 = smul.addr %s296, 8
      %s300 = sadd.s32 %s298, %s299
      %s301 = smul.addr %s294, 32
      %s302 = sadd.s32 %s300, %s301
      %s303 = smul.addr %s302, 4
      %s304 = scalar_lea.vmem %s0, %s303
      %s305 = smul.u32 8, %s22
      %s306 = smul.u32 8, %s23
      %p307 = scmp.lt.s32.totalorder %s20, 1
      %s308 = scalar_select %p307, %s20, 1
      %p309 = scmp.lt.s32.totalorder %s21, 3
      %s310 = scalar_select %p309, %s21, 3
      %p311 = scmp.lt.s32.totalorder %s306, 7
      %s312 = scalar_select %p311, %s306, 7
      %s313 = smul.addr %s310, 8
      %s314 = sadd.s32 %s312, %s313
      %s315 = smul.addr %s308, 32
      %s316 = sadd.s32 %s314, %s315
      %s317 = smul.addr %s316, 4
      %s318 = scalar_lea.vmem %s1, %s317
      %s319 = smul.u32 8, %s23
      %s320 = smul.u32 8, %s23
      %p321 = scmp.lt.s32.totalorder %s20, 1
      %s322 = scalar_select %p321, %s20, 1
      %p323 = scmp.lt.s32.totalorder %s21, 3
      %s324 = scalar_select %p323, %s21, 3
      %p325 = scmp.lt.s32.totalorder %s320, 7
      %s326 = scalar_select %p325, %s320, 7
      %s327 = smul.addr %s324, 8
      %s328 = sadd.s32 %s326, %s327
      %s329 = smul.addr %s322, 32
      %s330 = sadd.s32 %s328, %s329
      %s331 = smul.addr %s330, 4
      %s332 = scalar_lea.vmem %s2, %s331
      %s333 = smul.u32 8, %s23
      %s334 = smul.u32 8, %s22
      %p335 = scmp.lt.s32.totalorder %s20, 1
      %s336 = scalar_select %p335, %s20, 1
      %p337 = scmp.lt.s32.totalorder %s21, 3
      %s338 = scalar_select %p337, %s21, 3
      %p339 = scmp.lt.s32.totalorder %s334, 7
      %s340 = scalar_select %p339, %s334, 7
      %s341 = smul.addr %s338, 8
      %s342 = sadd.s32 %s340, %s341
      %s343 = smul.addr %s336, 32
      %s344 = sadd.s32 %s342, %s343
      %s345 = smul.addr %s344, 4
      %s346 = scalar_lea.vmem %s3, %s345
      %s347 = smul.u32 8, %s22
      %p349 = scmp.eq.s32.totalorder %s23, 0
      // Predicated region
      $region33: #{lavindit_forward.16} parent=31 // pred_check
        %p350 = pneg %p349
      $region34: #{lavindit_forward.16} parent=31 // pred_check_branch
        %352 = sbr.rel (%p350) target = $region36
      $region35: #{lavindit_forward.16} parent=31 // pred_region
        %vm353 = vcmask 7168
        %354 = vst.msk [vmem:[#allocation2] sm:$0xff] %vm353, -inf
        %355 = vst.msk [vmem:[#allocation2 + $0x8] sm:$0xff] %vm353, -inf
        %356 = vst.msk [vmem:[#allocation2 + $0x10] sm:$0xff] %vm353, -inf
        %357 = vst.msk [vmem:[#allocation2 + $0x18] sm:$0xff] %vm353, -inf
        %358 = vst.msk [vmem:[#allocation2 + $0x20] sm:$0xff] %vm353, -inf
        %359 = vst.msk [vmem:[#allocation2 + $0x28] sm:$0xff] %vm353, -inf
        %360 = vst.msk [vmem:[#allocation2 + $0x30] sm:$0xff] %vm353, -inf
        %361 = vst.msk [vmem:[#allocation2 + $0x38] sm:$0xff] %vm353, -inf
        %362 = vst.msk [vmem:[#allocation3] sm:$0xff] %vm353, 0.0
        %363 = vst.msk [vmem:[#allocation3 + $0x8] sm:$0xff] %vm353, 0.0
        %364 = vst.msk [vmem:[#allocation3 + $0x10] sm:$0xff] %vm353, 0.0
        %365 = vst.msk [vmem:[#allocation3 + $0x18] sm:$0xff] %vm353, 0.0
        %366 = vst.msk [vmem:[#allocation3 + $0x20] sm:$0xff] %vm353, 0.0
        %367 = vst.msk [vmem:[#allocation3 + $0x28] sm:$0xff] %vm353, 0.0
        %368 = vst.msk [vmem:[#allocation3 + $0x30] sm:$0xff] %vm353, 0.0
        %369 = vst.msk [vmem:[#allocation3 + $0x38] sm:$0xff] %vm353, 0.0
        %vm370 = vcmask 261120
        %371 = vst.msk [vmem:[#allocation4] sm:$0xff] %vm370, 0.0
        %372 = vst.msk [vmem:[#allocation4 + $0x8] sm:$0xff] %vm370, 0.0
        %373 = vst.msk [vmem:[#allocation4 + $0x10] sm:$0xff] %vm370, 0.0
        %374 = vst.msk [vmem:[#allocation4 + $0x18] sm:$0xff] %vm370, 0.0
        %375 = vst.msk [vmem:[#allocation4 + $0x20] sm:$0xff] %vm370, 0.0
        %376 = vst.msk [vmem:[#allocation4 + $0x28] sm:$0xff] %vm370, 0.0
        %377 = vst.msk [vmem:[#allocation4 + $0x30] sm:$0xff] %vm370, 0.0
        %378 = vst.msk [vmem:[#allocation4 + $0x38] sm:$0xff] %vm370, 0.0
      $region36: #{lavindit_forward.16} parent=31 // pred_fallthru
        _
      %v379 = vld [vmem:[%s304] sm:$0xf]
      %v380 = vld [vmem:[%s304 + $0x4] sm:$0xf]
      %v381 = vld [vmem:[%s304 + $0x8] sm:$0xf]
      %v382 = vld [vmem:[%s304 + $0xc] sm:$0xf]
      %v383 = vld [vmem:[%s304 + $0x10] sm:$0xf]
      %v384 = vld [vmem:[%s304 + $0x14] sm:$0xf]
      %v385 = vld [vmem:[%s304 + $0x18] sm:$0xf]
      %v386 = vld [vmem:[%s304 + $0x1c] sm:$0xf]
      %v387 = vld [vmem:[%s318] sm:$0xf]
      %v388 = vld [vmem:[%s318 + $0x4] sm:$0xf]
      %v389 = vld [vmem:[%s318 + $0x8] sm:$0xf]
      %v390 = vld [vmem:[%s318 + $0xc] sm:$0xf]
      %v391 = vld [vmem:[%s318 + $0x10] sm:$0xf]
      %v392 = vld [vmem:[%s318 + $0x14] sm:$0xf]
      %v393 = vld [vmem:[%s318 + $0x18] sm:$0xf]
      %v394 = vld [vmem:[%s318 + $0x1c] sm:$0xf]
      %v395 = vld [vmem:[%s332] sm:$0xf]
      %v396 = vld [vmem:[%s332 + $0x4] sm:$0xf]
      %v397 = vld [vmem:[%s332 + $0x8] sm:$0xf]
      %v398 = vld [vmem:[%s332 + $0xc] sm:$0xf]
      %v399 = vld [vmem:[%s332 + $0x10] sm:$0xf]
      %v400 = vld [vmem:[%s332 + $0x14] sm:$0xf]
      %v401 = vld [vmem:[%s332 + $0x18] sm:$0xf]
      %v402 = vld [vmem:[%s332 + $0x1c] sm:$0xf]
      %v411 = vunpack.c.l.b16 %v379
      %v412 = vunpack.c.l.b16 %v380
      %v413 = vunpack.c.l.b16 %v381
      %v414 = vunpack.c.l.b16 %v382
      %v415 = vunpack.c.l.b16 %v383
      %v416 = vunpack.c.l.b16 %v384
      %v417 = vunpack.c.l.b16 %v385
      %v418 = vunpack.c.l.b16 %v386
      %v419 = vpack.c.b16 %v412, %v411
      %v420 = vpack.c.b16 %v414, %v413
      %v421 = vpack.c.b16 %v416, %v415
      %v422 = vpack.c.b16 %v418, %v417
      %v431 = vunpack.c.l.b16 %v387
      %v432 = vunpack.c.l.b16 %v388
      %v433 = vunpack.c.l.b16 %v389
      %v434 = vunpack.c.l.b16 %v390
      %v435 = vunpack.c.l.b16 %v391
      %v436 = vunpack.c.l.b16 %v392
      %v437 = vunpack.c.l.b16 %v393
      %v438 = vunpack.c.l.b16 %v394
      %v439 = vpack.c.b16 %v432, %v431
      %v440 = vpack.c.b16 %v434, %v433
      %v441 = vpack.c.b16 %v436, %v435
      %v442 = vpack.c.b16 %v438, %v437
      %vm443 = vcmask 261120
      %v445 = vsel %vm443, %v419, 0
      %v448 = vsel %vm443, %v420, 0
      %v451 = vsel %vm443, %v421, 0
      %v454 = vsel %vm443, %v422, 0
      %v457 = vsel %vm443, %v439, 0
      %v460 = vsel %vm443, %v440, 0
      %v463 = vsel %vm443, %v441, 0
      %v466 = vsel %vm443, %v442, 0
      %468 = vmatprep.subr.bf16.mxu0 0
      %469 = vmatpush1.bf16.xpose.msra.mxu0 %v457
      %470 = vmatprep.subr.bf16.mxu0 0
      %471 = vmatpush1.bf16.xpose.msra.mxu0 %v460
      %472 = vmatprep.subr.bf16.mxu0 0
      %473 = vmatpush1.bf16.xpose.msra.mxu0 %v463
      %474 = vmatprep.subr.bf16.mxu0 0
      %475 = vmatpush1.bf16.xpose.msra.mxu0 %v466
      %476 = vmatprep.subr.bf16.mxu0 0
      %477 = vmatpush1.bf16.xpose.msra.mxu0 0
      %478 = vmatprep.subr.bf16.mxu0 0
      %479 = vmatpush1.bf16.xpose.msra.mxu0 0
      %480 = vmatprep.subr.bf16.mxu0 0
      %481 = vmatpush1.bf16.xpose.msra.mxu0 0
      %482 = vmatprep.subr.bf16.mxu0 0
      %483 = vmatpush1.bf16.xpose.msra.mxu0 0
      %484 = vmatprep.subr.bf16.mxu0 0
      %485 = vmatpush1.bf16.xpose.msra.mxu0 0
      %486 = vmatprep.subr.bf16.mxu0 0
      %487 = vmatpush1.bf16.xpose.msra.mxu0 0
      %488 = vmatprep.subr.bf16.mxu0 0
      %489 = vmatpush1.bf16.xpose.msra.mxu0 0
      %490 = vmatprep.subr.bf16.mxu0 0
      %491 = vmatpush1.bf16.xpose.msra.mxu0 0
      %492 = vmatprep.subr.bf16.mxu0 0
      %493 = vmatpush1.bf16.xpose.msra.mxu0 0
      %494 = vmatprep.subr.bf16.mxu0 0
      %495 = vmatpush1.bf16.xpose.msra.mxu0 0
      %496 = vmatprep.subr.bf16.mxu0 0
      %497 = vmatpush1.bf16.xpose.msra.mxu0 0
      %498 = vmatprep.subr.bf16.mxu0 0
      %499 = vmatpush1.bf16.xpose.msra.mxu0 0
      %500 = vmatprep.mubr.bf16.mxu0 0
      %501 = vmatmul.mubr.bf16.gmra.mrb[0].mxu0 %v445
      %v502 = vpop.f32.mrb[0].mxu0
      %v503 = vadd.f32 0.0, %v502
      %v504 = vpop.f32.mrb[0].mxu0
      %v505 = vpop.f32.mrb[0].mxu0
      %v506 = vadd.f32 0.0, %v505
      %v507 = vpop.f32.mrb[0].mxu0
      %508 = vmatprep.mubr.bf16.mxu0 0
      %509 = vmatmul.mubr.bf16.gmra.mrb[0].mxu0 %v448
      %v510 = vpop.f32.mrb[0].mxu0
      %v511 = vadd.f32 0.0, %v510
      %v512 = vpop.f32.mrb[0].mxu0
      %v513 = vpop.f32.mrb[0].mxu0
      %v514 = vadd.f32 0.0, %v513
      %v515 = vpop.f32.mrb[0].mxu0
      %516 = vmatprep.mubr.bf16.mxu0 0
      %517 = vmatmul.mubr.bf16.gmra.mrb[0].mxu0 %v451
      %v518 = vpop.f32.mrb[0].mxu0
      %v519 = vadd.f32 0.0, %v518
      %v520 = vpop.f32.mrb[0].mxu0
      %v521 = vpop.f32.mrb[0].mxu0
      %v522 = vadd.f32 0.0, %v521
      %v523 = vpop.f32.mrb[0].mxu0
      %524 = vmatprep.mubr.bf16.mxu0 0
      %525 = vmatmul.mubr.bf16.gmra.mrb[0].mxu0 %v454
      %v526 = vpop.f32.mrb[0].mxu0
      %v527 = vadd.f32 0.0, %v526
      %v528 = vpop.f32.mrb[0].mxu0
      %v529 = vpop.f32.mrb[0].mxu0
      %v530 = vadd.f32 0.0, %v529
      %v531 = vpop.f32.mrb[0].mxu0
      %532 = vdwg.mxu0
      %v533 = vld [vmem:[#allocation2] sm:$0xff]
      %v534 = vld [vmem:[#allocation2 + $0x8] sm:$0xff]
      %v535 = vld [vmem:[#allocation2 + $0x10] sm:$0xff]
      %v536 = vld [vmem:[#allocation2 + $0x18] sm:$0xff]
      %v537 = vld [vmem:[#allocation2 + $0x20] sm:$0xff]
      %v538 = vld [vmem:[#allocation2 + $0x28] sm:$0xff]
      %v539 = vld [vmem:[#allocation2 + $0x30] sm:$0xff]
      %v540 = vld [vmem:[#allocation2 + $0x38] sm:$0xff]
      %vm541 = vcmask 523264
      %v542 = vsel %vm541, %v503, -inf
      %543 = vmax.xlane.f32.xlu0 %v542
      %v544 = vpop.xlane.xlu0 %543
      %v545 = vsel %vm541, %v506, -inf
      %546 = vmax.xlane.f32.xlu0 %v545
      %v547 = vpop.xlane.xlu0 %546
      %v548 = vsel %vm541, %v511, -inf
      %549 = vmax.xlane.f32.xlu0 %v548
      %v550 = vpop.xlane.xlu0 %549
      %v551 = vsel %vm541, %v514, -inf
      %552 = vmax.xlane.f32.xlu0 %v551
      %v553 = vpop.xlane.xlu0 %552
      %v554 = vsel %vm541, %v519, -inf
      %555 = vmax.xlane.f32.xlu0 %v554
      %v556 = vpop.xlane.xlu0 %555
      %v557 = vsel %vm541, %v522, -inf
      %558 = vmax.xlane.f32.xlu0 %v557
      %v559 = vpop.xlane.xlu0 %558
      %v560 = vsel %vm541, %v527, -inf
      %561 = vmax.xlane.f32.xlu0 %v560
      %v562 = vpop.xlane.xlu0 %561
      %v563 = vsel %vm541, %v530, -inf
      %564 = vmax.xlane.f32.xlu0 %v563
      %v565 = vpop.xlane.xlu0 %564
      %v566 = vmax.f32 %v533, %v544
      %v567 = vmax.f32 %v534, %v547
      %v568 = vmax.f32 %v535, %v550
      %v569 = vmax.f32 %v536, %v553
      %v570 = vmax.f32 %v537, %v556
      %v571 = vmax.f32 %v538, %v559
      %v572 = vmax.f32 %v539, %v562
      %v573 = vmax.f32 %v540, %v565
      %v574 = vsub.f32 %v533, %v566
      %v575 = vsub.f32 %v534, %v567
      %v576 = vsub.f32 %v535, %v568
      %v577 = vsub.f32 %v536, %v569
      %v578 = vsub.f32 %v537, %v570
      %v579 = vsub.f32 %v538, %v571
      %v580 = vsub.f32 %v539, %v572
      %v581 = vsub.f32 %v540, %v573
      %v582 = vmul.f32 %v574, 1.442695
      %v583 = vpow.pop %v582
      %v584 = vmul.f32 %v575, 1.442695
      %v585 = vpow.pop %v584
      %v586 = vmul.f32 %v576, 1.442695
      %v587 = vpow.pop %v586
      %v588 = vmul.f32 %v577, 1.442695
      %v589 = vpow.pop %v588
      %v590 = vmul.f32 %v578, 1.442695
      %v591 = vpow.pop %v590
      %v592 = vmul.f32 %v579, 1.442695
      %v593 = vpow.pop %v592
      %v594 = vmul.f32 %v580, 1.442695
      %v595 = vpow.pop %v594
      %v596 = vmul.f32 %v581, 1.442695
      %v597 = vpow.pop %v596
      %599 = vset.pattern.permute.xlu0 0
      %600 = vperm.xlu0 %599, %v566
      %v601 = vpop.permute.xlu0 %600
      %604 = vset.pattern.permute.xlu0 0
      %605 = vperm.xlu0 %604, %v567
      %v606 = vpop.permute.xlu0 %605
      %609 = vset.pattern.permute.xlu0 0
      %610 = vperm.xlu0 %609, %v568
      %v611 = vpop.permute.xlu0 %610
      %614 = vset.pattern.permute.xlu0 0
      %615 = vperm.xlu0 %614, %v569
      %v616 = vpop.permute.xlu0 %615
      %619 = vset.pattern.permute.xlu0 0
      %620 = vperm.xlu0 %619, %v570
      %v621 = vpop.permute.xlu0 %620
      %624 = vset.pattern.permute.xlu0 0
      %625 = vperm.xlu0 %624, %v571
      %v626 = vpop.permute.xlu0 %625
      %629 = vset.pattern.permute.xlu0 0
      %630 = vperm.xlu0 %629, %v572
      %v631 = vpop.permute.xlu0 %630
      %634 = vset.pattern.permute.xlu0 0
      %635 = vperm.xlu0 %634, %v573
      %v636 = vpop.permute.xlu0 %635
      %v638 = vsub.f32 %v503, %v601
      %v639 = vsub.f32 %v506, %v606
      %v640 = vsub.f32 %v511, %v611
      %v641 = vsub.f32 %v514, %v616
      %v642 = vsub.f32 %v519, %v621
      %v643 = vsub.f32 %v522, %v626
      %v644 = vsub.f32 %v527, %v631
      %v645 = vsub.f32 %v530, %v636
      %v646 = vmul.f32 %v638, 1.442695
      %v647 = vpow.pop %v646
      %v648 = vmul.f32 %v639, 1.442695
      %v649 = vpow.pop %v648
      %v650 = vmul.f32 %v640, 1.442695
      %v651 = vpow.pop %v650
      %v652 = vmul.f32 %v641, 1.442695
      %v653 = vpow.pop %v652
      %v654 = vmul.f32 %v642, 1.442695
      %v655 = vpow.pop %v654
      %v656 = vmul.f32 %v643, 1.442695
      %v657 = vpow.pop %v656
      %v658 = vmul.f32 %v644, 1.442695
      %v659 = vpow.pop %v658
      %v660 = vmul.f32 %v645, 1.442695
      %v661 = vpow.pop %v660
      %v662 = vld [vmem:[#allocation3] sm:$0xff]
      %v663 = vld [vmem:[#allocation3 + $0x8] sm:$0xff]
      %v664 = vld [vmem:[#allocation3 + $0x10] sm:$0xff]
      %v665 = vld [vmem:[#allocation3 + $0x18] sm:$0xff]
      %v666 = vld [vmem:[#allocation3 + $0x20] sm:$0xff]
      %v667 = vld [vmem:[#allocation3 + $0x28] sm:$0xff]
      %v668 = vld [vmem:[#allocation3 + $0x30] sm:$0xff]
      %v669 = vld [vmem:[#allocation3 + $0x38] sm:$0xff]
      %v670 = vmul.f32 %v583, %v662
      %v671 = vmul.f32 %v585, %v663
      %v672 = vmul.f32 %v587, %v664
      %v673 = vmul.f32 %v589, %v665
      %v674 = vmul.f32 %v591, %v666
      %v675 = vmul.f32 %v593, %v667
      %v676 = vmul.f32 %v595, %v668
      %v677 = vmul.f32 %v597, %v669
      %v678 = vsel %vm541, %v647, 0.0
      %679 = vadd.xlane.f32.xlu0 %v678
      %v680 = vpop.xlane.xlu0 %679
      %v681 = vsel %vm541, %v649, 0.0
      %682 = vadd.xlane.f32.xlu0 %v681
      %v683 = vpop.xlane.xlu0 %682
      %v684 = vsel %vm541, %v651, 0.0
      %685 = vadd.xlane.f32.xlu0 %v684
      %v686 = vpop.xlane.xlu0 %685
      %v687 = vsel %vm541, %v653, 0.0
      %688 = vadd.xlane.f32.xlu0 %v687
      %v689 = vpop.xlane.xlu0 %688
      %v690 = vsel %vm541, %v655, 0.0
      %691 = vadd.xlane.f32.xlu0 %v690
      %v692 = vpop.xlane.xlu0 %691
      %v693 = vsel %vm541, %v657, 0.0
      %694 = vadd.xlane.f32.xlu0 %v693
      %v695 = vpop.xlane.xlu0 %694
      %v696 = vsel %vm541, %v659, 0.0
      %697 = vadd.xlane.f32.xlu0 %v696
      %v698 = vpop.xlane.xlu0 %697
      %v699 = vsel %vm541, %v661, 0.0
      %700 = vadd.xlane.f32.xlu0 %v699
      %v701 = vpop.xlane.xlu0 %700
      %v702 = vadd.f32 %v670, %v680
      %v703 = vadd.f32 %v671, %v683
      %v704 = vadd.f32 %v672, %v686
      %v705 = vadd.f32 %v673, %v689
      %v706 = vadd.f32 %v674, %v692
      %v707 = vadd.f32 %v675, %v695
      %v708 = vadd.f32 %v676, %v698
      %v709 = vadd.f32 %v677, %v701
      %vm710 = vcmask 7168
      %711 = vst.msk [vmem:[#allocation3] sm:$0xff] %vm710, %v702
      %712 = vst.msk [vmem:[#allocation3 + $0x8] sm:$0xff] %vm710, %v703
      %713 = vst.msk [vmem:[#allocation3 + $0x10] sm:$0xff] %vm710, %v704
      %714 = vst.msk [vmem:[#allocation3 + $0x18] sm:$0xff] %vm710, %v705
      %715 = vst.msk [vmem:[#allocation3 + $0x20] sm:$0xff] %vm710, %v706
      %716 = vst.msk [vmem:[#allocation3 + $0x28] sm:$0xff] %vm710, %v707
      %717 = vst.msk [vmem:[#allocation3 + $0x30] sm:$0xff] %vm710, %v708
      %718 = vst.msk [vmem:[#allocation3 + $0x38] sm:$0xff] %vm710, %v709
      %v719 = vld [vmem:[#allocation4] sm:$0xff]
      %v720 = vld [vmem:[#allocation4 + $0x8] sm:$0xff]
      %v721 = vld [vmem:[#allocation4 + $0x10] sm:$0xff]
      %v722 = vld [vmem:[#allocation4 + $0x18] sm:$0xff]
      %v723 = vld [vmem:[#allocation4 + $0x20] sm:$0xff]
      %v724 = vld [vmem:[#allocation4 + $0x28] sm:$0xff]
      %v725 = vld [vmem:[#allocation4 + $0x30] sm:$0xff]
      %v726 = vld [vmem:[#allocation4 + $0x38] sm:$0xff]
      %728 = vset.pattern.permute.xlu0 0
      %729 = vperm.xlu0 %728, %v583
      %v730 = vpop.permute.xlu0 %729
      %733 = vset.pattern.permute.xlu0 0
      %734 = vperm.xlu0 %733, %v585
      %v735 = vpop.permute.xlu0 %734
      %738 = vset.pattern.permute.xlu0 0
      %739 = vperm.xlu0 %738, %v587
      %v740 = vpop.permute.xlu0 %739
      %743 = vset.pattern.permute.xlu0 0
      %744 = vperm.xlu0 %743, %v589
      %v745 = vpop.permute.xlu0 %744
      %748 = vset.pattern.permute.xlu0 0
      %749 = vperm.xlu0 %748, %v591
      %v750 = vpop.permute.xlu0 %749
      %753 = vset.pattern.permute.xlu0 0
      %754 = vperm.xlu0 %753, %v593
      %v755 = vpop.permute.xlu0 %754
      %758 = vset.pattern.permute.xlu0 0
      %759 = vperm.xlu0 %758, %v595
      %v760 = vpop.permute.xlu0 %759
      %763 = vset.pattern.permute.xlu0 0
      %764 = vperm.xlu0 %763, %v597
      %v765 = vpop.permute.xlu0 %764
      %v767 = vmul.f32 %v730, %v719
      %v768 = vmul.f32 %v735, %v720
      %v769 = vmul.f32 %v740, %v721
      %v770 = vmul.f32 %v745, %v722
      %v771 = vmul.f32 %v750, %v723
      %v772 = vmul.f32 %v755, %v724
      %v773 = vmul.f32 %v760, %v725
      %v774 = vmul.f32 %v765, %v726
      %v775 = vpack.c.bf16 %v649, %v647
      %v776 = vpack.c.bf16 %v653, %v651
      %v777 = vpack.c.bf16 %v657, %v655
      %v778 = vpack.c.bf16 %v661, %v659
      %v787 = vunpack.c.l.b16 %v395
      %v788 = vunpack.c.l.b16 %v396
      %v789 = vunpack.c.l.b16 %v397
      %v790 = vunpack.c.l.b16 %v398
      %v791 = vunpack.c.l.b16 %v399
      %v792 = vunpack.c.l.b16 %v400
      %v793 = vunpack.c.l.b16 %v401
      %v794 = vunpack.c.l.b16 %v402
      %v795 = vpack.c.b16 %v788, %v787
      %v796 = vpack.c.b16 %v790, %v789
      %v797 = vpack.c.b16 %v792, %v791
      %v798 = vpack.c.b16 %v794, %v793
      %v804 = vsel %vm541, %v775, 0
      %v807 = vsel %vm541, %v776, 0
      %v810 = vsel %vm541, %v777, 0
      %v813 = vsel %vm541, %v778, 0
      %815 = vmatprep.subr.bf16.mxu0 0
      %816 = vmatpush1.bf16.msra.mxu0 %v795
      %817 = vmatprep.subr.bf16.mxu0 0
      %818 = vmatpush1.bf16.msra.mxu0 %v796
      %819 = vmatprep.subr.bf16.mxu0 0
      %820 = vmatpush1.bf16.msra.mxu0 %v797
      %821 = vmatprep.subr.bf16.mxu0 0
      %822 = vmatpush1.bf16.msra.mxu0 %v798
      %823 = vmatprep.subr.bf16.mxu0 0
      %824 = vmatpush1.bf16.msra.mxu0 0
      %825 = vmatprep.subr.bf16.mxu0 0
      %826 = vmatpush1.bf16.msra.mxu0 0
      %827 = vmatprep.subr.bf16.mxu0 0
      %828 = vmatpush1.bf16.msra.mxu0 0
      %829 = vmatprep.subr.bf16.mxu0 0
      %830 = vmatpush1.bf16.msra.mxu0 0
      %831 = vmatprep.subr.bf16.mxu0 0
      %832 = vmatpush1.bf16.msra.mxu0 0
      %833 = vmatprep.subr.bf16.mxu0 0
      %834 = vmatpush1.bf16.msra.mxu0 0
      %835 = vmatprep.subr.bf16.mxu0 0
      %836 = vmatpush1.bf16.msra.mxu0 0
      %837 = vmatprep.subr.bf16.mxu0 0
      %838 = vmatpush1.bf16.msra.mxu0 0
      %839 = vmatprep.subr.bf16.mxu0 0
      %840 = vmatpush1.bf16.msra.mxu0 0
      %841 = vmatprep.subr.bf16.mxu0 0
      %842 = vmatpush1.bf16.msra.mxu0 0
      %843 = vmatprep.subr.bf16.mxu0 0
      %844 = vmatpush1.bf16.msra.mxu0 0
      %845 = vmatprep.subr.bf16.mxu0 0
      %846 = vmatpush1.bf16.msra.mxu0 0
      %847 = vmatprep.mubr.bf16.mxu0 0
      %848 = vmatmul.mubr.bf16.gmra.mrb[0].mxu0 %v804
      %v849 = vpop.f32.mrb[0].mxu0
      %v850 = vadd.f32 0.0, %v849
      %v851 = vpop.f32.mrb[0].mxu0
      %v852 = vpop.f32.mrb[0].mxu0
      %v853 = vadd.f32 0.0, %v852
      %v854 = vpop.f32.mrb[0].mxu0
      %855 = vmatprep.mubr.bf16.mxu0 0
      %856 = vmatmul.mubr.bf16.gmra.mrb[0].mxu0 %v807
      %v857 = vpop.f32.mrb[0].mxu0
      %v858 = vadd.f32 0.0, %v857
      %v859 = vpop.f32.mrb[0].mxu0
      %v860 = vpop.f32.mrb[0].mxu0
      %v861 = vadd.f32 0.0, %v860
      %v862 = vpop.f32.mrb[0].mxu0
      %863 = vmatprep.mubr.bf16.mxu0 0
      %864 = vmatmul.mubr.bf16.gmra.mrb[0].mxu0 %v810
      %v865 = vpop.f32.mrb[0].mxu0
      %v866 = vadd.f32 0.0, %v865
      %v867 = vpop.f32.mrb[0].mxu0
      %v868 = vpop.f32.mrb[0].mxu0
      %v869 = vadd.f32 0.0, %v868
      %v870 = vpop.f32.mrb[0].mxu0
      %871 = vmatprep.mubr.bf16.mxu0 0
      %872 = vmatmul.mubr.bf16.gmra.mrb[0].mxu0 %v813
      %v873 = vpop.f32.mrb[0].mxu0
      %v874 = vadd.f32 0.0, %v873
      %v875 = vpop.f32.mrb[0].mxu0
      %v876 = vpop.f32.mrb[0].mxu0
      %v877 = vadd.f32 0.0, %v876
      %v878 = vpop.f32.mrb[0].mxu0
      %879 = vdwg.mxu0
      %v880 = vadd.f32 %v767, %v850
      %v881 = vadd.f32 %v768, %v853
      %v882 = vadd.f32 %v769, %v858
      %v883 = vadd.f32 %v770, %v861
      %v884 = vadd.f32 %v771, %v866
      %v885 = vadd.f32 %v772, %v869
      %v886 = vadd.f32 %v773, %v874
      %v887 = vadd.f32 %v774, %v877
      %888 = vst.msk [vmem:[#allocation4] sm:$0xff] %vm443, %v880
      %889 = vst.msk [vmem:[#allocation4 + $0x8] sm:$0xff] %vm443, %v881
      %890 = vst.msk [vmem:[#allocation4 + $0x10] sm:$0xff] %vm443, %v882
      %891 = vst.msk [vmem:[#allocation4 + $0x18] sm:$0xff] %vm443, %v883
      %892 = vst.msk [vmem:[#allocation4 + $0x20] sm:$0xff] %vm443, %v884
      %893 = vst.msk [vmem:[#allocation4 + $0x28] sm:$0xff] %vm443, %v885
      %894 = vst.msk [vmem:[#allocation4 + $0x30] sm:$0xff] %vm443, %v886
      %895 = vst.msk [vmem:[#allocation4 + $0x38] sm:$0xff] %vm443, %v887
      %896 = vst.msk [vmem:[#allocation2] sm:$0xff] %vm710, %v566
      %897 = vst.msk [vmem:[#allocation2 + $0x8] sm:$0xff] %vm710, %v567
      %898 = vst.msk [vmem:[#allocation2 + $0x10] sm:$0xff] %vm710, %v568
      %899 = vst.msk [vmem:[#allocation2 + $0x18] sm:$0xff] %vm710, %v569
      %900 = vst.msk [vmem:[#allocation2 + $0x20] sm:$0xff] %vm710, %v570
      %901 = vst.msk [vmem:[#allocation2 + $0x28] sm:$0xff] %vm710, %v571
      %902 = vst.msk [vmem:[#allocation2 + $0x30] sm:$0xff] %vm710, %v572
      %903 = vst.msk [vmem:[#allocation2 + $0x38] sm:$0xff] %vm710, %v573
      // Predicated region
      $region37: #{lavindit_forward.16} parent=31 // pred_check
        %p904 = pneg %p349
      $region38: #{lavindit_forward.16} parent=31 // pred_check_branch
        %906 = sbr.rel (%p904) target = $region40
      $region39: #{lavindit_forward.16} parent=31 // pred_region
        %v907 = vld [vmem:[#allocation4] sm:$0xff]
        %v908 = vld [vmem:[#allocation4 + $0x8] sm:$0xff]
        %v909 = vld [vmem:[#allocation4 + $0x10] sm:$0xff]
        %v910 = vld [vmem:[#allocation4 + $0x18] sm:$0xff]
        %v911 = vld [vmem:[#allocation4 + $0x20] sm:$0xff]
        %v912 = vld [vmem:[#allocation4 + $0x28] sm:$0xff]
        %v913 = vld [vmem:[#allocation4 + $0x30] sm:$0xff]
        %v914 = vld [vmem:[#allocation4 + $0x38] sm:$0xff]
        %v915 = vld [vmem:[#allocation3] sm:$0xff]
        %v916 = vld [vmem:[#allocation3 + $0x8] sm:$0xff]
        %v917 = vld [vmem:[#allocation3 + $0x10] sm:$0xff]
        %v918 = vld [vmem:[#allocation3 + $0x18] sm:$0xff]
        %v919 = vld [vmem:[#allocation3 + $0x20] sm:$0xff]
        %v920 = vld [vmem:[#allocation3 + $0x28] sm:$0xff]
        %v921 = vld [vmem:[#allocation3 + $0x30] sm:$0xff]
        %v922 = vld [vmem:[#allocation3 + $0x38] sm:$0xff]
        %v923 = vrcp.pop %v915
        %v924 = vrcp.pop %v916
        %v925 = vrcp.pop %v917
        %v926 = vrcp.pop %v918
        %v927 = vrcp.pop %v919
        %v928 = vrcp.pop %v920
        %v929 = vrcp.pop %v921
        %v930 = vrcp.pop %v922
        %932 = vset.pattern.permute.xlu0 0
        %933 = vperm.xlu0 %932, %v923
        %v934 = vpop.permute.xlu0 %933
        %937 = vset.pattern.permute.xlu0 0
        %938 = vperm.xlu0 %937, %v924
        %v939 = vpop.permute.xlu0 %938
        %942 = vset.pattern.permute.xlu0 0
        %943 = vperm.xlu0 %942, %v925
        %v944 = vpop.permute.xlu0 %943
        %947 = vset.pattern.permute.xlu0 0
        %948 = vperm.xlu0 %947, %v926
        %v949 = vpop.permute.xlu0 %948
        %952 = vset.pattern.permute.xlu0 0
        %953 = vperm.xlu0 %952, %v927
        %v954 = vpop.permute.xlu0 %953
        %957 = vset.pattern.permute.xlu0 0
        %958 = vperm.xlu0 %957, %v928
        %v959 = vpop.permute.xlu0 %958
        %962 = vset.pattern.permute.xlu0 0
        %963 = vperm.xlu0 %962, %v929
        %v964 = vpop.permute.xlu0 %963
        %967 = vset.pattern.permute.xlu0 0
        %968 = vperm.xlu0 %967, %v930
        %v969 = vpop.permute.xlu0 %968
        %v971 = vmul.f32 %v907, %v934
        %v972 = vmul.f32 %v908, %v939
        %v973 = vmul.f32 %v909, %v944
        %v974 = vmul.f32 %v910, %v949
        %v975 = vmul.f32 %v911, %v954
        %v976 = vmul.f32 %v912, %v959
        %v977 = vmul.f32 %v913, %v964
        %v978 = vmul.f32 %v914, %v969
        %v979 = vpack.c.bf16 %v972, %v971
        %v980 = vpack.c.bf16 %v974, %v973
        %v981 = vpack.c.bf16 %v976, %v975
        %v982 = vpack.c.bf16 %v978, %v977
        %v987 = vunpack.c.l.b16 %v979
        %v988 = vunpack.c.h.b16 %v979
        %v989 = vunpack.c.l.b16 %v980
        %v990 = vunpack.c.h.b16 %v980
        %v991 = vunpack.c.l.b16 %v981
        %v992 = vunpack.c.h.b16 %v981
        %v993 = vunpack.c.l.b16 %v982
        %v994 = vunpack.c.h.b16 %v982
        %v995 = vpack.c.b16 %v987, %v987
        %v996 = vpack.c.b16 %v988, %v988
        %v997 = vpack.c.b16 %v989, %v989
        %v998 = vpack.c.b16 %v990, %v990
        %v999 = vpack.c.b16 %v991, %v991
        %v1000 = vpack.c.b16 %v992, %v992
        %v1001 = vpack.c.b16 %v993, %v993
        %v1002 = vpack.c.b16 %v994, %v994
        %vm1011 = vcmask 257024
        %1012 = vst.msk [vmem:[%s346] sm:$0xf] %vm1011, %v995
        %1013 = vst.msk [vmem:[%s346 + $0x4] sm:$0xf] %vm1011, %v996
        %1014 = vst.msk [vmem:[%s346 + $0x8] sm:$0xf] %vm1011, %v997
        %1015 = vst.msk [vmem:[%s346 + $0xc] sm:$0xf] %vm1011, %v998
        %1016 = vst.msk [vmem:[%s346 + $0x10] sm:$0xf] %vm1011, %v999
        %1017 = vst.msk [vmem:[%s346 + $0x14] sm:$0xf] %vm1011, %v1000
        %1018 = vst.msk [vmem:[%s346 + $0x18] sm:$0xf] %vm1011, %v1001
        %1019 = vst.msk [vmem:[%s346 + $0x1c] sm:$0xf] %vm1011, %v1002
      $region40: #{lavindit_forward.16} parent=31 // pred_fallthru
        _
      %s1020 = smul.u32 8, %s22
      %p1021 = scmp.lt.s32.totalorder %s20, 1
      %s1022 = scalar_select %p1021, %s20, 1
      %p1023 = scmp.lt.s32.totalorder %s21, 3
      %s1024 = scalar_select %p1023, %s21, 3
      %p1025 = scmp.lt.s32.totalorder %s1020, 7
      %s1026 = scalar_select %p1025, %s1020, 7
      %s1027 = smul.addr %s1024, 8
      %s1028 = sadd.s32 %s1026, %s1027
      %s1029 = smul.addr %s1022, 32
      %s1030 = sadd.s32 %s1028, %s1029
      %s1031 = smul.addr %s1030, 4
      %s1032 = scalar_lea.vmem %s3, %s1031
      // Predicated region
      $region41: #{lavindit_forward.16} parent=31 // pred_check
        %p1033 = pneg %p152
      $region42: #{lavindit_forward.16} parent=31 // pred_check_branch
        %1035 = sbr.rel (%p1033) target = $region44
      $region43: #{lavindit_forward.16} parent=31 // pred_region
        %s1036 = smul.u32 8, %s22
      $region44: #{lavindit_forward.16} parent=31 // pred_fallthru
        _
    $region32: #{lavindit_forward.16} parent=5 // pred_fallthru
      _
    %p1037 = scmp.le.s32.totalorder 2, %s9
    // Predicated region
    $region45: #{lavindit_forward.16} parent=5 // pred_check
      %p1038 = pneg %p1037
    $region46: #{lavindit_forward.16} parent=5 // pred_check_branch
      %1040 = sbr.rel (%p1038) target = $region48
    $region47: #{lavindit_forward.16} parent=5 // pred_region
      %s1041 = ssub.s32 %s9, 2
      // Predicated region
      $region49: #{lavindit_forward.16} parent=47 // pred_check
        %p1042 = pneg %p158
      $region50: #{lavindit_forward.16} parent=47 // pred_check_branch
        %1044 = sbr.rel (%p1042) target = $region52
      $region51: #{lavindit_forward.16} parent=47 // pred_region
        %s1045 = smul.u32 8, %s26
        %p1046 = scmp.lt.s32.totalorder %s24, 1
        %s1047 = scalar_select %p1046, %s24, 1
        %p1048 = scmp.lt.s32.totalorder %s25, 3
        %s1049 = scalar_select %p1048, %s25, 3
        %p1050 = scmp.lt.s32.totalorder %s1045, 7
        %s1051 = scalar_select %p1050, %s1045, 7
        %s1052 = smul.addr %s1049, 8
        %s1053 = sadd.s32 %s1051, %s1052
        %s1054 = smul.addr %s1047, 32
        %s1055 = sadd.s32 %s1053, %s1054
        %s1056 = smul.addr %s1055, 4
        %s1057 = scalar_lea.vmem %s3, %s1056
      $region52: #{lavindit_forward.16} parent=47 // pred_fallthru
        _
    $region48: #{lavindit_forward.16} parent=5 // pred_fallthru
      _
  $region6: #{lavindit_forward.16} parent=0 // loop_footer
    %s13 = sadd.s32 1, %s9
  $region7: #{lavindit_forward.16} parent=0 // loop_footer_branch
    %8 = sbr.rel target = $region3
  $region8: #{lavindit_forward.16} parent=0 // loop_exit
    _

// kernel: lavindit_forward.23
$region0: #{lavindit_forward.23}
  #allocation0 [shape = 'u32[]', space=smem, size = 0x4, offset = 0x4, fixed_abs, tag = 'smem constant byte address 0x4 - core index']
  #allocation1 [shape = 'u32[144,128]{1,0:T(1,128)}', space=vmem, size = 0x12000, scoped, tag = 'internal scratch']
  %s0 = inlined_call_operand.vmem [shape: bf16[2,32,128], index: 0, kind: input, shape index: {}]
  %s1 = inlined_call_operand.vmem [shape: f32[2,1,128], index: 1, kind: input, shape index: {}]
  %s2 = inlined_call_operand.vmem [shape: f32[2,1,128], index: 2, kind: input, shape index: {}]
  %s3 = inlined_call_operand.vmem [shape: bf16[128,128], index: 3, kind: input, shape index: {}]
  %s4 = inlined_call_operand.vmem [shape: f32[1,128], index: 4, kind: input, shape index: {}]
  %s5 = inlined_call_operand.vmem [shape: f32[2,32,128], index: 5, kind: output, shape index: {}]
  %s6 = sld [smem:[#allocation0]]
  $region53: #{lavindit_forward.23} parent=0
    _
  %s8 = ssub.s32 1, %s6
  %s9 = scalar_select 0, %s8, %s6
  loop: start=0, step=1, limit=4
  $region2: #{lavindit_forward.23} parent=0 // loop_pre_header
    _
  $region3: #{lavindit_forward.23} parent=0 // loop_header
    %s11 = sphi 0, %s15
    %p12 = scmp.ge.s32.totalorder %s11, 4
    %s18 = sphi 0, %s30
    %s19 = sphi 0, %s26
    %s20 = sphi 0, %s18
    %s21 = sphi 0, %s19
    %s22 = sphi 0, %s20
    %s23 = sphi 0, %s21
    %s35 = sphi 0, %s37
    %s38 = sphi 0, %s35
    %s39 = sphi 0, %s38
    %s55 = sphi 0, %s39
    %s61 = sphi 0, %s63
    %s64 = sphi 0, %s61
    %s65 = sphi 0, %s64
    %s81 = sphi 0, %s65
    %s87 = sphi 0, %s89
    %s90 = sphi 0, %s87
    %s91 = sphi 0, %s90
    %s107 = sphi 0, %s91
    %s111 = sphi 0, %s111
    %s113 = sphi 0, %s111
    %s114 = sphi 0, %s113
    %s128 = sphi 0, %s114
    %s132 = sphi 0, %s132
    %s134 = sphi 0, %s132
    %s135 = sphi 0, %s134
    %s149 = sphi 0, %s135
    %s157 = sphi 0, %s159
    %s160 = sphi 0, %s157
    %s161 = sphi 0, %s160
    %s177 = sphi 0, %s161
  $region4: #{lavindit_forward.23} parent=0 // loop_header_branch
    %14 = sbr.rel (%p12) target = $region8
  $region5: #{lavindit_forward.23} parent=0 // loop_body
    %s16 = ssub.s32 %s11, 1
    %s17 = ssub.s32 %s11, 2
    %s24 = sadd.s32 1, %s19
    %p25 = scmp.ge.s32.totalorder %s24, 1
    %s26 = scalar_select %p25, 0, %s24
    %s27 = sadd.s32 1, %s18
    %s28 = scalar_select %p25, %s27, %s18
    %p29 = scmp.ge.s32.totalorder %s28, 2
    %s30 = scalar_select %p29, 0, %s28
    %s31 = ssub.s32 %s18, %s30
    %s32 = ssub.s32 %s19, %s26
    %s33 = sor.u32 %s31, %s32
    %p34 = scmp.eq.s32.totalorder %s33, 0
    %s36 = sadd.s32 %s35, 1
    %s37 = scalar_select %p34, %s35, %s36
    %p40 = pneg %p34
    %p41 = scmp.eq.s32.totalorder %s11, 1
    %p42 = por %p40, %p41
    %p43 = scmp.ne.s32.totalorder %s35, %s38
    %p44 = scmp.eq.s32.totalorder %s11, 0
    %p45 = por %p43, %p44
    %p46 = scmp.ne.s32.totalorder %s35, %s38
    %p47 = scmp.eq.s32.totalorder %s16, 1
    %p48 = por %p46, %p47
    %p49 = scmp.ne.s32.totalorder %s38, %s39
    %p50 = scmp.eq.s32.totalorder %s16, 0
    %p51 = por %p49, %p50
    %p52 = scmp.ne.s32.totalorder %s38, %s39
    %p53 = scmp.eq.s32.totalorder %s17, 1
    %p54 = por %p52, %p53
    %p56 = scmp.ne.s32.totalorder %s39, %s55
    %p57 = scmp.eq.s32.totalorder %s17, 0
    %p58 = por %p56, %p57
    %s59 = ssub.s32 %s18, %s30
    %p60 = scmp.eq.s32.totalorder %s59, 0
    %s62 = sadd.s32 %s61, 1
    %s63 = scalar_select %p60, %s61, %s62
    %p66 = pneg %p60
    %p67 = scmp.eq.s32.totalorder %s11, 1
    %p68 = por %p66, %p67
    %p69 = scmp.ne.s32.totalorder %s61, %s64
    %p70 = scmp.eq.s32.totalorder %s11, 0
    %p71 = por %p69, %p70
    %p72 = scmp.ne.s32.totalorder %s61, %s64
    %p73 = scmp.eq.s32.totalorder %s16, 1
    %p74 = por %p72, %p73
    %p75 = scmp.ne.s32.totalorder %s64, %s65
    %p76 = scmp.eq.s32.totalorder %s16, 0
    %p77 = por %p75, %p76
    %p78 = scmp.ne.s32.totalorder %s64, %s65
    %p79 = scmp.eq.s32.totalorder %s17, 1
    %p80 = por %p78, %p79
    %p82 = scmp.ne.s32.totalorder %s65, %s81
    %p83 = scmp.eq.s32.totalorder %s17, 0
    %p84 = por %p82, %p83
    %s85 = ssub.s32 %s18, %s30
    %p86 = scmp.eq.s32.totalorder %s85, 0
    %s88 = sadd.s32 %s87, 1
    %s89 = scalar_select %p86, %s87, %s88
    %p92 = pneg %p86
    %p93 = scmp.eq.s32.totalorder %s11, 1
    %p94 = por %p92, %p93
    %p95 = scmp.ne.s32.totalorder %s87, %s90
    %p96 = scmp.eq.s32.totalorder %s11, 0
    %p97 = por %p95, %p96
    %p98 = scmp.ne.s32.totalorder %s87, %s90
    %p99 = scmp.eq.s32.totalorder %s16, 1
    %p100 = por %p98, %p99
    %p101 = scmp.ne.s32.totalorder %s90, %s91
    %p102 = scmp.eq.s32.totalorder %s16, 0
    %p103 = por %p101, %p102
    %p104 = scmp.ne.s32.totalorder %s90, %s91
    %p105 = scmp.eq.s32.totalorder %s17, 1
    %p106 = por %p104, %p105
    %p108 = scmp.ne.s32.totalorder %s91, %s107
    %p109 = scmp.eq.s32.totalorder %s17, 0
    %p110 = por %p108, %p109
    %s112 = sadd.s32 %s111, 1
    %p115 = scmp.eq.s32.totalorder %s11, 1
    %p116 = scmp.ne.s32.totalorder %s111, %s113
    %p117 = scmp.eq.s32.totalorder %s11, 0
    %p118 = por %p116, %p117
    %p119 = scmp.ne.s32.totalorder %s111, %s113
    %p120 = scmp.eq.s32.totalorder %s16, 1
    %p121 = por %p119, %p120
    %p122 = scmp.ne.s32.totalorder %s113, %s114
    %p123 = scmp.eq.s32.totalorder %s16, 0
    %p124 = por %p122, %p123
    %p125 = scmp.ne.s32.totalorder %s113, %s114
    %p126 = scmp.eq.s32.totalorder %s17, 1
    %p127 = por %p125, %p126
    %p129 = scmp.ne.s32.totalorder %s114, %s128
    %p130 = scmp.eq.s32.totalorder %s17, 0
    %p131 = por %p129, %p130
    %s133 = sadd.s32 %s132, 1
    %p136 = scmp.eq.s32.totalorder %s11, 1
    %p137 = scmp.ne.s32.totalorder %s132, %s134
    %p138 = scmp.eq.s32.totalorder %s11, 0
    %p139 = por %p137, %p138
    %p140 = scmp.ne.s32.totalorder %s132, %s134
    %p141 = scmp.eq.s32.totalorder %s16, 1
    %p142 = por %p140, %p141
    %p143 = scmp.ne.s32.totalorder %s134, %s135
    %p144 = scmp.eq.s32.totalorder %s16, 0
    %p145 = por %p143, %p144
    %p146 = scmp.ne.s32.totalorder %s134, %s135
    %p147 = scmp.eq.s32.totalorder %s17, 1
    %p148 = por %p146, %p147
    %p150 = scmp.ne.s32.totalorder %s135, %s149
    %p151 = scmp.eq.s32.totalorder %s17, 0
    %p152 = por %p150, %p151
    %s153 = ssub.s32 %s18, %s30
    %s154 = ssub.s32 %s19, %s26
    %s155 = sor.u32 %s153, %s154
    %p156 = scmp.eq.s32.totalorder %s155, 0
    %s158 = sadd.s32 %s157, 1
    %s159 = scalar_select %p156, %s157, %s158
    %p162 = pneg %p156
    %p163 = scmp.eq.s32.totalorder %s11, 1
    %p164 = por %p162, %p163
    %p165 = scmp.ne.s32.totalorder %s157, %s160
    %p166 = scmp.eq.s32.totalorder %s11, 0
    %p167 = por %p165, %p166
    %p168 = scmp.ne.s32.totalorder %s157, %s160
    %p169 = scmp.eq.s32.totalorder %s16, 1
    %p170 = por %p168, %p169
    %p171 = scmp.ne.s32.totalorder %s160, %s161
    %p172 = scmp.eq.s32.totalorder %s16, 0
    %p173 = por %p171, %p172
    %p174 = scmp.ne.s32.totalorder %s160, %s161
    %p175 = scmp.eq.s32.totalorder %s17, 1
    %p176 = por %p174, %p175
    %p178 = scmp.ne.s32.totalorder %s161, %s177
    %p179 = scmp.eq.s32.totalorder %s17, 0
    %p180 = por %p178, %p179
    %p181 = scmp.le.s32.totalorder 1, %s11
    %p182 = scmp.lt.s32.totalorder %s11, 3
    %p183 = pnand %p181, %p182
    %p184 = pneg %p183
    // Predicated region
    $region9: #{lavindit_forward.23} parent=5 // pred_check
      _
    $region10: #{lavindit_forward.23} parent=5 // pred_check_branch
      %186 = sbr.rel (%p183) target = $region12
    $region11: #{lavindit_forward.23} parent=5 // pred_region
      %s187 = ssub.s32 %s11, 1
      // Predicated region
      $region13: #{lavindit_forward.23} parent=11 // pred_check
        %p188 = pneg %p124
      $region14: #{lavindit_forward.23} parent=11 // pred_check_branch
        %190 = sbr.rel (%p188) target = $region16
      $region15: #{lavindit_forward.23} parent=11 // pred_region
        _
      $region16: #{lavindit_forward.23} parent=11 // pred_fallthru
        _
      // Predicated region
      $region17: #{lavindit_forward.23} parent=11 // pred_check
        %p191 = pneg %p145
      $region18: #{lavindit_forward.23} parent=11 // pred_check_branch
        %193 = sbr.rel (%p191) target = $region20
      $region19: #{lavindit_forward.23} parent=11 // pred_region
        _
      $region20: #{lavindit_forward.23} parent=11 // pred_fallthru
        _
    $region12: #{lavindit_forward.23} parent=5 // pred_fallthru
      _
    %p194 = scmp.lt.s32.totalorder %s11, 2
    // Predicated region
    $region21: #{lavindit_forward.23} parent=5 // pred_check
      %p195 = pneg %p194
    $region22: #{lavindit_forward.23} parent=5 // pred_check_branch
      %197 = sbr.rel (%p195) target = $region24
    $region23: #{lavindit_forward.23} parent=5 // pred_region
      // Predicated region
      $region25: #{lavindit_forward.23} parent=23 // pred_check
        %p198 = pneg %p45
      $region26: #{lavindit_forward.23} parent=23 // pred_check_branch
        %200 = sbr.rel (%p198) target = $region28
      $region27: #{lavindit_forward.23} parent=23 // pred_region
        %s201 = smul.u32 4, %s19
        %p202 = scmp.lt.s32.totalorder %s18, 1
        %s203 = scalar_select %p202, %s18, 1
        %p204 = scmp.lt.s32.totalorder %s201, 3
        %s205 = scalar_select %p204, %s201, 3
        %s206 = smul.addr %s203, 4
        %s207 = sadd.s32 %s205, %s206
        %s208 = smul.addr %s207, 4
        %s209 = scalar_lea.vmem %s0, %s208
        %s210 = smul.u32 4, %s19
      $region28: #{lavindit_forward.23} parent=23 // pred_fallthru
        _
      // Predicated region
      $region29: #{lavindit_forward.23} parent=23 // pred_check
        %p211 = pneg %p71
      $region30: #{lavindit_forward.23} parent=23 // pred_check_branch
        %213 = sbr.rel (%p211) target = $region32
      $region31: #{lavindit_forward.23} parent=23 // pred_region
        %p214 = scmp.lt.s32.totalorder %s18, 1
        %s215 = scalar_select %p214, %s18, 1
        %s216 = scalar_lea.vmem %s1, %s215
      $region32: #{lavindit_forward.23} parent=23 // pred_fallthru
        _
      // Predicated region
      $region33: #{lavindit_forward.23} parent=23 // pred_check
        %p217 = pneg %p97
      $region34: #{lavindit_forward.23} parent=23 // pred_check_branch
        %219 = sbr.rel (%p217) target = $region36
      $region35: #{lavindit_forward.23} parent=23 // pred_region
        %p220 = scmp.lt.s32.totalorder %s18, 1
        %s221 = scalar_select %p220, %s18, 1
        %s222 = scalar_lea.vmem %s2, %s221
      $region36: #{lavindit_forward.23} parent=23 // pred_fallthru
        _
    $region24: #{lavindit_forward.23} parent=5 // pred_fallthru
      _
    %p223 = scmp.le.s32.totalorder 1, %s11
    %p224 = scmp.lt.s32.totalorder %s11, 3
    %p225 = pnand %p223, %p224
    %p226 = pneg %p225
    // Predicated region
    $region37: #{lavindit_forward.23} parent=5 // pred_check
      _
    $region38: #{lavindit_forward.23} parent=5 // pred_check_branch
      %228 = sbr.rel (%p225) target = $region40
    $region39: #{lavindit_forward.23} parent=5 // pred_region
      %s229 = ssub.s32 %s11, 1
      %s230 = smul.u32 4, %s21
      %p231 = scmp.lt.s32.totalorder %s20, 1
      %s232 = scalar_select %p231, %s20, 1
      %p233 = scmp.lt.s32.totalorder %s230, 3
      %s234 = scalar_select %p233, %s230, 3
      %s235 = smul.addr %s232, 4
      %s236 = sadd.s32 %s234, %s235
      %s237 = smul.addr %s236, 4
      %s238 = scalar_lea.vmem %s0, %s237
      %p239 = pneg %p51
      %p240 = pneg %p48
      %p241 = scmp.lt.s32.totalorder %s20, 1
      %s242 = scalar_select %p241, %s20, 1
      %s243 = scalar_lea.vmem %s1, %s242
      %p244 = pneg %p77
      %p245 = pneg %p74
      %p246 = scmp.lt.s32.totalorder %s20, 1
      %s247 = scalar_select %p246, %s20, 1
      %s248 = scalar_lea.vmem %s2, %s247
      %p249 = pneg %p103
      %p250 = pneg %p100
      %p251 = pneg %p124
      %p252 = pneg %p121
      %p253 = pneg %p145
      %p254 = pneg %p142
      %p255 = pneg %p173
      %p256 = pneg %p170
      %s257 = smul.u32 4, %s21
      %p258 = scmp.lt.s32.totalorder %s20, 1
      %s259 = scalar_select %p258, %s20, 1
      %p260 = scmp.lt.s32.totalorder %s257, 3
      %s261 = scalar_select %p260, %s257, 3
      %s262 = smul.addr %s259, 4
      %s263 = sadd.s32 %s261, %s262
      %s264 = smul.addr %s263, 8
      %s265 = scalar_lea.vmem %s5, %s264
      %s266 = smul.u32 4, %s21
      %p267 = scmp.lt.s32.totalorder %s20, 1
      %s268 = scalar_select %p267, %s20, 1
      %p269 = scmp.lt.s32.totalorder %s266, 3
      %s270 = scalar_select %p269, %s266, 3
      %s271 = smul.addr %s268, 4
      %s272 = sadd.s32 %s270, %s271
      %s273 = smul.addr %s272, 4
      %s274 = scalar_lea.vmem %s0, %s273
      %s275 = smul.u32 4, %s21
      %p276 = scmp.lt.s32.totalorder %s20, 1
      %s277 = scalar_select %p276, %s20, 1
      %s278 = scalar_lea.vmem %s1, %s277
      %p279 = scmp.lt.s32.totalorder %s20, 1
      %s280 = scalar_select %p279, %s20, 1
      %s281 = scalar_lea.vmem %s2, %s280
      %s282 = smul.u32 4, %s21
      %p283 = scmp.lt.s32.totalorder %s20, 1
      %s284 = scalar_select %p283, %s20, 1
      %p285 = scmp.lt.s32.totalorder %s282, 3
      %s286 = scalar_select %p285, %s282, 3
      %s287 = smul.addr %s284, 4
      %s288 = sadd.s32 %s286, %s287
      %s289 = smul.addr %s288, 8
      %s290 = scalar_lea.vmem %s5, %s289
      %s291 = smul.u32 4, %s21
      %v293 = vld [vmem:[%s274] sm:$0xf]
      %v294 = vld [vmem:[%s274 + $0x4] sm:$0xf]
      %v295 = vld [vmem:[%s274 + $0x8] sm:$0xf]
      %v296 = vld [vmem:[%s274 + $0xc] sm:$0xf]
      %v297 = vunpack.c.l.bf16 %v293
      %v298 = vunpack.c.l.bf16 %v294
      %v299 = vunpack.c.l.bf16 %v295
      %v300 = vunpack.c.l.bf16 %v296
      %301 = vadd.xlane.f32.xlu0 %v297
      %v302 = vpop.xlane.xlu0 %301
      %303 = vadd.xlane.f32.xlu0 %v298
      %v304 = vpop.xlane.xlu0 %303
      %305 = vadd.xlane.f32.xlu0 %v299
      %v306 = vpop.xlane.xlu0 %305
      %307 = vadd.xlane.f32.xlu0 %v300
      %v308 = vpop.xlane.xlu0 %307
      %v309 = vrcp.pop 128.0
      %v310 = vmul.f32 %v302, %v309
      %v311 = vmul.f32 %v304, %v309
      %v312 = vmul.f32 %v306, %v309
      %v313 = vmul.f32 %v308, %v309
      %v314 = vsub.f32 %v297, %v310
      %v315 = vsub.f32 %v298, %v311
      %v316 = vsub.f32 %v299, %v312
      %v317 = vsub.f32 %v300, %v313
      %v318 = vmul.f32 %v314, %v314
      %v319 = vmul.f32 %v315, %v315
      %v320 = vmul.f32 %v316, %v316
      %v321 = vmul.f32 %v317, %v317
      %322 = vadd.xlane.f32.xlu0 %v318
      %v323 = vpop.xlane.xlu0 %322
      %324 = vadd.xlane.f32.xlu0 %v319
      %v325 = vpop.xlane.xlu0 %324
      %326 = vadd.xlane.f32.xlu0 %v320
      %v327 = vpop.xlane.xlu0 %326
      %328 = vadd.xlane.f32.xlu0 %v321
      %v329 = vpop.xlane.xlu0 %328
      %v330 = vmul.f32 %v323, %v309
      %v331 = vmul.f32 %v325, %v309
      %v332 = vmul.f32 %v327, %v309
      %v333 = vmul.f32 %v329, %v309
      %v334 = vadd.f32 %v330, 1e-06
      %v335 = vadd.f32 %v331, 1e-06
      %v336 = vadd.f32 %v332, 1e-06
      %v337 = vadd.f32 %v333, 1e-06
      %v338 = vrsqrt.pop %v334
      %v339 = vrsqrt.pop %v335
      %v340 = vrsqrt.pop %v336
      %v341 = vrsqrt.pop %v337
      %v342 = vmul.f32 %v314, %v338
      %v343 = vmul.f32 %v315, %v339
      %v344 = vmul.f32 %v316, %v340
      %v345 = vmul.f32 %v317, %v341
      %v346 = vld [vmem:[%s281] sm:$0x1]
      %v347 = vadd.f32 %v346, 1.0
      %v349 = vlaneseq
      %v350 = vshrl.u32 %v349, 7
      %v351 = vsub.s32 0, %v350
      %v352 = vrot.slane %v347, %v351
      %v354 = vmul.f32 %v342, %v352
      %v355 = vmul.f32 %v343, %v352
      %v356 = vmul.f32 %v344, %v352
      %v357 = vmul.f32 %v345, %v352
      %v358 = vld [vmem:[%s278] sm:$0x1]
      %v360 = vlaneseq
      %v361 = vshrl.u32 %v360, 7
      %v362 = vsub.s32 0, %v361
      %v363 = vrot.slane %v358, %v362
      %v365 = vadd.f32 %v354, %v363
      %v366 = vadd.f32 %v355, %v363
      %v367 = vadd.f32 %v356, %v363
      %v368 = vadd.f32 %v357, %v363
      %v369 = vpack.c.bf16 %v366, %v365
      %v370 = vpack.c.bf16 %v368, %v367
      %v371 = vld [vmem:[%s3] sm:$0xf]
      %v372 = vld [vmem:[%s3 + $0x4] sm:$0xf]
      %v373 = vld [vmem:[%s3 + $0x8] sm:$0xf]
      %v374 = vld [vmem:[%s3 + $0xc] sm:$0xf]
      %v375 = vld [vmem:[%s3 + $0x10] sm:$0xf]
      %v376 = vld [vmem:[%s3 + $0x14] sm:$0xf]
      %v377 = vld [vmem:[%s3 + $0x18] sm:$0xf]
      %v378 = vld [vmem:[%s3 + $0x1c] sm:$0xf]
      %v379 = vld [vmem:[%s3 + $0x20] sm:$0xf]
      %v380 = vld [vmem:[%s3 + $0x24] sm:$0xf]
      %v381 = vld [vmem:[%s3 + $0x28] sm:$0xf]
      %v382 = vld [vmem:[%s3 + $0x2c] sm:$0xf]
      %v383 = vld [vmem:[%s3 + $0x30] sm:$0xf]
      %v384 = vld [vmem:[%s3 + $0x34] sm:$0xf]
      %v385 = vld [vmem:[%s3 + $0x38] sm:$0xf]
      %v386 = vld [vmem:[%s3 + $0x3c] sm:$0xf]
      %v387 = vld [vmem:[%s4] sm:$0x1]
      %v389 = vlaneseq
      %v390 = vshrl.u32 %v389, 7
      %v391 = vsub.s32 0, %v390
      %v392 = vrot.slane %v387, %v391
      %v410 = vunpack.c.l.b16 %v371
      %v411 = vunpack.c.l.b16 %v372
      %v412 = vunpack.c.l.b16 %v373
      %v413 = vunpack.c.l.b16 %v374
      %v414 = vunpack.c.l.b16 %v375
      %v415 = vunpack.c.l.b16 %v376
      %v416 = vunpack.c.l.b16 %v377
      %v417 = vunpack.c.l.b16 %v378
      %v418 = vunpack.c.l.b16 %v379
      %v419 = vunpack.c.l.b16 %v380
      %v420 = vunpack.c.l.b16 %v381
      %v421 = vunpack.c.l.b16 %v382
      %v422 = vunpack.c.l.b16 %v383
      %v423 = vunpack.c.l.b16 %v384
      %v424 = vunpack.c.l.b16 %v385
      %v425 = vunpack.c.l.b16 %v386
      %v426 = vpack.c.b16 %v411, %v410
      %v427 = vpack.c.b16 %v413, %v412
      %v428 = vpack.c.b16 %v415, %v414
      %v429 = vpack.c.b16 %v417, %v416
      %v430 = vpack.c.b16 %v419, %v418
      %v431 = vpack.c.b16 %v421, %v420
      %v432 = vpack.c.b16 %v423, %v422
      %v433 = vpack.c.b16 %v425, %v424
      %442 = vmatprep.subr.bf16.mxu0 0
      %443 = vmatpush1.bf16.msra.mxu0 %v426
      %444 = vmatprep.subr.bf16.mxu0 0
      %445 = vmatpush1.bf16.msra.mxu0 %v427
      %446 = vmatprep.subr.bf16.mxu0 0
      %447 = vmatpush1.bf16.msra.mxu0 %v428
      %448 = vmatprep.subr.bf16.mxu0 0
      %449 = vmatpush1.bf16.msra.mxu0 %v429
      %450 = vmatprep.subr.bf16.mxu0 0
      %451 = vmatpush1.bf16.msra.mxu0 %v430
      %452 = vmatprep.subr.bf16.mxu0 0
      %453 = vmatpush1.bf16.msra.mxu0 %v431
      %454 = vmatprep.subr.bf16.mxu0 0
      %455 = vmatpush1.bf16.msra.mxu0 %v432
      %456 = vmatprep.subr.bf16.mxu0 0
      %457 = vmatpush1.bf16.msra.mxu0 %v433
      %458 = vmatprep.subr.bf16.mxu0 0
      %459 = vmatpush1.bf16.msra.mxu0 0
      %460 = vmatprep.subr.bf16.mxu0 0
      %461 = vmatpush1.bf16.msra.mxu0 0
      %462 = vmatprep.subr.bf16.mxu0 0
      %463 = vmatpush1.bf16.msra.mxu0 0
      %464 = vmatprep.subr.bf16.mxu0 0
      %465 = vmatpush1.bf16.msra.mxu0 0
      %466 = vmatprep.subr.bf16.mxu0 0
      %467 = vmatpush1.bf16.msra.mxu0 0
      %468 = vmatprep.subr.bf16.mxu0 0
      %469 = vmatpush1.bf16.msra.mxu0 0
      %470 = vmatprep.subr.bf16.mxu0 0
      %471 = vmatpush1.bf16.msra.mxu0 0
      %472 = vmatprep.subr.bf16.mxu0 0
      %473 = vmatpush1.bf16.msra.mxu0 0
      %474 = vmatprep.mubr.bf16.mxu0 0
      %475 = vmatmul.mubr.bf16.gmra.mrb[0].mxu0 %v369
      %v476 = vpop.f32.mrb[0].mxu0
      %v477 = vadd.f32 %v392, %v476
      %v478 = vpop.f32.mrb[0].mxu0
      %v479 = vpop.f32.mrb[0].mxu0
      %v480 = vadd.f32 %v392, %v479
      %v481 = vpop.f32.mrb[0].mxu0
      %482 = vmatprep.mubr.bf16.mxu0 0
      %483 = vmatmul.mubr.bf16.gmra.mrb[0].mxu0 %v370
      %v484 = vpop.f32.mrb[0].mxu0
      %v485 = vadd.f32 %v392, %v484
      %v486 = vpop.f32.mrb[0].mxu0
      %v487 = vpop.f32.mrb[0].mxu0
      %v488 = vadd.f32 %v392, %v487
      %v489 = vpop.f32.mrb[0].mxu0
      %490 = vdwg.mxu0
      %491 = vst [vmem:[%s290] sm:$0xff] %v477
      %492 = vst [vmem:[%s290 + $0x8] sm:$0xff] %v480
      %493 = vst [vmem:[%s290 + $0x10] sm:$0xff] %v485
      %494 = vst [vmem:[%s290 + $0x18] sm:$0xff] %v488
      %s495 = smul.u32 4, %s21
      %p496 = scmp.lt.s32.totalorder %s20, 1
      %s497 = scalar_select %p496, %s20, 1
      %p498 = scmp.lt.s32.totalorder %s495, 3
      %s499 = scalar_select %p498, %s495, 3
      %s500 = smul.addr %s497, 4
      %s501 = sadd.s32 %s499, %s500
      %s502 = smul.addr %s501, 8
      %s503 = scalar_lea.vmem %s5, %s502
      // Predicated region
      $region41: #{lavindit_forward.23} parent=39 // pred_check
        %p504 = pneg %p170
      $region42: #{lavindit_forward.23} parent=39 // pred_check_branch
        %506 = sbr.rel (%p504) target = $region44
      $region43: #{lavindit_forward.23} parent=39 // pred_region
        %s507 = smul.u32 4, %s21
      $region44: #{lavindit_forward.23} parent=39 // pred_fallthru
        _
    $region40: #{lavindit_forward.23} parent=5 // pred_fallthru
      _
    %p508 = scmp.le.s32.totalorder 2, %s11
    // Predicated region
    $region45: #{lavindit_forward.23} parent=5 // pred_check
      %p509 = pneg %p508
    $region46: #{lavindit_forward.23} parent=5 // pred_check_branch
      %511 = sbr.rel (%p509) target = $region48
    $region47: #{lavindit_forward.23} parent=5 // pred_region
      %s512 = ssub.s32 %s11, 2
      // Predicated region
      $region49: #{lavindit_forward.23} parent=47 // pred_check
        %p513 = pneg %p176
      $region50: #{lavindit_forward.23} parent=47 // pred_check_branch
        %515 = sbr.rel (%p513) target = $region52
      $region51: #{lavindit_forward.23} parent=47 // pred_region
        %s516 = smul.u32 4, %s23
        %p517 = scmp.lt.s32.totalorder %s22, 1
        %s518 = scalar_select %p517, %s22, 1
        %p519 = scmp.lt.s32.totalorder %s516, 3
        %s520 = scalar_select %p519, %s516, 3
        %s521 = smul.addr %s518, 4
        %s522 = sadd.s32 %s520, %s521
        %s523 = smul.addr %s522, 8
        %s524 = scalar_lea.vmem %s5, %s523
      $region52: #{lavindit_forward.23} parent=47 // pred_fallthru
        _
    $region48: #{lavindit_forward.23} parent=5 // pred_fallthru
      _
  $region6: #{lavindit_forward.23} parent=0 // loop_footer
    %s15 = sadd.s32 1, %s11
  $region7: #{lavindit_forward.23} parent=0 // loop_footer_branch
    %10 = sbr.rel target = $region3
  $region8: #{lavindit_forward.23} parent=0 // loop_exit
    _

// kernel: lavindit_forward.17
$region0: #{lavindit_forward.17}
  #allocation0 [shape = 'u32[]', space=smem, size = 0x4, offset = 0x4, fixed_abs, tag = 'smem constant byte address 0x4 - core index']
  #allocation1 [shape = 'u32[144,128]{1,0:T(1,128)}', space=vmem, size = 0x12000, scoped, tag = 'internal scratch']
  %s0 = inlined_call_operand.vmem [shape: bf16[2,4,64,32], index: 0, kind: input, shape index: {}]
  %s1 = inlined_call_operand.vmem [shape: bf16[4,32,128], index: 1, kind: input, shape index: {}]
  %s2 = inlined_call_operand.vmem [shape: f32[1,128], index: 2, kind: input, shape index: {}]
  %s3 = inlined_call_operand.vmem [shape: bf16[2,32,128], index: 3, kind: input, shape index: {}]
  %s4 = inlined_call_operand.vmem [shape: f32[2,1,128], index: 4, kind: input, shape index: {}]
  %s5 = inlined_call_operand.vmem [shape: f32[2,1,128], index: 5, kind: input, shape index: {}]
  %s6 = inlined_call_operand.vmem [shape: f32[2,1,128], index: 6, kind: input, shape index: {}]
  %s7 = inlined_call_operand.vmem [shape: f32[2,1,128], index: 7, kind: input, shape index: {}]
  %s8 = inlined_call_operand.vmem [shape: bf16[128,512], index: 8, kind: input, shape index: {}]
  %s9 = inlined_call_operand.vmem [shape: f32[1,512], index: 9, kind: input, shape index: {}]
  %s10 = inlined_call_operand.vmem [shape: bf16[512,128], index: 10, kind: input, shape index: {}]
  %s11 = inlined_call_operand.vmem [shape: f32[1,128], index: 11, kind: input, shape index: {}]
  %s12 = inlined_call_operand.vmem [shape: bf16[2,32,128], index: 12, kind: output, shape index: {}]
  %s13 = sld [smem:[#allocation0]]
  $region122: #{lavindit_forward.17} parent=0
    _
  %s15 = ssub.s32 1, %s13
  %s16 = scalar_select 0, %s15, %s13
  $region1: #{lavindit_forward.17} parent=0
    #allocation2 [shape = 'u8[65536]{0}', space=vmem, size = 0x10000, scoped, tag = 'input window, operand 0']
    loop: start=0, step=1, limit=4
    $region2: #{lavindit_forward.17} parent=1 // loop_pre_header
      _
    $region3: #{lavindit_forward.17} parent=1 // loop_header
      %s18 = sphi 0, %s22
      %p19 = scmp.ge.s32.totalorder %s18, 4
      %s25 = sphi 0, %s37
      %s26 = sphi 0, %s33
      %s27 = sphi 0, %s25
      %s28 = sphi 0, %s26
      %s29 = sphi 0, %s27
      %s30 = sphi 0, %s28
      %s42 = sphi 0, %s44
      %s45 = sphi 0, %s42
      %s46 = sphi 0, %s45
      %s62 = sphi 0, %s46
      %s66 = sphi 0, %s66
      %s68 = sphi 0, %s66
      %s69 = sphi 0, %s68
      %s83 = sphi 0, %s69
      %s87 = sphi 0, %s87
      %s89 = sphi 0, %s87
      %s90 = sphi 0, %s89
      %s104 = sphi 0, %s90
      %s112 = sphi 0, %s114
      %s115 = sphi 0, %s112
      %s116 = sphi 0, %s115
      %s132 = sphi 0, %s116
      %s138 = sphi 0, %s140
      %s141 = sphi 0, %s138
      %s142 = sphi 0, %s141
      %s158 = sphi 0, %s142
      %s164 = sphi 0, %s166
      %s167 = sphi 0, %s164
      %s168 = sphi 0, %s167
      %s184 = sphi 0, %s168
      %s190 = sphi 0, %s192
      %s193 = sphi 0, %s190
      %s194 = sphi 0, %s193
      %s210 = sphi 0, %s194
      %s216 = sphi 0, %s218
      %s219 = sphi 0, %s216
      %s220 = sphi 0, %s219
      %s236 = sphi 0, %s220
      %s240 = sphi 0, %s240
      %s242 = sphi 0, %s240
      %s243 = sphi 0, %s242
      %s257 = sphi 0, %s243
      %s261 = sphi 0, %s261
      %s263 = sphi 0, %s261
      %s264 = sphi 0, %s263
      %s278 = sphi 0, %s264
      %s282 = sphi 0, %s282
      %s284 = sphi 0, %s282
      %s285 = sphi 0, %s284
      %s299 = sphi 0, %s285
      %s303 = sphi 0, %s303
      %s305 = sphi 0, %s303
      %s306 = sphi 0, %s305
      %s320 = sphi 0, %s306
      %s328 = sphi 0, %s330
      %s331 = sphi 0, %s328
      %s332 = sphi 0, %s331
      %s348 = sphi 0, %s332
    $region4: #{lavindit_forward.17} parent=1 // loop_header_branch
      %21 = sbr.rel (%p19) target = $region8
    $region5: #{lavindit_forward.17} parent=1 // loop_body
      %s23 = ssub.s32 %s18, 1
      %s24 = ssub.s32 %s18, 2
      %s31 = sadd.s32 1, %s26
      %p32 = scmp.ge.s32.totalorder %s31, 1
      %s33 = scalar_select %p32, 0, %s31
      %s34 = sadd.s32 1, %s25
      %s35 = scalar_select %p32, %s34, %s25
      %p36 = scmp.ge.s32.totalorder %s35, 2
      %s37 = scalar_select %p36, 0, %s35
      %s38 = ssub.s32 %s25, %s37
      %s39 = ssub.s32 %s26, %s33
      %s40 = sor.u32 %s38, %s39
      %p41 = scmp.eq.s32.totalorder %s40, 0
      %s43 = sadd.s32 %s42, 1
      %s44 = scalar_select %p41, %s42, %s43
      %p47 = pneg %p41
      %p48 = scmp.eq.s32.totalorder %s18, 1
      %p49 = por %p47, %p48
      %p50 = scmp.ne.s32.totalorder %s42, %s45
      %p51 = scmp.eq.s32.totalorder %s18, 0
      %p52 = por %p50, %p51
      %p53 = scmp.ne.s32.totalorder %s42, %s45
      %p54 = scmp.eq.s32.totalorder %s23, 1
      %p55 = por %p53, %p54
      %p56 = scmp.ne.s32.totalorder %s45, %s46
      %p57 = scmp.eq.s32.totalorder %s23, 0
      %p58 = por %p56, %p57
      %p59 = scmp.ne.s32.totalorder %s45, %s46
      %p60 = scmp.eq.s32.totalorder %s24, 1
      %p61 = por %p59, %p60
      %p63 = scmp.ne.s32.totalorder %s46, %s62
      %p64 = scmp.eq.s32.totalorder %s24, 0
      %p65 = por %p63, %p64
      %s67 = sadd.s32 %s66, 1
      %p70 = scmp.eq.s32.totalorder %s18, 1
      %p71 = scmp.ne.s32.totalorder %s66, %s68
      %p72 = scmp.eq.s32.totalorder %s18, 0
      %p73 = por %p71, %p72
      %p74 = scmp.ne.s32.totalorder %s66, %s68
      %p75 = scmp.eq.s32.totalorder %s23, 1
      %p76 = por %p74, %p75
      %p77 = scmp.ne.s32.totalorder %s68, %s69
      %p78 = scmp.eq.s32.totalorder %s23, 0
      %p79 = por %p77, %p78
      %p80 = scmp.ne.s32.totalorder %s68, %s69
      %p81 = scmp.eq.s32.totalorder %s24, 1
      %p82 = por %p80, %p81
      %p84 = scmp.ne.s32.totalorder %s69, %s83
      %p85 = scmp.eq.s32.totalorder %s24, 0
      %p86 = por %p84, %p85
      %s88 = sadd.s32 %s87, 1
      %p91 = scmp.eq.s32.totalorder %s18, 1
      %p92 = scmp.ne.s32.totalorder %s87, %s89
      %p93 = scmp.eq.s32.totalorder %s18, 0
      %p94 = por %p92, %p93
      %p95 = scmp.ne.s32.totalorder %s87, %s89
      %p96 = scmp.eq.s32.totalorder %s23, 1
      %p97 = por %p95, %p96
      %p98 = scmp.ne.s32.totalorder %s89, %s90
      %p99 = scmp.eq.s32.totalorder %s23, 0
      %p100 = por %p98, %p99
      %p101 = scmp.ne.s32.totalorder %s89, %s90
      %p102 = scmp.eq.s32.totalorder %s24, 1
      %p103 = por %p101, %p102
      %p105 = scmp.ne.s32.totalorder %s90, %s104
      %p106 = scmp.eq.s32.totalorder %s24, 0
      %p107 = por %p105, %p106
      %s108 = ssub.s32 %s25, %s37
      %s109 = ssub.s32 %s26, %s33
      %s110 = sor.u32 %s108, %s109
      %p111 = scmp.eq.s32.totalorder %s110, 0
      %s113 = sadd.s32 %s112, 1
      %s114 = scalar_select %p111, %s112, %s113
      %p117 = pneg %p111
      %p118 = scmp.eq.s32.totalorder %s18, 1
      %p119 = por %p117, %p118
      %p120 = scmp.ne.s32.totalorder %s112, %s115
      %p121 = scmp.eq.s32.totalorder %s18, 0
      %p122 = por %p120, %p121
      %p123 = scmp.ne.s32.totalorder %s112, %s115
      %p124 = scmp.eq.s32.totalorder %s23, 1
      %p125 = por %p123, %p124
      %p126 = scmp.ne.s32.totalorder %s115, %s116
      %p127 = scmp.eq.s32.totalorder %s23, 0
      %p128 = por %p126, %p127
      %p129 = scmp.ne.s32.totalorder %s115, %s116
      %p130 = scmp.eq.s32.totalorder %s24, 1
      %p131 = por %p129, %p130
      %p133 = scmp.ne.s32.totalorder %s116, %s132
      %p134 = scmp.eq.s32.totalorder %s24, 0
      %p135 = por %p133, %p134
      %s136 = ssub.s32 %s25, %s37
      %p137 = scmp.eq.s32.totalorder %s136, 0
      %s139 = sadd.s32 %s138, 1
      %s140 = scalar_select %p137, %s138, %s139
      %p143 = pneg %p137
      %p144 = scmp.eq.s32.totalorder %s18, 1
      %p145 = por %p143, %p144
      %p146 = scmp.ne.s32.totalorder %s138, %s141
      %p147 = scmp.eq.s32.totalorder %s18, 0
      %p148 = por %p146, %p147
      %p149 = scmp.ne.s32.totalorder %s138, %s141
      %p150 = scmp.eq.s32.totalorder %s23, 1
      %p151 = por %p149, %p150
      %p152 = scmp.ne.s32.totalorder %s141, %s142
      %p153 = scmp.eq.s32.totalorder %s23, 0
      %p154 = por %p152, %p153
      %p155 = scmp.ne.s32.totalorder %s141, %s142
      %p156 = scmp.eq.s32.totalorder %s24, 1
      %p157 = por %p155, %p156
      %p159 = scmp.ne.s32.totalorder %s142, %s158
      %p160 = scmp.eq.s32.totalorder %s24, 0
      %p161 = por %p159, %p160
      %s162 = ssub.s32 %s25, %s37
      %p163 = scmp.eq.s32.totalorder %s162, 0
      %s165 = sadd.s32 %s164, 1
      %s166 = scalar_select %p163, %s164, %s165
      %p169 = pneg %p163
      %p170 = scmp.eq.s32.totalorder %s18, 1
      %p171 = por %p169, %p170
      %p172 = scmp.ne.s32.totalorder %s164, %s167
      %p173 = scmp.eq.s32.totalorder %s18, 0
      %p174 = por %p172, %p173
      %p175 = scmp.ne.s32.totalorder %s164, %s167
      %p176 = scmp.eq.s32.totalorder %s23, 1
      %p177 = por %p175, %p176
      %p178 = scmp.ne.s32.totalorder %s167, %s168
      %p179 = scmp.eq.s32.totalorder %s23, 0
      %p180 = por %p178, %p179
      %p181 = scmp.ne.s32.totalorder %s167, %s168
      %p182 = scmp.eq.s32.totalorder %s24, 1
      %p183 = por %p181, %p182
      %p185 = scmp.ne.s32.totalorder %s168, %s184
      %p186 = scmp.eq.s32.totalorder %s24, 0
      %p187 = por %p185, %p186
      %s188 = ssub.s32 %s25, %s37
      %p189 = scmp.eq.s32.totalorder %s188, 0
      %s191 = sadd.s32 %s190, 1
      %s192 = scalar_select %p189, %s190, %s191
      %p195 = pneg %p189
      %p196 = scmp.eq.s32.totalorder %s18, 1
      %p197 = por %p195, %p196
      %p198 = scmp.ne.s32.totalorder %s190, %s193
      %p199 = scmp.eq.s32.totalorder %s18, 0
      %p200 = por %p198, %p199
      %p201 = scmp.ne.s32.totalorder %s190, %s193
      %p202 = scmp.eq.s32.totalorder %s23, 1
      %p203 = por %p201, %p202
      %p204 = scmp.ne.s32.totalorder %s193, %s194
      %p205 = scmp.eq.s32.totalorder %s23, 0
      %p206 = por %p204, %p205
      %p207 = scmp.ne.s32.totalorder %s193, %s194
      %p208 = scmp.eq.s32.totalorder %s24, 1
      %p209 = por %p207, %p208
      %p211 = scmp.ne.s32.totalorder %s194, %s210
      %p212 = scmp.eq.s32.totalorder %s24, 0
      %p213 = por %p211, %p212
      %s214 = ssub.s32 %s25, %s37
      %p215 = scmp.eq.s32.totalorder %s214, 0
      %s217 = sadd.s32 %s216, 1
      %s218 = scalar_select %p215, %s216, %s217
      %p221 = pneg %p215
      %p222 = scmp.eq.s32.totalorder %s18, 1
      %p223 = por %p221, %p222
      %p224 = scmp.ne.s32.totalorder %s216, %s219
      %p225 = scmp.eq.s32.totalorder %s18, 0
      %p226 = por %p224, %p225
      %p227 = scmp.ne.s32.totalorder %s216, %s219
      %p228 = scmp.eq.s32.totalorder %s23, 1
      %p229 = por %p227, %p228
      %p230 = scmp.ne.s32.totalorder %s219, %s220
      %p231 = scmp.eq.s32.totalorder %s23, 0
      %p232 = por %p230, %p231
      %p233 = scmp.ne.s32.totalorder %s219, %s220
      %p234 = scmp.eq.s32.totalorder %s24, 1
      %p235 = por %p233, %p234
      %p237 = scmp.ne.s32.totalorder %s220, %s236
      %p238 = scmp.eq.s32.totalorder %s24, 0
      %p239 = por %p237, %p238
      %s241 = sadd.s32 %s240, 1
      %p244 = scmp.eq.s32.totalorder %s18, 1
      %p245 = scmp.ne.s32.totalorder %s240, %s242
      %p246 = scmp.eq.s32.totalorder %s18, 0
      %p247 = por %p245, %p246
      %p248 = scmp.ne.s32.totalorder %s240, %s242
      %p249 = scmp.eq.s32.totalorder %s23, 1
      %p250 = por %p248, %p249
      %p251 = scmp.ne.s32.totalorder %s242, %s243
      %p252 = scmp.eq.s32.totalorder %s23, 0
      %p253 = por %p251, %p252
      %p254 = scmp.ne.s32.totalorder %s242, %s243
      %p255 = scmp.eq.s32.totalorder %s24, 1
      %p256 = por %p254, %p255
      %p258 = scmp.ne.s32.totalorder %s243, %s257
      %p259 = scmp.eq.s32.totalorder %s24, 0
      %p260 = por %p258, %p259
      %s262 = sadd.s32 %s261, 1
      %p265 = scmp.eq.s32.totalorder %s18, 1
      %p266 = scmp.ne.s32.totalorder %s261, %s263
      %p267 = scmp.eq.s32.totalorder %s18, 0
      %p268 = por %p266, %p267
      %p269 = scmp.ne.s32.totalorder %s261, %s263
      %p270 = scmp.eq.s32.totalorder %s23, 1
      %p271 = por %p269, %p270
      %p272 = scmp.ne.s32.totalorder %s263, %s264
      %p273 = scmp.eq.s32.totalorder %s23, 0
      %p274 = por %p272, %p273
      %p275 = scmp.ne.s32.totalorder %s263, %s264
      %p276 = scmp.eq.s32.totalorder %s24, 1
      %p277 = por %p275, %p276
      %p279 = scmp.ne.s32.totalorder %s264, %s278
      %p280 = scmp.eq.s32.totalorder %s24, 0
      %p281 = por %p279, %p280
      %s283 = sadd.s32 %s282, 1
      %p286 = scmp.eq.s32.totalorder %s18, 1
      %p287 = scmp.ne.s32.totalorder %s282, %s284
      %p288 = scmp.eq.s32.totalorder %s18, 0
      %p289 = por %p287, %p288
      %p290 = scmp.ne.s32.totalorder %s282, %s284
      %p291 = scmp.eq.s32.totalorder %s23, 1
      %p292 = por %p290, %p291
      %p293 = scmp.ne.s32.totalorder %s284, %s285
      %p294 = scmp.eq.s32.totalorder %s23, 0
      %p295 = por %p293, %p294
      %p296 = scmp.ne.s32.totalorder %s284, %s285
      %p297 = scmp.eq.s32.totalorder %s24, 1
      %p298 = por %p296, %p297
      %p300 = scmp.ne.s32.totalorder %s285, %s299
      %p301 = scmp.eq.s32.totalorder %s24, 0
      %p302 = por %p300, %p301
      %s304 = sadd.s32 %s303, 1
      %p307 = scmp.eq.s32.totalorder %s18, 1
      %p308 = scmp.ne.s32.totalorder %s303, %s305
      %p309 = scmp.eq.s32.totalorder %s18, 0
      %p310 = por %p308, %p309
      %p311 = scmp.ne.s32.totalorder %s303, %s305
      %p312 = scmp.eq.s32.totalorder %s23, 1
      %p313 = por %p311, %p312
      %p314 = scmp.ne.s32.totalorder %s305, %s306
      %p315 = scmp.eq.s32.totalorder %s23, 0
      %p316 = por %p314, %p315
      %p317 = scmp.ne.s32.totalorder %s305, %s306
      %p318 = scmp.eq.s32.totalorder %s24, 1
      %p319 = por %p317, %p318
      %p321 = scmp.ne.s32.totalorder %s306, %s320
      %p322 = scmp.eq.s32.totalorder %s24, 0
      %p323 = por %p321, %p322
      %s324 = ssub.s32 %s25, %s37
      %s325 = ssub.s32 %s26, %s33
      %s326 = sor.u32 %s324, %s325
      %p327 = scmp.eq.s32.totalorder %s326, 0
      %s329 = sadd.s32 %s328, 1
      %s330 = scalar_select %p327, %s328, %s329
      %p333 = pneg %p327
      %p334 = scmp.eq.s32.totalorder %s18, 1
      %p335 = por %p333, %p334
      %p336 = scmp.ne.s32.totalorder %s328, %s331
      %p337 = scmp.eq.s32.totalorder %s18, 0
      %p338 = por %p336, %p337
      %p339 = scmp.ne.s32.totalorder %s328, %s331
      %p340 = scmp.eq.s32.totalorder %s23, 1
      %p341 = por %p339, %p340
      %p342 = scmp.ne.s32.totalorder %s331, %s332
      %p343 = scmp.eq.s32.totalorder %s23, 0
      %p344 = por %p342, %p343
      %p345 = scmp.ne.s32.totalorder %s331, %s332
      %p346 = scmp.eq.s32.totalorder %s24, 1
      %p347 = por %p345, %p346
      %p349 = scmp.ne.s32.totalorder %s332, %s348
      %p350 = scmp.eq.s32.totalorder %s24, 0
      %p351 = por %p349, %p350
      %p352 = scmp.le.s32.totalorder 1, %s18
      %p353 = scmp.lt.s32.totalorder %s18, 3
      %p354 = pnand %p352, %p353
      %p355 = pneg %p354
      // Predicated region
      $region9: #{lavindit_forward.17} parent=5 // pred_check
        _
      $region10: #{lavindit_forward.17} parent=5 // pred_check_branch
        %357 = sbr.rel (%p354) target = $region12
      $region11: #{lavindit_forward.17} parent=5 // pred_region
        %s358 = ssub.s32 %s18, 1
        // Predicated region
        $region13: #{lavindit_forward.17} parent=11 // pred_check
          %p359 = pneg %p79
        $region14: #{lavindit_forward.17} parent=11 // pred_check_branch
          %361 = sbr.rel (%p359) target = $region16
        $region15: #{lavindit_forward.17} parent=11 // pred_region
          _
        $region16: #{lavindit_forward.17} parent=11 // pred_fallthru
          _
        // Predicated region
        $region17: #{lavindit_forward.17} parent=11 // pred_check
          %p362 = pneg %p100
        $region18: #{lavindit_forward.17} parent=11 // pred_check_branch
          %364 = sbr.rel (%p362) target = $region20
        $region19: #{lavindit_forward.17} parent=11 // pred_region
          _
        $region20: #{lavindit_forward.17} parent=11 // pred_fallthru
          _
        // Predicated region
        $region21: #{lavindit_forward.17} parent=11 // pred_check
          %p365 = pneg %p253
        $region22: #{lavindit_forward.17} parent=11 // pred_check_branch
          %367 = sbr.rel (%p365) target = $region24
        $region23: #{lavindit_forward.17} parent=11 // pred_region
          _
        $region24: #{lavindit_forward.17} parent=11 // pred_fallthru
          _
        // Predicated region
        $region25: #{lavindit_forward.17} parent=11 // pred_check
          %p368 = pneg %p274
        $region26: #{lavindit_forward.17} parent=11 // pred_check_branch
          %370 = sbr.rel (%p368) target = $region28
        $region27: #{lavindit_forward.17} parent=11 // pred_region
          _
        $region28: #{lavindit_forward.17} parent=11 // pred_fallthru
          _
        // Predicated region
        $region29: #{lavindit_forward.17} parent=11 // pred_check
          %p371 = pneg %p295
        $region30: #{lavindit_forward.17} parent=11 // pred_check_branch
          %373 = sbr.rel (%p371) target = $region32
        $region31: #{lavindit_forward.17} parent=11 // pred_region
          _
        $region32: #{lavindit_forward.17} parent=11 // pred_fallthru
          _
        // Predicated region
        $region33: #{lavindit_forward.17} parent=11 // pred_check
          %p374 = pneg %p316
        $region34: #{lavindit_forward.17} parent=11 // pred_check_branch
          %376 = sbr.rel (%p374) target = $region36
        $region35: #{lavindit_forward.17} parent=11 // pred_region
          _
        $region36: #{lavindit_forward.17} parent=11 // pred_fallthru
          _
      $region12: #{lavindit_forward.17} parent=5 // pred_fallthru
        _
      %p377 = scmp.lt.s32.totalorder %s18, 2
      // Predicated region
      $region37: #{lavindit_forward.17} parent=5 // pred_check
        %p378 = pneg %p377
      $region38: #{lavindit_forward.17} parent=5 // pred_check_branch
        %380 = sbr.rel (%p378) target = $region40
      $region39: #{lavindit_forward.17} parent=5 // pred_region
        // Predicated region
        $region41: #{lavindit_forward.17} parent=39 // pred_check
          %p381 = pneg %p52
        $region42: #{lavindit_forward.17} parent=39 // pred_check_branch
          %383 = sbr.rel (%p381) target = $region44
        $region43: #{lavindit_forward.17} parent=39 // pred_region
          %s384 = sand.u32 %s42, 1
          %s385 = sand.u32 %s42, 1
          %s386 = smul.addr %s385, 64
          %s387 = scalar_lea.vmem [#allocation2], %s386
          %s388 = smul.u32 4, %s26
          %s389 = smul.addr %s25, 32
          %s390 = sadd.s32 %s388, %s389
          %s391 = smul.addr %s390, 4
          %s392 = scalar_lea.vmem %s0, %s391
          // Predicated region
          $region45: #{lavindit_forward.17} parent=43 // pred_check
            _
          $region46: #{lavindit_forward.17} parent=43 // pred_check_branch
            %394 = sbr.rel (0) target = $region48
          $region47: #{lavindit_forward.17} parent=43 // pred_region
            // Predicated region
            $region49: #{lavindit_forward.17} parent=47 // pred_check
              _
            $region50: #{lavindit_forward.17} parent=47 // pred_check_branch
              %396 = sbr.rel target = $region52
            $region51: #{lavindit_forward.17} parent=47 // pred_region
              // Predicated region
              $region64: #{lavindit_forward.17} parent=51 // pred_check
                _
              $region65: #{lavindit_forward.17} parent=51 // pred_check_branch
                %441 = sbr.rel (0) target = $region67
              $region66: #{lavindit_forward.17} parent=51 // pred_region
                loop: start=0, step=1, limit=1
                $region68: #{lavindit_forward.17} parent=66 // loop_pre_header
                  _
                $region69: #{lavindit_forward.17} parent=66 // loop_header
                  %s443 = sphi 0, %s447
                  %p444 = scmp.ge.s32.totalorder %s443, 1
                  %s448 = sphi %s392, %s392
                  %s449 = sphi %s387, %s387
                $region70: #{lavindit_forward.17} parent=66 // loop_header_branch
                  %446 = sbr.rel (%p444) target = $region74
                $region71: #{lavindit_forward.17} parent=66 // loop_body
                  _
                $region72: #{lavindit_forward.17} parent=66 // loop_footer
                  %s447 = sadd.s32 1, %s443
                $region73: #{lavindit_forward.17} parent=66 // loop_footer_branch
                  %442 = sbr.rel target = $region69
                $region74: #{lavindit_forward.17} parent=66 // loop_exit
                  _
                loop: start=0, step=1, limit=1
                $region75: #{lavindit_forward.17} parent=66 // loop_pre_header
                  _
                $region76: #{lavindit_forward.17} parent=66 // loop_header
                  %s452 = sphi 0, %s456
                  %p453 = scmp.ge.s32.totalorder %s452, 1
                  %s457 = sphi %s392, %s392
                  %s458 = sphi %s387, %s387
                $region77: #{lavindit_forward.17} parent=66 // loop_header_branch
                  %455 = sbr.rel (%p453) target = $region81
                $region78: #{lavindit_forward.17} parent=66 // loop_body
                  %v459 = vld [vmem:[%s457] sm:$0xf]
                  %460 = vst [vmem:[%s458] sm:$0xf] %v459
                  %v461 = vld [vmem:[%s457 + $0x4] sm:$0xf]
                  %462 = vst [vmem:[%s458 + $0x4] sm:$0xf] %v461
                  %v463 = vld [vmem:[%s457 + $0x8] sm:$0xf]
                  %464 = vst [vmem:[%s458 + $0x8] sm:$0xf] %v463
                  %v465 = vld [vmem:[%s457 + $0xc] sm:$0xf]
                  %466 = vst [vmem:[%s458 + $0xc] sm:$0xf] %v465
                  %v467 = vld [vmem:[%s457 + $0x20] sm:$0xf]
                  %468 = vst [vmem:[%s458 + $0x10] sm:$0xf] %v467
                  %v469 = vld [vmem:[%s457 + $0x24] sm:$0xf]
                  %470 = vst [vmem:[%s458 + $0x14] sm:$0xf] %v469
                  %v471 = vld [vmem:[%s457 + $0x28] sm:$0xf]
                  %472 = vst [vmem:[%s458 + $0x18] sm:$0xf] %v471
                  %v473 = vld [vmem:[%s457 + $0x2c] sm:$0xf]
                  %474 = vst [vmem:[%s458 + $0x1c] sm:$0xf] %v473
                  %v475 = vld [vmem:[%s457 + $0x40] sm:$0xf]
                  %476 = vst [vmem:[%s458 + $0x20] sm:$0xf] %v475
                  %v477 = vld [vmem:[%s457 + $0x44] sm:$0xf]
                  %478 = vst [vmem:[%s458 + $0x24] sm:$0xf] %v477
                  %v479 = vld [vmem:[%s457 + $0x48] sm:$0xf]
                  %480 = vst [vmem:[%s458 + $0x28] sm:$0xf] %v479
                  %v481 = vld [vmem:[%s457 + $0x4c] sm:$0xf]
                  %482 = vst [vmem:[%s458 + $0x2c] sm:$0xf] %v481
                  %v483 = vld [vmem:[%s457 + $0x60] sm:$0xf]
                  %484 = vst [vmem:[%s458 + $0x30] sm:$0xf] %v483
                  %v485 = vld [vmem:[%s457 + $0x64] sm:$0xf]
                  %486 = vst [vmem:[%s458 + $0x34] sm:$0xf] %v485
                  %v487 = vld [vmem:[%s457 + $0x68] sm:$0xf]
                  %488 = vst [vmem:[%s458 + $0x38] sm:$0xf] %v487
                  %v489 = vld [vmem:[%s457 + $0x6c] sm:$0xf]
                  %490 = vst [vmem:[%s458 + $0x3c] sm:$0xf] %v489
                $region79: #{lavindit_forward.17} parent=66 // loop_footer
                  %s456 = sadd.s32 1, %s452
                $region80: #{lavindit_forward.17} parent=66 // loop_footer_branch
                  %451 = sbr.rel target = $region76
                $region81: #{lavindit_forward.17} parent=66 // loop_exit
                  _
              $region67: #{lavindit_forward.17} parent=51 // pred_fallthru
                _
            $region52: #{lavindit_forward.17} parent=47 // pred_fallthru
              _
            // Predicated region
            $region53: #{lavindit_forward.17} parent=47 // pred_check
              _
            $region54: #{lavindit_forward.17} parent=47 // pred_check_branch
              %398 = sbr.rel (0) target = $region56
            $region55: #{lavindit_forward.17} parent=47 // pred_region
              loop: start=0, step=1, limit=1
              $region57: #{lavindit_forward.17} parent=55 // loop_pre_header
                _
              $region58: #{lavindit_forward.17} parent=55 // loop_header
                %s401 = sphi 0, %s405
                %p402 = scmp.ge.s32.totalorder %s401, 1
                %s406 = sphi %s392, %s392
                %s407 = sphi %s387, %s387
              $region59: #{lavindit_forward.17} parent=55 // loop_header_branch
                %404 = sbr.rel (%p402) target = $region63
              $region60: #{lavindit_forward.17} parent=55 // loop_body
                %v408 = vld [vmem:[%s406] sm:$0xf]
                %409 = vst [vmem:[%s407] sm:$0xf] %v408
                %v410 = vld [vmem:[%s406 + $0x4] sm:$0xf]
                %411 = vst [vmem:[%s407 + $0x4] sm:$0xf] %v410
                %v412 = vld [vmem:[%s406 + $0x8] sm:$0xf]
                %413 = vst [vmem:[%s407 + $0x8] sm:$0xf] %v412
                %v414 = vld [vmem:[%s406 + $0xc] sm:$0xf]
                %415 = vst [vmem:[%s407 + $0xc] sm:$0xf] %v414
                %v416 = vld [vmem:[%s406 + $0x20] sm:$0xf]
                %417 = vst [vmem:[%s407 + $0x10] sm:$0xf] %v416
                %v418 = vld [vmem:[%s406 + $0x24] sm:$0xf]
                %419 = vst [vmem:[%s407 + $0x14] sm:$0xf] %v418
                %v420 = vld [vmem:[%s406 + $0x28] sm:$0xf]
                %421 = vst [vmem:[%s407 + $0x18] sm:$0xf] %v420
                %v422 = vld [vmem:[%s406 + $0x2c] sm:$0xf]
                %423 = vst [vmem:[%s407 + $0x1c] sm:$0xf] %v422
                %v424 = vld [vmem:[%s406 + $0x40] sm:$0xf]
                %425 = vst [vmem:[%s407 + $0x20] sm:$0xf] %v424
                %v426 = vld [vmem:[%s406 + $0x44] sm:$0xf]
                %427 = vst [vmem:[%s407 + $0x24] sm:$0xf] %v426
                %v428 = vld [vmem:[%s406 + $0x48] sm:$0xf]
                %429 = vst [vmem:[%s407 + $0x28] sm:$0xf] %v428
                %v430 = vld [vmem:[%s406 + $0x4c] sm:$0xf]
                %431 = vst [vmem:[%s407 + $0x2c] sm:$0xf] %v430
                %v432 = vld [vmem:[%s406 + $0x60] sm:$0xf]
                %433 = vst [vmem:[%s407 + $0x30] sm:$0xf] %v432
                %v434 = vld [vmem:[%s406 + $0x64] sm:$0xf]
                %435 = vst [vmem:[%s407 + $0x34] sm:$0xf] %v434
                %v436 = vld [vmem:[%s406 + $0x68] sm:$0xf]
                %437 = vst [vmem:[%s407 + $0x38] sm:$0xf] %v436
                %v438 = vld [vmem:[%s406 + $0x6c] sm:$0xf]
                %439 = vst [vmem:[%s407 + $0x3c] sm:$0xf] %v438
              $region61: #{lavindit_forward.17} parent=55 // loop_footer
                %s405 = sadd.s32 1, %s401
              $region62: #{lavindit_forward.17} parent=55 // loop_footer_branch
                %400 = sbr.rel target = $region58
              $region63: #{lavindit_forward.17} parent=55 // loop_exit
                _
            $region56: #{lavindit_forward.17} parent=47 // pred_fallthru
              _
          $region48: #{lavindit_forward.17} parent=43 // pred_fallthru
            _
          %491 = vnop
        $region44: #{lavindit_forward.17} parent=39 // pred_fallthru
          _
        // Predicated region
        $region82: #{lavindit_forward.17} parent=39 // pred_check
          %p492 = pneg %p122
        $region83: #{lavindit_forward.17} parent=39 // pred_check_branch
          %494 = sbr.rel (%p492) target = $region85
        $region84: #{lavindit_forward.17} parent=39 // pred_region
          %s495 = smul.u32 4, %s26
          %p496 = scmp.lt.s32.totalorder %s25, 1
          %s497 = scalar_select %p496, %s25, 1
          %p498 = scmp.lt.s32.totalorder %s495, 3
          %s499 = scalar_select %p498, %s495, 3
          %s500 = smul.addr %s497, 4
          %s501 = sadd.s32 %s499, %s500
          %s502 = smul.addr %s501, 4
          %s503 = scalar_lea.vmem %s3, %s502
          %s504 = smul.u32 4, %s26
        $region85: #{lavindit_forward.17} parent=39 // pred_fallthru
          _
        // Predicated region
        $region86: #{lavindit_forward.17} parent=39 // pred_check
          %p505 = pneg %p148
        $region87: #{lavindit_forward.17} parent=39 // pred_check_branch
          %507 = sbr.rel (%p505) target = $region89
        $region88: #{lavindit_forward.17} parent=39 // pred_region
          %p508 = scmp.lt.s32.totalorder %s25, 1
          %s509 = scalar_select %p508, %s25, 1
          %s510 = scalar_lea.vmem %s4, %s509
        $region89: #{lavindit_forward.17} parent=39 // pred_fallthru
          _
        // Predicated region
        $region90: #{lavindit_forward.17} parent=39 // pred_check
          %p511 = pneg %p174
        $region91: #{lavindit_forward.17} parent=39 // pred_check_branch
          %513 = sbr.rel (%p511) target = $region93
        $region92: #{lavindit_forward.17} parent=39 // pred_region
          %p514 = scmp.lt.s32.totalorder %s25, 1
          %s515 = scalar_select %p514, %s25, 1
          %s516 = scalar_lea.vmem %s5, %s515
        $region93: #{lavindit_forward.17} parent=39 // pred_fallthru
          _
        // Predicated region
        $region94: #{lavindit_forward.17} parent=39 // pred_check
          %p517 = pneg %p200
        $region95: #{lavindit_forward.17} parent=39 // pred_check_branch
          %519 = sbr.rel (%p517) target = $region97
        $region96: #{lavindit_forward.17} parent=39 // pred_region
          %p520 = scmp.lt.s32.totalorder %s25, 1
          %s521 = scalar_select %p520, %s25, 1
          %s522 = scalar_lea.vmem %s6, %s521
        $region97: #{lavindit_forward.17} parent=39 // pred_fallthru
          _
        // Predicated region
        $region98: #{lavindit_forward.17} parent=39 // pred_check
          %p523 = pneg %p226
        $region99: #{lavindit_forward.17} parent=39 // pred_check_branch
          %525 = sbr.rel (%p523) target = $region101
        $region100: #{lavindit_forward.17} parent=39 // pred_region
          %p526 = scmp.lt.s32.totalorder %s25, 1
          %s527 = scalar_select %p526, %s25, 1
          %s528 = scalar_lea.vmem %s7, %s527
        $region101: #{lavindit_forward.17} parent=39 // pred_fallthru
          _
      $region40: #{lavindit_forward.17} parent=5 // pred_fallthru
        _
      %p529 = scmp.le.s32.totalorder 1, %s18
      %p530 = scmp.lt.s32.totalorder %s18, 3
      %p531 = pnand %p529, %p530
      %p532 = pneg %p531
      // Predicated region
      $region102: #{lavindit_forward.17} parent=5 // pred_check
        _
      $region103: #{lavindit_forward.17} parent=5 // pred_check_branch
        %534 = sbr.rel (%p531) target = $region105
      $region104: #{lavindit_forward.17} parent=5 // pred_region
        %s535 = ssub.s32 %s18, 1
        %s536 = sand.u32 %s45, 1
        %s537 = sand.u32 %s45, 1
        %s538 = smul.addr %s537, 64
        %s539 = scalar_lea.vmem [#allocation2], %s538
        // Predicated region
        $region106: #{lavindit_forward.17} parent=104 // pred_check
          %p540 = pneg %p58
        $region107: #{lavindit_forward.17} parent=104 // pred_check_branch
          %542 = sbr.rel (%p540) target = $region109
        $region108: #{lavindit_forward.17} parent=104 // pred_region
          _
        $region109: #{lavindit_forward.17} parent=104 // pred_fallthru
          _
        %s543 = sand.u32 %s45, 1
        %s544 = sand.u32 %s45, 1
        %s545 = smul.addr %s544, 64
        %s546 = scalar_lea.vmem [#allocation2], %s545
        %p547 = pneg %p58
        %p548 = pneg %p55
        %p549 = pneg %p79
        %p550 = pneg %p76
        %p551 = pneg %p100
        %p552 = pneg %p97
        %s553 = smul.u32 4, %s28
        %p554 = scmp.lt.s32.totalorder %s27, 1
        %s555 = scalar_select %p554, %s27, 1
        %p556 = scmp.lt.s32.totalorder %s553, 3
        %s557 = scalar_select %p556, %s553, 3
        %s558 = smul.addr %s555, 4
        %s559 = sadd.s32 %s557, %s558
        %s560 = smul.addr %s559, 4
        %s561 = scalar_lea.vmem %s3, %s560
        %p562 = pneg %p128
        %p563 = pneg %p125
        %p564 = scmp.lt.s32.totalorder %s27, 1
        %s565 = scalar_select %p564, %s27, 1
        %s566 = scalar_lea.vmem %s4, %s565
        %p567 = pneg %p154
        %p568 = pneg %p151
        %p569 = scmp.lt.s32.totalorder %s27, 1
        %s570 = scalar_select %p569, %s27, 1
        %s571 = scalar_lea.vmem %s5, %s570
        %p572 = pneg %p180
        %p573 = pneg %p177
        %p574 = scmp.lt.s32.totalorder %s27, 1
        %s575 = scalar_select %p574, %s27, 1
        %s576 = scalar_lea.vmem %s6, %s575
        %p577 = pneg %p206
        %p578 = pneg %p203
        %p579 = scmp.lt.s32.totalorder %s27, 1
        %s580 = scalar_select %p579, %s27, 1
        %s581 = scalar_lea.vmem %s7, %s580
        %p582 = pneg %p232
        %p583 = pneg %p229
        %p584 = pneg %p253
        %p585 = pneg %p250
        %p586 = pneg %p274
        %p587 = pneg %p271
        %p588 = pneg %p295
        %p589 = pneg %p292
        %p590 = pneg %p316
        %p591 = pneg %p313
        %p592 = pneg %p344
        %p593 = pneg %p341
        %s594 = smul.u32 4, %s28
        %p595 = scmp.lt.s32.totalorder %s27, 1
        %s596 = scalar_select %p595, %s27, 1
        %p597 = scmp.lt.s32.totalorder %s594, 3
        %s598 = scalar_select %p597, %s594, 3
        %s599 = smul.addr %s596, 4
        %s600 = sadd.s32 %s598, %s599
        %s601 = smul.addr %s600, 4
        %s602 = scalar_lea.vmem %s12, %s601
        %s603 = smul.u32 4, %s28
        %s604 = smul.u32 4, %s28
        %p605 = scmp.lt.s32.totalorder %s27, 1
        %s606 = scalar_select %p605, %s27, 1
        %p607 = scmp.lt.s32.totalorder %s604, 3
        %s608 = scalar_select %p607, %s604, 3
        %s609 = smul.addr %s606, 4
        %s610 = sadd.s32 %s608, %s609
        %s611 = smul.addr %s610, 4
        %s612 = scalar_lea.vmem %s3, %s611
        %s613 = smul.u32 4, %s28
        %p614 = scmp.lt.s32.totalorder %s27, 1
        %s615 = scalar_select %p614, %s27, 1
        %s616 = scalar_lea.vmem %s4, %s615
        %p617 = scmp.lt.s32.totalorder %s27, 1
        %s618 = scalar_select %p617, %s27, 1
        %s619 = scalar_lea.vmem %s5, %s618
        %p620 = scmp.lt.s32.totalorder %s27, 1
        %s621 = scalar_select %p620, %s27, 1
        %s622 = scalar_lea.vmem %s6, %s621
        %p623 = scmp.lt.s32.totalorder %s27, 1
        %s624 = scalar_select %p623, %s27, 1
        %s625 = scalar_lea.vmem %s7, %s624
        %s626 = smul.u32 4, %s28
        %p627 = scmp.lt.s32.totalorder %s27, 1
        %s628 = scalar_select %p627, %s27, 1
        %p629 = scmp.lt.s32.totalorder %s626, 3
        %s630 = scalar_select %p629, %s626, 3
        %s631 = smul.addr %s628, 4
        %s632 = sadd.s32 %s630, %s631
        %s633 = smul.addr %s632, 4
        %s634 = scalar_lea.vmem %s12, %s633
        %s635 = smul.u32 4, %s28
        %v637 = vld [vmem:[%s539] sm:$0xf]
        %v638 = vld [vmem:[%s539 + $0x4] sm:$0xf]
        %v639 = vld [vmem:[%s539 + $0x8] sm:$0xf]
        %v640 = vld [vmem:[%s539 + $0xc] sm:$0xf]
        %v641 = vld [vmem:[%s1] sm:$0xf]
        %v642 = vld [vmem:[%s1 + $0x4] sm:$0xf]
        %v643 = vld [vmem:[%s1 + $0x8] sm:$0xf]
        %v644 = vld [vmem:[%s1 + $0xc] sm:$0xf]
        %s645 = scalar_lea.vmem %s539, 16 [#allocation2]
        %v646 = vld [vmem:[%s645] sm:$0xf]
        %v647 = vld [vmem:[%s645 + $0x4] sm:$0xf]
        %v648 = vld [vmem:[%s645 + $0x8] sm:$0xf]
        %v649 = vld [vmem:[%s645 + $0xc] sm:$0xf]
        %s650 = scalar_lea.vmem %s1, 16
        %v651 = vld [vmem:[%s650] sm:$0xf]
        %v652 = vld [vmem:[%s650 + $0x4] sm:$0xf]
        %v653 = vld [vmem:[%s650 + $0x8] sm:$0xf]
        %v654 = vld [vmem:[%s650 + $0xc] sm:$0xf]
        %v659 = vunpack.c.l.b16 %v646
        %v660 = vunpack.c.l.b16 %v647
        %v661 = vunpack.c.l.b16 %v648
        %v662 = vunpack.c.l.b16 %v649
        %v663 = vpack.c.b16 %v660, %v659
        %v664 = vpack.c.b16 %v662, %v661
        %v669 = vunpack.c.l.b16 %v651
        %v670 = vunpack.c.l.b16 %v652
        %v671 = vunpack.c.l.b16 %v653
        %v672 = vunpack.c.l.b16 %v654
        %v673 = vpack.c.b16 %v670, %v669
        %v674 = vpack.c.b16 %v672, %v671
        %vm677 = vcmask 261120
        %v679 = vsel %vm677, %v663, 0
        %v682 = vsel %vm677, %v664, 0
        %684 = vmatprep.subr.bf16.mxu0 0
        %685 = vmatpush1.bf16.msra.mxu0 %v673
        %686 = vmatprep.subr.bf16.mxu0 0
        %687 = vmatpush1.bf16.msra.mxu0 %v674
        %688 = vmatprep.subr.bf16.mxu0 0
        %689 = vmatpush1.bf16.msra.mxu0 0
        %690 = vmatprep.subr.bf16.mxu0 0
        %691 = vmatpush1.bf16.msra.mxu0 0
        %692 = vmatprep.subr.bf16.mxu0 0
        %693 = vmatpush1.bf16.msra.mxu0 0
        %694 = vmatprep.subr.bf16.mxu0 0
        %695 = vmatpush1.bf16.msra.mxu0 0
        %696 = vmatprep.subr.bf16.mxu0 0
        %697 = vmatpush1.bf16.msra.mxu0 0
        %698 = vmatprep.subr.bf16.mxu0 0
        %699 = vmatpush1.bf16.msra.mxu0 0
        %700 = vmatprep.subr.bf16.mxu0 0
        %701 = vmatpush1.bf16.msra.mxu0 0
        %702 = vmatprep.subr.bf16.mxu0 0
        %703 = vmatpush1.bf16.msra.mxu0 0
        %704 = vmatprep.subr.bf16.mxu0 0
        %705 = vmatpush1.bf16.msra.mxu0 0
        %706 = vmatprep.subr.bf16.mxu0 0
        %707 = vmatpush1.bf16.msra.mxu0 0
        %708 = vmatprep.subr.bf16.mxu0 0
        %709 = vmatpush1.bf16.msra.mxu0 0
        %710 = vmatprep.subr.bf16.mxu0 0
        %711 = vmatpush1.bf16.msra.mxu0 0
        %712 = vmatprep.subr.bf16.mxu0 0
        %713 = vmatpush1.bf16.msra.mxu0 0
        %714 = vmatprep.subr.bf16.mxu0 0
        %715 = vmatpush1.bf16.msra.mxu0 0
        %716 = vmatprep.mubr.bf16.mxu0 0
        %717 = vmatmul.mubr.bf16.gmra.mrb[0].mxu0 %v679
        %v718 = vpop.f32.mrb[0].mxu0
        %v719 = vadd.f32 0.0, %v718
        %v720 = vpop.f32.mrb[0].mxu0
        %v721 = vpop.f32.mrb[0].mxu0
        %v722 = vadd.f32 0.0, %v721
        %v723 = vpop.f32.mrb[0].mxu0
        %724 = vmatprep.mubr.bf16.mxu0 0
        %725 = vmatmul.mubr.bf16.gmra.mrb[0].mxu0 %v682
        %v726 = vpop.f32.mrb[0].mxu0
        %v727 = vadd.f32 0.0, %v726
        %v728 = vpop.f32.mrb[0].mxu0
        %v729 = vpop.f32.mrb[0].mxu0
        %v730 = vadd.f32 0.0, %v729
        %v731 = vpop.f32.mrb[0].mxu0
        %732 = vdwg.mxu0
        %v737 = vunpack.c.l.b16 %v637
        %v738 = vunpack.c.l.b16 %v638
        %v739 = vunpack.c.l.b16 %v639
        %v740 = vunpack.c.l.b16 %v640
        %v741 = vpack.c.b16 %v738, %v737
        %v742 = vpack.c.b16 %v740, %v739
        %v747 = vunpack.c.l.b16 %v641
        %v748 = vunpack.c.l.b16 %v642
        %v749 = vunpack.c.l.b16 %v643
        %v750 = vunpack.c.l.b16 %v644
        %v751 = vpack.c.b16 %v748, %v747
        %v752 = vpack.c.b16 %v750, %v749
        %v756 = vsel %vm677, %v741, 0
        %v759 = vsel %vm677, %v742, 0
        %761 = vmatprep.subr.bf16.mxu0 0
        %762 = vmatpush1.bf16.msra.mxu0 %v751
        %763 = vmatprep.subr.bf16.mxu0 0
        %764 = vmatpush1.bf16.msra.mxu0 %v752
        %765 = vmatprep.subr.bf16.mxu0 0
        %766 = vmatpush1.bf16.msra.mxu0 0
        %767 = vmatprep.subr.bf16.mxu0 0
        %768 = vmatpush1.bf16.msra.mxu0 0
        %769 = vmatprep.subr.bf16.mxu0 0
        %770 = vmatpush1.bf16.msra.mxu0 0
        %771 = vmatprep.subr.bf16.mxu0 0
        %772 = vmatpush1.bf16.msra.mxu0 0
        %773 = vmatprep.subr.bf16.mxu0 0
        %774 = vmatpush1.bf16.msra.mxu0 0
        %775 = vmatprep.subr.bf16.mxu0 0
        %776 = vmatpush1.bf16.msra.mxu0 0
        %777 = vmatprep.subr.bf16.mxu0 0
        %778 = vmatpush1.bf16.msra.mxu0 0
        %779 = vmatprep.subr.bf16.mxu0 0
        %780 = vmatpush1.bf16.msra.mxu0 0
        %781 = vmatprep.subr.bf16.mxu0 0
        %782 = vmatpush1.bf16.msra.mxu0 0
        %783 = vmatprep.subr.bf16.mxu0 0
        %784 = vmatpush1.bf16.msra.mxu0 0
        %785 = vmatprep.subr.bf16.mxu0 0
        %786 = vmatpush1.bf16.msra.mxu0 0
        %787 = vmatprep.subr.bf16.mxu0 0
        %788 = vmatpush1.bf16.msra.mxu0 0
        %789 = vmatprep.subr.bf16.mxu0 0
        %790 = vmatpush1.bf16.msra.mxu0 0
        %791 = vmatprep.subr.bf16.mxu0 0
        %792 = vmatpush1.bf16.msra.mxu0 0
        %793 = vmatprep.mubr.bf16.mxu0 0
        %794 = vmatmul.mubr.bf16.gmra.mrb[0].mxu0 %v756
        %v795 = vpop.f32.mrb[0].mxu0
        %v796 = vadd.f32 %v719, %v795
        %v797 = vpop.f32.mrb[0].mxu0
        %v798 = vpop.f32.mrb[0].mxu0
        %v799 = vadd.f32 %v722, %v798
        %v800 = vpop.f32.mrb[0].mxu0
        %801 = vmatprep.mubr.bf16.mxu0 0
        %802 = vmatmul.mubr.bf16.gmra.mrb[0].mxu0 %v759
        %v803 = vpop.f32.mrb[0].mxu0
        %v804 = vadd.f32 %v727, %v803
        %v805 = vpop.f32.mrb[0].mxu0
        %v806 = vpop.f32.mrb[0].mxu0
        %v807 = vadd.f32 %v730, %v806
        %v808 = vpop.f32.mrb[0].mxu0
        %809 = vdwg.mxu0
        %s810 = scalar_lea.vmem %s539, 32 [#allocation2]
        %v811 = vld [vmem:[%s810] sm:$0xf]
        %v812 = vld [vmem:[%s810 + $0x4] sm:$0xf]
        %v813 = vld [vmem:[%s810 + $0x8] sm:$0xf]
        %v814 = vld [vmem:[%s810 + $0xc] sm:$0xf]
        %s815 = scalar_lea.vmem %s1, 32
        %v816 = vld [vmem:[%s815] sm:$0xf]
        %v817 = vld [vmem:[%s815 + $0x4] sm:$0xf]
        %v818 = vld [vmem:[%s815 + $0x8] sm:$0xf]
        %v819 = vld [vmem:[%s815 + $0xc] sm:$0xf]
        %v824 = vunpack.c.l.b16 %v811
        %v825 = vunpack.c.l.b16 %v812
        %v826 = vunpack.c.l.b16 %v813
        %v827 = vunpack.c.l.b16 %v814
        %v828 = vpack.c.b16 %v825, %v824
        %v829 = vpack.c.b16 %v827, %v826
        %v834 = vunpack.c.l.b16 %v816
        %v835 = vunpack.c.l.b16 %v817
        %v836 = vunpack.c.l.b16 %v818
        %v837 = vunpack.c.l.b16 %v819
        %v838 = vpack.c.b16 %v835, %v834
        %v839 = vpack.c.b16 %v837, %v836
        %v843 = vsel %vm677, %v828, 0
        %v846 = vsel %vm677, %v829, 0
        %848 = vmatprep.subr.bf16.mxu0 0
        %849 = vmatpush1.bf16.msra.mxu0 %v838
        %850 = vmatprep.subr.bf16.mxu0 0
        %851 = vmatpush1.bf16.msra.mxu0 %v839
        %852 = vmatprep.subr.bf16.mxu0 0
        %853 = vmatpush1.bf16.msra.mxu0 0
        %854 = vmatprep.subr.bf16.mxu0 0
        %855 = vmatpush1.bf16.msra.mxu0 0
        %856 = vmatprep.subr.bf16.mxu0 0
        %857 = vmatpush1.bf16.msra.mxu0 0
        %858 = vmatprep.subr.bf16.mxu0 0
        %859 = vmatpush1.bf16.msra.mxu0 0
        %860 = vmatprep.subr.bf16.mxu0 0
        %861 = vmatpush1.bf16.msra.mxu0 0
        %862 = vmatprep.subr.bf16.mxu0 0
        %863 = vmatpush1.bf16.msra.mxu0 0
        %864 = vmatprep.subr.bf16.mxu0 0
        %865 = vmatpush1.bf16.msra.mxu0 0
        %866 = vmatprep.subr.bf16.mxu0 0
        %867 = vmatpush1.bf16.msra.mxu0 0
        %868 = vmatprep.subr.bf16.mxu0 0
        %869 = vmatpush1.bf16.msra.mxu0 0
        %870 = vmatprep.subr.bf16.mxu0 0
        %871 = vmatpush1.bf16.msra.mxu0 0
        %872 = vmatprep.subr.bf16.mxu0 0
        %873 = vmatpush1.bf16.msra.mxu0 0
        %874 = vmatprep.subr.bf16.mxu0 0
        %875 = vmatpush1.bf16.msra.mxu0 0
        %876 = vmatprep.subr.bf16.mxu0 0
        %877 = vmatpush1.bf16.msra.mxu0 0
        %878 = vmatprep.subr.bf16.mxu0 0
        %879 = vmatpush1.bf16.msra.mxu0 0
        %880 = vmatprep.mubr.bf16.mxu0 0
        %881 = vmatmul.mubr.bf16.gmra.mrb[0].mxu0 %v843
        %v882 = vpop.f32.mrb[0].mxu0
        %v883 = vadd.f32 0.0, %v882
        %v884 = vpop.f32.mrb[0].mxu0
        %v885 = vpop.f32.mrb[0].mxu0
        %v886 = vadd.f32 0.0, %v885
        %v887 = vpop.f32.mrb[0].mxu0
        %888 = vmatprep.mubr.bf16.mxu0 0
        %889 = vmatmul.mubr.bf16.gmra.mrb[0].mxu0 %v846
        %v890 = vpop.f32.mrb[0].mxu0
        %v891 = vadd.f32 0.0, %v890
        %v892 = vpop.f32.mrb[0].mxu0
        %v893 = vpop.f32.mrb[0].mxu0
        %v894 = vadd.f32 0.0, %v893
        %v895 = vpop.f32.mrb[0].mxu0
        %896 = vdwg.mxu0
        %v897 = vadd.f32 %v796, %v883
        %v898 = vadd.f32 %v799, %v886
        %v899 = vadd.f32 %v804, %v891
        %v900 = vadd.f32 %v807, %v894
        %s901 = scalar_lea.vmem %s539, 48 [#allocation2]
        %v902 = vld [vmem:[%s901] sm:$0xf]
        %v903 = vld [vmem:[%s901 + $0x4] sm:$0xf]
        %v904 = vld [vmem:[%s901 + $0x8] sm:$0xf]
        %v905 = vld [vmem:[%s901 + $0xc] sm:$0xf]
        %s906 = scalar_lea.vmem %s1, 48
        %v907 = vld [vmem:[%s906] sm:$0xf]
        %v908 = vld [vmem:[%s906 + $0x4] sm:$0xf]
        %v909 = vld [vmem:[%s906 + $0x8] sm:$0xf]
        %v910 = vld [vmem:[%s906 + $0xc] sm:$0xf]
        %v915 = vunpack.c.l.b16 %v902
        %v916 = vunpack.c.l.b16 %v903
        %v917 = vunpack.c.l.b16 %v904
        %v918 = vunpack.c.l.b16 %v905
        %v919 = vpack.c.b16 %v916, %v915
        %v920 = vpack.c.b16 %v918, %v917
        %v925 = vunpack.c.l.b16 %v907
        %v926 = vunpack.c.l.b16 %v908
        %v927 = vunpack.c.l.b16 %v909
        %v928 = vunpack.c.l.b16 %v910
        %v929 = vpack.c.b16 %v926, %v925
        %v930 = vpack.c.b16 %v928, %v927
        %v934 = vsel %vm677, %v919, 0
        %v937 = vsel %vm677, %v920, 0
        %939 = vmatprep.subr.bf16.mxu0 0
        %940 = vmatpush1.bf16.msra.mxu0 %v929
        %941 = vmatprep.subr.bf16.mxu0 0
        %942 = vmatpush1.bf16.msra.mxu0 %v930
        %943 = vmatprep.subr.bf16.mxu0 0
        %944 = vmatpush1.bf16.msra.mxu0 0
        %945 = vmatprep.subr.bf16.mxu0 0
        %946 = vmatpush1.bf16.msra.mxu0 0
        %947 = vmatprep.subr.bf16.mxu0 0
        %948 = vmatpush1.bf16.msra.mxu0 0
        %949 = vmatprep.subr.bf16.mxu0 0
        %950 = vmatpush1.bf16.msra.mxu0 0
        %951 = vmatprep.subr.bf16.mxu0 0
        %952 = vmatpush1.bf16.msra.mxu0 0
        %953 = vmatprep.subr.bf16.mxu0 0
        %954 = vmatpush1.bf16.msra.mxu0 0
        %955 = vmatprep.subr.bf16.mxu0 0
        %956 = vmatpush1.bf16.msra.mxu0 0
        %957 = vmatprep.subr.bf16.mxu0 0
        %958 = vmatpush1.bf16.msra.mxu0 0
        %959 = vmatprep.subr.bf16.mxu0 0
        %960 = vmatpush1.bf16.msra.mxu0 0
        %961 = vmatprep.subr.bf16.mxu0 0
        %962 = vmatpush1.bf16.msra.mxu0 0
        %963 = vmatprep.subr.bf16.mxu0 0
        %964 = vmatpush1.bf16.msra.mxu0 0
        %965 = vmatprep.subr.bf16.mxu0 0
        %966 = vmatpush1.bf16.msra.mxu0 0
        %967 = vmatprep.subr.bf16.mxu0 0
        %968 = vmatpush1.bf16.msra.mxu0 0
        %969 = vmatprep.subr.bf16.mxu0 0
        %970 = vmatpush1.bf16.msra.mxu0 0
        %971 = vmatprep.mubr.bf16.mxu0 0
        %972 = vmatmul.mubr.bf16.gmra.mrb[0].mxu0 %v934
        %v973 = vpop.f32.mrb[0].mxu0
        %v974 = vadd.f32 0.0, %v973
        %v975 = vpop.f32.mrb[0].mxu0
        %v976 = vpop.f32.mrb[0].mxu0
        %v977 = vadd.f32 0.0, %v976
        %v978 = vpop.f32.mrb[0].mxu0
        %979 = vmatprep.mubr.bf16.mxu0 0
        %980 = vmatmul.mubr.bf16.gmra.mrb[0].mxu0 %v937
        %v981 = vpop.f32.mrb[0].mxu0
        %v982 = vadd.f32 0.0, %v981
        %v983 = vpop.f32.mrb[0].mxu0
        %v984 = vpop.f32.mrb[0].mxu0
        %v985 = vadd.f32 0.0, %v984
        %v986 = vpop.f32.mrb[0].mxu0
        %987 = vdwg.mxu0
        %v988 = vadd.f32 %v897, %v974
        %v989 = vadd.f32 %v898, %v977
        %v990 = vadd.f32 %v899, %v982
        %v991 = vadd.f32 %v900, %v985
        %v992 = vld [vmem:[%s2] sm:$0x1]
        %v994 = vlaneseq
        %v995 = vshrl.u32 %v994, 7
        %v996 = vsub.s32 0, %v995
        %v997 = vrot.slane %v992, %v996
        %v999 = vadd.f32 %v988, %v997
        %v1000 = vadd.f32 %v989, %v997
        %v1001 = vadd.f32 %v990, %v997
        %v1002 = vadd.f32 %v991, %v997
        %v1003 = vld [vmem:[%s612] sm:$0xf]
        %v1004 = vld [vmem:[%s612 + $0x4] sm:$0xf]
        %v1005 = vld [vmem:[%s612 + $0x8] sm:$0xf]
        %v1006 = vld [vmem:[%s612 + $0xc] sm:$0xf]
        %v1007 = vunpack.c.l.bf16 %v1003
        %v1008 = vunpack.c.l.bf16 %v1004
        %v1009 = vunpack.c.l.bf16 %v1005
        %v1010 = vunpack.c.l.bf16 %v1006
        %v1011 = vld [vmem:[%s616] sm:$0x1]
        %v1013 = vlaneseq
        %v1014 = vshrl.u32 %v1013, 7
        %v1015 = vsub.s32 0, %v1014
        %v1016 = vrot.slane %v1011, %v1015
        %v1018 = vmul.f32 %v1016, %v999
        %v1019 = vmul.f32 %v1016, %v1000
        %v1020 = vmul.f32 %v1016, %v1001
        %v1021 = vmul.f32 %v1016, %v1002
        %v1022 = vadd.f32 %v1007, %v1018
        %v1023 = vadd.f32 %v1008, %v1019
        %v1024 = vadd.f32 %v1009, %v1020
        %v1025 = vadd.f32 %v1010, %v1021
        %1026 = vadd.xlane.f32.xlu0 %v1022
        %v1027 = vpop.xlane.xlu0 %1026
        %1028 = vadd.xlane.f32.xlu0 %v1023
        %v1029 = vpop.xlane.xlu0 %1028
        %1030 = vadd.xlane.f32.xlu0 %v1024
        %v1031 = vpop.xlane.xlu0 %1030
        %1032 = vadd.xlane.f32.xlu0 %v1025
        %v1033 = vpop.xlane.xlu0 %1032
        %v1034 = vrcp.pop 128.0
        %v1035 = vmul.f32 %v1027, %v1034
        %v1036 = vmul.f32 %v1029, %v1034
        %v1037 = vmul.f32 %v1031, %v1034
        %v1038 = vmul.f32 %v1033, %v1034
        %v1039 = vsub.f32 %v1022, %v1035
        %v1040 = vsub.f32 %v1023, %v1036
        %v1041 = vsub.f32 %v1024, %v1037
        %v1042 = vsub.f32 %v1025, %v1038
        %v1043 = vmul.f32 %v1039, %v1039
        %v1044 = vmul.f32 %v1040, %v1040
        %v1045 = vmul.f32 %v1041, %v1041
        %v1046 = vmul.f32 %v1042, %v1042
        %1047 = vadd.xlane.f32.xlu0 %v1043
        %v1048 = vpop.xlane.xlu0 %1047
        %1049 = vadd.xlane.f32.xlu0 %v1044
        %v1050 = vpop.xlane.xlu0 %1049
        %1051 = vadd.xlane.f32.xlu0 %v1045
        %v1052 = vpop.xlane.xlu0 %1051
        %1053 = vadd.xlane.f32.xlu0 %v1046
        %v1054 = vpop.xlane.xlu0 %1053
        %v1055 = vmul.f32 %v1048, %v1034
        %v1056 = vmul.f32 %v1050, %v1034
        %v1057 = vmul.f32 %v1052, %v1034
        %v1058 = vmul.f32 %v1054, %v1034
        %v1059 = vadd.f32 %v1055, 1e-06
        %v1060 = vadd.f32 %v1056, 1e-06
        %v1061 = vadd.f32 %v1057, 1e-06
        %v1062 = vadd.f32 %v1058, 1e-06
        %v1063 = vrsqrt.pop %v1059
        %v1064 = vrsqrt.pop %v1060
        %v1065 = vrsqrt.pop %v1061
        %v1066 = vrsqrt.pop %v1062
        %v1067 = vmul.f32 %v1039, %v1063
        %v1068 = vmul.f32 %v1040, %v1064
        %v1069 = vmul.f32 %v1041, %v1065
        %v1070 = vmul.f32 %v1042, %v1066
        %v1071 = vld [vmem:[%s622] sm:$0x1]
        %v1072 = vadd.f32 %v1071, 1.0
        %v1074 = vlaneseq
        %v1075 = vshrl.u32 %v1074, 7
        %v1076 = vsub.s32 0, %v1075
        %v1077 = vrot.slane %v1072, %v1076
        %v1079 = vmul.f32 %v1067, %v1077
        %v1080 = vmul.f32 %v1068, %v1077
        %v1081 = vmul.f32 %v1069, %v1077
        %v1082 = vmul.f32 %v1070, %v1077
        %v1083 = vld [vmem:[%s619] sm:$0x1]
        %v1085 = vlaneseq
        %v1086 = vshrl.u32 %v1085, 7
        %v1087 = vsub.s32 0, %v1086
        %v1088 = vrot.slane %v1083, %v1087
        %v1090 = vadd.f32 %v1079, %v1088
        %v1091 = vadd.f32 %v1080, %v1088
        %v1092 = vadd.f32 %v1081, %v1088
        %v1093 = vadd.f32 %v1082, %v1088
        %v1094 = vpack.c.bf16 %v1091, %v1090
        %v1095 = vpack.c.bf16 %v1093, %v1092
        %v1096 = vld [vmem:[%s8] sm:$0xff]
        %v1097 = vld [vmem:[%s8 + $0x8] sm:$0xff]
        %v1098 = vld [vmem:[%s8 + $0x10] sm:$0xff]
        %v1099 = vld [vmem:[%s8 + $0x18] sm:$0xff]
        %v1100 = vld [vmem:[%s8 + $0x20] sm:$0xff]
        %v1101 = vld [vmem:[%s8 + $0x28] sm:$0xff]
        %v1102 = vld [vmem:[%s8 + $0x30] sm:$0xff]
        %v1103 = vld [vmem:[%s8 + $0x38] sm:$0xff]
        %v1104 = vld [vmem:[%s8 + $0x40] sm:$0xff]
        %v1105 = vld [vmem:[%s8 + $0x48] sm:$0xff]
        %v1106 = vld [vmem:[%s8 + $0x50] sm:$0xff]
        %v1107 = vld [vmem:[%s8 + $0x58] sm:$0xff]
        %v1108 = vld [vmem:[%s8 + $0x60] sm:$0xff]
        %v1109 = vld [vmem:[%s8 + $0x68] sm:$0xff]
        %v1110 = vld [vmem:[%s8 + $0x70] sm:$0xff]
        %v1111 = vld [vmem:[%s8 + $0x78] sm:$0xff]
        %v1112 = vld [vmem:[%s8 + $0x80] sm:$0xff]
        %v1113 = vld [vmem:[%s8 + $0x88] sm:$0xff]
        %v1114 = vld [vmem:[%s8 + $0x90] sm:$0xff]
        %v1115 = vld [vmem:[%s8 + $0x98] sm:$0xff]
        %v1116 = vld [vmem:[%s8 + $0xa0] sm:$0xff]
        %v1117 = vld [vmem:[%s8 + $0xa8] sm:$0xff]
        %v1118 = vld [vmem:[%s8 + $0xb0] sm:$0xff]
        %v1119 = vld [vmem:[%s8 + $0xb8] sm:$0xff]
        %v1120 = vld [vmem:[%s8 + $0xc0] sm:$0xff]
        %v1121 = vld [vmem:[%s8 + $0xc8] sm:$0xff]
        %v1122 = vld [vmem:[%s8 + $0xd0] sm:$0xff]
        %v1123 = vld [vmem:[%s8 + $0xd8] sm:$0xff]
        %v1124 = vld [vmem:[%s8 + $0xe0] sm:$0xff]
        %v1125 = vld [vmem:[%s8 + $0xe8] sm:$0xff]
        %v1126 = vld [vmem:[%s8 + $0xf0] sm:$0xff]
        %v1127 = vld [vmem:[%s8 + $0xf8] sm:$0xff]
        %v1128 = vld [vmem:[%s9] sm:$0xf]
        %v1130 = vlaneseq
        %v1131 = vshrl.u32 %v1130, 7
        %v1132 = vsub.s32 0, %v1131
        %v1133 = vrot.slane %v1128, %v1132
        %v1134 = vlaneseq
        %v1135 = vshrl.u32 %v1134, 7
        %v1136 = vsub.s32 1, %v1135
        %v1137 = vrot.slane %v1128, %v1136
        %v1138 = vlaneseq
        %v1139 = vshrl.u32 %v1138, 7
        %v1140 = vsub.s32 2, %v1139
        %v1141 = vrot.slane %v1128, %v1140
        %v1142 = vlaneseq
        %v1143 = vshrl.u32 %v1142, 7
        %v1144 = vsub.s32 3, %v1143
        %v1145 = vrot.slane %v1128, %v1144
        %v1182 = vunpack.c.l.b16 %v1096
        %v1183 = vunpack.c.h.b16 %v1096
        %v1184 = vunpack.c.l.b16 %v1097
        %v1185 = vunpack.c.h.b16 %v1097
        %v1186 = vunpack.c.l.b16 %v1098
        %v1187 = vunpack.c.h.b16 %v1098
        %v1188 = vunpack.c.l.b16 %v1099
        %v1189 = vunpack.c.h.b16 %v1099
        %v1190 = vunpack.c.l.b16 %v1100
        %v1191 = vunpack.c.h.b16 %v1100
        %v1192 = vunpack.c.l.b16 %v1101
        %v1193 = vunpack.c.h.b16 %v1101
        %v1194 = vunpack.c.l.b16 %v1102
        %v1195 = vunpack.c.h.b16 %v1102
        %v1196 = vunpack.c.l.b16 %v1103
        %v1197 = vunpack.c.h.b16 %v1103
        %v1198 = vunpack.c.l.b16 %v1104
        %v1199 = vunpack.c.h.b16 %v1104
        %v1200 = vunpack.c.l.b16 %v1105
        %v1201 = vunpack.c.h.b16 %v1105
        %v1202 = vunpack.c.l.b16 %v1106
        %v1203 = vunpack.c.h.b16 %v1106
        %v1204 = vunpack.c.l.b16 %v1107
        %v1205 = vunpack.c.h.b16 %v1107
        %v1206 = vunpack.c.l.b16 %v1108
        %v1207 = vunpack.c.h.b16 %v1108
        %v1208 = vunpack.c.l.b16 %v1109
        %v1209 = vunpack.c.h.b16 %v1109
        %v1210 = vunpack.c.l.b16 %v1110
        %v1211 = vunpack.c.h.b16 %v1110
        %v1212 = vunpack.c.l.b16 %v1111
        %v1213 = vunpack.c.h.b16 %v1111
        %v1214 = vunpack.c.l.b16 %v1112
        %v1215 = vunpack.c.h.b16 %v1112
        %v1216 = vunpack.c.l.b16 %v1113
        %v1217 = vunpack.c.h.b16 %v1113
        %v1218 = vunpack.c.l.b16 %v1114
        %v1219 = vunpack.c.h.b16 %v1114
        %v1220 = vunpack.c.l.b16 %v1115
        %v1221 = vunpack.c.h.b16 %v1115
        %v1222 = vunpack.c.l.b16 %v1116
        %v1223 = vunpack.c.h.b16 %v1116
        %v1224 = vunpack.c.l.b16 %v1117
        %v1225 = vunpack.c.h.b16 %v1117
        %v1226 = vunpack.c.l.b16 %v1118
        %v1227 = vunpack.c.h.b16 %v1118
        %v1228 = vunpack.c.l.b16 %v1119
        %v1229 = vunpack.c.h.b16 %v1119
        %v1230 = vunpack.c.l.b16 %v1120
        %v1231 = vunpack.c.h.b16 %v1120
        %v1232 = vunpack.c.l.b16 %v1121
        %v1233 = vunpack.c.h.b16 %v1121
        %v1234 = vunpack.c.l.b16 %v1122
        %v1235 = vunpack.c.h.b16 %v1122
        %v1236 = vunpack.c.l.b16 %v1123
        %v1237 = vunpack.c.h.b16 %v1123
        %v1238 = vunpack.c.l.b16 %v1124
        %v1239 = vunpack.c.h.b16 %v1124
        %v1240 = vunpack.c.l.b16 %v1125
        %v1241 = vunpack.c.h.b16 %v1125
        %v1242 = vunpack.c.l.b16 %v1126
        %v1243 = vunpack.c.h.b16 %v1126
        %v1244 = vunpack.c.l.b16 %v1127
        %v1245 = vunpack.c.h.b16 %v1127
        %v1246 = vpack.c.b16 %v1186, %v1182
        %v1247 = vpack.c.b16 %v1187, %v1183
        %v1248 = vpack.c.b16 %v1188, %v1184
        %v1249 = vpack.c.b16 %v1189, %v1185
        %v1250 = vpack.c.b16 %v1194, %v1190
        %v1251 = vpack.c.b16 %v1195, %v1191
        %v1252 = vpack.c.b16 %v1196, %v1192
        %v1253 = vpack.c.b16 %v1197, %v1193
        %v1254 = vpack.c.b16 %v1202, %v1198
        %v1255 = vpack.c.b16 %v1203, %v1199
        %v1256 = vpack.c.b16 %v1204, %v1200
        %v1257 = vpack.c.b16 %v1205, %v1201
        %v1258 = vpack.c.b16 %v1210, %v1206
        %v1259 = vpack.c.b16 %v1211, %v1207
        %v1260 = vpack.c.b16 %v1212, %v1208
        %v1261 = vpack.c.b16 %v1213, %v1209
        %v1262 = vpack.c.b16 %v1218, %v1214
        %v1263 = vpack.c.b16 %v1219, %v1215
        %v1264 = vpack.c.b16 %v1220, %v1216
        %v1265 = vpack.c.b16 %v1221, %v1217
        %v1266 = vpack.c.b16 %v1226, %v1222
        %v1267 = vpack.c.b16 %v1227, %v1223
        %v1268 = vpack.c.b16 %v1228, %v1224
        %v1269 = vpack.c.b16 %v1229, %v1225
        %v1270 = vpack.c.b16 %v1234, %v1230
        %v1271 = vpack.c.b16 %v1235, %v1231
        %v1272 = vpack.c.b16 %v1236, %v1232
        %v1273 = vpack.c.b16 %v1237, %v1233
        %v1274 = vpack.c.b16 %v1242, %v1238
        %v1275 = vpack.c.b16 %v1243, %v1239
        %v1276 = vpack.c.b16 %v1244, %v1240
        %v1277 = vpack.c.b16 %v1245, %v1241
        %1310 = vmatprep.subr.bf16.mxu0 %v1247
        %1311 = vmatpush1.bf16.msra.mxu0 %v1246
        %1312 = vmatprep.subr.bf16.mxu0 %v1251
        %1313 = vmatpush1.bf16.msra.mxu0 %v1250
        %1314 = vmatprep.subr.bf16.mxu0 %v1255
        %1315 = vmatpush1.bf16.msra.mxu0 %v1254
        %1316 = vmatprep.subr.bf16.mxu0 %v1259
        %1317 = vmatpush1.bf16.msra.mxu0 %v1258
        %1318 = vmatprep.subr.bf16.mxu0 %v1263
        %1319 = vmatpush1.bf16.msra.mxu0 %v1262
        %1320 = vmatprep.subr.bf16.mxu0 %v1267
        %1321 = vmatpush1.bf16.msra.mxu0 %v1266
        %1322 = vmatprep.subr.bf16.mxu0 %v1271
        %1323 = vmatpush1.bf16.msra.mxu0 %v1270
        %1324 = vmatprep.subr.bf16.mxu0 %v1275
        %1325 = vmatpush1.bf16.msra.mxu0 %v1274
        %1326 = vmatprep.subr.bf16.mxu0 0
        %1327 = vmatpush1.bf16.msra.mxu0 0
        %1328 = vmatprep.subr.bf16.mxu0 0
        %1329 = vmatpush1.bf16.msra.mxu0 0
        %1330 = vmatprep.subr.bf16.mxu0 0
        %1331 = vmatpush1.bf16.msra.mxu0 0
        %1332 = vmatprep.subr.bf16.mxu0 0
        %1333 = vmatpush1.bf16.msra.mxu0 0
        %1334 = vmatprep.subr.bf16.mxu0 0
        %1335 = vmatpush1.bf16.msra.mxu0 0
        %1336 = vmatprep.subr.bf16.mxu0 0
        %1337 = vmatpush1.bf16.msra.mxu0 0
        %1338 = vmatprep.subr.bf16.mxu0 0
        %1339 = vmatpush1.bf16.msra.mxu0 0
        %1340 = vmatprep.subr.bf16.mxu0 0
        %1341 = vmatpush1.bf16.msra.mxu0 0
        %1342 = vmatprep.mubr.bf16.mxu0 0
        %1343 = vmatmul.mubr.bf16.gmra.mrb[0].mxu0 %v1094
        %v1344 = vpop.f32.mrb[0].mxu0
        %v1345 = vadd.f32 %v1133, %v1344
        %v1346 = vpop.f32.mrb[0].mxu0
        %v1347 = vadd.f32 %v1137, %v1346
        %v1348 = vpop.f32.mrb[0].mxu0
        %v1349 = vadd.f32 %v1133, %v1348
        %v1350 = vpop.f32.mrb[0].mxu0
        %v1351 = vadd.f32 %v1137, %v1350
        %1352 = vmatprep.mubr.bf16.mxu0 0
        %1353 = vmatmul.mubr.bf16.gmra.mrb[0].mxu0 %v1095
        %v1354 = vpop.f32.mrb[0].mxu0
        %v1355 = vadd.f32 %v1133, %v1354
        %v1356 = vpop.f32.mrb[0].mxu0
        %v1357 = vadd.f32 %v1137, %v1356
        %v1358 = vpop.f32.mrb[0].mxu0
        %v1359 = vadd.f32 %v1133, %v1358
        %v1360 = vpop.f32.mrb[0].mxu0
        %v1361 = vadd.f32 %v1137, %v1360
        %1362 = vdwg.mxu0
        %1363 = vmatprep.subr.bf16.mxu0 %v1249
        %1364 = vmatpush1.bf16.msra.mxu0 %v1248
        %1365 = vmatprep.subr.bf16.mxu0 %v1253
        %1366 = vmatpush1.bf16.msra.mxu0 %v1252
        %1367 = vmatprep.subr.bf16.mxu0 %v1257
        %1368 = vmatpush1.bf16.msra.mxu0 %v1256
        %1369 = vmatprep.subr.bf16.mxu0 %v1261
        %1370 = vmatpush1.bf16.msra.mxu0 %v1260
        %1371 = vmatprep.subr.bf16.mxu0 %v1265
        %1372 = vmatpush1.bf16.msra.mxu0 %v1264
        %1373 = vmatprep.subr.bf16.mxu0 %v1269
        %1374 = vmatpush1.bf16.msra.mxu0 %v1268
        %1375 = vmatprep.subr.bf16.mxu0 %v1273
        %1376 = vmatpush1.bf16.msra.mxu0 %v1272
        %1377 = vmatprep.subr.bf16.mxu0 %v1277
        %1378 = vmatpush1.bf16.msra.mxu0 %v1276
        %1379 = vmatprep.subr.bf16.mxu0 0
        %1380 = vmatpush1.bf16.msra.mxu0 0
        %1381 = vmatprep.subr.bf16.mxu0 0
        %1382 = vmatpush1.bf16.msra.mxu0 0
        %1383 = vmatprep.subr.bf16.mxu0 0
        %1384 = vmatpush1.bf16.msra.mxu0 0
        %1385 = vmatprep.subr.bf16.mxu0 0
        %1386 = vmatpush1.bf16.msra.mxu0 0
        %1387 = vmatprep.subr.bf16.mxu0 0
        %1388 = vmatpush1.bf16.msra.mxu0 0
        %1389 = vmatprep.subr.bf16.mxu0 0
        %1390 = vmatpush1.bf16.msra.mxu0 0
        %1391 = vmatprep.subr.bf16.mxu0 0
        %1392 = vmatpush1.bf16.msra.mxu0 0
        %1393 = vmatprep.subr.bf16.mxu0 0
        %1394 = vmatpush1.bf16.msra.mxu0 0
        %1395 = vmatprep.mubr.bf16.mxu0 0
        %1396 = vmatmul.mubr.bf16.gmra.mrb[0].mxu0 %v1094
        %v1397 = vpop.f32.mrb[0].mxu0
        %v1398 = vadd.f32 %v1141, %v1397
        %v1399 = vpop.f32.mrb[0].mxu0
        %v1400 = vadd.f32 %v1145, %v1399
        %v1401 = vpop.f32.mrb[0].mxu0
        %v1402 = vadd.f32 %v1141, %v1401
        %v1403 = vpop.f32.mrb[0].mxu0
        %v1404 = vadd.f32 %v1145, %v1403
        %1405 = vmatprep.mubr.bf16.mxu0 0
        %1406 = vmatmul.mubr.bf16.gmra.mrb[0].mxu0 %v1095
        %v1407 = vpop.f32.mrb[0].mxu0
        %v1408 = vadd.f32 %v1141, %v1407
        %v1409 = vpop.f32.mrb[0].mxu0
        %v1410 = vadd.f32 %v1145, %v1409
        %v1411 = vpop.f32.mrb[0].mxu0
        %v1412 = vadd.f32 %v1141, %v1411
        %v1413 = vpop.f32.mrb[0].mxu0
        %v1414 = vadd.f32 %v1145, %v1413
        %1415 = vdwg.mxu0
        %v1416 = vmul.f32 %v1345, %v1345
        %v1417 = vmul.f32 %v1347, %v1347
        %v1418 = vmul.f32 %v1398, %v1398
        %v1419 = vmul.f32 %v1400, %v1400
        %v1420 = vmul.f32 %v1349, %v1349
        %v1421 = vmul.f32 %v1351, %v1351
        %v1422 = vmul.f32 %v1402, %v1402
        %v1423 = vmul.f32 %v1404, %v1404
        %v1424 = vmul.f32 %v1355, %v1355
        %v1425 = vmul.f32 %v1357, %v1357
        %v1426 = vmul.f32 %v1408, %v1408
        %v1427 = vmul.f32 %v1410, %v1410
        %v1428 = vmul.f32 %v1359, %v1359
        %v1429 = vmul.f32 %v1361, %v1361
        %v1430 = vmul.f32 %v1412, %v1412
        %v1431 = vmul.f32 %v1414, %v1414
        %v1432 = vmul.f32 %v1345, %v1416
        %v1433 = vmul.f32 %v1347, %v1417
        %v1434 = vmul.f32 %v1398, %v1418
        %v1435 = vmul.f32 %v1400, %v1419
        %v1436 = vmul.f32 %v1349, %v1420
        %v1437 = vmul.f32 %v1351, %v1421
        %v1438 = vmul.f32 %v1402, %v1422
        %v1439 = vmul.f32 %v1404, %v1423
        %v1440 = vmul.f32 %v1355, %v1424
        %v1441 = vmul.f32 %v1357, %v1425
        %v1442 = vmul.f32 %v1408, %v1426
        %v1443 = vmul.f32 %v1410, %v1427
        %v1444 = vmul.f32 %v1359, %v1428
        %v1445 = vmul.f32 %v1361, %v1429
        %v1446 = vmul.f32 %v1412, %v1430
        %v1447 = vmul.f32 %v1414, %v1431
        %v1448 = vmul.f32 %v1432, 0.044715
        %v1449 = vmul.f32 %v1433, 0.044715
        %v1450 = vmul.f32 %v1434, 0.044715
        %v1451 = vmul.f32 %v1435, 0.044715
        %v1452 = vmul.f32 %v1436, 0.044715
        %v1453 = vmul.f32 %v1437, 0.044715
        %v1454 = vmul.f32 %v1438, 0.044715
        %v1455 = vmul.f32 %v1439, 0.044715
        %v1456 = vmul.f32 %v1440, 0.044715
        %v1457 = vmul.f32 %v1441, 0.044715
        %v1458 = vmul.f32 %v1442, 0.044715
        %v1459 = vmul.f32 %v1443, 0.044715
        %v1460 = vmul.f32 %v1444, 0.044715
        %v1461 = vmul.f32 %v1445, 0.044715
        %v1462 = vmul.f32 %v1446, 0.044715
        %v1463 = vmul.f32 %v1447, 0.044715
        %v1464 = vadd.f32 %v1345, %v1448
        %v1465 = vadd.f32 %v1347, %v1449
        %v1466 = vadd.f32 %v1398, %v1450
        %v1467 = vadd.f32 %v1400, %v1451
        %v1468 = vadd.f32 %v1349, %v1452
        %v1469 = vadd.f32 %v1351, %v1453
        %v1470 = vadd.f32 %v1402, %v1454
        %v1471 = vadd.f32 %v1404, %v1455
        %v1472 = vadd.f32 %v1355, %v1456
        %v1473 = vadd.f32 %v1357, %v1457
        %v1474 = vadd.f32 %v1408, %v1458
        %v1475 = vadd.f32 %v1410, %v1459
        %v1476 = vadd.f32 %v1359, %v1460
        %v1477 = vadd.f32 %v1361, %v1461
        %v1478 = vadd.f32 %v1412, %v1462
        %v1479 = vadd.f32 %v1414, %v1463
        %v1480 = vmul.f32 %v1464, 0.7978846
        %v1481 = vmul.f32 %v1465, 0.7978846
        %v1482 = vmul.f32 %v1466, 0.7978846
        %v1483 = vmul.f32 %v1467, 0.7978846
        %v1484 = vmul.f32 %v1468, 0.7978846
        %v1485 = vmul.f32 %v1469, 0.7978846
        %v1486 = vmul.f32 %v1470, 0.7978846
        %v1487 = vmul.f32 %v1471, 0.7978846
        %v1488 = vmul.f32 %v1472, 0.7978846
        %v1489 = vmul.f32 %v1473, 0.7978846
        %v1490 = vmul.f32 %v1474, 0.7978846
        %v1491 = vmul.f32 %v1475, 0.7978846
        %v1492 = vmul.f32 %v1476, 0.7978846
        %v1493 = vmul.f32 %v1477, 0.7978846
        %v1494 = vmul.f32 %v1478, 0.7978846
        %v1495 = vmul.f32 %v1479, 0.7978846
        %v1496 = vtanh.pop %v1480
        %v1497 = vtanh.pop %v1481
        %v1498 = vtanh.pop %v1482
        %v1499 = vtanh.pop %v1483
        %v1500 = vtanh.pop %v1484
        %v1501 = vtanh.pop %v1485
        %v1502 = vtanh.pop %v1486
        %v1503 = vtanh.pop %v1487
        %v1504 = vtanh.pop %v1488
        %v1505 = vtanh.pop %v1489
        %v1506 = vtanh.pop %v1490
        %v1507 = vtanh.pop %v1491
        %v1508 = vtanh.pop %v1492
        %v1509 = vtanh.pop %v1493
        %v1510 = vtanh.pop %v1494
        %v1511 = vtanh.pop %v1495
        %v1512 = vadd.f32 %v1496, 1.0
        %v1513 = vadd.f32 %v1497, 1.0
        %v1514 = vadd.f32 %v1498, 1.0
        %v1515 = vadd.f32 %v1499, 1.0
        %v1516 = vadd.f32 %v1500, 1.0
        %v1517 = vadd.f32 %v1501, 1.0
        %v1518 = vadd.f32 %v1502, 1.0
        %v1519 = vadd.f32 %v1503, 1.0
        %v1520 = vadd.f32 %v1504, 1.0
        %v1521 = vadd.f32 %v1505, 1.0
        %v1522 = vadd.f32 %v1506, 1.0
        %v1523 = vadd.f32 %v1507, 1.0
        %v1524 = vadd.f32 %v1508, 1.0
        %v1525 = vadd.f32 %v1509, 1.0
        %v1526 = vadd.f32 %v1510, 1.0
        %v1527 = vadd.f32 %v1511, 1.0
        %v1528 = vmul.f32 %v1512, 0.5
        %v1529 = vmul.f32 %v1513, 0.5
        %v1530 = vmul.f32 %v1514, 0.5
        %v1531 = vmul.f32 %v1515, 0.5
        %v1532 = vmul.f32 %v1516, 0.5
        %v1533 = vmul.f32 %v1517, 0.5
        %v1534 = vmul.f32 %v1518, 0.5
        %v1535 = vmul.f32 %v1519, 0.5
        %v1536 = vmul.f32 %v1520, 0.5
        %v1537 = vmul.f32 %v1521, 0.5
        %v1538 = vmul.f32 %v1522, 0.5
        %v1539 = vmul.f32 %v1523, 0.5
        %v1540 = vmul.f32 %v1524, 0.5
        %v1541 = vmul.f32 %v1525, 0.5
        %v1542 = vmul.f32 %v1526, 0.5
        %v1543 = vmul.f32 %v1527, 0.5
        %v1544 = vmul.f32 %v1345, %v1528
        %v1545 = vmul.f32 %v1347, %v1529
        %v1546 = vmul.f32 %v1398, %v1530
        %v1547 = vmul.f32 %v1400, %v1531
        %v1548 = vmul.f32 %v1349, %v1532
        %v1549 = vmul.f32 %v1351, %v1533
        %v1550 = vmul.f32 %v1402, %v1534
        %v1551 = vmul.f32 %v1404, %v1535
        %v1552 = vmul.f32 %v1355, %v1536
        %v1553 = vmul.f32 %v1357, %v1537
        %v1554 = vmul.f32 %v1408, %v1538
        %v1555 = vmul.f32 %v1410, %v1539
        %v1556 = vmul.f32 %v1359, %v1540
        %v1557 = vmul.f32 %v1361, %v1541
        %v1558 = vmul.f32 %v1412, %v1542
        %v1559 = vmul.f32 %v1414, %v1543
        %v1560 = vpack.c.bf16 %v1548, %v1544
        %v1561 = vpack.c.bf16 %v1549, %v1545
        %v1562 = vpack.c.bf16 %v1550, %v1546
        %v1563 = vpack.c.bf16 %v1551, %v1547
        %v1564 = vpack.c.bf16 %v1556, %v1552
        %v1565 = vpack.c.bf16 %v1557, %v1553
        %v1566 = vpack.c.bf16 %v1558, %v1554
        %v1567 = vpack.c.bf16 %v1559, %v1555
        %v1568 = vld [vmem:[%s10] sm:$0xf]
        %v1569 = vld [vmem:[%s10 + $0x4] sm:$0xf]
        %v1570 = vld [vmem:[%s10 + $0x8] sm:$0xf]
        %v1571 = vld [vmem:[%s10 + $0xc] sm:$0xf]
        %v1572 = vld [vmem:[%s10 + $0x10] sm:$0xf]
        %v1573 = vld [vmem:[%s10 + $0x14] sm:$0xf]
        %v1574 = vld [vmem:[%s10 + $0x18] sm:$0xf]
        %v1575 = vld [vmem:[%s10 + $0x1c] sm:$0xf]
        %v1576 = vld [vmem:[%s10 + $0x20] sm:$0xf]
        %v1577 = vld [vmem:[%s10 + $0x24] sm:$0xf]
        %v1578 = vld [vmem:[%s10 + $0x28] sm:$0xf]
        %v1579 = vld [vmem:[%s10 + $0x2c] sm:$0xf]
        %v1580 = vld [vmem:[%s10 + $0x30] sm:$0xf]
        %v1581 = vld [vmem:[%s10 + $0x34] sm:$0xf]
        %v1582 = vld [vmem:[%s10 + $0x38] sm:$0xf]
        %v1583 = vld [vmem:[%s10 + $0x3c] sm:$0xf]
        %v1584 = vld [vmem:[%s10 + $0x40] sm:$0xf]
        %v1585 = vld [vmem:[%s10 + $0x44] sm:$0xf]
        %v1586 = vld [vmem:[%s10 + $0x48] sm:$0xf]
        %v1587 = vld [vmem:[%s10 + $0x4c] sm:$0xf]
        %v1588 = vld [vmem:[%s10 + $0x50] sm:$0xf]
        %v1589 = vld [vmem:[%s10 + $0x54] sm:$0xf]
        %v1590 = vld [vmem:[%s10 + $0x58] sm:$0xf]
        %v1591 = vld [vmem:[%s10 + $0x5c] sm:$0xf]
        %v1592 = vld [vmem:[%s10 + $0x60] sm:$0xf]
        %v1593 = vld [vmem:[%s10 + $0x64] sm:$0xf]
        %v1594 = vld [vmem:[%s10 + $0x68] sm:$0xf]
        %v1595 = vld [vmem:[%s10 + $0x6c] sm:$0xf]
        %v1596 = vld [vmem:[%s10 + $0x70] sm:$0xf]
        %v1597 = vld [vmem:[%s10 + $0x74] sm:$0xf]
        %v1598 = vld [vmem:[%s10 + $0x78] sm:$0xf]
        %v1599 = vld [vmem:[%s10 + $0x7c] sm:$0xf]
        %v1600 = vld [vmem:[%s10 + $0x80] sm:$0xf]
        %v1601 = vld [vmem:[%s10 + $0x84] sm:$0xf]
        %v1602 = vld [vmem:[%s10 + $0x88] sm:$0xf]
        %v1603 = vld [vmem:[%s10 + $0x8c] sm:$0xf]
        %v1604 = vld [vmem:[%s10 + $0x90] sm:$0xf]
        %v1605 = vld [vmem:[%s10 + $0x94] sm:$0xf]
        %v1606 = vld [vmem:[%s10 + $0x98] sm:$0xf]
        %v1607 = vld [vmem:[%s10 + $0x9c] sm:$0xf]
        %v1608 = vld [vmem:[%s10 + $0xa0] sm:$0xf]
        %v1609 = vld [vmem:[%s10 + $0xa4] sm:$0xf]
        %v1610 = vld [vmem:[%s10 + $0xa8] sm:$0xf]
        %v1611 = vld [vmem:[%s10 + $0xac] sm:$0xf]
        %v1612 = vld [vmem:[%s10 + $0xb0] sm:$0xf]
        %v1613 = vld [vmem:[%s10 + $0xb4] sm:$0xf]
        %v1614 = vld [vmem:[%s10 + $0xb8] sm:$0xf]
        %v1615 = vld [vmem:[%s10 + $0xbc] sm:$0xf]
        %v1616 = vld [vmem:[%s10 + $0xc0] sm:$0xf]
        %v1617 = vld [vmem:[%s10 + $0xc4] sm:$0xf]
        %v1618 = vld [vmem:[%s10 + $0xc8] sm:$0xf]
        %v1619 = vld [vmem:[%s10 + $0xcc] sm:$0xf]
        %v1620 = vld [vmem:[%s10 + $0xd0] sm:$0xf]
        %v1621 = vld [vmem:[%s10 + $0xd4] sm:$0xf]
        %v1622 = vld [vmem:[%s10 + $0xd8] sm:$0xf]
        %v1623 = vld [vmem:[%s10 + $0xdc] sm:$0xf]
        %v1624 = vld [vmem:[%s10 + $0xe0] sm:$0xf]
        %v1625 = vld [vmem:[%s10 + $0xe4] sm:$0xf]
        %v1626 = vld [vmem:[%s10 + $0xe8] sm:$0xf]
        %v1627 = vld [vmem:[%s10 + $0xec] sm:$0xf]
        %v1628 = vld [vmem:[%s10 + $0xf0] sm:$0xf]
        %v1629 = vld [vmem:[%s10 + $0xf4] sm:$0xf]
        %v1630 = vld [vmem:[%s10 + $0xf8] sm:$0xf]
        %v1631 = vld [vmem:[%s10 + $0xfc] sm:$0xf]
        %v1632 = vld [vmem:[%s11] sm:$0x1]
        %v1634 = vlaneseq
        %v1635 = vshrl.u32 %v1634, 7
        %v1636 = vsub.s32 0, %v1635
        %v1637 = vrot.slane %v1632, %v1636
        %v1703 = vunpack.c.l.b16 %v1568
        %v1704 = vunpack.c.l.b16 %v1569
        %v1705 = vunpack.c.l.b16 %v1570
        %v1706 = vunpack.c.l.b16 %v1571
        %v1707 = vunpack.c.l.b16 %v1572
        %v1708 = vunpack.c.l.b16 %v1573
        %v1709 = vunpack.c.l.b16 %v1574
        %v1710 = vunpack.c.l.b16 %v1575
        %v1711 = vunpack.c.l.b16 %v1576
        %v1712 = vunpack.c.l.b16 %v1577
        %v1713 = vunpack.c.l.b16 %v1578
        %v1714 = vunpack.c.l.b16 %v1579
        %v1715 = vunpack.c.l.b16 %v1580
        %v1716 = vunpack.c.l.b16 %v1581
        %v1717 = vunpack.c.l.b16 %v1582
        %v1718 = vunpack.c.l.b16 %v1583
        %v1719 = vunpack.c.l.b16 %v1584
        %v1720 = vunpack.c.l.b16 %v1585
        %v1721 = vunpack.c.l.b16 %v1586
        %v1722 = vunpack.c.l.b16 %v1587
        %v1723 = vunpack.c.l.b16 %v1588
        %v1724 = vunpack.c.l.b16 %v1589
        %v1725 = vunpack.c.l.b16 %v1590
        %v1726 = vunpack.c.l.b16 %v1591
        %v1727 = vunpack.c.l.b16 %v1592
        %v1728 = vunpack.c.l.b16 %v1593
        %v1729 = vunpack.c.l.b16 %v1594
        %v1730 = vunpack.c.l.b16 %v1595
        %v1731 = vunpack.c.l.b16 %v1596
        %v1732 = vunpack.c.l.b16 %v1597
        %v1733 = vunpack.c.l.b16 %v1598
        %v1734 = vunpack.c.l.b16 %v1599
        %v1735 = vunpack.c.l.b16 %v1600
        %v1736 = vunpack.c.l.b16 %v1601
        %v1737 = vunpack.c.l.b16 %v1602
        %v1738 = vunpack.c.l.b16 %v1603
        %v1739 = vunpack.c.l.b16 %v1604
        %v1740 = vunpack.c.l.b16 %v1605
        %v1741 = vunpack.c.l.b16 %v1606
        %v1742 = vunpack.c.l.b16 %v1607
        %v1743 = vunpack.c.l.b16 %v1608
        %v1744 = vunpack.c.l.b16 %v1609
        %v1745 = vunpack.c.l.b16 %v1610
        %v1746 = vunpack.c.l.b16 %v1611
        %v1747 = vunpack.c.l.b16 %v1612
        %v1748 = vunpack.c.l.b16 %v1613
        %v1749 = vunpack.c.l.b16 %v1614
        %v1750 = vunpack.c.l.b16 %v1615
        %v1751 = vunpack.c.l.b16 %v1616
        %v1752 = vunpack.c.l.b16 %v1617
        %v1753 = vunpack.c.l.b16 %v1618
        %v1754 = vunpack.c.l.b16 %v1619
        %v1755 = vunpack.c.l.b16 %v1620
        %v1756 = vunpack.c.l.b16 %v1621
        %v1757 = vunpack.c.l.b16 %v1622
        %v1758 = vunpack.c.l.b16 %v1623
        %v1759 = vunpack.c.l.b16 %v1624
        %v1760 = vunpack.c.l.b16 %v1625
        %v1761 = vunpack.c.l.b16 %v1626
        %v1762 = vunpack.c.l.b16 %v1627
        %v1763 = vunpack.c.l.b16 %v1628
        %v1764 = vunpack.c.l.b16 %v1629
        %v1765 = vunpack.c.l.b16 %v1630
        %v1766 = vunpack.c.l.b16 %v1631
        %v1767 = vpack.c.b16 %v1704, %v1703
        %v1768 = vpack.c.b16 %v1706, %v1705
        %v1769 = vpack.c.b16 %v1708, %v1707
        %v1770 = vpack.c.b16 %v1710, %v1709
        %v1771 = vpack.c.b16 %v1712, %v1711
        %v1772 = vpack.c.b16 %v1714, %v1713
        %v1773 = vpack.c.b16 %v1716, %v1715
        %v1774 = vpack.c.b16 %v1718, %v1717
        %v1775 = vpack.c.b16 %v1720, %v1719
        %v1776 = vpack.c.b16 %v1722, %v1721
        %v1777 = vpack.c.b16 %v1724, %v1723
        %v1778 = vpack.c.b16 %v1726, %v1725
        %v1779 = vpack.c.b16 %v1728, %v1727
        %v1780 = vpack.c.b16 %v1730, %v1729
        %v1781 = vpack.c.b16 %v1732, %v1731
        %v1782 = vpack.c.b16 %v1734, %v1733
        %v1783 = vpack.c.b16 %v1736, %v1735
        %v1784 = vpack.c.b16 %v1738, %v1737
        %v1785 = vpack.c.b16 %v1740, %v1739
        %v1786 = vpack.c.b16 %v1742, %v1741
        %v1787 = vpack.c.b16 %v1744, %v1743
        %v1788 = vpack.c.b16 %v1746, %v1745
        %v1789 = vpack.c.b16 %v1748, %v1747
        %v1790 = vpack.c.b16 %v1750, %v1749
        %v1791 = vpack.c.b16 %v1752, %v1751
        %v1792 = vpack.c.b16 %v1754, %v1753
        %v1793 = vpack.c.b16 %v1756, %v1755
        %v1794 = vpack.c.b16 %v1758, %v1757
        %v1795 = vpack.c.b16 %v1760, %v1759
        %v1796 = vpack.c.b16 %v1762, %v1761
        %v1797 = vpack.c.b16 %v1764, %v1763
        %v1798 = vpack.c.b16 %v1766, %v1765
        %1831 = vmatprep.subr.bf16.mxu0 0
        %1832 = vmatpush1.bf16.msra.mxu0 %v1767
        %1833 = vmatprep.subr.bf16.mxu0 0
        %1834 = vmatpush1.bf16.msra.mxu0 %v1768
        %1835 = vmatprep.subr.bf16.mxu0 0
        %1836 = vmatpush1.bf16.msra.mxu0 %v1769
        %1837 = vmatprep.subr.bf16.mxu0 0
        %1838 = vmatpush1.bf16.msra.mxu0 %v1770
        %1839 = vmatprep.subr.bf16.mxu0 0
        %1840 = vmatpush1.bf16.msra.mxu0 %v1771
        %1841 = vmatprep.subr.bf16.mxu0 0
        %1842 = vmatpush1.bf16.msra.mxu0 %v1772
        %1843 = vmatprep.subr.bf16.mxu0 0
        %1844 = vmatpush1.bf16.msra.mxu0 %v1773
        %1845 = vmatprep.subr.bf16.mxu0 0
        %1846 = vmatpush1.bf16.msra.mxu0 %v1774
        %1847 = vmatprep.subr.bf16.mxu0 0
        %1848 = vmatpush1.bf16.msra.mxu0 %v1775
        %1849 = vmatprep.subr.bf16.mxu0 0
        %1850 = vmatpush1.bf16.msra.mxu0 %v1776
        %1851 = vmatprep.subr.bf16.mxu0 0
        %1852 = vmatpush1.bf16.msra.mxu0 %v1777
        %1853 = vmatprep.subr.bf16.mxu0 0
        %1854 = vmatpush1.bf16.msra.mxu0 %v1778
        %1855 = vmatprep.subr.bf16.mxu0 0
        %1856 = vmatpush1.bf16.msra.mxu0 %v1779
        %1857 = vmatprep.subr.bf16.mxu0 0
        %1858 = vmatpush1.bf16.msra.mxu0 %v1780
        %1859 = vmatprep.subr.bf16.mxu0 0
        %1860 = vmatpush1.bf16.msra.mxu0 %v1781
        %1861 = vmatprep.subr.bf16.mxu0 0
        %1862 = vmatpush1.bf16.msra.mxu0 %v1782
        %1863 = vmatprep.mubr.bf16.mxu0 %v1561
        %1864 = vmatmul.mubr.bf16.gmra.mrb[0].mxu0 %v1560
        %v1865 = vpop.f32.mrb[0].mxu0
        %v1866 = vadd.f32 %v1637, %v1865
        %v1867 = vpop.f32.mrb[0].mxu0
        %v1868 = vpop.f32.mrb[0].mxu0
        %v1869 = vadd.f32 %v1637, %v1868
        %v1870 = vpop.f32.mrb[0].mxu0
        %1871 = vmatprep.mubr.bf16.mxu0 %v1565
        %1872 = vmatmul.mubr.bf16.gmra.mrb[0].mxu0 %v1564
        %v1873 = vpop.f32.mrb[0].mxu0
        %v1874 = vadd.f32 %v1637, %v1873
        %v1875 = vpop.f32.mrb[0].mxu0
        %v1876 = vpop.f32.mrb[0].mxu0
        %v1877 = vadd.f32 %v1637, %v1876
        %v1878 = vpop.f32.mrb[0].mxu0
        %1879 = vdwg.mxu0
        %1880 = vmatprep.subr.bf16.mxu0 0
        %1881 = vmatpush1.bf16.msra.mxu0 %v1783
        %1882 = vmatprep.subr.bf16.mxu0 0
        %1883 = vmatpush1.bf16.msra.mxu0 %v1784
        %1884 = vmatprep.subr.bf16.mxu0 0
        %1885 = vmatpush1.bf16.msra.mxu0 %v1785
        %1886 = vmatprep.subr.bf16.mxu0 0
        %1887 = vmatpush1.bf16.msra.mxu0 %v1786
        %1888 = vmatprep.subr.bf16.mxu0 0
        %1889 = vmatpush1.bf16.msra.mxu0 %v1787
        %1890 = vmatprep.subr.bf16.mxu0 0
        %1891 = vmatpush1.bf16.msra.mxu0 %v1788
        %1892 = vmatprep.subr.bf16.mxu0 0
        %1893 = vmatpush1.bf16.msra.mxu0 %v1789
        %1894 = vmatprep.subr.bf16.mxu0 0
        %1895 = vmatpush1.bf16.msra.mxu0 %v1790
        %1896 = vmatprep.subr.bf16.mxu0 0
        %1897 = vmatpush1.bf16.msra.mxu0 %v1791
        %1898 = vmatprep.subr.bf16.mxu0 0
        %1899 = vmatpush1.bf16.msra.mxu0 %v1792
        %1900 = vmatprep.subr.bf16.mxu0 0
        %1901 = vmatpush1.bf16.msra.mxu0 %v1793
        %1902 = vmatprep.subr.bf16.mxu0 0
        %1903 = vmatpush1.bf16.msra.mxu0 %v1794
        %1904 = vmatprep.subr.bf16.mxu0 0
        %1905 = vmatpush1.bf16.msra.mxu0 %v1795
        %1906 = vmatprep.subr.bf16.mxu0 0
        %1907 = vmatpush1.bf16.msra.mxu0 %v1796
        %1908 = vmatprep.subr.bf16.mxu0 0
        %1909 = vmatpush1.bf16.msra.mxu0 %v1797
        %1910 = vmatprep.subr.bf16.mxu0 0
        %1911 = vmatpush1.bf16.msra.mxu0 %v1798
        %1912 = vmatprep.mubr.bf16.mxu0 %v1563
        %1913 = vmatmul.mubr.bf16.gmra.mrb[0].mxu0 %v1562
        %v1914 = vpop.f32.mrb[0].mxu0
        %v1915 = vadd.f32 %v1866, %v1914
        %v1916 = vpop.f32.mrb[0].mxu0
        %v1917 = vpop.f32.mrb[0].mxu0
        %v1918 = vadd.f32 %v1869, %v1917
        %v1919 = vpop.f32.mrb[0].mxu0
        %1920 = vmatprep.mubr.bf16.mxu0 %v1567
        %1921 = vmatmul.mubr.bf16.gmra.mrb[0].mxu0 %v1566
        %v1922 = vpop.f32.mrb[0].mxu0
        %v1923 = vadd.f32 %v1874, %v1922
        %v1924 = vpop.f32.mrb[0].mxu0
        %v1925 = vpop.f32.mrb[0].mxu0
        %v1926 = vadd.f32 %v1877, %v1925
        %v1927 = vpop.f32.mrb[0].mxu0
        %1928 = vdwg.mxu0
        %v1929 = vld [vmem:[%s625] sm:$0x1]
        %v1931 = vlaneseq
        %v1932 = vshrl.u32 %v1931, 7
        %v1933 = vsub.s32 0, %v1932
        %v1934 = vrot.slane %v1929, %v1933
        %v1936 = vmul.f32 %v1934, %v1915
        %v1937 = vmul.f32 %v1934, %v1918
        %v1938 = vmul.f32 %v1934, %v1923
        %v1939 = vmul.f32 %v1934, %v1926
        %v1940 = vadd.f32 %v1022, %v1936
        %v1941 = vadd.f32 %v1023, %v1937
        %v1942 = vadd.f32 %v1024, %v1938
        %v1943 = vadd.f32 %v1025, %v1939
        %v1944 = vpack.c.bf16 %v1941, %v1940
        %v1945 = vpack.c.bf16 %v1943, %v1942
        %v1948 = vunpack.c.l.b16 %v1944
        %v1949 = vunpack.c.h.b16 %v1944
        %v1950 = vunpack.c.l.b16 %v1945
        %v1951 = vunpack.c.h.b16 %v1945
        %v1952 = vpack.c.b16 %v1948, %v1948
        %v1953 = vpack.c.b16 %v1949, %v1949
        %v1954 = vpack.c.b16 %v1950, %v1950
        %v1955 = vpack.c.b16 %v1951, %v1951
        %1960 = vst [vmem:[%s634] sm:$0xf] %v1952
        %1961 = vst [vmem:[%s634 + $0x4] sm:$0xf] %v1953
        %1962 = vst [vmem:[%s634 + $0x8] sm:$0xf] %v1954
        %1963 = vst [vmem:[%s634 + $0xc] sm:$0xf] %v1955
        %s1964 = smul.u32 4, %s28
        %p1965 = scmp.lt.s32.totalorder %s27, 1
        %s1966 = scalar_select %p1965, %s27, 1
        %p1967 = scmp.lt.s32.totalorder %s1964, 3
        %s1968 = scalar_select %p1967, %s1964, 3
        %s1969 = smul.addr %s1966, 4
        %s1970 = sadd.s32 %s1968, %s1969
        %s1971 = smul.addr %s1970, 4
        %s1972 = scalar_lea.vmem %s12, %s1971
        // Predicated region
        $region110: #{lavindit_forward.17} parent=104 // pred_check
          %p1973 = pneg %p341
        $region111: #{lavindit_forward.17} parent=104 // pred_check_branch
          %1975 = sbr.rel (%p1973) target = $region113
        $region112: #{lavindit_forward.17} parent=104 // pred_region
          %s1976 = smul.u32 4, %s28
        $region113: #{lavindit_forward.17} parent=104 // pred_fallthru
          _
      $region105: #{lavindit_forward.17} parent=5 // pred_fallthru
        _
      %p1977 = scmp.le.s32.totalorder 2, %s18
      // Predicated region
      $region114: #{lavindit_forward.17} parent=5 // pred_check
        %p1978 = pneg %p1977
      $region115: #{lavindit_forward.17} parent=5 // pred_check_branch
        %1980 = sbr.rel (%p1978) target = $region117
      $region116: #{lavindit_forward.17} parent=5 // pred_region
        %s1981 = ssub.s32 %s18, 2
        // Predicated region
        $region118: #{lavindit_forward.17} parent=116 // pred_check
          %p1982 = pneg %p347
        $region119: #{lavindit_forward.17} parent=116 // pred_check_branch
          %1984 = sbr.rel (%p1982) target = $region121
        $region120: #{lavindit_forward.17} parent=116 // pred_region
          %s1985 = smul.u32 4, %s30
          %p1986 = scmp.lt.s32.totalorder %s29, 1
          %s1987 = scalar_select %p1986, %s29, 1
          %p1988 = scmp.lt.s32.totalorder %s1985, 3
          %s1989 = scalar_select %p1988, %s1985, 3
          %s1990 = smul.addr %s1987, 4
          %s1991 = sadd.s32 %s1989, %s1990
          %s1992 = smul.addr %s1991, 4
          %s1993 = scalar_lea.vmem %s12, %s1992
        $region121: #{lavindit_forward.17} parent=116 // pred_fallthru
          _
      $region117: #{lavindit_forward.17} parent=5 // pred_fallthru
        _
    $region6: #{lavindit_forward.17} parent=1 // loop_footer
      %s22 = sadd.s32 1, %s18
    $region7: #{lavindit_forward.17} parent=1 // loop_footer_branch
      %17 = sbr.rel target = $region3
    $region8: #{lavindit_forward.17} parent=1 // loop_exit
      _

// kernel: lavindit_forward.18
$region0: #{lavindit_forward.18}
  #allocation0 [shape = 'u32[]', space=smem, size = 0x4, offset = 0x4, fixed_abs, tag = 'smem constant byte address 0x4 - core index']
  #allocation1 [shape = 'u32[144,128]{1,0:T(1,128)}', space=vmem, size = 0x12000, scoped, tag = 'internal scratch']
  %s0 = inlined_call_operand.vmem [shape: bf16[2,4,64,32], index: 0, kind: input, shape index: {}]
  %s1 = inlined_call_operand.vmem [shape: bf16[4,32,128], index: 1, kind: input, shape index: {}]
  %s2 = inlined_call_operand.vmem [shape: f32[1,128], index: 2, kind: input, shape index: {}]
  %s3 = inlined_call_operand.vmem [shape: bf16[2,32,128], index: 3, kind: input, shape index: {}]
  %s4 = inlined_call_operand.vmem [shape: f32[2,1,128], index: 4, kind: input, shape index: {}]
  %s5 = inlined_call_operand.vmem [shape: f32[2,1,128], index: 5, kind: input, shape index: {}]
  %s6 = inlined_call_operand.vmem [shape: f32[2,1,128], index: 6, kind: input, shape index: {}]
  %s7 = inlined_call_operand.vmem [shape: f32[2,1,128], index: 7, kind: input, shape index: {}]
  %s8 = inlined_call_operand.vmem [shape: bf16[128,512], index: 8, kind: input, shape index: {}]
  %s9 = inlined_call_operand.vmem [shape: f32[1,512], index: 9, kind: input, shape index: {}]
  %s10 = inlined_call_operand.vmem [shape: bf16[512,128], index: 10, kind: input, shape index: {}]
  %s11 = inlined_call_operand.vmem [shape: f32[1,128], index: 11, kind: input, shape index: {}]
  %s12 = inlined_call_operand.vmem [shape: bf16[2,32,128], index: 12, kind: output, shape index: {}]
  %s13 = sld [smem:[#allocation0]]
  $region122: #{lavindit_forward.18} parent=0
    _
  %s15 = ssub.s32 1, %s13
  %s16 = scalar_select 0, %s15, %s13
  $region1: #{lavindit_forward.18} parent=0
    #allocation2 [shape = 'u8[65536]{0}', space=vmem, size = 0x10000, scoped, tag = 'input window, operand 0']
    loop: start=0, step=1, limit=4
    $region2: #{lavindit_forward.18} parent=1 // loop_pre_header
      _
    $region3: #{lavindit_forward.18} parent=1 // loop_header
      %s18 = sphi 0, %s22
      %p19 = scmp.ge.s32.totalorder %s18, 4
      %s25 = sphi 0, %s37
      %s26 = sphi 0, %s33
      %s27 = sphi 0, %s25
      %s28 = sphi 0, %s26
      %s29 = sphi 0, %s27
      %s30 = sphi 0, %s28
      %s44 = sphi 0, %s46
      %s47 = sphi 0, %s44
      %s48 = sphi 0, %s47
      %s64 = sphi 0, %s48
      %s68 = sphi 0, %s68
      %s70 = sphi 0, %s68
      %s71 = sphi 0, %s70
      %s85 = sphi 0, %s71
      %s89 = sphi 0, %s89
      %s91 = sphi 0, %s89
      %s92 = sphi 0, %s91
      %s106 = sphi 0, %s92
      %s114 = sphi 0, %s116
      %s117 = sphi 0, %s114
      %s118 = sphi 0, %s117
      %s134 = sphi 0, %s118
      %s140 = sphi 0, %s142
      %s143 = sphi 0, %s140
      %s144 = sphi 0, %s143
      %s160 = sphi 0, %s144
      %s166 = sphi 0, %s168
      %s169 = sphi 0, %s166
      %s170 = sphi 0, %s169
      %s186 = sphi 0, %s170
      %s192 = sphi 0, %s194
      %s195 = sphi 0, %s192
      %s196 = sphi 0, %s195
      %s212 = sphi 0, %s196
      %s218 = sphi 0, %s220
      %s221 = sphi 0, %s218
      %s222 = sphi 0, %s221
      %s238 = sphi 0, %s222
      %s242 = sphi 0, %s242
      %s244 = sphi 0, %s242
      %s245 = sphi 0, %s244
      %s259 = sphi 0, %s245
      %s263 = sphi 0, %s263
      %s265 = sphi 0, %s263
      %s266 = sphi 0, %s265
      %s280 = sphi 0, %s266
      %s284 = sphi 0, %s284
      %s286 = sphi 0, %s284
      %s287 = sphi 0, %s286
      %s301 = sphi 0, %s287
      %s305 = sphi 0, %s305
      %s307 = sphi 0, %s305
      %s308 = sphi 0, %s307
      %s322 = sphi 0, %s308
      %s330 = sphi 0, %s332
      %s333 = sphi 0, %s330
      %s334 = sphi 0, %s333
      %s350 = sphi 0, %s334
    $region4: #{lavindit_forward.18} parent=1 // loop_header_branch
      %21 = sbr.rel (%p19) target = $region8
    $region5: #{lavindit_forward.18} parent=1 // loop_body
      %s23 = ssub.s32 %s18, 1
      %s24 = ssub.s32 %s18, 2
      %s31 = sadd.s32 1, %s26
      %p32 = scmp.ge.s32.totalorder %s31, 1
      %s33 = scalar_select %p32, 0, %s31
      %s34 = sadd.s32 1, %s25
      %s35 = scalar_select %p32, %s34, %s25
      %p36 = scmp.ge.s32.totalorder %s35, 2
      %s37 = scalar_select %p36, 0, %s35
      %s38 = sadd.s32 %s26, 1
      %s39 = sadd.s32 %s33, 1
      %s40 = ssub.s32 %s25, %s37
      %s41 = ssub.s32 %s38, %s39
      %s42 = sor.u32 %s40, %s41
      %p43 = scmp.eq.s32.totalorder %s42, 0
      %s45 = sadd.s32 %s44, 1
      %s46 = scalar_select %p43, %s44, %s45
      %p49 = pneg %p43
      %p50 = scmp.eq.s32.totalorder %s18, 1
      %p51 = por %p49, %p50
      %p52 = scmp.ne.s32.totalorder %s44, %s47
      %p53 = scmp.eq.s32.totalorder %s18, 0
      %p54 = por %p52, %p53
      %p55 = scmp.ne.s32.totalorder %s44, %s47
      %p56 = scmp.eq.s32.totalorder %s23, 1
      %p57 = por %p55, %p56
      %p58 = scmp.ne.s32.totalorder %s47, %s48
      %p59 = scmp.eq.s32.totalorder %s23, 0
      %p60 = por %p58, %p59
      %p61 = scmp.ne.s32.totalorder %s47, %s48
      %p62 = scmp.eq.s32.totalorder %s24, 1
      %p63 = por %p61, %p62
      %p65 = scmp.ne.s32.totalorder %s48, %s64
      %p66 = scmp.eq.s32.totalorder %s24, 0
      %p67 = por %p65, %p66
      %s69 = sadd.s32 %s68, 1
      %p72 = scmp.eq.s32.totalorder %s18, 1
      %p73 = scmp.ne.s32.totalorder %s68, %s70
      %p74 = scmp.eq.s32.totalorder %s18, 0
      %p75 = por %p73, %p74
      %p76 = scmp.ne.s32.totalorder %s68, %s70
      %p77 = scmp.eq.s32.totalorder %s23, 1
      %p78 = por %p76, %p77
      %p79 = scmp.ne.s32.totalorder %s70, %s71
      %p80 = scmp.eq.s32.totalorder %s23, 0
      %p81 = por %p79, %p80
      %p82 = scmp.ne.s32.totalorder %s70, %s71
      %p83 = scmp.eq.s32.totalorder %s24, 1
      %p84 = por %p82, %p83
      %p86 = scmp.ne.s32.totalorder %s71, %s85
      %p87 = scmp.eq.s32.totalorder %s24, 0
      %p88 = por %p86, %p87
      %s90 = sadd.s32 %s89, 1
      %p93 = scmp.eq.s32.totalorder %s18, 1
      %p94 = scmp.ne.s32.totalorder %s89, %s91
      %p95 = scmp.eq.s32.totalorder %s18, 0
      %p96 = por %p94, %p95
      %p97 = scmp.ne.s32.totalorder %s89, %s91
      %p98 = scmp.eq.s32.totalorder %s23, 1
      %p99 = por %p97, %p98
      %p100 = scmp.ne.s32.totalorder %s91, %s92
      %p101 = scmp.eq.s32.totalorder %s23, 0
      %p102 = por %p100, %p101
      %p103 = scmp.ne.s32.totalorder %s91, %s92
      %p104 = scmp.eq.s32.totalorder %s24, 1
      %p105 = por %p103, %p104
      %p107 = scmp.ne.s32.totalorder %s92, %s106
      %p108 = scmp.eq.s32.totalorder %s24, 0
      %p109 = por %p107, %p108
      %s110 = ssub.s32 %s25, %s37
      %s111 = ssub.s32 %s26, %s33
      %s112 = sor.u32 %s110, %s111
      %p113 = scmp.eq.s32.totalorder %s112, 0
      %s115 = sadd.s32 %s114, 1
      %s116 = scalar_select %p113, %s114, %s115
      %p119 = pneg %p113
      %p120 = scmp.eq.s32.totalorder %s18, 1
      %p121 = por %p119, %p120
      %p122 = scmp.ne.s32.totalorder %s114, %s117
      %p123 = scmp.eq.s32.totalorder %s18, 0
      %p124 = por %p122, %p123
      %p125 = scmp.ne.s32.totalorder %s114, %s117
      %p126 = scmp.eq.s32.totalorder %s23, 1
      %p127 = por %p125, %p126
      %p128 = scmp.ne.s32.totalorder %s117, %s118
      %p129 = scmp.eq.s32.totalorder %s23, 0
      %p130 = por %p128, %p129
      %p131 = scmp.ne.s32.totalorder %s117, %s118
      %p132 = scmp.eq.s32.totalorder %s24, 1
      %p133 = por %p131, %p132
      %p135 = scmp.ne.s32.totalorder %s118, %s134
      %p136 = scmp.eq.s32.totalorder %s24, 0
      %p137 = por %p135, %p136
      %s138 = ssub.s32 %s25, %s37
      %p139 = scmp.eq.s32.totalorder %s138, 0
      %s141 = sadd.s32 %s140, 1
      %s142 = scalar_select %p139, %s140, %s141
      %p145 = pneg %p139
      %p146 = scmp.eq.s32.totalorder %s18, 1
      %p147 = por %p145, %p146
      %p148 = scmp.ne.s32.totalorder %s140, %s143
      %p149 = scmp.eq.s32.totalorder %s18, 0
      %p150 = por %p148, %p149
      %p151 = scmp.ne.s32.totalorder %s140, %s143
      %p152 = scmp.eq.s32.totalorder %s23, 1
      %p153 = por %p151, %p152
      %p154 = scmp.ne.s32.totalorder %s143, %s144
      %p155 = scmp.eq.s32.totalorder %s23, 0
      %p156 = por %p154, %p155
      %p157 = scmp.ne.s32.totalorder %s143, %s144
      %p158 = scmp.eq.s32.totalorder %s24, 1
      %p159 = por %p157, %p158
      %p161 = scmp.ne.s32.totalorder %s144, %s160
      %p162 = scmp.eq.s32.totalorder %s24, 0
      %p163 = por %p161, %p162
      %s164 = ssub.s32 %s25, %s37
      %p165 = scmp.eq.s32.totalorder %s164, 0
      %s167 = sadd.s32 %s166, 1
      %s168 = scalar_select %p165, %s166, %s167
      %p171 = pneg %p165
      %p172 = scmp.eq.s32.totalorder %s18, 1
      %p173 = por %p171, %p172
      %p174 = scmp.ne.s32.totalorder %s166, %s169
      %p175 = scmp.eq.s32.totalorder %s18, 0
      %p176 = por %p174, %p175
      %p177 = scmp.ne.s32.totalorder %s166, %s169
      %p178 = scmp.eq.s32.totalorder %s23, 1
      %p179 = por %p177, %p178
      %p180 = scmp.ne.s32.totalorder %s169, %s170
      %p181 = scmp.eq.s32.totalorder %s23, 0
      %p182 = por %p180, %p181
      %p183 = scmp.ne.s32.totalorder %s169, %s170
      %p184 = scmp.eq.s32.totalorder %s24, 1
      %p185 = por %p183, %p184
      %p187 = scmp.ne.s32.totalorder %s170, %s186
      %p188 = scmp.eq.s32.totalorder %s24, 0
      %p189 = por %p187, %p188
      %s190 = ssub.s32 %s25, %s37
      %p191 = scmp.eq.s32.totalorder %s190, 0
      %s193 = sadd.s32 %s192, 1
      %s194 = scalar_select %p191, %s192, %s193
      %p197 = pneg %p191
      %p198 = scmp.eq.s32.totalorder %s18, 1
      %p199 = por %p197, %p198
      %p200 = scmp.ne.s32.totalorder %s192, %s195
      %p201 = scmp.eq.s32.totalorder %s18, 0
      %p202 = por %p200, %p201
      %p203 = scmp.ne.s32.totalorder %s192, %s195
      %p204 = scmp.eq.s32.totalorder %s23, 1
      %p205 = por %p203, %p204
      %p206 = scmp.ne.s32.totalorder %s195, %s196
      %p207 = scmp.eq.s32.totalorder %s23, 0
      %p208 = por %p206, %p207
      %p209 = scmp.ne.s32.totalorder %s195, %s196
      %p210 = scmp.eq.s32.totalorder %s24, 1
      %p211 = por %p209, %p210
      %p213 = scmp.ne.s32.totalorder %s196, %s212
      %p214 = scmp.eq.s32.totalorder %s24, 0
      %p215 = por %p213, %p214
      %s216 = ssub.s32 %s25, %s37
      %p217 = scmp.eq.s32.totalorder %s216, 0
      %s219 = sadd.s32 %s218, 1
      %s220 = scalar_select %p217, %s218, %s219
      %p223 = pneg %p217
      %p224 = scmp.eq.s32.totalorder %s18, 1
      %p225 = por %p223, %p224
      %p226 = scmp.ne.s32.totalorder %s218, %s221
      %p227 = scmp.eq.s32.totalorder %s18, 0
      %p228 = por %p226, %p227
      %p229 = scmp.ne.s32.totalorder %s218, %s221
      %p230 = scmp.eq.s32.totalorder %s23, 1
      %p231 = por %p229, %p230
      %p232 = scmp.ne.s32.totalorder %s221, %s222
      %p233 = scmp.eq.s32.totalorder %s23, 0
      %p234 = por %p232, %p233
      %p235 = scmp.ne.s32.totalorder %s221, %s222
      %p236 = scmp.eq.s32.totalorder %s24, 1
      %p237 = por %p235, %p236
      %p239 = scmp.ne.s32.totalorder %s222, %s238
      %p240 = scmp.eq.s32.totalorder %s24, 0
      %p241 = por %p239, %p240
      %s243 = sadd.s32 %s242, 1
      %p246 = scmp.eq.s32.totalorder %s18, 1
      %p247 = scmp.ne.s32.totalorder %s242, %s244
      %p248 = scmp.eq.s32.totalorder %s18, 0
      %p249 = por %p247, %p248
      %p250 = scmp.ne.s32.totalorder %s242, %s244
      %p251 = scmp.eq.s32.totalorder %s23, 1
      %p252 = por %p250, %p251
      %p253 = scmp.ne.s32.totalorder %s244, %s245
      %p254 = scmp.eq.s32.totalorder %s23, 0
      %p255 = por %p253, %p254
      %p256 = scmp.ne.s32.totalorder %s244, %s245
      %p257 = scmp.eq.s32.totalorder %s24, 1
      %p258 = por %p256, %p257
      %p260 = scmp.ne.s32.totalorder %s245, %s259
      %p261 = scmp.eq.s32.totalorder %s24, 0
      %p262 = por %p260, %p261
      %s264 = sadd.s32 %s263, 1
      %p267 = scmp.eq.s32.totalorder %s18, 1
      %p268 = scmp.ne.s32.totalorder %s263, %s265
      %p269 = scmp.eq.s32.totalorder %s18, 0
      %p270 = por %p268, %p269
      %p271 = scmp.ne.s32.totalorder %s263, %s265
      %p272 = scmp.eq.s32.totalorder %s23, 1
      %p273 = por %p271, %p272
      %p274 = scmp.ne.s32.totalorder %s265, %s266
      %p275 = scmp.eq.s32.totalorder %s23, 0
      %p276 = por %p274, %p275
      %p277 = scmp.ne.s32.totalorder %s265, %s266
      %p278 = scmp.eq.s32.totalorder %s24, 1
      %p279 = por %p277, %p278
      %p281 = scmp.ne.s32.totalorder %s266, %s280
      %p282 = scmp.eq.s32.totalorder %s24, 0
      %p283 = por %p281, %p282
      %s285 = sadd.s32 %s284, 1
      %p288 = scmp.eq.s32.totalorder %s18, 1
      %p289 = scmp.ne.s32.totalorder %s284, %s286
      %p290 = scmp.eq.s32.totalorder %s18, 0
      %p291 = por %p289, %p290
      %p292 = scmp.ne.s32.totalorder %s284, %s286
      %p293 = scmp.eq.s32.totalorder %s23, 1
      %p294 = por %p292, %p293
      %p295 = scmp.ne.s32.totalorder %s286, %s287
      %p296 = scmp.eq.s32.totalorder %s23, 0
      %p297 = por %p295, %p296
      %p298 = scmp.ne.s32.totalorder %s286, %s287
      %p299 = scmp.eq.s32.totalorder %s24, 1
      %p300 = por %p298, %p299
      %p302 = scmp.ne.s32.totalorder %s287, %s301
      %p303 = scmp.eq.s32.totalorder %s24, 0
      %p304 = por %p302, %p303
      %s306 = sadd.s32 %s305, 1
      %p309 = scmp.eq.s32.totalorder %s18, 1
      %p310 = scmp.ne.s32.totalorder %s305, %s307
      %p311 = scmp.eq.s32.totalorder %s18, 0
      %p312 = por %p310, %p311
      %p313 = scmp.ne.s32.totalorder %s305, %s307
      %p314 = scmp.eq.s32.totalorder %s23, 1
      %p315 = por %p313, %p314
      %p316 = scmp.ne.s32.totalorder %s307, %s308
      %p317 = scmp.eq.s32.totalorder %s23, 0
      %p318 = por %p316, %p317
      %p319 = scmp.ne.s32.totalorder %s307, %s308
      %p320 = scmp.eq.s32.totalorder %s24, 1
      %p321 = por %p319, %p320
      %p323 = scmp.ne.s32.totalorder %s308, %s322
      %p324 = scmp.eq.s32.totalorder %s24, 0
      %p325 = por %p323, %p324
      %s326 = ssub.s32 %s25, %s37
      %s327 = ssub.s32 %s26, %s33
      %s328 = sor.u32 %s326, %s327
      %p329 = scmp.eq.s32.totalorder %s328, 0
      %s331 = sadd.s32 %s330, 1
      %s332 = scalar_select %p329, %s330, %s331
      %p335 = pneg %p329
      %p336 = scmp.eq.s32.totalorder %s18, 1
      %p337 = por %p335, %p336
      %p338 = scmp.ne.s32.totalorder %s330, %s333
      %p339 = scmp.eq.s32.totalorder %s18, 0
      %p340 = por %p338, %p339
      %p341 = scmp.ne.s32.totalorder %s330, %s333
      %p342 = scmp.eq.s32.totalorder %s23, 1
      %p343 = por %p341, %p342
      %p344 = scmp.ne.s32.totalorder %s333, %s334
      %p345 = scmp.eq.s32.totalorder %s23, 0
      %p346 = por %p344, %p345
      %p347 = scmp.ne.s32.totalorder %s333, %s334
      %p348 = scmp.eq.s32.totalorder %s24, 1
      %p349 = por %p347, %p348
      %p351 = scmp.ne.s32.totalorder %s334, %s350
      %p352 = scmp.eq.s32.totalorder %s24, 0
      %p353 = por %p351, %p352
      %p354 = scmp.le.s32.totalorder 1, %s18
      %p355 = scmp.lt.s32.totalorder %s18, 3
      %p356 = pnand %p354, %p355
      %p357 = pneg %p356
      // Predicated region
      $region9: #{lavindit_forward.18} parent=5 // pred_check
        _
      $region10: #{lavindit_forward.18} parent=5 // pred_check_branch
        %359 = sbr.rel (%p356) target = $region12
      $region11: #{lavindit_forward.18} parent=5 // pred_region
        %s360 = ssub.s32 %s18, 1
        // Predicated region
        $region13: #{lavindit_forward.18} parent=11 // pred_check
          %p361 = pneg %p81
        $region14: #{lavindit_forward.18} parent=11 // pred_check_branch
          %363 = sbr.rel (%p361) target = $region16
        $region15: #{lavindit_forward.18} parent=11 // pred_region
          _
        $region16: #{lavindit_forward.18} parent=11 // pred_fallthru
          _
        // Predicated region
        $region17: #{lavindit_forward.18} parent=11 // pred_check
          %p364 = pneg %p102
        $region18: #{lavindit_forward.18} parent=11 // pred_check_branch
          %366 = sbr.rel (%p364) target = $region20
        $region19: #{lavindit_forward.18} parent=11 // pred_region
          _
        $region20: #{lavindit_forward.18} parent=11 // pred_fallthru
          _
        // Predicated region
        $region21: #{lavindit_forward.18} parent=11 // pred_check
          %p367 = pneg %p255
        $region22: #{lavindit_forward.18} parent=11 // pred_check_branch
          %369 = sbr.rel (%p367) target = $region24
        $region23: #{lavindit_forward.18} parent=11 // pred_region
          _
        $region24: #{lavindit_forward.18} parent=11 // pred_fallthru
          _
        // Predicated region
        $region25: #{lavindit_forward.18} parent=11 // pred_check
          %p370 = pneg %p276
        $region26: #{lavindit_forward.18} parent=11 // pred_check_branch
          %372 = sbr.rel (%p370) target = $region28
        $region27: #{lavindit_forward.18} parent=11 // pred_region
          _
        $region28: #{lavindit_forward.18} parent=11 // pred_fallthru
          _
        // Predicated region
        $region29: #{lavindit_forward.18} parent=11 // pred_check
          %p373 = pneg %p297
        $region30: #{lavindit_forward.18} parent=11 // pred_check_branch
          %375 = sbr.rel (%p373) target = $region32
        $region31: #{lavindit_forward.18} parent=11 // pred_region
          _
        $region32: #{lavindit_forward.18} parent=11 // pred_fallthru
          _
        // Predicated region
        $region33: #{lavindit_forward.18} parent=11 // pred_check
          %p376 = pneg %p318
        $region34: #{lavindit_forward.18} parent=11 // pred_check_branch
          %378 = sbr.rel (%p376) target = $region36
        $region35: #{lavindit_forward.18} parent=11 // pred_region
          _
        $region36: #{lavindit_forward.18} parent=11 // pred_fallthru
          _
      $region12: #{lavindit_forward.18} parent=5 // pred_fallthru
        _
      %p379 = scmp.lt.s32.totalorder %s18, 2
      // Predicated region
      $region37: #{lavindit_forward.18} parent=5 // pred_check
        %p380 = pneg %p379
      $region38: #{lavindit_forward.18} parent=5 // pred_check_branch
        %382 = sbr.rel (%p380) target = $region40
      $region39: #{lavindit_forward.18} parent=5 // pred_region
        // Predicated region
        $region41: #{lavindit_forward.18} parent=39 // pred_check
          %p383 = pneg %p54
        $region42: #{lavindit_forward.18} parent=39 // pred_check_branch
          %385 = sbr.rel (%p383) target = $region44
        $region43: #{lavindit_forward.18} parent=39 // pred_region
          %s386 = sand.u32 %s44, 1
          %s387 = sand.u32 %s44, 1
          %s388 = smul.addr %s387, 64
          %s389 = scalar_lea.vmem [#allocation2], %s388
          %s390 = sadd.s32 %s26, 1
          %s391 = smul.u32 4, %s390
          %s392 = smul.addr %s25, 32
          %s393 = sadd.s32 %s391, %s392
          %s394 = smul.addr %s393, 4
          %s395 = scalar_lea.vmem %s0, %s394
          // Predicated region
          $region45: #{lavindit_forward.18} parent=43 // pred_check
            _
          $region46: #{lavindit_forward.18} parent=43 // pred_check_branch
            %397 = sbr.rel (0) target = $region48
          $region47: #{lavindit_forward.18} parent=43 // pred_region
            // Predicated region
            $region49: #{lavindit_forward.18} parent=47 // pred_check
              _
            $region50: #{lavindit_forward.18} parent=47 // pred_check_branch
              %399 = sbr.rel target = $region52
            $region51: #{lavindit_forward.18} parent=47 // pred_region
              // Predicated region
              $region64: #{lavindit_forward.18} parent=51 // pred_check
                _
              $region65: #{lavindit_forward.18} parent=51 // pred_check_branch
                %444 = sbr.rel (0) target = $region67
              $region66: #{lavindit_forward.18} parent=51 // pred_region
                loop: start=0, step=1, limit=1
                $region68: #{lavindit_forward.18} parent=66 // loop_pre_header
                  _
                $region69: #{lavindit_forward.18} parent=66 // loop_header
                  %s446 = sphi 0, %s450
                  %p447 = scmp.ge.s32.totalorder %s446, 1
                  %s451 = sphi %s395, %s395
                  %s452 = sphi %s389, %s389
                $region70: #{lavindit_forward.18} parent=66 // loop_header_branch
                  %449 = sbr.rel (%p447) target = $region74
                $region71: #{lavindit_forward.18} parent=66 // loop_body
                  _
                $region72: #{lavindit_forward.18} parent=66 // loop_footer
                  %s450 = sadd.s32 1, %s446
                $region73: #{lavindit_forward.18} parent=66 // loop_footer_branch
                  %445 = sbr.rel target = $region69
                $region74: #{lavindit_forward.18} parent=66 // loop_exit
                  _
                loop: start=0, step=1, limit=1
                $region75: #{lavindit_forward.18} parent=66 // loop_pre_header
                  _
                $region76: #{lavindit_forward.18} parent=66 // loop_header
                  %s455 = sphi 0, %s459
                  %p456 = scmp.ge.s32.totalorder %s455, 1
                  %s460 = sphi %s395, %s395
                  %s461 = sphi %s389, %s389
                $region77: #{lavindit_forward.18} parent=66 // loop_header_branch
                  %458 = sbr.rel (%p456) target = $region81
                $region78: #{lavindit_forward.18} parent=66 // loop_body
                  %v462 = vld [vmem:[%s460] sm:$0xf]
                  %463 = vst [vmem:[%s461] sm:$0xf] %v462
                  %v464 = vld [vmem:[%s460 + $0x4] sm:$0xf]
                  %465 = vst [vmem:[%s461 + $0x4] sm:$0xf] %v464
                  %v466 = vld [vmem:[%s460 + $0x8] sm:$0xf]
                  %467 = vst [vmem:[%s461 + $0x8] sm:$0xf] %v466
                  %v468 = vld [vmem:[%s460 + $0xc] sm:$0xf]
                  %469 = vst [vmem:[%s461 + $0xc] sm:$0xf] %v468
                  %v470 = vld [vmem:[%s460 + $0x20] sm:$0xf]
                  %471 = vst [vmem:[%s461 + $0x10] sm:$0xf] %v470
                  %v472 = vld [vmem:[%s460 + $0x24] sm:$0xf]
                  %473 = vst [vmem:[%s461 + $0x14] sm:$0xf] %v472
                  %v474 = vld [vmem:[%s460 + $0x28] sm:$0xf]
                  %475 = vst [vmem:[%s461 + $0x18] sm:$0xf] %v474
                  %v476 = vld [vmem:[%s460 + $0x2c] sm:$0xf]
                  %477 = vst [vmem:[%s461 + $0x1c] sm:$0xf] %v476
                  %v478 = vld [vmem:[%s460 + $0x40] sm:$0xf]
                  %479 = vst [vmem:[%s461 + $0x20] sm:$0xf] %v478
                  %v480 = vld [vmem:[%s460 + $0x44] sm:$0xf]
                  %481 = vst [vmem:[%s461 + $0x24] sm:$0xf] %v480
                  %v482 = vld [vmem:[%s460 + $0x48] sm:$0xf]
                  %483 = vst [vmem:[%s461 + $0x28] sm:$0xf] %v482
                  %v484 = vld [vmem:[%s460 + $0x4c] sm:$0xf]
                  %485 = vst [vmem:[%s461 + $0x2c] sm:$0xf] %v484
                  %v486 = vld [vmem:[%s460 + $0x60] sm:$0xf]
                  %487 = vst [vmem:[%s461 + $0x30] sm:$0xf] %v486
                  %v488 = vld [vmem:[%s460 + $0x64] sm:$0xf]
                  %489 = vst [vmem:[%s461 + $0x34] sm:$0xf] %v488
                  %v490 = vld [vmem:[%s460 + $0x68] sm:$0xf]
                  %491 = vst [vmem:[%s461 + $0x38] sm:$0xf] %v490
                  %v492 = vld [vmem:[%s460 + $0x6c] sm:$0xf]
                  %493 = vst [vmem:[%s461 + $0x3c] sm:$0xf] %v492
                $region79: #{lavindit_forward.18} parent=66 // loop_footer
                  %s459 = sadd.s32 1, %s455
                $region80: #{lavindit_forward.18} parent=66 // loop_footer_branch
                  %454 = sbr.rel target = $region76
                $region81: #{lavindit_forward.18} parent=66 // loop_exit
                  _
              $region67: #{lavindit_forward.18} parent=51 // pred_fallthru
                _
            $region52: #{lavindit_forward.18} parent=47 // pred_fallthru
              _
            // Predicated region
            $region53: #{lavindit_forward.18} parent=47 // pred_check
              _
            $region54: #{lavindit_forward.18} parent=47 // pred_check_branch
              %401 = sbr.rel (0) target = $region56
            $region55: #{lavindit_forward.18} parent=47 // pred_region
              loop: start=0, step=1, limit=1
              $region57: #{lavindit_forward.18} parent=55 // loop_pre_header
                _
              $region58: #{lavindit_forward.18} parent=55 // loop_header
                %s404 = sphi 0, %s408
                %p405 = scmp.ge.s32.totalorder %s404, 1
                %s409 = sphi %s395, %s395
                %s410 = sphi %s389, %s389
              $region59: #{lavindit_forward.18} parent=55 // loop_header_branch
                %407 = sbr.rel (%p405) target = $region63
              $region60: #{lavindit_forward.18} parent=55 // loop_body
                %v411 = vld [vmem:[%s409] sm:$0xf]
                %412 = vst [vmem:[%s410] sm:$0xf] %v411
                %v413 = vld [vmem:[%s409 + $0x4] sm:$0xf]
                %414 = vst [vmem:[%s410 + $0x4] sm:$0xf] %v413
                %v415 = vld [vmem:[%s409 + $0x8] sm:$0xf]
                %416 = vst [vmem:[%s410 + $0x8] sm:$0xf] %v415
                %v417 = vld [vmem:[%s409 + $0xc] sm:$0xf]
                %418 = vst [vmem:[%s410 + $0xc] sm:$0xf] %v417
                %v419 = vld [vmem:[%s409 + $0x20] sm:$0xf]
                %420 = vst [vmem:[%s410 + $0x10] sm:$0xf] %v419
                %v421 = vld [vmem:[%s409 + $0x24] sm:$0xf]
                %422 = vst [vmem:[%s410 + $0x14] sm:$0xf] %v421
                %v423 = vld [vmem:[%s409 + $0x28] sm:$0xf]
                %424 = vst [vmem:[%s410 + $0x18] sm:$0xf] %v423
                %v425 = vld [vmem:[%s409 + $0x2c] sm:$0xf]
                %426 = vst [vmem:[%s410 + $0x1c] sm:$0xf] %v425
                %v427 = vld [vmem:[%s409 + $0x40] sm:$0xf]
                %428 = vst [vmem:[%s410 + $0x20] sm:$0xf] %v427
                %v429 = vld [vmem:[%s409 + $0x44] sm:$0xf]
                %430 = vst [vmem:[%s410 + $0x24] sm:$0xf] %v429
                %v431 = vld [vmem:[%s409 + $0x48] sm:$0xf]
                %432 = vst [vmem:[%s410 + $0x28] sm:$0xf] %v431
                %v433 = vld [vmem:[%s409 + $0x4c] sm:$0xf]
                %434 = vst [vmem:[%s410 + $0x2c] sm:$0xf] %v433
                %v435 = vld [vmem:[%s409 + $0x60] sm:$0xf]
                %436 = vst [vmem:[%s410 + $0x30] sm:$0xf] %v435
                %v437 = vld [vmem:[%s409 + $0x64] sm:$0xf]
                %438 = vst [vmem:[%s410 + $0x34] sm:$0xf] %v437
                %v439 = vld [vmem:[%s409 + $0x68] sm:$0xf]
                %440 = vst [vmem:[%s410 + $0x38] sm:$0xf] %v439
                %v441 = vld [vmem:[%s409 + $0x6c] sm:$0xf]
                %442 = vst [vmem:[%s410 + $0x3c] sm:$0xf] %v441
              $region61: #{lavindit_forward.18} parent=55 // loop_footer
                %s408 = sadd.s32 1, %s404
              $region62: #{lavindit_forward.18} parent=55 // loop_footer_branch
                %403 = sbr.rel target = $region58
              $region63: #{lavindit_forward.18} parent=55 // loop_exit
                _
            $region56: #{lavindit_forward.18} parent=47 // pred_fallthru
              _
          $region48: #{lavindit_forward.18} parent=43 // pred_fallthru
            _
          %494 = vnop
        $region44: #{lavindit_forward.18} parent=39 // pred_fallthru
          _
        // Predicated region
        $region82: #{lavindit_forward.18} parent=39 // pred_check
          %p495 = pneg %p124
        $region83: #{lavindit_forward.18} parent=39 // pred_check_branch
          %497 = sbr.rel (%p495) target = $region85
        $region84: #{lavindit_forward.18} parent=39 // pred_region
          %s498 = smul.u32 4, %s26
          %p499 = scmp.lt.s32.totalorder %s25, 1
          %s500 = scalar_select %p499, %s25, 1
          %p501 = scmp.lt.s32.totalorder %s498, 3
          %s502 = scalar_select %p501, %s498, 3
          %s503 = smul.addr %s500, 4
          %s504 = sadd.s32 %s502, %s503
          %s505 = smul.addr %s504, 4
          %s506 = scalar_lea.vmem %s3, %s505
          %s507 = smul.u32 4, %s26
        $region85: #{lavindit_forward.18} parent=39 // pred_fallthru
          _
        // Predicated region
        $region86: #{lavindit_forward.18} parent=39 // pred_check
          %p508 = pneg %p150
        $region87: #{lavindit_forward.18} parent=39 // pred_check_branch
          %510 = sbr.rel (%p508) target = $region89
        $region88: #{lavindit_forward.18} parent=39 // pred_region
          %p511 = scmp.lt.s32.totalorder %s25, 1
          %s512 = scalar_select %p511, %s25, 1
          %s513 = scalar_lea.vmem %s4, %s512
        $region89: #{lavindit_forward.18} parent=39 // pred_fallthru
          _
        // Predicated region
        $region90: #{lavindit_forward.18} parent=39 // pred_check
          %p514 = pneg %p176
        $region91: #{lavindit_forward.18} parent=39 // pred_check_branch
          %516 = sbr.rel (%p514) target = $region93
        $region92: #{lavindit_forward.18} parent=39 // pred_region
          %p517 = scmp.lt.s32.totalorder %s25, 1
          %s518 = scalar_select %p517, %s25, 1
          %s519 = scalar_lea.vmem %s5, %s518
        $region93: #{lavindit_forward.18} parent=39 // pred_fallthru
          _
        // Predicated region
        $region94: #{lavindit_forward.18} parent=39 // pred_check
          %p520 = pneg %p202
        $region95: #{lavindit_forward.18} parent=39 // pred_check_branch
          %522 = sbr.rel (%p520) target = $region97
        $region96: #{lavindit_forward.18} parent=39 // pred_region
          %p523 = scmp.lt.s32.totalorder %s25, 1
          %s524 = scalar_select %p523, %s25, 1
          %s525 = scalar_lea.vmem %s6, %s524
        $region97: #{lavindit_forward.18} parent=39 // pred_fallthru
          _
        // Predicated region
        $region98: #{lavindit_forward.18} parent=39 // pred_check
          %p526 = pneg %p228
        $region99: #{lavindit_forward.18} parent=39 // pred_check_branch
          %528 = sbr.rel (%p526) target = $region101
        $region100: #{lavindit_forward.18} parent=39 // pred_region
          %p529 = scmp.lt.s32.totalorder %s25, 1
          %s530 = scalar_select %p529, %s25, 1
          %s531 = scalar_lea.vmem %s7, %s530
        $region101: #{lavindit_forward.18} parent=39 // pred_fallthru
          _
      $region40: #{lavindit_forward.18} parent=5 // pred_fallthru
        _
      %p532 = scmp.le.s32.totalorder 1, %s18
      %p533 = scmp.lt.s32.totalorder %s18, 3
      %p534 = pnand %p532, %p533
      %p535 = pneg %p534
      // Predicated region
      $region102: #{lavindit_forward.18} parent=5 // pred_check
        _
      $region103: #{lavindit_forward.18} parent=5 // pred_check_branch
        %537 = sbr.rel (%p534) target = $region105
      $region104: #{lavindit_forward.18} parent=5 // pred_region
        %s538 = ssub.s32 %s18, 1
        %s539 = sand.u32 %s47, 1
        %s540 = sand.u32 %s47, 1
        %s541 = smul.addr %s540, 64
        %s542 = scalar_lea.vmem [#allocation2], %s541
        // Predicated region
        $region106: #{lavindit_forward.18} parent=104 // pred_check
          %p543 = pneg %p60
        $region107: #{lavindit_forward.18} parent=104 // pred_check_branch
          %545 = sbr.rel (%p543) target = $region109
        $region108: #{lavindit_forward.18} parent=104 // pred_region
          _
        $region109: #{lavindit_forward.18} parent=104 // pred_fallthru
          _
        %s546 = sand.u32 %s47, 1
        %s547 = sand.u32 %s47, 1
        %s548 = smul.addr %s547, 64
        %s549 = scalar_lea.vmem [#allocation2], %s548
        %p550 = pneg %p60
        %p551 = pneg %p57
        %p552 = pneg %p81
        %p553 = pneg %p78
        %p554 = pneg %p102
        %p555 = pneg %p99
        %s556 = smul.u32 4, %s28
        %p557 = scmp.lt.s32.totalorder %s27, 1
        %s558 = scalar_select %p557, %s27, 1
        %p559 = scmp.lt.s32.totalorder %s556, 3
        %s560 = scalar_select %p559, %s556, 3
        %s561 = smul.addr %s558, 4
        %s562 = sadd.s32 %s560, %s561
        %s563 = smul.addr %s562, 4
        %s564 = scalar_lea.vmem %s3, %s563
        %p565 = pneg %p130
        %p566 = pneg %p127
        %p567 = scmp.lt.s32.totalorder %s27, 1
        %s568 = scalar_select %p567, %s27, 1
        %s569 = scalar_lea.vmem %s4, %s568
        %p570 = pneg %p156
        %p571 = pneg %p153
        %p572 = scmp.lt.s32.totalorder %s27, 1
        %s573 = scalar_select %p572, %s27, 1
        %s574 = scalar_lea.vmem %s5, %s573
        %p575 = pneg %p182
        %p576 = pneg %p179
        %p577 = scmp.lt.s32.totalorder %s27, 1
        %s578 = scalar_select %p577, %s27, 1
        %s579 = scalar_lea.vmem %s6, %s578
        %p580 = pneg %p208
        %p581 = pneg %p205
        %p582 = scmp.lt.s32.totalorder %s27, 1
        %s583 = scalar_select %p582, %s27, 1
        %s584 = scalar_lea.vmem %s7, %s583
        %p585 = pneg %p234
        %p586 = pneg %p231
        %p587 = pneg %p255
        %p588 = pneg %p252
        %p589 = pneg %p276
        %p590 = pneg %p273
        %p591 = pneg %p297
        %p592 = pneg %p294
        %p593 = pneg %p318
        %p594 = pneg %p315
        %p595 = pneg %p346
        %p596 = pneg %p343
        %s597 = smul.u32 4, %s28
        %p598 = scmp.lt.s32.totalorder %s27, 1
        %s599 = scalar_select %p598, %s27, 1
        %p600 = scmp.lt.s32.totalorder %s597, 3
        %s601 = scalar_select %p600, %s597, 3
        %s602 = smul.addr %s599, 4
        %s603 = sadd.s32 %s601, %s602
        %s604 = smul.addr %s603, 4
        %s605 = scalar_lea.vmem %s12, %s604
        %s606 = sadd.s32 %s28, 1
        %s607 = smul.u32 4, %s606
        %s608 = smul.u32 4, %s28
        %p609 = scmp.lt.s32.totalorder %s27, 1
        %s610 = scalar_select %p609, %s27, 1
        %p611 = scmp.lt.s32.totalorder %s608, 3
        %s612 = scalar_select %p611, %s608, 3
        %s613 = smul.addr %s610, 4
        %s614 = sadd.s32 %s612, %s613
        %s615 = smul.addr %s614, 4
        %s616 = scalar_lea.vmem %s3, %s615
        %s617 = smul.u32 4, %s28
        %p618 = scmp.lt.s32.totalorder %s27, 1
        %s619 = scalar_select %p618, %s27, 1
        %s620 = scalar_lea.vmem %s4, %s619
        %p621 = scmp.lt.s32.totalorder %s27, 1
        %s622 = scalar_select %p621, %s27, 1
        %s623 = scalar_lea.vmem %s5, %s622
        %p624 = scmp.lt.s32.totalorder %s27, 1
        %s625 = scalar_select %p624, %s27, 1
        %s626 = scalar_lea.vmem %s6, %s625
        %p627 = scmp.lt.s32.totalorder %s27, 1
        %s628 = scalar_select %p627, %s27, 1
        %s629 = scalar_lea.vmem %s7, %s628
        %s630 = smul.u32 4, %s28
        %p631 = scmp.lt.s32.totalorder %s27, 1
        %s632 = scalar_select %p631, %s27, 1
        %p633 = scmp.lt.s32.totalorder %s630, 3
        %s634 = scalar_select %p633, %s630, 3
        %s635 = smul.addr %s632, 4
        %s636 = sadd.s32 %s634, %s635
        %s637 = smul.addr %s636, 4
        %s638 = scalar_lea.vmem %s12, %s637
        %s639 = smul.u32 4, %s28
        %v641 = vld [vmem:[%s542] sm:$0xf]
        %v642 = vld [vmem:[%s542 + $0x4] sm:$0xf]
        %v643 = vld [vmem:[%s542 + $0x8] sm:$0xf]
        %v644 = vld [vmem:[%s542 + $0xc] sm:$0xf]
        %v645 = vld [vmem:[%s1] sm:$0xf]
        %v646 = vld [vmem:[%s1 + $0x4] sm:$0xf]
        %v647 = vld [vmem:[%s1 + $0x8] sm:$0xf]
        %v648 = vld [vmem:[%s1 + $0xc] sm:$0xf]
        %s649 = scalar_lea.vmem %s542, 16 [#allocation2]
        %v650 = vld [vmem:[%s649] sm:$0xf]
        %v651 = vld [vmem:[%s649 + $0x4] sm:$0xf]
        %v652 = vld [vmem:[%s649 + $0x8] sm:$0xf]
        %v653 = vld [vmem:[%s649 + $0xc] sm:$0xf]
        %s654 = scalar_lea.vmem %s1, 16
        %v655 = vld [vmem:[%s654] sm:$0xf]
        %v656 = vld [vmem:[%s654 + $0x4] sm:$0xf]
        %v657 = vld [vmem:[%s654 + $0x8] sm:$0xf]
        %v658 = vld [vmem:[%s654 + $0xc] sm:$0xf]
        %v663 = vunpack.c.l.b16 %v650
        %v664 = vunpack.c.l.b16 %v651
        %v665 = vunpack.c.l.b16 %v652
        %v666 = vunpack.c.l.b16 %v653
        %v667 = vpack.c.b16 %v664, %v663
        %v668 = vpack.c.b16 %v666, %v665
        %v673 = vunpack.c.l.b16 %v655
        %v674 = vunpack.c.l.b16 %v656
        %v675 = vunpack.c.l.b16 %v657
        %v676 = vunpack.c.l.b16 %v658
        %v677 = vpack.c.b16 %v674, %v673
        %v678 = vpack.c.b16 %v676, %v675
        %vm681 = vcmask 261120
        %v683 = vsel %vm681, %v667, 0
        %v686 = vsel %vm681, %v668, 0
        %688 = vmatprep.subr.bf16.mxu0 0
        %689 = vmatpush1.bf16.msra.mxu0 %v677
        %690 = vmatprep.subr.bf16.mxu0 0
        %691 = vmatpush1.bf16.msra.mxu0 %v678
        %692 = vmatprep.subr.bf16.mxu0 0
        %693 = vmatpush1.bf16.msra.mxu0 0
        %694 = vmatprep.subr.bf16.mxu0 0
        %695 = vmatpush1.bf16.msra.mxu0 0
        %696 = vmatprep.subr.bf16.mxu0 0
        %697 = vmatpush1.bf16.msra.mxu0 0
        %698 = vmatprep.subr.bf16.mxu0 0
        %699 = vmatpush1.bf16.msra.mxu0 0
        %700 = vmatprep.subr.bf16.mxu0 0
        %701 = vmatpush1.bf16.msra.mxu0 0
        %702 = vmatprep.subr.bf16.mxu0 0
        %703 = vmatpush1.bf16.msra.mxu0 0
        %704 = vmatprep.subr.bf16.mxu0 0
        %705 = vmatpush1.bf16.msra.mxu0 0
        %706 = vmatprep.subr.bf16.mxu0 0
        %707 = vmatpush1.bf16.msra.mxu0 0
        %708 = vmatprep.subr.bf16.mxu0 0
        %709 = vmatpush1.bf16.msra.mxu0 0
        %710 = vmatprep.subr.bf16.mxu0 0
        %711 = vmatpush1.bf16.msra.mxu0 0
        %712 = vmatprep.subr.bf16.mxu0 0
        %713 = vmatpush1.bf16.msra.mxu0 0
        %714 = vmatprep.subr.bf16.mxu0 0
        %715 = vmatpush1.bf16.msra.mxu0 0
        %716 = vmatprep.subr.bf16.mxu0 0
        %717 = vmatpush1.bf16.msra.mxu0 0
        %718 = vmatprep.subr.bf16.mxu0 0
        %719 = vmatpush1.bf16.msra.mxu0 0
        %720 = vmatprep.mubr.bf16.mxu0 0
        %721 = vmatmul.mubr.bf16.gmra.mrb[0].mxu0 %v683
        %v722 = vpop.f32.mrb[0].mxu0
        %v723 = vadd.f32 0.0, %v722
        %v724 = vpop.f32.mrb[0].mxu0
        %v725 = vpop.f32.mrb[0].mxu0
        %v726 = vadd.f32 0.0, %v725
        %v727 = vpop.f32.mrb[0].mxu0
        %728 = vmatprep.mubr.bf16.mxu0 0
        %729 = vmatmul.mubr.bf16.gmra.mrb[0].mxu0 %v686
        %v730 = vpop.f32.mrb[0].mxu0
        %v731 = vadd.f32 0.0, %v730
        %v732 = vpop.f32.mrb[0].mxu0
        %v733 = vpop.f32.mrb[0].mxu0
        %v734 = vadd.f32 0.0, %v733
        %v735 = vpop.f32.mrb[0].mxu0
        %736 = vdwg.mxu0
        %v741 = vunpack.c.l.b16 %v641
        %v742 = vunpack.c.l.b16 %v642
        %v743 = vunpack.c.l.b16 %v643
        %v744 = vunpack.c.l.b16 %v644
        %v745 = vpack.c.b16 %v742, %v741
        %v746 = vpack.c.b16 %v744, %v743
        %v751 = vunpack.c.l.b16 %v645
        %v752 = vunpack.c.l.b16 %v646
        %v753 = vunpack.c.l.b16 %v647
        %v754 = vunpack.c.l.b16 %v648
        %v755 = vpack.c.b16 %v752, %v751
        %v756 = vpack.c.b16 %v754, %v753
        %v760 = vsel %vm681, %v745, 0
        %v763 = vsel %vm681, %v746, 0
        %765 = vmatprep.subr.bf16.mxu0 0
        %766 = vmatpush1.bf16.msra.mxu0 %v755
        %767 = vmatprep.subr.bf16.mxu0 0
        %768 = vmatpush1.bf16.msra.mxu0 %v756
        %769 = vmatprep.subr.bf16.mxu0 0
        %770 = vmatpush1.bf16.msra.mxu0 0
        %771 = vmatprep.subr.bf16.mxu0 0
        %772 = vmatpush1.bf16.msra.mxu0 0
        %773 = vmatprep.subr.bf16.mxu0 0
        %774 = vmatpush1.bf16.msra.mxu0 0
        %775 = vmatprep.subr.bf16.mxu0 0
        %776 = vmatpush1.bf16.msra.mxu0 0
        %777 = vmatprep.subr.bf16.mxu0 0
        %778 = vmatpush1.bf16.msra.mxu0 0
        %779 = vmatprep.subr.bf16.mxu0 0
        %780 = vmatpush1.bf16.msra.mxu0 0
        %781 = vmatprep.subr.bf16.mxu0 0
        %782 = vmatpush1.bf16.msra.mxu0 0
        %783 = vmatprep.subr.bf16.mxu0 0
        %784 = vmatpush1.bf16.msra.mxu0 0
        %785 = vmatprep.subr.bf16.mxu0 0
        %786 = vmatpush1.bf16.msra.mxu0 0
        %787 = vmatprep.subr.bf16.mxu0 0
        %788 = vmatpush1.bf16.msra.mxu0 0
        %789 = vmatprep.subr.bf16.mxu0 0
        %790 = vmatpush1.bf16.msra.mxu0 0
        %791 = vmatprep.subr.bf16.mxu0 0
        %792 = vmatpush1.bf16.msra.mxu0 0
        %793 = vmatprep.subr.bf16.mxu0 0
        %794 = vmatpush1.bf16.msra.mxu0 0
        %795 = vmatprep.subr.bf16.mxu0 0
        %796 = vmatpush1.bf16.msra.mxu0 0
        %797 = vmatprep.mubr.bf16.mxu0 0
        %798 = vmatmul.mubr.bf16.gmra.mrb[0].mxu0 %v760
        %v799 = vpop.f32.mrb[0].mxu0
        %v800 = vadd.f32 %v723, %v799
        %v801 = vpop.f32.mrb[0].mxu0
        %v802 = vpop.f32.mrb[0].mxu0
        %v803 = vadd.f32 %v726, %v802
        %v804 = vpop.f32.mrb[0].mxu0
        %805 = vmatprep.mubr.bf16.mxu0 0
        %806 = vmatmul.mubr.bf16.gmra.mrb[0].mxu0 %v763
        %v807 = vpop.f32.mrb[0].mxu0
        %v808 = vadd.f32 %v731, %v807
        %v809 = vpop.f32.mrb[0].mxu0
        %v810 = vpop.f32.mrb[0].mxu0
        %v811 = vadd.f32 %v734, %v810
        %v812 = vpop.f32.mrb[0].mxu0
        %813 = vdwg.mxu0
        %s814 = scalar_lea.vmem %s542, 32 [#allocation2]
        %v815 = vld [vmem:[%s814] sm:$0xf]
        %v816 = vld [vmem:[%s814 + $0x4] sm:$0xf]
        %v817 = vld [vmem:[%s814 + $0x8] sm:$0xf]
        %v818 = vld [vmem:[%s814 + $0xc] sm:$0xf]
        %s819 = scalar_lea.vmem %s1, 32
        %v820 = vld [vmem:[%s819] sm:$0xf]
        %v821 = vld [vmem:[%s819 + $0x4] sm:$0xf]
        %v822 = vld [vmem:[%s819 + $0x8] sm:$0xf]
        %v823 = vld [vmem:[%s819 + $0xc] sm:$0xf]
        %v828 = vunpack.c.l.b16 %v815
        %v829 = vunpack.c.l.b16 %v816
        %v830 = vunpack.c.l.b16 %v817
        %v831 = vunpack.c.l.b16 %v818
        %v832 = vpack.c.b16 %v829, %v828
        %v833 = vpack.c.b16 %v831, %v830
        %v838 = vunpack.c.l.b16 %v820
        %v839 = vunpack.c.l.b16 %v821
        %v840 = vunpack.c.l.b16 %v822
        %v841 = vunpack.c.l.b16 %v823
        %v842 = vpack.c.b16 %v839, %v838
        %v843 = vpack.c.b16 %v841, %v840
        %v847 = vsel %vm681, %v832, 0
        %v850 = vsel %vm681, %v833, 0
        %852 = vmatprep.subr.bf16.mxu0 0
        %853 = vmatpush1.bf16.msra.mxu0 %v842
        %854 = vmatprep.subr.bf16.mxu0 0
        %855 = vmatpush1.bf16.msra.mxu0 %v843
        %856 = vmatprep.subr.bf16.mxu0 0
        %857 = vmatpush1.bf16.msra.mxu0 0
        %858 = vmatprep.subr.bf16.mxu0 0
        %859 = vmatpush1.bf16.msra.mxu0 0
        %860 = vmatprep.subr.bf16.mxu0 0
        %861 = vmatpush1.bf16.msra.mxu0 0
        %862 = vmatprep.subr.bf16.mxu0 0
        %863 = vmatpush1.bf16.msra.mxu0 0
        %864 = vmatprep.subr.bf16.mxu0 0
        %865 = vmatpush1.bf16.msra.mxu0 0
        %866 = vmatprep.subr.bf16.mxu0 0
        %867 = vmatpush1.bf16.msra.mxu0 0
        %868 = vmatprep.subr.bf16.mxu0 0
        %869 = vmatpush1.bf16.msra.mxu0 0
        %870 = vmatprep.subr.bf16.mxu0 0
        %871 = vmatpush1.bf16.msra.mxu0 0
        %872 = vmatprep.subr.bf16.mxu0 0
        %873 = vmatpush1.bf16.msra.mxu0 0
        %874 = vmatprep.subr.bf16.mxu0 0
        %875 = vmatpush1.bf16.msra.mxu0 0
        %876 = vmatprep.subr.bf16.mxu0 0
        %877 = vmatpush1.bf16.msra.mxu0 0
        %878 = vmatprep.subr.bf16.mxu0 0
        %879 = vmatpush1.bf16.msra.mxu0 0
        %880 = vmatprep.subr.bf16.mxu0 0
        %881 = vmatpush1.bf16.msra.mxu0 0
        %882 = vmatprep.subr.bf16.mxu0 0
        %883 = vmatpush1.bf16.msra.mxu0 0
        %884 = vmatprep.mubr.bf16.mxu0 0
        %885 = vmatmul.mubr.bf16.gmra.mrb[0].mxu0 %v847
        %v886 = vpop.f32.mrb[0].mxu0
        %v887 = vadd.f32 0.0, %v886
        %v888 = vpop.f32.mrb[0].mxu0
        %v889 = vpop.f32.mrb[0].mxu0
        %v890 = vadd.f32 0.0, %v889
        %v891 = vpop.f32.mrb[0].mxu0
        %892 = vmatprep.mubr.bf16.mxu0 0
        %893 = vmatmul.mubr.bf16.gmra.mrb[0].mxu0 %v850
        %v894 = vpop.f32.mrb[0].mxu0
        %v895 = vadd.f32 0.0, %v894
        %v896 = vpop.f32.mrb[0].mxu0
        %v897 = vpop.f32.mrb[0].mxu0
        %v898 = vadd.f32 0.0, %v897
        %v899 = vpop.f32.mrb[0].mxu0
        %900 = vdwg.mxu0
        %v901 = vadd.f32 %v800, %v887
        %v902 = vadd.f32 %v803, %v890
        %v903 = vadd.f32 %v808, %v895
        %v904 = vadd.f32 %v811, %v898
        %s905 = scalar_lea.vmem %s542, 48 [#allocation2]
        %v906 = vld [vmem:[%s905] sm:$0xf]
        %v907 = vld [vmem:[%s905 + $0x4] sm:$0xf]
        %v908 = vld [vmem:[%s905 + $0x8] sm:$0xf]
        %v909 = vld [vmem:[%s905 + $0xc] sm:$0xf]
        %s910 = scalar_lea.vmem %s1, 48
        %v911 = vld [vmem:[%s910] sm:$0xf]
        %v912 = vld [vmem:[%s910 + $0x4] sm:$0xf]
        %v913 = vld [vmem:[%s910 + $0x8] sm:$0xf]
        %v914 = vld [vmem:[%s910 + $0xc] sm:$0xf]
        %v919 = vunpack.c.l.b16 %v906
        %v920 = vunpack.c.l.b16 %v907
        %v921 = vunpack.c.l.b16 %v908
        %v922 = vunpack.c.l.b16 %v909
        %v923 = vpack.c.b16 %v920, %v919
        %v924 = vpack.c.b16 %v922, %v921
        %v929 = vunpack.c.l.b16 %v911
        %v930 = vunpack.c.l.b16 %v912
        %v931 = vunpack.c.l.b16 %v913
        %v932 = vunpack.c.l.b16 %v914
        %v933 = vpack.c.b16 %v930, %v929
        %v934 = vpack.c.b16 %v932, %v931
        %v938 = vsel %vm681, %v923, 0
        %v941 = vsel %vm681, %v924, 0
        %943 = vmatprep.subr.bf16.mxu0 0
        %944 = vmatpush1.bf16.msra.mxu0 %v933
        %945 = vmatprep.subr.bf16.mxu0 0
        %946 = vmatpush1.bf16.msra.mxu0 %v934
        %947 = vmatprep.subr.bf16.mxu0 0
        %948 = vmatpush1.bf16.msra.mxu0 0
        %949 = vmatprep.subr.bf16.mxu0 0
        %950 = vmatpush1.bf16.msra.mxu0 0
        %951 = vmatprep.subr.bf16.mxu0 0
        %952 = vmatpush1.bf16.msra.mxu0 0
        %953 = vmatprep.subr.bf16.mxu0 0
        %954 = vmatpush1.bf16.msra.mxu0 0
        %955 = vmatprep.subr.bf16.mxu0 0
        %956 = vmatpush1.bf16.msra.mxu0 0
        %957 = vmatprep.subr.bf16.mxu0 0
        %958 = vmatpush1.bf16.msra.mxu0 0
        %959 = vmatprep.subr.bf16.mxu0 0
        %960 = vmatpush1.bf16.msra.mxu0 0
        %961 = vmatprep.subr.bf16.mxu0 0
        %962 = vmatpush1.bf16.msra.mxu0 0
        %963 = vmatprep.subr.bf16.mxu0 0
        %964 = vmatpush1.bf16.msra.mxu0 0
        %965 = vmatprep.subr.bf16.mxu0 0
        %966 = vmatpush1.bf16.msra.mxu0 0
        %967 = vmatprep.subr.bf16.mxu0 0
        %968 = vmatpush1.bf16.msra.mxu0 0
        %969 = vmatprep.subr.bf16.mxu0 0
        %970 = vmatpush1.bf16.msra.mxu0 0
        %971 = vmatprep.subr.bf16.mxu0 0
        %972 = vmatpush1.bf16.msra.mxu0 0
        %973 = vmatprep.subr.bf16.mxu0 0
        %974 = vmatpush1.bf16.msra.mxu0 0
        %975 = vmatprep.mubr.bf16.mxu0 0
        %976 = vmatmul.mubr.bf16.gmra.mrb[0].mxu0 %v938
        %v977 = vpop.f32.mrb[0].mxu0
        %v978 = vadd.f32 0.0, %v977
        %v979 = vpop.f32.mrb[0].mxu0
        %v980 = vpop.f32.mrb[0].mxu0
        %v981 = vadd.f32 0.0, %v980
        %v982 = vpop.f32.mrb[0].mxu0
        %983 = vmatprep.mubr.bf16.mxu0 0
        %984 = vmatmul.mubr.bf16.gmra.mrb[0].mxu0 %v941
        %v985 = vpop.f32.mrb[0].mxu0
        %v986 = vadd.f32 0.0, %v985
        %v987 = vpop.f32.mrb[0].mxu0
        %v988 = vpop.f32.mrb[0].mxu0
        %v989 = vadd.f32 0.0, %v988
        %v990 = vpop.f32.mrb[0].mxu0
        %991 = vdwg.mxu0
        %v992 = vadd.f32 %v901, %v978
        %v993 = vadd.f32 %v902, %v981
        %v994 = vadd.f32 %v903, %v986
        %v995 = vadd.f32 %v904, %v989
        %v996 = vld [vmem:[%s2] sm:$0x1]
        %v998 = vlaneseq
        %v999 = vshrl.u32 %v998, 7
        %v1000 = vsub.s32 0, %v999
        %v1001 = vrot.slane %v996, %v1000
        %v1003 = vadd.f32 %v992, %v1001
        %v1004 = vadd.f32 %v993, %v1001
        %v1005 = vadd.f32 %v994, %v1001
        %v1006 = vadd.f32 %v995, %v1001
        %v1007 = vld [vmem:[%s616] sm:$0xf]
        %v1008 = vld [vmem:[%s616 + $0x4] sm:$0xf]
        %v1009 = vld [vmem:[%s616 + $0x8] sm:$0xf]
        %v1010 = vld [vmem:[%s616 + $0xc] sm:$0xf]
        %v1011 = vunpack.c.l.bf16 %v1007
        %v1012 = vunpack.c.l.bf16 %v1008
        %v1013 = vunpack.c.l.bf16 %v1009
        %v1014 = vunpack.c.l.bf16 %v1010
        %v1015 = vld [vmem:[%s620] sm:$0x1]
        %v1017 = vlaneseq
        %v1018 = vshrl.u32 %v1017, 7
        %v1019 = vsub.s32 0, %v1018
        %v1020 = vrot.slane %v1015, %v1019
        %v1022 = vmul.f32 %v1020, %v1003
        %v1023 = vmul.f32 %v1020, %v1004
        %v1024 = vmul.f32 %v1020, %v1005
        %v1025 = vmul.f32 %v1020, %v1006
        %v1026 = vadd.f32 %v1011, %v1022
        %v1027 = vadd.f32 %v1012, %v1023
        %v1028 = vadd.f32 %v1013, %v1024
        %v1029 = vadd.f32 %v1014, %v1025
        %1030 = vadd.xlane.f32.xlu0 %v1026
        %v1031 = vpop.xlane.xlu0 %1030
        %1032 = vadd.xlane.f32.xlu0 %v1027
        %v1033 = vpop.xlane.xlu0 %1032
        %1034 = vadd.xlane.f32.xlu0 %v1028
        %v1035 = vpop.xlane.xlu0 %1034
        %1036 = vadd.xlane.f32.xlu0 %v1029
        %v1037 = vpop.xlane.xlu0 %1036
        %v1038 = vrcp.pop 128.0
        %v1039 = vmul.f32 %v1031, %v1038
        %v1040 = vmul.f32 %v1033, %v1038
        %v1041 = vmul.f32 %v1035, %v1038
        %v1042 = vmul.f32 %v1037, %v1038
        %v1043 = vsub.f32 %v1026, %v1039
        %v1044 = vsub.f32 %v1027, %v1040
        %v1045 = vsub.f32 %v1028, %v1041
        %v1046 = vsub.f32 %v1029, %v1042
        %v1047 = vmul.f32 %v1043, %v1043
        %v1048 = vmul.f32 %v1044, %v1044
        %v1049 = vmul.f32 %v1045, %v1045
        %v1050 = vmul.f32 %v1046, %v1046
        %1051 = vadd.xlane.f32.xlu0 %v1047
        %v1052 = vpop.xlane.xlu0 %1051
        %1053 = vadd.xlane.f32.xlu0 %v1048
        %v1054 = vpop.xlane.xlu0 %1053
        %1055 = vadd.xlane.f32.xlu0 %v1049
        %v1056 = vpop.xlane.xlu0 %1055
        %1057 = vadd.xlane.f32.xlu0 %v1050
        %v1058 = vpop.xlane.xlu0 %1057
        %v1059 = vmul.f32 %v1052, %v1038
        %v1060 = vmul.f32 %v1054, %v1038
        %v1061 = vmul.f32 %v1056, %v1038
        %v1062 = vmul.f32 %v1058, %v1038
        %v1063 = vadd.f32 %v1059, 1e-06
        %v1064 = vadd.f32 %v1060, 1e-06
        %v1065 = vadd.f32 %v1061, 1e-06
        %v1066 = vadd.f32 %v1062, 1e-06
        %v1067 = vrsqrt.pop %v1063
        %v1068 = vrsqrt.pop %v1064
        %v1069 = vrsqrt.pop %v1065
        %v1070 = vrsqrt.pop %v1066
        %v1071 = vmul.f32 %v1043, %v1067
        %v1072 = vmul.f32 %v1044, %v1068
        %v1073 = vmul.f32 %v1045, %v1069
        %v1074 = vmul.f32 %v1046, %v1070
        %v1075 = vld [vmem:[%s626] sm:$0x1]
        %v1076 = vadd.f32 %v1075, 1.0
        %v1078 = vlaneseq
        %v1079 = vshrl.u32 %v1078, 7
        %v1080 = vsub.s32 0, %v1079
        %v1081 = vrot.slane %v1076, %v1080
        %v1083 = vmul.f32 %v1071, %v1081
        %v1084 = vmul.f32 %v1072, %v1081
        %v1085 = vmul.f32 %v1073, %v1081
        %v1086 = vmul.f32 %v1074, %v1081
        %v1087 = vld [vmem:[%s623] sm:$0x1]
        %v1089 = vlaneseq
        %v1090 = vshrl.u32 %v1089, 7
        %v1091 = vsub.s32 0, %v1090
        %v1092 = vrot.slane %v1087, %v1091
        %v1094 = vadd.f32 %v1083, %v1092
        %v1095 = vadd.f32 %v1084, %v1092
        %v1096 = vadd.f32 %v1085, %v1092
        %v1097 = vadd.f32 %v1086, %v1092
        %v1098 = vpack.c.bf16 %v1095, %v1094
        %v1099 = vpack.c.bf16 %v1097, %v1096
        %v1100 = vld [vmem:[%s8] sm:$0xff]
        %v1101 = vld [vmem:[%s8 + $0x8] sm:$0xff]
        %v1102 = vld [vmem:[%s8 + $0x10] sm:$0xff]
        %v1103 = vld [vmem:[%s8 + $0x18] sm:$0xff]
        %v1104 = vld [vmem:[%s8 + $0x20] sm:$0xff]
        %v1105 = vld [vmem:[%s8 + $0x28] sm:$0xff]
        %v1106 = vld [vmem:[%s8 + $0x30] sm:$0xff]
        %v1107 = vld [vmem:[%s8 + $0x38] sm:$0xff]
        %v1108 = vld [vmem:[%s8 + $0x40] sm:$0xff]
        %v1109 = vld [vmem:[%s8 + $0x48] sm:$0xff]
        %v1110 = vld [vmem:[%s8 + $0x50] sm:$0xff]
        %v1111 = vld [vmem:[%s8 + $0x58] sm:$0xff]
        %v1112 = vld [vmem:[%s8 + $0x60] sm:$0xff]
        %v1113 = vld [vmem:[%s8 + $0x68] sm:$0xff]
        %v1114 = vld [vmem:[%s8 + $0x70] sm:$0xff]
        %v1115 = vld [vmem:[%s8 + $0x78] sm:$0xff]
        %v1116 = vld [vmem:[%s8 + $0x80] sm:$0xff]
        %v1117 = vld [vmem:[%s8 + $0x88] sm:$0xff]
        %v1118 = vld [vmem:[%s8 + $0x90] sm:$0xff]
        %v1119 = vld [vmem:[%s8 + $0x98] sm:$0xff]
        %v1120 = vld [vmem:[%s8 + $0xa0] sm:$0xff]
        %v1121 = vld [vmem:[%s8 + $0xa8] sm:$0xff]
        %v1122 = vld [vmem:[%s8 + $0xb0] sm:$0xff]
        %v1123 = vld [vmem:[%s8 + $0xb8] sm:$0xff]
        %v1124 = vld [vmem:[%s8 + $0xc0] sm:$0xff]
        %v1125 = vld [vmem:[%s8 + $0xc8] sm:$0xff]
        %v1126 = vld [vmem:[%s8 + $0xd0] sm:$0xff]
        %v1127 = vld [vmem:[%s8 + $0xd8] sm:$0xff]
        %v1128 = vld [vmem:[%s8 + $0xe0] sm:$0xff]
        %v1129 = vld [vmem:[%s8 + $0xe8] sm:$0xff]
        %v1130 = vld [vmem:[%s8 + $0xf0] sm:$0xff]
        %v1131 = vld [vmem:[%s8 + $0xf8] sm:$0xff]
        %v1132 = vld [vmem:[%s9] sm:$0xf]
        %v1134 = vlaneseq
        %v1135 = vshrl.u32 %v1134, 7
        %v1136 = vsub.s32 0, %v1135
        %v1137 = vrot.slane %v1132, %v1136
        %v1138 = vlaneseq
        %v1139 = vshrl.u32 %v1138, 7
        %v1140 = vsub.s32 1, %v1139
        %v1141 = vrot.slane %v1132, %v1140
        %v1142 = vlaneseq
        %v1143 = vshrl.u32 %v1142, 7
        %v1144 = vsub.s32 2, %v1143
        %v1145 = vrot.slane %v1132, %v1144
        %v1146 = vlaneseq
        %v1147 = vshrl.u32 %v1146, 7
        %v1148 = vsub.s32 3, %v1147
        %v1149 = vrot.slane %v1132, %v1148
        %v1186 = vunpack.c.l.b16 %v1100
        %v1187 = vunpack.c.h.b16 %v1100
        %v1188 = vunpack.c.l.b16 %v1101
        %v1189 = vunpack.c.h.b16 %v1101
        %v1190 = vunpack.c.l.b16 %v1102
        %v1191 = vunpack.c.h.b16 %v1102
        %v1192 = vunpack.c.l.b16 %v1103
        %v1193 = vunpack.c.h.b16 %v1103
        %v1194 = vunpack.c.l.b16 %v1104
        %v1195 = vunpack.c.h.b16 %v1104
        %v1196 = vunpack.c.l.b16 %v1105
        %v1197 = vunpack.c.h.b16 %v1105
        %v1198 = vunpack.c.l.b16 %v1106
        %v1199 = vunpack.c.h.b16 %v1106
        %v1200 = vunpack.c.l.b16 %v1107
        %v1201 = vunpack.c.h.b16 %v1107
        %v1202 = vunpack.c.l.b16 %v1108
        %v1203 = vunpack.c.h.b16 %v1108
        %v1204 = vunpack.c.l.b16 %v1109
        %v1205 = vunpack.c.h.b16 %v1109
        %v1206 = vunpack.c.l.b16 %v1110
        %v1207 = vunpack.c.h.b16 %v1110
        %v1208 = vunpack.c.l.b16 %v1111
        %v1209 = vunpack.c.h.b16 %v1111
        %v1210 = vunpack.c.l.b16 %v1112
        %v1211 = vunpack.c.h.b16 %v1112
        %v1212 = vunpack.c.l.b16 %v1113
        %v1213 = vunpack.c.h.b16 %v1113
        %v1214 = vunpack.c.l.b16 %v1114
        %v1215 = vunpack.c.h.b16 %v1114
        %v1216 = vunpack.c.l.b16 %v1115
        %v1217 = vunpack.c.h.b16 %v1115
        %v1218 = vunpack.c.l.b16 %v1116
        %v1219 = vunpack.c.h.b16 %v1116
        %v1220 = vunpack.c.l.b16 %v1117
        %v1221 = vunpack.c.h.b16 %v1117
        %v1222 = vunpack.c.l.b16 %v1118
        %v1223 = vunpack.c.h.b16 %v1118
        %v1224 = vunpack.c.l.b16 %v1119
        %v1225 = vunpack.c.h.b16 %v1119
        %v1226 = vunpack.c.l.b16 %v1120
        %v1227 = vunpack.c.h.b16 %v1120
        %v1228 = vunpack.c.l.b16 %v1121
        %v1229 = vunpack.c.h.b16 %v1121
        %v1230 = vunpack.c.l.b16 %v1122
        %v1231 = vunpack.c.h.b16 %v1122
        %v1232 = vunpack.c.l.b16 %v1123
        %v1233 = vunpack.c.h.b16 %v1123
        %v1234 = vunpack.c.l.b16 %v1124
        %v1235 = vunpack.c.h.b16 %v1124
        %v1236 = vunpack.c.l.b16 %v1125
        %v1237 = vunpack.c.h.b16 %v1125
        %v1238 = vunpack.c.l.b16 %v1126
        %v1239 = vunpack.c.h.b16 %v1126
        %v1240 = vunpack.c.l.b16 %v1127
        %v1241 = vunpack.c.h.b16 %v1127
        %v1242 = vunpack.c.l.b16 %v1128
        %v1243 = vunpack.c.h.b16 %v1128
        %v1244 = vunpack.c.l.b16 %v1129
        %v1245 = vunpack.c.h.b16 %v1129
        %v1246 = vunpack.c.l.b16 %v1130
        %v1247 = vunpack.c.h.b16 %v1130
        %v1248 = vunpack.c.l.b16 %v1131
        %v1249 = vunpack.c.h.b16 %v1131
        %v1250 = vpack.c.b16 %v1190, %v1186
        %v1251 = vpack.c.b16 %v1191, %v1187
        %v1252 = vpack.c.b16 %v1192, %v1188
        %v1253 = vpack.c.b16 %v1193, %v1189
        %v1254 = vpack.c.b16 %v1198, %v1194
        %v1255 = vpack.c.b16 %v1199, %v1195
        %v1256 = vpack.c.b16 %v1200, %v1196
        %v1257 = vpack.c.b16 %v1201, %v1197
        %v1258 = vpack.c.b16 %v1206, %v1202
        %v1259 = vpack.c.b16 %v1207, %v1203
        %v1260 = vpack.c.b16 %v1208, %v1204
        %v1261 = vpack.c.b16 %v1209, %v1205
        %v1262 = vpack.c.b16 %v1214, %v1210
        %v1263 = vpack.c.b16 %v1215, %v1211
        %v1264 = vpack.c.b16 %v1216, %v1212
        %v1265 = vpack.c.b16 %v1217, %v1213
        %v1266 = vpack.c.b16 %v1222, %v1218
        %v1267 = vpack.c.b16 %v1223, %v1219
        %v1268 = vpack.c.b16 %v1224, %v1220
        %v1269 = vpack.c.b16 %v1225, %v1221
        %v1270 = vpack.c.b16 %v1230, %v1226
        %v1271 = vpack.c.b16 %v1231, %v1227
        %v1272 = vpack.c.b16 %v1232, %v1228
        %v1273 = vpack.c.b16 %v1233, %v1229
        %v1274 = vpack.c.b16 %v1238, %v1234
        %v1275 = vpack.c.b16 %v1239, %v1235
        %v1276 = vpack.c.b16 %v1240, %v1236
        %v1277 = vpack.c.b16 %v1241, %v1237
        %v1278 = vpack.c.b16 %v1246, %v1242
        %v1279 = vpack.c.b16 %v1247, %v1243
        %v1280 = vpack.c.b16 %v1248, %v1244
        %v1281 = vpack.c.b16 %v1249, %v1245
        %1314 = vmatprep.subr.bf16.mxu0 %v1251
        %1315 = vmatpush1.bf16.msra.mxu0 %v1250
        %1316 = vmatprep.subr.bf16.mxu0 %v1255
        %1317 = vmatpush1.bf16.msra.mxu0 %v1254
        %1318 = vmatprep.subr.bf16.mxu0 %v1259
        %1319 = vmatpush1.bf16.msra.mxu0 %v1258
        %1320 = vmatprep.subr.bf16.mxu0 %v1263
        %1321 = vmatpush1.bf16.msra.mxu0 %v1262
        %1322 = vmatprep.subr.bf16.mxu0 %v1267
        %1323 = vmatpush1.bf16.msra.mxu0 %v1266
        %1324 = vmatprep.subr.bf16.mxu0 %v1271
        %1325 = vmatpush1.bf16.msra.mxu0 %v1270
        %1326 = vmatprep.subr.bf16.mxu0 %v1275
        %1327 = vmatpush1.bf16.msra.mxu0 %v1274
        %1328 = vmatprep.subr.bf16.mxu0 %v1279
        %1329 = vmatpush1.bf16.msra.mxu0 %v1278
        %1330 = vmatprep.subr.bf16.mxu0 0
        %1331 = vmatpush1.bf16.msra.mxu0 0
        %1332 = vmatprep.subr.bf16.mxu0 0
        %1333 = vmatpush1.bf16.msra.mxu0 0
        %1334 = vmatprep.subr.bf16.mxu0 0
        %1335 = vmatpush1.bf16.msra.mxu0 0
        %1336 = vmatprep.subr.bf16.mxu0 0
        %1337 = vmatpush1.bf16.msra.mxu0 0
        %1338 = vmatprep.subr.bf16.mxu0 0
        %1339 = vmatpush1.bf16.msra.mxu0 0
        %1340 = vmatprep.subr.bf16.mxu0 0
        %1341 = vmatpush1.bf16.msra.mxu0 0
        %1342 = vmatprep.subr.bf16.mxu0 0
        %1343 = vmatpush1.bf16.msra.mxu0 0
        %1344 = vmatprep.subr.bf16.mxu0 0
        %1345 = vmatpush1.bf16.msra.mxu0 0
        %1346 = vmatprep.mubr.bf16.mxu0 0
        %1347 = vmatmul.mubr.bf16.gmra.mrb[0].mxu0 %v1098
        %v1348 = vpop.f32.mrb[0].mxu0
        %v1349 = vadd.f32 %v1137, %v1348
        %v1350 = vpop.f32.mrb[0].mxu0
        %v1351 = vadd.f32 %v1141, %v1350
        %v1352 = vpop.f32.mrb[0].mxu0
        %v1353 = vadd.f32 %v1137, %v1352
        %v1354 = vpop.f32.mrb[0].mxu0
        %v1355 = vadd.f32 %v1141, %v1354
        %1356 = vmatprep.mubr.bf16.mxu0 0
        %1357 = vmatmul.mubr.bf16.gmra.mrb[0].mxu0 %v1099
        %v1358 = vpop.f32.mrb[0].mxu0
        %v1359 = vadd.f32 %v1137, %v1358
        %v1360 = vpop.f32.mrb[0].mxu0
        %v1361 = vadd.f32 %v1141, %v1360
        %v1362 = vpop.f32.mrb[0].mxu0
        %v1363 = vadd.f32 %v1137, %v1362
        %v1364 = vpop.f32.mrb[0].mxu0
        %v1365 = vadd.f32 %v1141, %v1364
        %1366 = vdwg.mxu0
        %1367 = vmatprep.subr.bf16.mxu0 %v1253
        %1368 = vmatpush1.bf16.msra.mxu0 %v1252
        %1369 = vmatprep.subr.bf16.mxu0 %v1257
        %1370 = vmatpush1.bf16.msra.mxu0 %v1256
        %1371 = vmatprep.subr.bf16.mxu0 %v1261
        %1372 = vmatpush1.bf16.msra.mxu0 %v1260
        %1373 = vmatprep.subr.bf16.mxu0 %v1265
        %1374 = vmatpush1.bf16.msra.mxu0 %v1264
        %1375 = vmatprep.subr.bf16.mxu0 %v1269
        %1376 = vmatpush1.bf16.msra.mxu0 %v1268
        %1377 = vmatprep.subr.bf16.mxu0 %v1273
        %1378 = vmatpush1.bf16.msra.mxu0 %v1272
        %1379 = vmatprep.subr.bf16.mxu0 %v1277
        %1380 = vmatpush1.bf16.msra.mxu0 %v1276
        %1381 = vmatprep.subr.bf16.mxu0 %v1281
        %1382 = vmatpush1.bf16.msra.mxu0 %v1280
        %1383 = vmatprep.subr.bf16.mxu0 0
        %1384 = vmatpush1.bf16.msra.mxu0 0
        %1385 = vmatprep.subr.bf16.mxu0 0
        %1386 = vmatpush1.bf16.msra.mxu0 0
        %1387 = vmatprep.subr.bf16.mxu0 0
        %1388 = vmatpush1.bf16.msra.mxu0 0
        %1389 = vmatprep.subr.bf16.mxu0 0
        %1390 = vmatpush1.bf16.msra.mxu0 0
        %1391 = vmatprep.subr.bf16.mxu0 0
        %1392 = vmatpush1.bf16.msra.mxu0 0
        %1393 = vmatprep.subr.bf16.mxu0 0
        %1394 = vmatpush1.bf16.msra.mxu0 0
        %1395 = vmatprep.subr.bf16.mxu0 0
        %1396 = vmatpush1.bf16.msra.mxu0 0
        %1397 = vmatprep.subr.bf16.mxu0 0
        %1398 = vmatpush1.bf16.msra.mxu0 0
        %1399 = vmatprep.mubr.bf16.mxu0 0
        %1400 = vmatmul.mubr.bf16.gmra.mrb[0].mxu0 %v1098
        %v1401 = vpop.f32.mrb[0].mxu0
        %v1402 = vadd.f32 %v1145, %v1401
        %v1403 = vpop.f32.mrb[0].mxu0
        %v1404 = vadd.f32 %v1149, %v1403
        %v1405 = vpop.f32.mrb[0].mxu0
        %v1406 = vadd.f32 %v1145, %v1405
        %v1407 = vpop.f32.mrb[0].mxu0
        %v1408 = vadd.f32 %v1149, %v1407
        %1409 = vmatprep.mubr.bf16.mxu0 0
        %1410 = vmatmul.mubr.bf16.gmra.mrb[0].mxu0 %v1099
        %v1411 = vpop.f32.mrb[0].mxu0
        %v1412 = vadd.f32 %v1145, %v1411
        %v1413 = vpop.f32.mrb[0].mxu0
        %v1414 = vadd.f32 %v1149, %v1413
        %v1415 = vpop.f32.mrb[0].mxu0
        %v1416 = vadd.f32 %v1145, %v1415
        %v1417 = vpop.f32.mrb[0].mxu0
        %v1418 = vadd.f32 %v1149, %v1417
        %1419 = vdwg.mxu0
        %v1420 = vmul.f32 %v1349, %v1349
        %v1421 = vmul.f32 %v1351, %v1351
        %v1422 = vmul.f32 %v1402, %v1402
        %v1423 = vmul.f32 %v1404, %v1404
        %v1424 = vmul.f32 %v1353, %v1353
        %v1425 = vmul.f32 %v1355, %v1355
        %v1426 = vmul.f32 %v1406, %v1406
        %v1427 = vmul.f32 %v1408, %v1408
        %v1428 = vmul.f32 %v1359, %v1359
        %v1429 = vmul.f32 %v1361, %v1361
        %v1430 = vmul.f32 %v1412, %v1412
        %v1431 = vmul.f32 %v1414, %v1414
        %v1432 = vmul.f32 %v1363, %v1363
        %v1433 = vmul.f32 %v1365, %v1365
        %v1434 = vmul.f32 %v1416, %v1416
        %v1435 = vmul.f32 %v1418, %v1418
        %v1436 = vmul.f32 %v1349, %v1420
        %v1437 = vmul.f32 %v1351, %v1421
        %v1438 = vmul.f32 %v1402, %v1422
        %v1439 = vmul.f32 %v1404, %v1423
        %v1440 = vmul.f32 %v1353, %v1424
        %v1441 = vmul.f32 %v1355, %v1425
        %v1442 = vmul.f32 %v1406, %v1426
        %v1443 = vmul.f32 %v1408, %v1427
        %v1444 = vmul.f32 %v1359, %v1428
        %v1445 = vmul.f32 %v1361, %v1429
        %v1446 = vmul.f32 %v1412, %v1430
        %v1447 = vmul.f32 %v1414, %v1431
        %v1448 = vmul.f32 %v1363, %v1432
        %v1449 = vmul.f32 %v1365, %v1433
        %v1450 = vmul.f32 %v1416, %v1434
        %v1451 = vmul.f32 %v1418, %v1435
        %v1452 = vmul.f32 %v1436, 0.044715
        %v1453 = vmul.f32 %v1437, 0.044715
        %v1454 = vmul.f32 %v1438, 0.044715
        %v1455 = vmul.f32 %v1439, 0.044715
        %v1456 = vmul.f32 %v1440, 0.044715
        %v1457 = vmul.f32 %v1441, 0.044715
        %v1458 = vmul.f32 %v1442, 0.044715
        %v1459 = vmul.f32 %v1443, 0.044715
        %v1460 = vmul.f32 %v1444, 0.044715
        %v1461 = vmul.f32 %v1445, 0.044715
        %v1462 = vmul.f32 %v1446, 0.044715
        %v1463 = vmul.f32 %v1447, 0.044715
        %v1464 = vmul.f32 %v1448, 0.044715
        %v1465 = vmul.f32 %v1449, 0.044715
        %v1466 = vmul.f32 %v1450, 0.044715
        %v1467 = vmul.f32 %v1451, 0.044715
        %v1468 = vadd.f32 %v1349, %v1452
        %v1469 = vadd.f32 %v1351, %v1453
        %v1470 = vadd.f32 %v1402, %v1454
        %v1471 = vadd.f32 %v1404, %v1455
        %v1472 = vadd.f32 %v1353, %v1456
        %v1473 = vadd.f32 %v1355, %v1457
        %v1474 = vadd.f32 %v1406, %v1458
        %v1475 = vadd.f32 %v1408, %v1459
        %v1476 = vadd.f32 %v1359, %v1460
        %v1477 = vadd.f32 %v1361, %v1461
        %v1478 = vadd.f32 %v1412, %v1462
        %v1479 = vadd.f32 %v1414, %v1463
        %v1480 = vadd.f32 %v1363, %v1464
        %v1481 = vadd.f32 %v1365, %v1465
        %v1482 = vadd.f32 %v1416, %v1466
        %v1483 = vadd.f32 %v1418, %v1467
        %v1484 = vmul.f32 %v1468, 0.7978846
        %v1485 = vmul.f32 %v1469, 0.7978846
        %v1486 = vmul.f32 %v1470, 0.7978846
        %v1487 = vmul.f32 %v1471, 0.7978846
        %v1488 = vmul.f32 %v1472, 0.7978846
        %v1489 = vmul.f32 %v1473, 0.7978846
        %v1490 = vmul.f32 %v1474, 0.7978846
        %v1491 = vmul.f32 %v1475, 0.7978846
        %v1492 = vmul.f32 %v1476, 0.7978846
        %v1493 = vmul.f32 %v1477, 0.7978846
        %v1494 = vmul.f32 %v1478, 0.7978846
        %v1495 = vmul.f32 %v1479, 0.7978846
        %v1496 = vmul.f32 %v1480, 0.7978846
        %v1497 = vmul.f32 %v1481, 0.7978846
        %v1498 = vmul.f32 %v1482, 0.7978846
        %v1499 = vmul.f32 %v1483, 0.7978846
        %v1500 = vtanh.pop %v1484
        %v1501 = vtanh.pop %v1485
        %v1502 = vtanh.pop %v1486
        %v1503 = vtanh.pop %v1487
        %v1504 = vtanh.pop %v1488
        %v1505 = vtanh.pop %v1489
        %v1506 = vtanh.pop %v1490
        %v1507 = vtanh.pop %v1491
        %v1508 = vtanh.pop %v1492
        %v1509 = vtanh.pop %v1493
        %v1510 = vtanh.pop %v1494
        %v1511 = vtanh.pop %v1495
        %v1512 = vtanh.pop %v1496
        %v1513 = vtanh.pop %v1497
        %v1514 = vtanh.pop %v1498
        %v1515 = vtanh.pop %v1499
        %v1516 = vadd.f32 %v1500, 1.0
        %v1517 = vadd.f32 %v1501, 1.0
        %v1518 = vadd.f32 %v1502, 1.0
        %v1519 = vadd.f32 %v1503, 1.0
        %v1520 = vadd.f32 %v1504, 1.0
        %v1521 = vadd.f32 %v1505, 1.0
        %v1522 = vadd.f32 %v1506, 1.0
        %v1523 = vadd.f32 %v1507, 1.0
        %v1524 = vadd.f32 %v1508, 1.0
        %v1525 = vadd.f32 %v1509, 1.0
        %v1526 = vadd.f32 %v1510, 1.0
        %v1527 = vadd.f32 %v1511, 1.0
        %v1528 = vadd.f32 %v1512, 1.0
        %v1529 = vadd.f32 %v1513, 1.0
        %v1530 = vadd.f32 %v1514, 1.0
        %v1531 = vadd.f32 %v1515, 1.0
        %v1532 = vmul.f32 %v1516, 0.5
        %v1533 = vmul.f32 %v1517, 0.5
        %v1534 = vmul.f32 %v1518, 0.5
        %v1535 = vmul.f32 %v1519, 0.5
        %v1536 = vmul.f32 %v1520, 0.5
        %v1537 = vmul.f32 %v1521, 0.5
        %v1538 = vmul.f32 %v1522, 0.5
        %v1539 = vmul.f32 %v1523, 0.5
        %v1540 = vmul.f32 %v1524, 0.5
        %v1541 = vmul.f32 %v1525, 0.5
        %v1542 = vmul.f32 %v1526, 0.5
        %v1543 = vmul.f32 %v1527, 0.5
        %v1544 = vmul.f32 %v1528, 0.5
        %v1545 = vmul.f32 %v1529, 0.5
        %v1546 = vmul.f32 %v1530, 0.5
        %v1547 = vmul.f32 %v1531, 0.5
        %v1548 = vmul.f32 %v1349, %v1532
        %v1549 = vmul.f32 %v1351, %v1533
        %v1550 = vmul.f32 %v1402, %v1534
        %v1551 = vmul.f32 %v1404, %v1535
        %v1552 = vmul.f32 %v1353, %v1536
        %v1553 = vmul.f32 %v1355, %v1537
        %v1554 = vmul.f32 %v1406, %v1538
        %v1555 = vmul.f32 %v1408, %v1539
        %v1556 = vmul.f32 %v1359, %v1540
        %v1557 = vmul.f32 %v1361, %v1541
        %v1558 = vmul.f32 %v1412, %v1542
        %v1559 = vmul.f32 %v1414, %v1543
        %v1560 = vmul.f32 %v1363, %v1544
        %v1561 = vmul.f32 %v1365, %v1545
        %v1562 = vmul.f32 %v1416, %v1546
        %v1563 = vmul.f32 %v1418, %v1547
        %v1564 = vpack.c.bf16 %v1552, %v1548
        %v1565 = vpack.c.bf16 %v1553, %v1549
        %v1566 = vpack.c.bf16 %v1554, %v1550
        %v1567 = vpack.c.bf16 %v1555, %v1551
        %v1568 = vpack.c.bf16 %v1560, %v1556
        %v1569 = vpack.c.bf16 %v1561, %v1557
        %v1570 = vpack.c.bf16 %v1562, %v1558
        %v1571 = vpack.c.bf16 %v1563, %v1559
        %v1572 = vld [vmem:[%s10] sm:$0xf]
        %v1573 = vld [vmem:[%s10 + $0x4] sm:$0xf]
        %v1574 = vld [vmem:[%s10 + $0x8] sm:$0xf]
        %v1575 = vld [vmem:[%s10 + $0xc] sm:$0xf]
        %v1576 = vld [vmem:[%s10 + $0x10] sm:$0xf]
        %v1577 = vld [vmem:[%s10 + $0x14] sm:$0xf]
        %v1578 = vld [vmem:[%s10 + $0x18] sm:$0xf]
        %v1579 = vld [vmem:[%s10 + $0x1c] sm:$0xf]
        %v1580 = vld [vmem:[%s10 + $0x20] sm:$0xf]
        %v1581 = vld [vmem:[%s10 + $0x24] sm:$0xf]
        %v1582 = vld [vmem:[%s10 + $0x28] sm:$0xf]
        %v1583 = vld [vmem:[%s10 + $0x2c] sm:$0xf]
        %v1584 = vld [vmem:[%s10 + $0x30] sm:$0xf]
        %v1585 = vld [vmem:[%s10 + $0x34] sm:$0xf]
        %v1586 = vld [vmem:[%s10 + $0x38] sm:$0xf]
        %v1587 = vld [vmem:[%s10 + $0x3c] sm:$0xf]
        %v1588 = vld [vmem:[%s10 + $0x40] sm:$0xf]
        %v1589 = vld [vmem:[%s10 + $0x44] sm:$0xf]
        %v1590 = vld [vmem:[%s10 + $0x48] sm:$0xf]
        %v1591 = vld [vmem:[%s10 + $0x4c] sm:$0xf]
        %v1592 = vld [vmem:[%s10 + $0x50] sm:$0xf]
        %v1593 = vld [vmem:[%s10 + $0x54] sm:$0xf]
        %v1594 = vld [vmem:[%s10 + $0x58] sm:$0xf]
        %v1595 = vld [vmem:[%s10 + $0x5c] sm:$0xf]
        %v1596 = vld [vmem:[%s10 + $0x60] sm:$0xf]
        %v1597 = vld [vmem:[%s10 + $0x64] sm:$0xf]
        %v1598 = vld [vmem:[%s10 + $0x68] sm:$0xf]
        %v1599 = vld [vmem:[%s10 + $0x6c] sm:$0xf]
        %v1600 = vld [vmem:[%s10 + $0x70] sm:$0xf]
        %v1601 = vld [vmem:[%s10 + $0x74] sm:$0xf]
        %v1602 = vld [vmem:[%s10 + $0x78] sm:$0xf]
        %v1603 = vld [vmem:[%s10 + $0x7c] sm:$0xf]
        %v1604 = vld [vmem:[%s10 + $0x80] sm:$0xf]
        %v1605 = vld [vmem:[%s10 + $0x84] sm:$0xf]
        %v1606 = vld [vmem:[%s10 + $0x88] sm:$0xf]
        %v1607 = vld [vmem:[%s10 + $0x8c] sm:$0xf]
        %v1608 = vld [vmem:[%s10 + $0x90] sm:$0xf]
        %v1609 = vld [vmem:[%s10 + $0x94] sm:$0xf]
        %v1610 = vld [vmem:[%s10 + $0x98] sm:$0xf]
        %v1611 = vld [vmem:[%s10 + $0x9c] sm:$0xf]
        %v1612 = vld [vmem:[%s10 + $0xa0] sm:$0xf]
        %v1613 = vld [vmem:[%s10 + $0xa4] sm:$0xf]
        %v1614 = vld [vmem:[%s10 + $0xa8] sm:$0xf]
        %v1615 = vld [vmem:[%s10 + $0xac] sm:$0xf]
        %v1616 = vld [vmem:[%s10 + $0xb0] sm:$0xf]
        %v1617 = vld [vmem:[%s10 + $0xb4] sm:$0xf]
        %v1618 = vld [vmem:[%s10 + $0xb8] sm:$0xf]
        %v1619 = vld [vmem:[%s10 + $0xbc] sm:$0xf]
        %v1620 = vld [vmem:[%s10 + $0xc0] sm:$0xf]
        %v1621 = vld [vmem:[%s10 + $0xc4] sm:$0xf]
        %v1622 = vld [vmem:[%s10 + $0xc8] sm:$0xf]
        %v1623 = vld [vmem:[%s10 + $0xcc] sm:$0xf]
        %v1624 = vld [vmem:[%s10 + $0xd0] sm:$0xf]
        %v1625 = vld [vmem:[%s10 + $0xd4] sm:$0xf]
        %v1626 = vld [vmem:[%s10 + $0xd8] sm:$0xf]
        %v1627 = vld [vmem:[%s10 + $0xdc] sm:$0xf]
        %v1628 = vld [vmem:[%s10 + $0xe0] sm:$0xf]
        %v1629 = vld [vmem:[%s10 + $0xe4] sm:$0xf]
        %v1630 = vld [vmem:[%s10 + $0xe8] sm:$0xf]
        %v1631 = vld [vmem:[%s10 + $0xec] sm:$0xf]
        %v1632 = vld [vmem:[%s10 + $0xf0] sm:$0xf]
        %v1633 = vld [vmem:[%s10 + $0xf4] sm:$0xf]
        %v1634 = vld [vmem:[%s10 + $0xf8] sm:$0xf]
        %v1635 = vld [vmem:[%s10 + $0xfc] sm:$0xf]
        %v1636 = vld [vmem:[%s11] sm:$0x1]
        %v1638 = vlaneseq
        %v1639 = vshrl.u32 %v1638, 7
        %v1640 = vsub.s32 0, %v1639
        %v1641 = vrot.slane %v1636, %v1640
        %v1707 = vunpack.c.l.b16 %v1572
        %v1708 = vunpack.c.l.b16 %v1573
        %v1709 = vunpack.c.l.b16 %v1574
        %v1710 = vunpack.c.l.b16 %v1575
        %v1711 = vunpack.c.l.b16 %v1576
        %v1712 = vunpack.c.l.b16 %v1577
        %v1713 = vunpack.c.l.b16 %v1578
        %v1714 = vunpack.c.l.b16 %v1579
        %v1715 = vunpack.c.l.b16 %v1580
        %v1716 = vunpack.c.l.b16 %v1581
        %v1717 = vunpack.c.l.b16 %v1582
        %v1718 = vunpack.c.l.b16 %v1583
        %v1719 = vunpack.c.l.b16 %v1584
        %v1720 = vunpack.c.l.b16 %v1585
        %v1721 = vunpack.c.l.b16 %v1586
        %v1722 = vunpack.c.l.b16 %v1587
        %v1723 = vunpack.c.l.b16 %v1588
        %v1724 = vunpack.c.l.b16 %v1589
        %v1725 = vunpack.c.l.b16 %v1590
        %v1726 = vunpack.c.l.b16 %v1591
        %v1727 = vunpack.c.l.b16 %v1592
        %v1728 = vunpack.c.l.b16 %v1593
        %v1729 = vunpack.c.l.b16 %v1594
        %v1730 = vunpack.c.l.b16 %v1595
        %v1731 = vunpack.c.l.b16 %v1596
        %v1732 = vunpack.c.l.b16 %v1597
        %v1733 = vunpack.c.l.b16 %v1598
        %v1734 = vunpack.c.l.b16 %v1599
        %v1735 = vunpack.c.l.b16 %v1600
        %v1736 = vunpack.c.l.b16 %v1601
        %v1737 = vunpack.c.l.b16 %v1602
        %v1738 = vunpack.c.l.b16 %v1603
        %v1739 = vunpack.c.l.b16 %v1604
        %v1740 = vunpack.c.l.b16 %v1605
        %v1741 = vunpack.c.l.b16 %v1606
        %v1742 = vunpack.c.l.b16 %v1607
        %v1743 = vunpack.c.l.b16 %v1608
        %v1744 = vunpack.c.l.b16 %v1609
        %v1745 = vunpack.c.l.b16 %v1610
        %v1746 = vunpack.c.l.b16 %v1611
        %v1747 = vunpack.c.l.b16 %v1612
        %v1748 = vunpack.c.l.b16 %v1613
        %v1749 = vunpack.c.l.b16 %v1614
        %v1750 = vunpack.c.l.b16 %v1615
        %v1751 = vunpack.c.l.b16 %v1616
        %v1752 = vunpack.c.l.b16 %v1617
        %v1753 = vunpack.c.l.b16 %v1618
        %v1754 = vunpack.c.l.b16 %v1619
        %v1755 = vunpack.c.l.b16 %v1620
        %v1756 = vunpack.c.l.b16 %v1621
        %v1757 = vunpack.c.l.b16 %v1622
        %v1758 = vunpack.c.l.b16 %v1623
        %v1759 = vunpack.c.l.b16 %v1624
        %v1760 = vunpack.c.l.b16 %v1625
        %v1761 = vunpack.c.l.b16 %v1626
        %v1762 = vunpack.c.l.b16 %v1627
        %v1763 = vunpack.c.l.b16 %v1628
        %v1764 = vunpack.c.l.b16 %v1629
        %v1765 = vunpack.c.l.b16 %v1630
        %v1766 = vunpack.c.l.b16 %v1631
        %v1767 = vunpack.c.l.b16 %v1632
        %v1768 = vunpack.c.l.b16 %v1633
        %v1769 = vunpack.c.l.b16 %v1634
        %v1770 = vunpack.c.l.b16 %v1635
        %v1771 = vpack.c.b16 %v1708, %v1707
        %v1772 = vpack.c.b16 %v1710, %v1709
        %v1773 = vpack.c.b16 %v1712, %v1711
        %v1774 = vpack.c.b16 %v1714, %v1713
        %v1775 = vpack.c.b16 %v1716, %v1715
        %v1776 = vpack.c.b16 %v1718, %v1717
        %v1777 = vpack.c.b16 %v1720, %v1719
        %v1778 = vpack.c.b16 %v1722, %v1721
        %v1779 = vpack.c.b16 %v1724, %v1723
        %v1780 = vpack.c.b16 %v1726, %v1725
        %v1781 = vpack.c.b16 %v1728, %v1727
        %v1782 = vpack.c.b16 %v1730, %v1729
        %v1783 = vpack.c.b16 %v1732, %v1731
        %v1784 = vpack.c.b16 %v1734, %v1733
        %v1785 = vpack.c.b16 %v1736, %v1735
        %v1786 = vpack.c.b16 %v1738, %v1737
        %v1787 = vpack.c.b16 %v1740, %v1739
        %v1788 = vpack.c.b16 %v1742, %v1741
        %v1789 = vpack.c.b16 %v1744, %v1743
        %v1790 = vpack.c.b16 %v1746, %v1745
        %v1791 = vpack.c.b16 %v1748, %v1747
        %v1792 = vpack.c.b16 %v1750, %v1749
        %v1793 = vpack.c.b16 %v1752, %v1751
        %v1794 = vpack.c.b16 %v1754, %v1753
        %v1795 = vpack.c.b16 %v1756, %v1755
        %v1796 = vpack.c.b16 %v1758, %v1757
        %v1797 = vpack.c.b16 %v1760, %v1759
        %v1798 = vpack.c.b16 %v1762, %v1761
        %v1799 = vpack.c.b16 %v1764, %v1763
        %v1800 = vpack.c.b16 %v1766, %v1765
        %v1801 = vpack.c.b16 %v1768, %v1767
        %v1802 = vpack.c.b16 %v1770, %v1769
        %1835 = vmatprep.subr.bf16.mxu0 0
        %1836 = vmatpush1.bf16.msra.mxu0 %v1771
        %1837 = vmatprep.subr.bf16.mxu0 0
        %1838 = vmatpush1.bf16.msra.mxu0 %v1772
        %1839 = vmatprep.subr.bf16.mxu0 0
        %1840 = vmatpush1.bf16.msra.mxu0 %v1773
        %1841 = vmatprep.subr.bf16.mxu0 0
        %1842 = vmatpush1.bf16.msra.mxu0 %v1774
        %1843 = vmatprep.subr.bf16.mxu0 0
        %1844 = vmatpush1.bf16.msra.mxu0 %v1775
        %1845 = vmatprep.subr.bf16.mxu0 0
        %1846 = vmatpush1.bf16.msra.mxu0 %v1776
        %1847 = vmatprep.subr.bf16.mxu0 0
        %1848 = vmatpush1.bf16.msra.mxu0 %v1777
        %1849 = vmatprep.subr.bf16.mxu0 0
        %1850 = vmatpush1.bf16.msra.mxu0 %v1778
        %1851 = vmatprep.subr.bf16.mxu0 0
        %1852 = vmatpush1.bf16.msra.mxu0 %v1779
        %1853 = vmatprep.subr.bf16.mxu0 0
        %1854 = vmatpush1.bf16.msra.mxu0 %v1780
        %1855 = vmatprep.subr.bf16.mxu0 0
        %1856 = vmatpush1.bf16.msra.mxu0 %v1781
        %1857 = vmatprep.subr.bf16.mxu0 0
        %1858 = vmatpush1.bf16.msra.mxu0 %v1782
        %1859 = vmatprep.subr.bf16.mxu0 0
        %1860 = vmatpush1.bf16.msra.mxu0 %v1783
        %1861 = vmatprep.subr.bf16.mxu0 0
        %1862 = vmatpush1.bf16.msra.mxu0 %v1784
        %1863 = vmatprep.subr.bf16.mxu0 0
        %1864 = vmatpush1.bf16.msra.mxu0 %v1785
        %1865 = vmatprep.subr.bf16.mxu0 0
        %1866 = vmatpush1.bf16.msra.mxu0 %v1786
        %1867 = vmatprep.mubr.bf16.mxu0 %v1565
        %1868 = vmatmul.mubr.bf16.gmra.mrb[0].mxu0 %v1564
        %v1869 = vpop.f32.mrb[0].mxu0
        %v1870 = vadd.f32 %v1641, %v1869
        %v1871 = vpop.f32.mrb[0].mxu0
        %v1872 = vpop.f32.mrb[0].mxu0
        %v1873 = vadd.f32 %v1641, %v1872
        %v1874 = vpop.f32.mrb[0].mxu0
        %1875 = vmatprep.mubr.bf16.mxu0 %v1569
        %1876 = vmatmul.mubr.bf16.gmra.mrb[0].mxu0 %v1568
        %v1877 = vpop.f32.mrb[0].mxu0
        %v1878 = vadd.f32 %v1641, %v1877
        %v1879 = vpop.f32.mrb[0].mxu0
        %v1880 = vpop.f32.mrb[0].mxu0
        %v1881 = vadd.f32 %v1641, %v1880
        %v1882 = vpop.f32.mrb[0].mxu0
        %1883 = vdwg.mxu0
        %1884 = vmatprep.subr.bf16.mxu0 0
        %1885 = vmatpush1.bf16.msra.mxu0 %v1787
        %1886 = vmatprep.subr.bf16.mxu0 0
        %1887 = vmatpush1.bf16.msra.mxu0 %v1788
        %1888 = vmatprep.subr.bf16.mxu0 0
        %1889 = vmatpush1.bf16.msra.mxu0 %v1789
        %1890 = vmatprep.subr.bf16.mxu0 0
        %1891 = vmatpush1.bf16.msra.mxu0 %v1790
        %1892 = vmatprep.subr.bf16.mxu0 0
        %1893 = vmatpush1.bf16.msra.mxu0 %v1791
        %1894 = vmatprep.subr.bf16.mxu0 0
        %1895 = vmatpush1.bf16.msra.mxu0 %v1792
        %1896 = vmatprep.subr.bf16.mxu0 0
        %1897 = vmatpush1.bf16.msra.mxu0 %v1793
        %1898 = vmatprep.subr.bf16.mxu0 0
        %1899 = vmatpush1.bf16.msra.mxu0 %v1794
        %1900 = vmatprep.subr.bf16.mxu0 0
        %1901 = vmatpush1.bf16.msra.mxu0 %v1795
        %1902 = vmatprep.subr.bf16.mxu0 0
        %1903 = vmatpush1.bf16.msra.mxu0 %v1796
        %1904 = vmatprep.subr.bf16.mxu0 0
        %1905 = vmatpush1.bf16.msra.mxu0 %v1797
        %1906 = vmatprep.subr.bf16.mxu0 0
        %1907 = vmatpush1.bf16.msra.mxu0 %v1798
        %1908 = vmatprep.subr.bf16.mxu0 0
        %1909 = vmatpush1.bf16.msra.mxu0 %v1799
        %1910 = vmatprep.subr.bf16.mxu0 0
        %1911 = vmatpush1.bf16.msra.mxu0 %v1800
        %1912 = vmatprep.subr.bf16.mxu0 0
        %1913 = vmatpush1.bf16.msra.mxu0 %v1801
        %1914 = vmatprep.subr.bf16.mxu0 0
        %1915 = vmatpush1.bf16.msra.mxu0 %v1802
        %1916 = vmatprep.mubr.bf16.mxu0 %v1567
        %1917 = vmatmul.mubr.bf16.gmra.mrb[0].mxu0 %v1566
        %v1918 = vpop.f32.mrb[0].mxu0
        %v1919 = vadd.f32 %v1870, %v1918
        %v1920 = vpop.f32.mrb[0].mxu0
        %v1921 = vpop.f32.mrb[0].mxu0
        %v1922 = vadd.f32 %v1873, %v1921
        %v1923 = vpop.f32.mrb[0].mxu0
        %1924 = vmatprep.mubr.bf16.mxu0 %v1571
        %1925 = vmatmul.mubr.bf16.gmra.mrb[0].mxu0 %v1570
        %v1926 = vpop.f32.mrb[0].mxu0
        %v1927 = vadd.f32 %v1878, %v1926
        %v1928 = vpop.f32.mrb[0].mxu0
        %v1929 = vpop.f32.mrb[0].mxu0
        %v1930 = vadd.f32 %v1881, %v1929
        %v1931 = vpop.f32.mrb[0].mxu0
        %1932 = vdwg.mxu0
        %v1933 = vld [vmem:[%s629] sm:$0x1]
        %v1935 = vlaneseq
        %v1936 = vshrl.u32 %v1935, 7
        %v1937 = vsub.s32 0, %v1936
        %v1938 = vrot.slane %v1933, %v1937
        %v1940 = vmul.f32 %v1938, %v1919
        %v1941 = vmul.f32 %v1938, %v1922
        %v1942 = vmul.f32 %v1938, %v1927
        %v1943 = vmul.f32 %v1938, %v1930
        %v1944 = vadd.f32 %v1026, %v1940
        %v1945 = vadd.f32 %v1027, %v1941
        %v1946 = vadd.f32 %v1028, %v1942
        %v1947 = vadd.f32 %v1029, %v1943
        %v1948 = vpack.c.bf16 %v1945, %v1944
        %v1949 = vpack.c.bf16 %v1947, %v1946
        %v1952 = vunpack.c.l.b16 %v1948
        %v1953 = vunpack.c.h.b16 %v1948
        %v1954 = vunpack.c.l.b16 %v1949
        %v1955 = vunpack.c.h.b16 %v1949
        %v1956 = vpack.c.b16 %v1952, %v1952
        %v1957 = vpack.c.b16 %v1953, %v1953
        %v1958 = vpack.c.b16 %v1954, %v1954
        %v1959 = vpack.c.b16 %v1955, %v1955
        %1964 = vst [vmem:[%s638] sm:$0xf] %v1956
        %1965 = vst [vmem:[%s638 + $0x4] sm:$0xf] %v1957
        %1966 = vst [vmem:[%s638 + $0x8] sm:$0xf] %v1958
        %1967 = vst [vmem:[%s638 + $0xc] sm:$0xf] %v1959
        %s1968 = smul.u32 4, %s28
        %p1969 = scmp.lt.s32.totalorder %s27, 1
        %s1970 = scalar_select %p1969, %s27, 1
        %p1971 = scmp.lt.s32.totalorder %s1968, 3
        %s1972 = scalar_select %p1971, %s1968, 3
        %s1973 = smul.addr %s1970, 4
        %s1974 = sadd.s32 %s1972, %s1973
        %s1975 = smul.addr %s1974, 4
        %s1976 = scalar_lea.vmem %s12, %s1975
        // Predicated region
        $region110: #{lavindit_forward.18} parent=104 // pred_check
          %p1977 = pneg %p343
        $region111: #{lavindit_forward.18} parent=104 // pred_check_branch
          %1979 = sbr.rel (%p1977) target = $region113
        $region112: #{lavindit_forward.18} parent=104 // pred_region
          %s1980 = smul.u32 4, %s28
        $region113: #{lavindit_forward.18} parent=104 // pred_fallthru
          _
      $region105: #{lavindit_forward.18} parent=5 // pred_fallthru
        _
      %p1981 = scmp.le.s32.totalorder 2, %s18
      // Predicated region
      $region114: #{lavindit_forward.18} parent=5 // pred_check
        %p1982 = pneg %p1981
      $region115: #{lavindit_forward.18} parent=5 // pred_check_branch
        %1984 = sbr.rel (%p1982) target = $region117
      $region116: #{lavindit_forward.18} parent=5 // pred_region
        %s1985 = ssub.s32 %s18, 2
        // Predicated region
        $region118: #{lavindit_forward.18} parent=116 // pred_check
          %p1986 = pneg %p349
        $region119: #{lavindit_forward.18} parent=116 // pred_check_branch
          %1988 = sbr.rel (%p1986) target = $region121
        $region120: #{lavindit_forward.18} parent=116 // pred_region
          %s1989 = smul.u32 4, %s30
          %p1990 = scmp.lt.s32.totalorder %s29, 1
          %s1991 = scalar_select %p1990, %s29, 1
          %p1992 = scmp.lt.s32.totalorder %s1989, 3
          %s1993 = scalar_select %p1992, %s1989, 3
          %s1994 = smul.addr %s1991, 4
          %s1995 = sadd.s32 %s1993, %s1994
          %s1996 = smul.addr %s1995, 4
          %s1997 = scalar_lea.vmem %s12, %s1996
        $region121: #{lavindit_forward.18} parent=116 // pred_fallthru
          _
      $region117: #{lavindit_forward.18} parent=5 // pred_fallthru
        _
    $region6: #{lavindit_forward.18} parent=1 // loop_footer
      %s22 = sadd.s32 1, %s18
    $region7: #{lavindit_forward.18} parent=1 // loop_footer_branch
      %17 = sbr.rel target = $region3
    $region8: #{lavindit_forward.18} parent=1 // loop_exit
      _

</llo_original>
